<compile_context>
chip_gen: v6e
topology: v6e:2x2x1
jax: 0.10.0
libtpu: 0.0.40
codegen_flags: <defaults>
</compile_context>

<pallas_src>
import jax
import jax.numpy as jnp
import numpy as np
from jax import lax
from jax.experimental import pallas as pl
from jax.experimental.pallas import tpu as pltpu

_NEG_BIG = -1e30     # bias for padded class lanes: exp() underflows to exactly 0
_OC2_PAD = 24        # conv2: pad 20 -> 24 output channels (lane-friendly packing)
_ROW_PITCH = 128     # lane pitch of one pooled output row inside a1 / a2


# ------------------------------ Pallas kernel -------------------------------

def _conv_pool_relu_banded(x, taps_ref, b_ref):
    """conv2d(5x5,'valid') + 2x2 max-pool + ReLU via banded tap matmuls.

    taps_ref: (4, Kblk, Nblk) bf16 -- one dense matrix per 2x2 pooling tap,
    shared by every pooled row-pair block (translation invariance).  Block r
    reads input columns [r*Kblk/2, r*Kblk/2 + Kblk) (8 input rows) and yields
    Nblk pooled outputs (2 pooled rows, lane pitch _ROW_PITCH per row).

    NOTE: the conv bias is identical for all 4 pooling taps of a given output,
    so it is added AFTER the running max.  Do not break this invariant when
    re-lowering (e.g. per-tap scales for fp8 quantization).
    """
    k_blk = taps_ref.shape[1]
    stride = k_blk // 2                      # 4 input rows per block step
    assert (x.shape[1] - k_blk) % stride == 0
    n_blocks = (x.shape[1] - k_blk) // stride + 1
    taps = [taps_ref[t] for t in range(4)]   # hoist the 4 tap loads
    bias = b_ref[...]
    out = []
    for r in range(n_blocks):                # static, fully unrolled loop
        xr = x[:, r * stride: r * stride + k_blk]
        s = jnp.dot(xr, taps[0], preferred_element_type=jnp.float32)
        for t in range(1, 4):
            s = jnp.maximum(s, jnp.dot(xr, taps[t],
                                       preferred_element_type=jnp.float32))
        # Fused per-block epilogue: max -> +bias -> relu -> bf16 (item 7).
        out.append(jnp.maximum(s + bias, 0.0).astype(jnp.bfloat16))
    return jnp.concatenate(out, axis=-1)     # 256-lane aligned pieces


def _mnist_fused_kernel(x_ref, t1_ref, b1_ref, t2_ref, b2_ref,
                        w3_ref, b3_ref, w4_ref, b4_ref, o_ref):
    """Whole MNistNet forward for one batch tile, entirely in VMEM.

    x:  (TB, 784)       f32   flattened 28x28 image (bf16 cast happens here)
    t1: (4, 224, 256)   bf16  conv1 band taps (8 rows in -> 2 pooled rows out)
    b1: (1, 256)        f32
    t2: (4, 1024, 256)  bf16  conv2 band taps (oc padded 20->24)
    b2: (1, 256)        f32
    w3: (512, 128)      bf16  fc1 (rows follow a2's (h, row-pitch-128) layout)
    b3: (1, 128)        f32
    w4: (128, 128)      bf16  fc2 (50->128 rows, 10->128 class lanes)
    b4: (1, 128)        f32   -1e30 on padded class lanes
    o:  (TB, 128)       f32   log_softmax; first 10 lanes are the real classes
    """
    # In-kernel bf16 cast (item 6): free VPU work hidden under the MXU.
    x = x_ref[...].astype(jnp.bfloat16)                            # (TB, 784)

    # conv1 -> max_pool(2) -> relu : 6 row-pair blocks x 4 tap matmuls.
    a1 = _conv_pool_relu_banded(x, t1_ref, b1_ref)                 # (TB, 1536)
    # conv2 -> max_pool(2) -> relu (conv2_drop is identity in eval mode).
    a2 = _conv_pool_relu_banded(a1, t2_ref, b2_ref)                # (TB, 512)

    # fc1 + relu   (F.dropout is identity in eval mode).
    h = jnp.dot(a2, w3_ref[...], preferred_element_type=jnp.float32) + b3_ref[...]
    h = jnp.maximum(h, 0.0).astype(jnp.bfloat16)                   # (TB, 128)

    # fc2 + log_softmax over the 128 (padded) class lanes -- f32 epilogue.
    logits = jnp.dot(h, w4_ref[...], preferred_element_type=jnp.float32) + b4_ref[...]
    m = jnp.max(logits, axis=-1, keepdims=True)
    shifted = logits - m
    lse = jnp.log(jnp.sum(jnp.exp(shifted), axis=-1, keepdims=True))
    o_ref[...] = shifted - lse


# ----------------------------- pallas_call glue ------------------------------

def _const_spec(arr):
    """Resident weight: full-array block, constant index -> DMA'd once."""
    zeros = (0,) * arr.ndim
    return pl.BlockSpec(arr.shape, lambda b, _z=zeros: _z)


def _mnist_fused_call(x2d, p, tile_b):
    bp, n_feat = x2d.shape
    weights = (p["t1"], p["b1"], p["t2"], p["b2"],
               p["w3"], p["b3"], p["w4"], p["b4"])
    return pl.pallas_call(
        _mnist_fused_kernel,
        out_shape=jax.ShapeDtypeStruct((bp, 128), jnp.float32),
        grid=(bp // tile_b,),
        in_specs=[pl.BlockSpec((tile_b, n_feat), lambda b: (b, 0))]
                 + [_const_spec(w) for w in weights],
        out_specs=pl.BlockSpec((tile_b, 128), lambda b: (b, 0)),
        compiler_params=pltpu.CompilerParams(
            dimension_semantics=("parallel",),   # megacore split on v7x
            # ~2.6 MiB weights (+ double buffers) + a few MiB of per-tile
            # activations -- 32 MiB is comfortable on v5e/v6e/v7x.
            vmem_limit_bytes=32 * 1024 * 1024,
        ),
    )(x2d, *weights)


# --------------------------- one-time weight prep ----------------------------

def _conv_pool_band_taps(w, bias, h_in, w_in, *, in_pitch=None, out_pitch=None,
                         oc_pad=None):
    """Lower conv2d(k=5,'valid') + max_pool2d(2) to 4 banded tap matrices.

    The pooled output is computed in row-pair blocks (pooled rows 2r, 2r+1);
    each block reads 8 consecutive input rows.  Because the convolution is
    translation invariant, every block uses the SAME four matrices:
        block_r_tap[d] = x[:, 4r*in_pitch : 4r*in_pitch + 8*in_pitch] @ T[d]
        block_r        = relu(max_d block_r_tap[d] + bias_block)
    Rows of T index (local_input_row, col, ic) with row pitch `in_pitch`;
    columns index (local_pooled_row, pw, oc_pad) with row pitch `out_pitch`
    (padding lanes stay zero so downstream layers can treat them as padding).
    The bias is tap-invariant, hence added after the pooling max.
    """
    w = np.asarray(w, np.float32)                     # (OC, IC, KH, KW)
    bias = np.asarray(bias, np.float32)
    oc, ic, kh_n, kw_n = w.shape
    oc_p = oc_pad or oc
    oh, ow = h_in - kh_n + 1, w_in - kw_n + 1
    assert oh % 2 == 0 and ow % 2 == 0
    ph_n, pw_n = oh // 2, ow // 2
    assert ph_n % 2 == 0, "row-pair banding needs an even number of pooled rows"
    in_p = in_pitch or (w_in * ic)
    out_p = out_pitch or (pw_n * oc_p)
    assert in_p >= w_in * ic and out_p >= pw_n * oc_p
    k_blk, n_blk = 8 * in_p, 2 * out_p
    taps = np.zeros((4, k_blk, n_blk), np.float32)
    for t, (di, dj) in enumerate(((0, 0), (0, 1), (1, 0), (1, 1))):
        for ph_l in range(2):                         # pooled row within pair
            for pw in range(pw_n):
                col = ph_l * out_p + pw * oc_p
                for kh in range(kh_n):
                    lrow = 2 * ph_l + di + kh         # local input row, 0..7
                    for kw in range(kw_n):
                        r0 = lrow * in_p + (2 * pw + dj + kw) * ic
                        taps[t, r0:r0 + ic, col:col + oc] = w[:, :, kh, kw].T
    row_bias = np.zeros((out_p,), np.float32)
    row_bias[: pw_n * oc_p] = np.tile(np.pad(bias, (0, oc_p - oc)), pw_n)
    b_blk = np.tile(row_bias, 2)[None, :]
    return taps, b_blk


def prepare_params(params):
    """Host-side weight packing, hoisted out of the per-forward path."""
    t1, b1 = _conv_pool_band_taps(params["conv1_w"], params["conv1_b"],
                                  28, 28, out_pitch=_ROW_PITCH)
    t2, b2 = _conv_pool_band_taps(params["conv2_w"], params["conv2_b"],
                                  12, 12, in_pitch=_ROW_PITCH,
                                  out_pitch=_ROW_PITCH, oc_pad=_OC2_PAD)
    assert t1.shape == (4, 8 * 28, 2 * _ROW_PITCH), t1.shape
    assert t2.shape == (4, 8 * _ROW_PITCH, 2 * _ROW_PITCH), t2.shape

    # fc1: PyTorch's x.view(-1, 320) flattens (c, h, w); the kernel's a2 layout
    # is (h, [w, c_pad] padded to a 128-lane row) -> permute + zero-pad once,
    # pad 50 -> 128 output lanes, transpose for right-multiplication.
    fc1_w = np.asarray(params["fc1_w"], np.float32).reshape(50, 20, 4, 4)
    fc1_hwc = np.zeros((50, 4, 4, _OC2_PAD), np.float32)
    fc1_hwc[..., :20] = fc1_w.transpose(0, 2, 3, 1)               # (out, h, w, c)
    fc1_rows = np.zeros((50, 4, _ROW_PITCH), np.float32)
    fc1_rows[:, :, :4 * _OC2_PAD] = fc1_hwc.reshape(50, 4, 4 * _OC2_PAD)
    w3 = np.zeros((4 * _ROW_PITCH, 128), np.float32)
    w3[:, :50] = fc1_rows.reshape(50, 4 * _ROW_PITCH).T
    b3 = np.zeros((1, 128), np.float32)
    b3[0, :50] = np.asarray(params["fc1_b"], np.float32)

    # fc2: pad 50->128 rows and 10->128 class lanes; padded classes get -1e30
    # bias so they contribute exactly 0 probability inside log_softmax.
    w4 = np.zeros((128, 128), np.float32)
    w4[:50, :10] = np.asarray(params["fc2_w"], np.float32).T
    b4 = np.full((1, 128), _NEG_BIG, np.float32)
    b4[0, :10] = np.asarray(params["fc2_b"], np.float32)

    # TODO(synk): optional v7x-only fp8 quantization of t1/t2 (with per-matrix
    # scales folded into the epilogue) is not implemented; bf16 everywhere.
    return {
        "t1": jnp.asarray(t1, jnp.bfloat16), "b1": jnp.asarray(b1, jnp.float32),
        "t2": jnp.asarray(t2, jnp.bfloat16), "b2": jnp.asarray(b2, jnp.float32),
        "w3": jnp.asarray(w3, jnp.bfloat16), "b3": jnp.asarray(b3, jnp.float32),
        "w4": jnp.asarray(w4, jnp.bfloat16), "b4": jnp.asarray(b4, jnp.float32),
    }


# -------------------------------- forward pass -------------------------------

def _round_up(n, m):
    return ((n + m - 1) // m) * m


def _tile_policy():
    """(max batch tile, min grid steps) for the local TPU generation."""
    kind = ""
    try:
        kind = jax.devices()[0].device_kind.lower()
    except Exception:
        pass
    if "v5" in kind:
        return 128, 1          # v5e/v5p: 128x128 MXUs -> M=128 already fills them
    if "v7" in kind or "tpu7" in kind:
        return 256, 2          # v7x: 256x256 MXU, 2 TCs -> want >= 2 grid steps
    return 256, 1              # v6e / default: 256x256 MXU, single TensorCore


def mnist_net_forward(x_nchw, prepped, *, tile_b=None):
    """MNistNet forward (eval semantics: both dropout layers are identity)."""
    # TODO(synk): training-mode dropout RNG (pltpu.prng_*) not implemented.
    b = x_nchw.shape[0]
    x2d = x_nchw.reshape(b, 28 * 28)            # stays f32; bf16 cast in-kernel
    if tile_b is None:
        tb_max, min_steps = _tile_policy()
    else:
        tb_max, min_steps = int(tile_b), 1
    bp8 = _round_up(b, 8)
    tb = max(8, _round_up(min(tb_max, bp8), 8))
    if bp8 // tb < min_steps:                   # keep both v7x TensorCores busy
        tb = max(8, _round_up((bp8 + min_steps - 1) // min_steps, 8))
    bp = _round_up(b, tb)
    if bp != b:
        # TODO(synk): sizing the last tile would avoid this whole-input copy.
        x2d = jnp.pad(x2d, ((0, bp - b), (0, 0)))
    out = _mnist_fused_call(x2d, prepped, tb)   # (bp, 128) f32
    return out[:b, :10]


# ------------------------------ pure-JAX reference ---------------------------

def _reference_forward(x_nchw, params):
    def conv(x, w, bias):
        y = lax.conv_general_dilated(x, w, (1, 1), "VALID",
                                     dimension_numbers=("NCHW", "OIHW", "NCHW"))
        return y + bias.reshape(1, -1, 1, 1)

    def pool(x):
        return lax.reduce_window(x, -jnp.inf, lax.max,
                                 (1, 1, 2, 2), (1, 1, 2, 2), "VALID")

    x = jnp.maximum(pool(conv(x_nchw, params["conv1_w"], params["conv1_b"])), 0.0)
    x = jnp.maximum(pool(conv(x, params["conv2_w"], params["conv2_b"])), 0.0)
    x = x.reshape(x.shape[0], 320)
    h = jnp.maximum(x @ params["fc1_w"].T + params["fc1_b"], 0.0)
    logits = h @ params["fc2_w"].T + params["fc2_b"]
    return jax.nn.log_softmax(logits, axis=-1)


# -------------------------------- parameter init -----------------------------

def init_params(key):
    """Deterministic PyTorch-default-style init (uniform +/- 1/sqrt(fan_in))."""
    def u(k, shape, fan_in):
        bound = 1.0 / (fan_in ** 0.5)
        return jax.random.uniform(k, shape, jnp.float32, -bound, bound)

    ks = jax.random.split(key, 8)
    return {
        "conv1_w": u(ks[0], (10, 1, 5, 5), 1 * 5 * 5),
        "conv1_b": u(ks[1], (10,), 1 * 5 * 5),
        "conv2_w": u(ks[2], (20, 10, 5, 5), 10 * 5 * 5),
        "conv2_b": u(ks[3], (20,), 10 * 5 * 5),
        "fc1_w":   u(ks[4], (50, 320), 320),
        "fc1_b":   u(ks[5], (50,), 320),
        "fc2_w":   u(ks[6], (10, 50), 50),
        "fc2_b":   u(ks[7], (10,), 50),
    }


if __name__ == "__main__":
    key = jax.random.PRNGKey(0)
    pkey, xkey = jax.random.split(key)
    params = init_params(pkey)
    prepped = prepare_params(params)

    # MNIST-shaped input: fc1's in_features=320 pins the spatial size to 28x28.
    x = jax.random.normal(xkey, (2, 1, 28, 28), jnp.float32)

    fwd = jax.jit(mnist_net_forward)
    out = jax.block_until_ready(fwd(x, prepped))
    assert out.shape == (2, 10), out.shape
    assert bool(jnp.all(jnp.isfinite(out))), "non-finite output"
    row_sums = jnp.exp(out).sum(axis=-1)
    assert bool(jnp.all(jnp.abs(row_sums - 1.0) < 1e-3)), row_sums
    ref = _reference_forward(x, params)
    assert bool(jnp.max(jnp.abs(out - ref)) < 5e-2), "mismatch vs reference"

    # Exercise a multi-step batch-tiled grid (20 rows padded to 24 = 3 tiles of 8).
    x_big = jax.random.normal(jax.random.PRNGKey(1), (20, 1, 28, 28), jnp.float32)
    out_big = jax.block_until_ready(mnist_net_forward(x_big, prepped, tile_b=8))
    ref_big = _reference_forward(x_big, params)
    assert out_big.shape == (20, 10), out_big.shape
    assert bool(jnp.max(jnp.abs(out_big - ref_big)) < 5e-2), "mismatch (tiled grid)"

    print("KERNEL_OK")
</pallas_src>

<mosaic_0001>
module attributes {stable_mosaic.version = 11 : i64} {
  func.func @_mnist_fused_kernel(%arg0: i32, %arg1: memref<8x784xf32, #tpu.memory_space<vmem>>, %arg2: memref<4x224x256xbf16, #tpu.memory_space<vmem>>, %arg3: memref<1x256xf32, #tpu.memory_space<vmem>>, %arg4: memref<4x1024x256xbf16, #tpu.memory_space<vmem>>, %arg5: memref<1x256xf32, #tpu.memory_space<vmem>>, %arg6: memref<512x128xbf16, #tpu.memory_space<vmem>>, %arg7: memref<1x128xf32, #tpu.memory_space<vmem>>, %arg8: memref<128x128xbf16, #tpu.memory_space<vmem>>, %arg9: memref<1x128xf32, #tpu.memory_space<vmem>>, %arg10: memref<8x128xf32, #tpu.memory_space<vmem>>) attributes {dimension_semantics = [#tpu.dimension_semantics<parallel>], iteration_bounds = array<i64: 1>, scalar_prefetch = 0 : i64, scratch_operands = 0 : i64, tpu.core_type = #tpu.core_type<tc>, window_params = [{transform_indices = @transform_0, window_bounds = array<i64: 8, 784>}, {pipeline_mode = #tpu.pipeline_mode<synchronous>, transform_indices = @transform_1, window_bounds = array<i64: 4, 224, 256>}, {pipeline_mode = #tpu.pipeline_mode<synchronous>, transform_indices = @transform_2, window_bounds = array<i64: 1, 256>}, {pipeline_mode = #tpu.pipeline_mode<synchronous>, transform_indices = @transform_3, window_bounds = array<i64: 4, 1024, 256>}, {pipeline_mode = #tpu.pipeline_mode<synchronous>, transform_indices = @transform_4, window_bounds = array<i64: 1, 256>}, {pipeline_mode = #tpu.pipeline_mode<synchronous>, transform_indices = @transform_5, window_bounds = array<i64: 512, 128>}, {pipeline_mode = #tpu.pipeline_mode<synchronous>, transform_indices = @transform_6, window_bounds = array<i64: 1, 128>}, {pipeline_mode = #tpu.pipeline_mode<synchronous>, transform_indices = @transform_7, window_bounds = array<i64: 128, 128>}, {pipeline_mode = #tpu.pipeline_mode<synchronous>, transform_indices = @transform_8, window_bounds = array<i64: 1, 128>}, {transform_indices = @transform_9, window_bounds = array<i64: 8, 128>}]} {
    %c0 = arith.constant 0 : index
    %c0_0 = arith.constant 0 : index
    %0 = vector.load %arg1[%c0, %c0_0] : memref<8x784xf32, #tpu.memory_space<vmem>>, vector<8x784xf32>
    %1 = arith.truncf %0 : vector<8x784xf32> to vector<8x784xbf16>
    %c0_1 = arith.constant 0 : index
    %c0_2 = arith.constant 0 : index
    %c0_3 = arith.constant 0 : index
    %2 = vector.load %arg2[%c0_1, %c0_2, %c0_3] : memref<4x224x256xbf16, #tpu.memory_space<vmem>>, vector<1x224x256xbf16>
    %3 = vector.shape_cast %2 : vector<1x224x256xbf16> to vector<224x256xbf16>
    %c1 = arith.constant 1 : index
    %c0_4 = arith.constant 0 : index
    %c0_5 = arith.constant 0 : index
    %4 = vector.load %arg2[%c1, %c0_4, %c0_5] : memref<4x224x256xbf16, #tpu.memory_space<vmem>>, vector<1x224x256xbf16>
    %5 = vector.shape_cast %4 : vector<1x224x256xbf16> to vector<224x256xbf16>
    %c2 = arith.constant 2 : index
    %c0_6 = arith.constant 0 : index
    %c0_7 = arith.constant 0 : index
    %6 = vector.load %arg2[%c2, %c0_6, %c0_7] : memref<4x224x256xbf16, #tpu.memory_space<vmem>>, vector<1x224x256xbf16>
    %7 = vector.shape_cast %6 : vector<1x224x256xbf16> to vector<224x256xbf16>
    %c3 = arith.constant 3 : index
    %c0_8 = arith.constant 0 : index
    %c0_9 = arith.constant 0 : index
    %8 = vector.load %arg2[%c3, %c0_8, %c0_9] : memref<4x224x256xbf16, #tpu.memory_space<vmem>>, vector<1x224x256xbf16>
    %9 = vector.shape_cast %8 : vector<1x224x256xbf16> to vector<224x256xbf16>
    %c0_10 = arith.constant 0 : index
    %c0_11 = arith.constant 0 : index
    %10 = vector.load %arg3[%c0_10, %c0_11] : memref<1x256xf32, #tpu.memory_space<vmem>>, vector<1x256xf32>
    %11 = vector.extract_strided_slice %1 {offsets = [0, 0], sizes = [8, 224], strides = [1, 1]} : vector<8x784xbf16> to vector<8x224xbf16>
    %cst = arith.constant dense<0.000000e+00> : vector<8x256xf32>
    %12 = tpu.matmul %11, %3, %cst {dimension_numbers = #tpu.dot_dimension_numbers<[1], [0], [0], [1], [0, 0, 1, 1], [], []>} : vector<8x224xbf16>, vector<224x256xbf16>, vector<8x256xf32> -> vector<8x256xf32>
    %cst_12 = arith.constant dense<0.000000e+00> : vector<8x256xf32>
    %13 = tpu.matmul %11, %5, %cst_12 {dimension_numbers = #tpu.dot_dimension_numbers<[1], [0], [0], [1], [0, 0, 1, 1], [], []>} : vector<8x224xbf16>, vector<224x256xbf16>, vector<8x256xf32> -> vector<8x256xf32>
    %14 = arith.maximumf %12, %13 : vector<8x256xf32>
    %cst_13 = arith.constant dense<0.000000e+00> : vector<8x256xf32>
    %15 = tpu.matmul %11, %7, %cst_13 {dimension_numbers = #tpu.dot_dimension_numbers<[1], [0], [0], [1], [0, 0, 1, 1], [], []>} : vector<8x224xbf16>, vector<224x256xbf16>, vector<8x256xf32> -> vector<8x256xf32>
    %16 = arith.maximumf %14, %15 : vector<8x256xf32>
    %cst_14 = arith.constant dense<0.000000e+00> : vector<8x256xf32>
    %17 = tpu.matmul %11, %9, %cst_14 {dimension_numbers = #tpu.dot_dimension_numbers<[1], [0], [0], [1], [0, 0, 1, 1], [], []>} : vector<8x224xbf16>, vector<224x256xbf16>, vector<8x256xf32> -> vector<8x256xf32>
    %18 = arith.maximumf %16, %17 : vector<8x256xf32>
    %19 = vector.broadcast %10 : vector<1x256xf32> to vector<8x256xf32>
    %20 = arith.addf %18, %19 : vector<8x256xf32>
    %cst_15 = arith.constant 0.000000e+00 : f32
    %21 = vector.broadcast %cst_15 : f32 to vector<8x256xf32>
    %22 = arith.maximumf %20, %21 : vector<8x256xf32>
    %23 = arith.truncf %22 : vector<8x256xf32> to vector<8x256xbf16>
    %24 = vector.extract_strided_slice %1 {offsets = [0, 112], sizes = [8, 224], strides = [1, 1]} : vector<8x784xbf16> to vector<8x224xbf16>
    %cst_16 = arith.constant dense<0.000000e+00> : vector<8x256xf32>
    %25 = tpu.matmul %24, %3, %cst_16 {dimension_numbers = #tpu.dot_dimension_numbers<[1], [0], [0], [1], [0, 0, 1, 1], [], []>} : vector<8x224xbf16>, vector<224x256xbf16>, vector<8x256xf32> -> vector<8x256xf32>
    %cst_17 = arith.constant dense<0.000000e+00> : vector<8x256xf32>
    %26 = tpu.matmul %24, %5, %cst_17 {dimension_numbers = #tpu.dot_dimension_numbers<[1], [0], [0], [1], [0, 0, 1, 1], [], []>} : vector<8x224xbf16>, vector<224x256xbf16>, vector<8x256xf32> -> vector<8x256xf32>
    %27 = arith.maximumf %25, %26 : vector<8x256xf32>
    %cst_18 = arith.constant dense<0.000000e+00> : vector<8x256xf32>
    %28 = tpu.matmul %24, %7, %cst_18 {dimension_numbers = #tpu.dot_dimension_numbers<[1], [0], [0], [1], [0, 0, 1, 1], [], []>} : vector<8x224xbf16>, vector<224x256xbf16>, vector<8x256xf32> -> vector<8x256xf32>
    %29 = arith.maximumf %27, %28 : vector<8x256xf32>
    %cst_19 = arith.constant dense<0.000000e+00> : vector<8x256xf32>
    %30 = tpu.matmul %24, %9, %cst_19 {dimension_numbers = #tpu.dot_dimension_numbers<[1], [0], [0], [1], [0, 0, 1, 1], [], []>} : vector<8x224xbf16>, vector<224x256xbf16>, vector<8x256xf32> -> vector<8x256xf32>
    %31 = arith.maximumf %29, %30 : vector<8x256xf32>
    %32 = vector.broadcast %10 : vector<1x256xf32> to vector<8x256xf32>
    %33 = arith.addf %31, %32 : vector<8x256xf32>
    %cst_20 = arith.constant 0.000000e+00 : f32
    %34 = vector.broadcast %cst_20 : f32 to vector<8x256xf32>
    %35 = arith.maximumf %33, %34 : vector<8x256xf32>
    %36 = arith.truncf %35 : vector<8x256xf32> to vector<8x256xbf16>
    %37 = vector.extract_strided_slice %1 {offsets = [0, 224], sizes = [8, 224], strides = [1, 1]} : vector<8x784xbf16> to vector<8x224xbf16>
    %cst_21 = arith.constant dense<0.000000e+00> : vector<8x256xf32>
    %38 = tpu.matmul %37, %3, %cst_21 {dimension_numbers = #tpu.dot_dimension_numbers<[1], [0], [0], [1], [0, 0, 1, 1], [], []>} : vector<8x224xbf16>, vector<224x256xbf16>, vector<8x256xf32> -> vector<8x256xf32>
    %cst_22 = arith.constant dense<0.000000e+00> : vector<8x256xf32>
    %39 = tpu.matmul %37, %5, %cst_22 {dimension_numbers = #tpu.dot_dimension_numbers<[1], [0], [0], [1], [0, 0, 1, 1], [], []>} : vector<8x224xbf16>, vector<224x256xbf16>, vector<8x256xf32> -> vector<8x256xf32>
    %40 = arith.maximumf %38, %39 : vector<8x256xf32>
    %cst_23 = arith.constant dense<0.000000e+00> : vector<8x256xf32>
    %41 = tpu.matmul %37, %7, %cst_23 {dimension_numbers = #tpu.dot_dimension_numbers<[1], [0], [0], [1], [0, 0, 1, 1], [], []>} : vector<8x224xbf16>, vector<224x256xbf16>, vector<8x256xf32> -> vector<8x256xf32>
    %42 = arith.maximumf %40, %41 : vector<8x256xf32>
    %cst_24 = arith.constant dense<0.000000e+00> : vector<8x256xf32>
    %43 = tpu.matmul %37, %9, %cst_24 {dimension_numbers = #tpu.dot_dimension_numbers<[1], [0], [0], [1], [0, 0, 1, 1], [], []>} : vector<8x224xbf16>, vector<224x256xbf16>, vector<8x256xf32> -> vector<8x256xf32>
    %44 = arith.maximumf %42, %43 : vector<8x256xf32>
    %45 = vector.broadcast %10 : vector<1x256xf32> to vector<8x256xf32>
    %46 = arith.addf %44, %45 : vector<8x256xf32>
    %cst_25 = arith.constant 0.000000e+00 : f32
    %47 = vector.broadcast %cst_25 : f32 to vector<8x256xf32>
    %48 = arith.maximumf %46, %47 : vector<8x256xf32>
    %49 = arith.truncf %48 : vector<8x256xf32> to vector<8x256xbf16>
    %50 = vector.extract_strided_slice %1 {offsets = [0, 336], sizes = [8, 224], strides = [1, 1]} : vector<8x784xbf16> to vector<8x224xbf16>
    %cst_26 = arith.constant dense<0.000000e+00> : vector<8x256xf32>
    %51 = tpu.matmul %50, %3, %cst_26 {dimension_numbers = #tpu.dot_dimension_numbers<[1], [0], [0], [1], [0, 0, 1, 1], [], []>} : vector<8x224xbf16>, vector<224x256xbf16>, vector<8x256xf32> -> vector<8x256xf32>
    %cst_27 = arith.constant dense<0.000000e+00> : vector<8x256xf32>
    %52 = tpu.matmul %50, %5, %cst_27 {dimension_numbers = #tpu.dot_dimension_numbers<[1], [0], [0], [1], [0, 0, 1, 1], [], []>} : vector<8x224xbf16>, vector<224x256xbf16>, vector<8x256xf32> -> vector<8x256xf32>
    %53 = arith.maximumf %51, %52 : vector<8x256xf32>
    %cst_28 = arith.constant dense<0.000000e+00> : vector<8x256xf32>
    %54 = tpu.matmul %50, %7, %cst_28 {dimension_numbers = #tpu.dot_dimension_numbers<[1], [0], [0], [1], [0, 0, 1, 1], [], []>} : vector<8x224xbf16>, vector<224x256xbf16>, vector<8x256xf32> -> vector<8x256xf32>
    %55 = arith.maximumf %53, %54 : vector<8x256xf32>
    %cst_29 = arith.constant dense<0.000000e+00> : vector<8x256xf32>
    %56 = tpu.matmul %50, %9, %cst_29 {dimension_numbers = #tpu.dot_dimension_numbers<[1], [0], [0], [1], [0, 0, 1, 1], [], []>} : vector<8x224xbf16>, vector<224x256xbf16>, vector<8x256xf32> -> vector<8x256xf32>
    %57 = arith.maximumf %55, %56 : vector<8x256xf32>
    %58 = vector.broadcast %10 : vector<1x256xf32> to vector<8x256xf32>
    %59 = arith.addf %57, %58 : vector<8x256xf32>
    %cst_30 = arith.constant 0.000000e+00 : f32
    %60 = vector.broadcast %cst_30 : f32 to vector<8x256xf32>
    %61 = arith.maximumf %59, %60 : vector<8x256xf32>
    %62 = arith.truncf %61 : vector<8x256xf32> to vector<8x256xbf16>
    %63 = vector.extract_strided_slice %1 {offsets = [0, 448], sizes = [8, 224], strides = [1, 1]} : vector<8x784xbf16> to vector<8x224xbf16>
    %cst_31 = arith.constant dense<0.000000e+00> : vector<8x256xf32>
    %64 = tpu.matmul %63, %3, %cst_31 {dimension_numbers = #tpu.dot_dimension_numbers<[1], [0], [0], [1], [0, 0, 1, 1], [], []>} : vector<8x224xbf16>, vector<224x256xbf16>, vector<8x256xf32> -> vector<8x256xf32>
    %cst_32 = arith.constant dense<0.000000e+00> : vector<8x256xf32>
    %65 = tpu.matmul %63, %5, %cst_32 {dimension_numbers = #tpu.dot_dimension_numbers<[1], [0], [0], [1], [0, 0, 1, 1], [], []>} : vector<8x224xbf16>, vector<224x256xbf16>, vector<8x256xf32> -> vector<8x256xf32>
    %66 = arith.maximumf %64, %65 : vector<8x256xf32>
    %cst_33 = arith.constant dense<0.000000e+00> : vector<8x256xf32>
    %67 = tpu.matmul %63, %7, %cst_33 {dimension_numbers = #tpu.dot_dimension_numbers<[1], [0], [0], [1], [0, 0, 1, 1], [], []>} : vector<8x224xbf16>, vector<224x256xbf16>, vector<8x256xf32> -> vector<8x256xf32>
    %68 = arith.maximumf %66, %67 : vector<8x256xf32>
    %cst_34 = arith.constant dense<0.000000e+00> : vector<8x256xf32>
    %69 = tpu.matmul %63, %9, %cst_34 {dimension_numbers = #tpu.dot_dimension_numbers<[1], [0], [0], [1], [0, 0, 1, 1], [], []>} : vector<8x224xbf16>, vector<224x256xbf16>, vector<8x256xf32> -> vector<8x256xf32>
    %70 = arith.maximumf %68, %69 : vector<8x256xf32>
    %71 = vector.broadcast %10 : vector<1x256xf32> to vector<8x256xf32>
    %72 = arith.addf %70, %71 : vector<8x256xf32>
    %cst_35 = arith.constant 0.000000e+00 : f32
    %73 = vector.broadcast %cst_35 : f32 to vector<8x256xf32>
    %74 = arith.maximumf %72, %73 : vector<8x256xf32>
    %75 = arith.truncf %74 : vector<8x256xf32> to vector<8x256xbf16>
    %76 = vector.extract_strided_slice %1 {offsets = [0, 560], sizes = [8, 224], strides = [1, 1]} : vector<8x784xbf16> to vector<8x224xbf16>
    %cst_36 = arith.constant dense<0.000000e+00> : vector<8x256xf32>
    %77 = tpu.matmul %76, %3, %cst_36 {dimension_numbers = #tpu.dot_dimension_numbers<[1], [0], [0], [1], [0, 0, 1, 1], [], []>} : vector<8x224xbf16>, vector<224x256xbf16>, vector<8x256xf32> -> vector<8x256xf32>
    %cst_37 = arith.constant dense<0.000000e+00> : vector<8x256xf32>
    %78 = tpu.matmul %76, %5, %cst_37 {dimension_numbers = #tpu.dot_dimension_numbers<[1], [0], [0], [1], [0, 0, 1, 1], [], []>} : vector<8x224xbf16>, vector<224x256xbf16>, vector<8x256xf32> -> vector<8x256xf32>
    %79 = arith.maximumf %77, %78 : vector<8x256xf32>
    %cst_38 = arith.constant dense<0.000000e+00> : vector<8x256xf32>
    %80 = tpu.matmul %76, %7, %cst_38 {dimension_numbers = #tpu.dot_dimension_numbers<[1], [0], [0], [1], [0, 0, 1, 1], [], []>} : vector<8x224xbf16>, vector<224x256xbf16>, vector<8x256xf32> -> vector<8x256xf32>
    %81 = arith.maximumf %79, %80 : vector<8x256xf32>
    %cst_39 = arith.constant dense<0.000000e+00> : vector<8x256xf32>
    %82 = tpu.matmul %76, %9, %cst_39 {dimension_numbers = #tpu.dot_dimension_numbers<[1], [0], [0], [1], [0, 0, 1, 1], [], []>} : vector<8x224xbf16>, vector<224x256xbf16>, vector<8x256xf32> -> vector<8x256xf32>
    %83 = arith.maximumf %81, %82 : vector<8x256xf32>
    %84 = vector.broadcast %10 : vector<1x256xf32> to vector<8x256xf32>
    %85 = arith.addf %83, %84 : vector<8x256xf32>
    %cst_40 = arith.constant 0.000000e+00 : f32
    %86 = vector.broadcast %cst_40 : f32 to vector<8x256xf32>
    %87 = arith.maximumf %85, %86 : vector<8x256xf32>
    %88 = arith.truncf %87 : vector<8x256xf32> to vector<8x256xbf16>
    %89 = tpu.concatenate %23, %36, %49, %62, %75, %88 in 1 : vector<8x256xbf16>, vector<8x256xbf16>, vector<8x256xbf16>, vector<8x256xbf16>, vector<8x256xbf16>, vector<8x256xbf16> -> vector<8x1536xbf16>
    %c0_41 = arith.constant 0 : index
    %c0_42 = arith.constant 0 : index
    %c0_43 = arith.constant 0 : index
    %90 = vector.load %arg4[%c0_41, %c0_42, %c0_43] : memref<4x1024x256xbf16, #tpu.memory_space<vmem>>, vector<1x1024x256xbf16>
    %91 = vector.shape_cast %90 : vector<1x1024x256xbf16> to vector<1024x256xbf16>
    %c1_44 = arith.constant 1 : index
    %c0_45 = arith.constant 0 : index
    %c0_46 = arith.constant 0 : index
    %92 = vector.load %arg4[%c1_44, %c0_45, %c0_46] : memref<4x1024x256xbf16, #tpu.memory_space<vmem>>, vector<1x1024x256xbf16>
    %93 = vector.shape_cast %92 : vector<1x1024x256xbf16> to vector<1024x256xbf16>
    %c2_47 = arith.constant 2 : index
    %c0_48 = arith.constant 0 : index
    %c0_49 = arith.constant 0 : index
    %94 = vector.load %arg4[%c2_47, %c0_48, %c0_49] : memref<4x1024x256xbf16, #tpu.memory_space<vmem>>, vector<1x1024x256xbf16>
    %95 = vector.shape_cast %94 : vector<1x1024x256xbf16> to vector<1024x256xbf16>
    %c3_50 = arith.constant 3 : index
    %c0_51 = arith.constant 0 : index
    %c0_52 = arith.constant 0 : index
    %96 = vector.load %arg4[%c3_50, %c0_51, %c0_52] : memref<4x1024x256xbf16, #tpu.memory_space<vmem>>, vector<1x1024x256xbf16>
    %97 = vector.shape_cast %96 : vector<1x1024x256xbf16> to vector<1024x256xbf16>
    %c0_53 = arith.constant 0 : index
    %c0_54 = arith.constant 0 : index
    %98 = vector.load %arg5[%c0_53, %c0_54] : memref<1x256xf32, #tpu.memory_space<vmem>>, vector<1x256xf32>
    %99 = vector.extract_strided_slice %89 {offsets = [0, 0], sizes = [8, 1024], strides = [1, 1]} : vector<8x1536xbf16> to vector<8x1024xbf16>
    %cst_55 = arith.constant dense<0.000000e+00> : vector<8x256xf32>
    %100 = tpu.matmul %99, %91, %cst_55 {dimension_numbers = #tpu.dot_dimension_numbers<[1], [0], [0], [1], [0, 0, 1, 1], [], []>} : vector<8x1024xbf16>, vector<1024x256xbf16>, vector<8x256xf32> -> vector<8x256xf32>
    %cst_56 = arith.constant dense<0.000000e+00> : vector<8x256xf32>
    %101 = tpu.matmul %99, %93, %cst_56 {dimension_numbers = #tpu.dot_dimension_numbers<[1], [0], [0], [1], [0, 0, 1, 1], [], []>} : vector<8x1024xbf16>, vector<1024x256xbf16>, vector<8x256xf32> -> vector<8x256xf32>
    %102 = arith.maximumf %100, %101 : vector<8x256xf32>
    %cst_57 = arith.constant dense<0.000000e+00> : vector<8x256xf32>
    %103 = tpu.matmul %99, %95, %cst_57 {dimension_numbers = #tpu.dot_dimension_numbers<[1], [0], [0], [1], [0, 0, 1, 1], [], []>} : vector<8x1024xbf16>, vector<1024x256xbf16>, vector<8x256xf32> -> vector<8x256xf32>
    %104 = arith.maximumf %102, %103 : vector<8x256xf32>
    %cst_58 = arith.constant dense<0.000000e+00> : vector<8x256xf32>
    %105 = tpu.matmul %99, %97, %cst_58 {dimension_numbers = #tpu.dot_dimension_numbers<[1], [0], [0], [1], [0, 0, 1, 1], [], []>} : vector<8x1024xbf16>, vector<1024x256xbf16>, vector<8x256xf32> -> vector<8x256xf32>
    %106 = arith.maximumf %104, %105 : vector<8x256xf32>
    %107 = vector.broadcast %98 : vector<1x256xf32> to vector<8x256xf32>
    %108 = arith.addf %106, %107 : vector<8x256xf32>
    %cst_59 = arith.constant 0.000000e+00 : f32
    %109 = vector.broadcast %cst_59 : f32 to vector<8x256xf32>
    %110 = arith.maximumf %108, %109 : vector<8x256xf32>
    %111 = arith.truncf %110 : vector<8x256xf32> to vector<8x256xbf16>
    %112 = vector.extract_strided_slice %89 {offsets = [0, 512], sizes = [8, 1024], strides = [1, 1]} : vector<8x1536xbf16> to vector<8x1024xbf16>
    %cst_60 = arith.constant dense<0.000000e+00> : vector<8x256xf32>
    %113 = tpu.matmul %112, %91, %cst_60 {dimension_numbers = #tpu.dot_dimension_numbers<[1], [0], [0], [1], [0, 0, 1, 1], [], []>} : vector<8x1024xbf16>, vector<1024x256xbf16>, vector<8x256xf32> -> vector<8x256xf32>
    %cst_61 = arith.constant dense<0.000000e+00> : vector<8x256xf32>
    %114 = tpu.matmul %112, %93, %cst_61 {dimension_numbers = #tpu.dot_dimension_numbers<[1], [0], [0], [1], [0, 0, 1, 1], [], []>} : vector<8x1024xbf16>, vector<1024x256xbf16>, vector<8x256xf32> -> vector<8x256xf32>
    %115 = arith.maximumf %113, %114 : vector<8x256xf32>
    %cst_62 = arith.constant dense<0.000000e+00> : vector<8x256xf32>
    %116 = tpu.matmul %112, %95, %cst_62 {dimension_numbers = #tpu.dot_dimension_numbers<[1], [0], [0], [1], [0, 0, 1, 1], [], []>} : vector<8x1024xbf16>, vector<1024x256xbf16>, vector<8x256xf32> -> vector<8x256xf32>
    %117 = arith.maximumf %115, %116 : vector<8x256xf32>
    %cst_63 = arith.constant dense<0.000000e+00> : vector<8x256xf32>
    %118 = tpu.matmul %112, %97, %cst_63 {dimension_numbers = #tpu.dot_dimension_numbers<[1], [0], [0], [1], [0, 0, 1, 1], [], []>} : vector<8x1024xbf16>, vector<1024x256xbf16>, vector<8x256xf32> -> vector<8x256xf32>
    %119 = arith.maximumf %117, %118 : vector<8x256xf32>
    %120 = vector.broadcast %98 : vector<1x256xf32> to vector<8x256xf32>
    %121 = arith.addf %119, %120 : vector<8x256xf32>
    %cst_64 = arith.constant 0.000000e+00 : f32
    %122 = vector.broadcast %cst_64 : f32 to vector<8x256xf32>
    %123 = arith.maximumf %121, %122 : vector<8x256xf32>
    %124 = arith.truncf %123 : vector<8x256xf32> to vector<8x256xbf16>
    %125 = tpu.concatenate %111, %124 in 1 : vector<8x256xbf16>, vector<8x256xbf16> -> vector<8x512xbf16>
    %c0_65 = arith.constant 0 : index
    %c0_66 = arith.constant 0 : index
    %126 = vector.load %arg6[%c0_65, %c0_66] : memref<512x128xbf16, #tpu.memory_space<vmem>>, vector<512x128xbf16>
    %cst_67 = arith.constant dense<0.000000e+00> : vector<8x128xf32>
    %127 = tpu.matmul %125, %126, %cst_67 {dimension_numbers = #tpu.dot_dimension_numbers<[1], [0], [0], [1], [0, 0, 1, 1], [], []>} : vector<8x512xbf16>, vector<512x128xbf16>, vector<8x128xf32> -> vector<8x128xf32>
    %c0_68 = arith.constant 0 : index
    %c0_69 = arith.constant 0 : index
    %128 = vector.load %arg7[%c0_68, %c0_69] : memref<1x128xf32, #tpu.memory_space<vmem>>, vector<1x128xf32>
    %129 = vector.broadcast %128 : vector<1x128xf32> to vector<8x128xf32>
    %130 = arith.addf %127, %129 : vector<8x128xf32>
    %cst_70 = arith.constant 0.000000e+00 : f32
    %131 = vector.broadcast %cst_70 : f32 to vector<8x128xf32>
    %132 = arith.maximumf %130, %131 : vector<8x128xf32>
    %133 = arith.truncf %132 : vector<8x128xf32> to vector<8x128xbf16>
    %c0_71 = arith.constant 0 : index
    %c0_72 = arith.constant 0 : index
    %134 = vector.load %arg8[%c0_71, %c0_72] : memref<128x128xbf16, #tpu.memory_space<vmem>>, vector<128x128xbf16>
    %cst_73 = arith.constant dense<0.000000e+00> : vector<8x128xf32>
    %135 = tpu.matmul %133, %134, %cst_73 {dimension_numbers = #tpu.dot_dimension_numbers<[1], [0], [0], [1], [0, 0, 1, 1], [], []>} : vector<8x128xbf16>, vector<128x128xbf16>, vector<8x128xf32> -> vector<8x128xf32>
    %c0_74 = arith.constant 0 : index
    %c0_75 = arith.constant 0 : index
    %136 = vector.load %arg9[%c0_74, %c0_75] : memref<1x128xf32, #tpu.memory_space<vmem>>, vector<1x128xf32>
    %137 = vector.broadcast %136 : vector<1x128xf32> to vector<8x128xf32>
    %138 = arith.addf %135, %137 : vector<8x128xf32>
    %cst_76 = arith.constant dense<0xFF800000> : vector<8xf32>
    %139 = vector.multi_reduction <maximumf>, %138, %cst_76 [1] : vector<8x128xf32> to vector<8xf32>
    %140 = vector.shape_cast %139 : vector<8xf32> to vector<8x1xf32>
    %141 = vector.broadcast %140 : vector<8x1xf32> to vector<8x128xf32>
    %142 = arith.subf %138, %141 : vector<8x128xf32>
    %143 = math.exp %142 : vector<8x128xf32>
    %cst_77 = arith.constant dense<0.000000e+00> : vector<8xf32>
    %144 = vector.multi_reduction <add>, %143, %cst_77 [1] : vector<8x128xf32> to vector<8xf32>
    %145 = vector.shape_cast %144 : vector<8xf32> to vector<8x1xf32>
    %146 = math.log %145 : vector<8x1xf32>
    %147 = vector.broadcast %146 : vector<8x1xf32> to vector<8x128xf32>
    %148 = arith.subf %142, %147 : vector<8x128xf32>
    %c0_78 = arith.constant 0 : index
    %c0_79 = arith.constant 0 : index
    %149 = vector.load %arg10[%c0_78, %c0_79] : memref<8x128xf32, #tpu.memory_space<vmem>>, vector<8x128xf32>
    tpu.vector_store %arg10[%c0_78, %c0_79], %148 {strides = array<i32>} : memref<8x128xf32, #tpu.memory_space<vmem>>, vector<8x128xf32>,
    return
  }
  func.func @transform_0(%arg0: i32) -> (i32, i32) {
    %c0_i32 = arith.constant 0 : i32
    %c0_i32_0 = arith.constant 0 : i32
    return %arg0, %c0_i32 : i32, i32
  }
  func.func @transform_1(%arg0: i32) -> (i32, i32, i32) {
    %c0_i32 = arith.constant 0 : i32
    %c0_i32_0 = arith.constant 0 : i32
    %c0_i32_1 = arith.constant 0 : i32
    %c0_i32_2 = arith.constant 0 : i32
    return %c0_i32, %c0_i32_0, %c0_i32_1 : i32, i32, i32
  }
  func.func @transform_2(%arg0: i32) -> (i32, i32) {
    %c0_i32 = arith.constant 0 : i32
    %c0_i32_0 = arith.constant 0 : i32
    %c0_i32_1 = arith.constant 0 : i32
    return %c0_i32, %c0_i32_0 : i32, i32
  }
  func.func @transform_3(%arg0: i32) -> (i32, i32, i32) {
    %c0_i32 = arith.constant 0 : i32
    %c0_i32_0 = arith.constant 0 : i32
    %c0_i32_1 = arith.constant 0 : i32
    %c0_i32_2 = arith.constant 0 : i32
    return %c0_i32, %c0_i32_0, %c0_i32_1 : i32, i32, i32
  }
  func.func @transform_4(%arg0: i32) -> (i32, i32) {
    %c0_i32 = arith.constant 0 : i32
    %c0_i32_0 = arith.constant 0 : i32
    %c0_i32_1 = arith.constant 0 : i32
    return %c0_i32, %c0_i32_0 : i32, i32
  }
  func.func @transform_5(%arg0: i32) -> (i32, i32) {
    %c0_i32 = arith.constant 0 : i32
    %c0_i32_0 = arith.constant 0 : i32
    %c0_i32_1 = arith.constant 0 : i32
    return %c0_i32, %c0_i32_0 : i32, i32
  }
  func.func @transform_6(%arg0: i32) -> (i32, i32) {
    %c0_i32 = arith.constant 0 : i32
    %c0_i32_0 = arith.constant 0 : i32
    %c0_i32_1 = arith.constant 0 : i32
    return %c0_i32, %c0_i32_0 : i32, i32
  }
  func.func @transform_7(%arg0: i32) -> (i32, i32) {
    %c0_i32 = arith.constant 0 : i32
    %c0_i32_0 = arith.constant 0 : i32
    %c0_i32_1 = arith.constant 0 : i32
    return %c0_i32, %c0_i32_0 : i32, i32
  }
  func.func @transform_8(%arg0: i32) -> (i32, i32) {
    %c0_i32 = arith.constant 0 : i32
    %c0_i32_0 = arith.constant 0 : i32
    %c0_i32_1 = arith.constant 0 : i32
    return %c0_i32, %c0_i32_0 : i32, i32
  }
  func.func @transform_9(%arg0: i32) -> (i32, i32) {
    %c0_i32 = arith.constant 0 : i32
    %c0_i32_0 = arith.constant 0 : i32
    return %arg0, %c0_i32 : i32, i32
  }
}

</mosaic_0001>

<llo_original>
// kernel: mnist_net_forward.1
$region0: #{mnist_net_forward.1}
  #allocation0 [shape = 'u32[]', space=smem, size = 0x4, offset = 0x4, fixed_abs, tag = 'smem constant byte address 0x4 - core index']
  #allocation1 [shape = 'u32[144,128]{1,0:T(1,128)}', space=vmem, size = 0x12000, scoped, tag = 'internal scratch']
  %s0 = inlined_call_operand.vmem [shape: f32[8,784], index: 0, kind: input, shape index: {}]
  %s1 = inlined_call_operand.hbm [shape: bf16[4,224,256], index: 1, kind: input, shape index: {}]
  %s2 = inlined_call_operand.hbm [shape: f32[1,256], index: 2, kind: input, shape index: {}]
  %s3 = inlined_call_operand.hbm [shape: bf16[4,1024,256], index: 3, kind: input, shape index: {}]
  %s4 = inlined_call_operand.hbm [shape: f32[1,256], index: 4, kind: input, shape index: {}]
  %s5 = inlined_call_operand.hbm [shape: bf16[512,128], index: 5, kind: input, shape index: {}]
  %s6 = inlined_call_operand.hbm [shape: f32[1,128], index: 6, kind: input, shape index: {}]
  %s7 = inlined_call_operand.hbm [shape: bf16[128,128], index: 7, kind: input, shape index: {}]
  %s8 = inlined_call_operand.hbm [shape: f32[1,128], index: 8, kind: input, shape index: {}]
  %s9 = inlined_call_operand.vmem [shape: f32[8,128], index: 9, kind: output, shape index: {}]
  %s10 = sld [smem:[#allocation0]]
  $region78: #{mnist_net_forward.1} parent=0
    _
  %s12 = ssub.s32 1, %s10
  %s13 = scalar_select 0, %s12, %s10
  $region1: #{mnist_net_forward.1} parent=0
    #allocation2 [shape = 'u8[458752]{0}', space=vmem, size = 0x70000, scoped, tag = 'input window, operand 1, single buffered']
    #allocation3 [shape = 's32[1]{0}', space=sflag, size = 0x4, scoped, tag = 'scoped memory for mnist_net_forward.1']
    #allocation4 [shape = 'u8[1024]{0}', space=vmem, size = 0x400, scoped, tag = 'input window, operand 2, single buffered']
    #allocation5 [shape = 's32[1]{0}', space=sflag, size = 0x4, scoped, tag = 'scoped memory for mnist_net_forward.1']
    #allocation6 [shape = 'u8[2097152]{0}', space=vmem, size = 0x200000, scoped, tag = 'input window, operand 3, single buffered']
    #allocation7 [shape = 'u8[1024]{0}', space=vmem, size = 0x400, scoped, tag = 'input window, operand 4, single buffered']
    #allocation8 [shape = 's32[1]{0}', space=sflag, size = 0x4, scoped, tag = 'scoped memory for mnist_net_forward.1']
    #allocation9 [shape = 'u8[131072]{0}', space=vmem, size = 0x20000, scoped, tag = 'input window, operand 5, single buffered']
    #allocation10 [shape = 'u8[512]{0}', space=vmem, size = 0x400, scoped, tag = 'input window, operand 6, single buffered']
    #allocation11 [shape = 's32[1]{0}', space=sflag, size = 0x4, scoped, tag = 'scoped memory for mnist_net_forward.1']
    #allocation12 [shape = 'u8[32768]{0}', space=vmem, size = 0x8000, scoped, tag = 'input window, operand 7, single buffered']
    #allocation13 [shape = 'u8[512]{0}', space=vmem, size = 0x400, scoped, tag = 'input window, operand 8, single buffered']
    #allocation14 [shape = 's32[1]{0}', space=sflag, size = 0x4, scoped, tag = 'scoped memory for mnist_net_forward.1']
    %14 = vsyncpa [#allocation3], 0
    %15 = vsyncpa [#allocation5], 0
    %16 = vsyncpa [#allocation8], 0
    %17 = vsyncpa [#allocation11], 0
    %18 = vsyncpa [#allocation14], 0
    // Predicated region
    $region2: #{mnist_net_forward.1} parent=1 // pred_check
      _
    $region3: #{mnist_net_forward.1} parent=1 // pred_check_branch
      %20 = sbr.rel (0) target = $region5
    $region4: #{mnist_net_forward.1} parent=1 // pred_region
      _
    $region5: #{mnist_net_forward.1} parent=1 // pred_fallthru
      _
    // Predicated region
    $region6: #{mnist_net_forward.1} parent=1 // pred_check
      _
    $region7: #{mnist_net_forward.1} parent=1 // pred_check_branch
      %22 = sbr.rel (0) target = $region9
    $region8: #{mnist_net_forward.1} parent=1 // pred_region
      %s24 = ssub.s32 14336, 14336
      %25 = vsyncadd [#allocation3], %s24
      %s26 = sshll.u32 [#allocation2], 4
      %s27 = int_to_ptr.vmem [resolvable:$true] %s26
      %32 = dma.hbm_to_vmem [thread:$0]  %s1, 14336, %s27, [#allocation3], 128, 128, 8
    $region9: #{mnist_net_forward.1} parent=1 // pred_fallthru
      _
    // Predicated region
    $region10: #{mnist_net_forward.1} parent=1 // pred_check
      _
    $region11: #{mnist_net_forward.1} parent=1 // pred_check_branch
      %34 = sbr.rel (0) target = $region13
    $region12: #{mnist_net_forward.1} parent=1 // pred_region
      %s36 = ssub.s32 32, 32
      %37 = vsyncadd [#allocation5], %s36
      %s39 = sshll.u32 [#allocation4], 4
      %s40 = int_to_ptr.vmem [resolvable:$true] %s39
      %42 = dma.hbm_to_vmem [thread:$0]  %s2, 32, %s40, [#allocation5]
    $region13: #{mnist_net_forward.1} parent=1 // pred_fallthru
      _
    // Predicated region
    $region14: #{mnist_net_forward.1} parent=1 // pred_check
      _
    $region15: #{mnist_net_forward.1} parent=1 // pred_check_branch
      %44 = sbr.rel (0) target = $region17
    $region16: #{mnist_net_forward.1} parent=1 // pred_region
      %s46 = ssub.s32 65536, 65536
      %47 = vsyncadd [#allocation5], %s46
      %s48 = sshll.u32 [#allocation6], 4
      %s49 = int_to_ptr.vmem [resolvable:$true] %s48
      %54 = dma.hbm_to_vmem [thread:$0]  %s3, 65536, %s49, [#allocation5], 128, 128, 8
    $region17: #{mnist_net_forward.1} parent=1 // pred_fallthru
      _
    // Predicated region
    $region18: #{mnist_net_forward.1} parent=1 // pred_check
      _
    $region19: #{mnist_net_forward.1} parent=1 // pred_check_branch
      %56 = sbr.rel (0) target = $region21
    $region20: #{mnist_net_forward.1} parent=1 // pred_region
      %s58 = ssub.s32 32, 32
      %59 = vsyncadd [#allocation8], %s58
      %s61 = sshll.u32 [#allocation7], 4
      %s62 = int_to_ptr.vmem [resolvable:$true] %s61
      %64 = dma.hbm_to_vmem [thread:$0]  %s4, 32, %s62, [#allocation8]
    $region21: #{mnist_net_forward.1} parent=1 // pred_fallthru
      _
    // Predicated region
    $region22: #{mnist_net_forward.1} parent=1 // pred_check
      _
    $region23: #{mnist_net_forward.1} parent=1 // pred_check_branch
      %66 = sbr.rel (0) target = $region25
    $region24: #{mnist_net_forward.1} parent=1 // pred_region
      %s68 = ssub.s32 4096, 4096
      %69 = vsyncadd [#allocation8], %s68
      %s70 = sshll.u32 [#allocation9], 4
      %s71 = int_to_ptr.vmem [resolvable:$true] %s70
      %76 = dma.hbm_to_vmem [thread:$0]  %s5, 4096, %s71, [#allocation8], 64, 64, 4
    $region25: #{mnist_net_forward.1} parent=1 // pred_fallthru
      _
    // Predicated region
    $region26: #{mnist_net_forward.1} parent=1 // pred_check
      _
    $region27: #{mnist_net_forward.1} parent=1 // pred_check_branch
      %78 = sbr.rel (0) target = $region29
    $region28: #{mnist_net_forward.1} parent=1 // pred_region
      %s80 = ssub.s32 16, 16
      %81 = vsyncadd [#allocation11], %s80
      %s83 = sshll.u32 [#allocation10], 4
      %s84 = int_to_ptr.vmem [resolvable:$true] %s83
      %86 = dma.hbm_to_vmem [thread:$0]  %s6, 16, %s84, [#allocation11]
    $region29: #{mnist_net_forward.1} parent=1 // pred_fallthru
      _
    // Predicated region
    $region30: #{mnist_net_forward.1} parent=1 // pred_check
      _
    $region31: #{mnist_net_forward.1} parent=1 // pred_check_branch
      %88 = sbr.rel (0) target = $region33
    $region32: #{mnist_net_forward.1} parent=1 // pred_region
      %s90 = ssub.s32 1024, 1024
      %91 = vsyncadd [#allocation11], %s90
      %s92 = sshll.u32 [#allocation12], 4
      %s93 = int_to_ptr.vmem [resolvable:$true] %s92
      %98 = dma.hbm_to_vmem [thread:$0]  %s7, 1024, %s93, [#allocation11], 64, 64, 4
    $region33: #{mnist_net_forward.1} parent=1 // pred_fallthru
      _
    // Predicated region
    $region34: #{mnist_net_forward.1} parent=1 // pred_check
      _
    $region35: #{mnist_net_forward.1} parent=1 // pred_check_branch
      %100 = sbr.rel (0) target = $region37
    $region36: #{mnist_net_forward.1} parent=1 // pred_region
      %s102 = ssub.s32 16, 16
      %103 = vsyncadd [#allocation14], %s102
      %s105 = sshll.u32 [#allocation13], 4
      %s106 = int_to_ptr.vmem [resolvable:$true] %s105
      %108 = dma.hbm_to_vmem [thread:$0]  %s8, 16, %s106, [#allocation14]
    $region37: #{mnist_net_forward.1} parent=1 // pred_fallthru
      _
    // Predicated region
    $region38: #{mnist_net_forward.1} parent=1 // pred_check
      _
    $region39: #{mnist_net_forward.1} parent=1 // pred_check_branch
      %110 = sbr.rel (0) target = $region41
    $region40: #{mnist_net_forward.1} parent=1 // pred_region
      %111 = dma.done [#allocation3], 14336
    $region41: #{mnist_net_forward.1} parent=1 // pred_fallthru
      _
    // Predicated region
    $region42: #{mnist_net_forward.1} parent=1 // pred_check
      _
    $region43: #{mnist_net_forward.1} parent=1 // pred_check_branch
      %113 = sbr.rel (0) target = $region45
    $region44: #{mnist_net_forward.1} parent=1 // pred_region
      %114 = dma.done [#allocation5], 32
    $region45: #{mnist_net_forward.1} parent=1 // pred_fallthru
      _
    // Predicated region
    $region46: #{mnist_net_forward.1} parent=1 // pred_check
      _
    $region47: #{mnist_net_forward.1} parent=1 // pred_check_branch
      %116 = sbr.rel (0) target = $region49
    $region48: #{mnist_net_forward.1} parent=1 // pred_region
      %117 = dma.done [#allocation5], 65536
    $region49: #{mnist_net_forward.1} parent=1 // pred_fallthru
      _
    // Predicated region
    $region50: #{mnist_net_forward.1} parent=1 // pred_check
      _
    $region51: #{mnist_net_forward.1} parent=1 // pred_check_branch
      %119 = sbr.rel (0) target = $region53
    $region52: #{mnist_net_forward.1} parent=1 // pred_region
      %120 = dma.done [#allocation8], 32
    $region53: #{mnist_net_forward.1} parent=1 // pred_fallthru
      _
    // Predicated region
    $region54: #{mnist_net_forward.1} parent=1 // pred_check
      _
    $region55: #{mnist_net_forward.1} parent=1 // pred_check_branch
      %122 = sbr.rel (0) target = $region57
    $region56: #{mnist_net_forward.1} parent=1 // pred_region
      %123 = dma.done [#allocation8], 4096
    $region57: #{mnist_net_forward.1} parent=1 // pred_fallthru
      _
    // Predicated region
    $region58: #{mnist_net_forward.1} parent=1 // pred_check
      _
    $region59: #{mnist_net_forward.1} parent=1 // pred_check_branch
      %125 = sbr.rel (0) target = $region61
    $region60: #{mnist_net_forward.1} parent=1 // pred_region
      %126 = dma.done [#allocation11], 16
    $region61: #{mnist_net_forward.1} parent=1 // pred_fallthru
      _
    // Predicated region
    $region62: #{mnist_net_forward.1} parent=1 // pred_check
      _
    $region63: #{mnist_net_forward.1} parent=1 // pred_check_branch
      %128 = sbr.rel (0) target = $region65
    $region64: #{mnist_net_forward.1} parent=1 // pred_region
      %129 = dma.done [#allocation11], 1024
    $region65: #{mnist_net_forward.1} parent=1 // pred_fallthru
      _
    // Predicated region
    $region66: #{mnist_net_forward.1} parent=1 // pred_check
      _
    $region67: #{mnist_net_forward.1} parent=1 // pred_check_branch
      %131 = sbr.rel (0) target = $region69
    $region68: #{mnist_net_forward.1} parent=1 // pred_region
      %132 = dma.done [#allocation14], 16
    $region69: #{mnist_net_forward.1} parent=1 // pred_fallthru
      _
    %v134 = vld [vmem:[%s0] sm:$0xff]
    %v135 = vld [vmem:[%s0 + $0x8] sm:$0xff]
    %v136 = vld [vmem:[%s0 + $0x10] sm:$0xff]
    %v137 = vld [vmem:[%s0 + $0x18] sm:$0xff]
    %v138 = vld [vmem:[%s0 + $0x20] sm:$0xff]
    %v139 = vld [vmem:[%s0 + $0x28] sm:$0xff]
    %v140 = vld [vmem:[%s0 + $0x30] sm:$0xff]
    %v141 = vpack.c.bf16 %v134, %v134
    %v142 = vpack.c.bf16 %v135, %v135
    %v143 = vpack.c.bf16 %v136, %v136
    %v144 = vpack.c.bf16 %v137, %v137
    %v145 = vpack.c.bf16 %v138, %v138
    %v146 = vpack.c.bf16 %v139, %v139
    %v147 = vpack.c.bf16 %v140, %v140
    %v148 = vld [vmem:[#allocation2] sm:$0xff]
    %v149 = vld [vmem:[#allocation2 + $0x8] sm:$0xff]
    %v150 = vld [vmem:[#allocation2 + $0x10] sm:$0xff]
    %v151 = vld [vmem:[#allocation2 + $0x18] sm:$0xff]
    %v152 = vld [vmem:[#allocation2 + $0x20] sm:$0xff]
    %v153 = vld [vmem:[#allocation2 + $0x28] sm:$0xff]
    %v154 = vld [vmem:[#allocation2 + $0x30] sm:$0xff]
    %v155 = vld [vmem:[#allocation2 + $0x38] sm:$0xff]
    %v156 = vld [vmem:[#allocation2 + $0x40] sm:$0xff]
    %v157 = vld [vmem:[#allocation2 + $0x48] sm:$0xff]
    %v158 = vld [vmem:[#allocation2 + $0x50] sm:$0xff]
    %v159 = vld [vmem:[#allocation2 + $0x58] sm:$0xff]
    %v160 = vld [vmem:[#allocation2 + $0x60] sm:$0xff]
    %v161 = vld [vmem:[#allocation2 + $0x68] sm:$0xff]
    %v162 = vld [vmem:[#allocation2 + $0x70] sm:$0xff]
    %v163 = vld [vmem:[#allocation2 + $0x78] sm:$0xff]
    %v164 = vld [vmem:[#allocation2 + $0x80] sm:$0xff]
    %v165 = vld [vmem:[#allocation2 + $0x88] sm:$0xff]
    %v166 = vld [vmem:[#allocation2 + $0x90] sm:$0xff]
    %v167 = vld [vmem:[#allocation2 + $0x98] sm:$0xff]
    %v168 = vld [vmem:[#allocation2 + $0xa0] sm:$0xff]
    %v169 = vld [vmem:[#allocation2 + $0xa8] sm:$0xff]
    %v170 = vld [vmem:[#allocation2 + $0xb0] sm:$0xff]
    %v171 = vld [vmem:[#allocation2 + $0xb8] sm:$0xff]
    %v172 = vld [vmem:[#allocation2 + $0xc0] sm:$0xff]
    %v173 = vld [vmem:[#allocation2 + $0xc8] sm:$0xff]
    %v174 = vld [vmem:[#allocation2 + $0xd0] sm:$0xff]
    %v175 = vld [vmem:[#allocation2 + $0xd8] sm:$0xff]
    %s176 = scalar_lea.vmem [#allocation2], 224
    %v177 = vld [vmem:[%s176] sm:$0xff]
    %v178 = vld [vmem:[%s176 + $0x8] sm:$0xff]
    %v179 = vld [vmem:[%s176 + $0x10] sm:$0xff]
    %v180 = vld [vmem:[%s176 + $0x18] sm:$0xff]
    %v181 = vld [vmem:[%s176 + $0x20] sm:$0xff]
    %v182 = vld [vmem:[%s176 + $0x28] sm:$0xff]
    %v183 = vld [vmem:[%s176 + $0x30] sm:$0xff]
    %v184 = vld [vmem:[%s176 + $0x38] sm:$0xff]
    %v185 = vld [vmem:[%s176 + $0x40] sm:$0xff]
    %v186 = vld [vmem:[%s176 + $0x48] sm:$0xff]
    %v187 = vld [vmem:[%s176 + $0x50] sm:$0xff]
    %v188 = vld [vmem:[%s176 + $0x58] sm:$0xff]
    %v189 = vld [vmem:[%s176 + $0x60] sm:$0xff]
    %v190 = vld [vmem:[%s176 + $0x68] sm:$0xff]
    %v191 = vld [vmem:[%s176 + $0x70] sm:$0xff]
    %v192 = vld [vmem:[%s176 + $0x78] sm:$0xff]
    %v193 = vld [vmem:[%s176 + $0x80] sm:$0xff]
    %v194 = vld [vmem:[%s176 + $0x88] sm:$0xff]
    %v195 = vld [vmem:[%s176 + $0x90] sm:$0xff]
    %v196 = vld [vmem:[%s176 + $0x98] sm:$0xff]
    %v197 = vld [vmem:[%s176 + $0xa0] sm:$0xff]
    %v198 = vld [vmem:[%s176 + $0xa8] sm:$0xff]
    %v199 = vld [vmem:[%s176 + $0xb0] sm:$0xff]
    %v200 = vld [vmem:[%s176 + $0xb8] sm:$0xff]
    %v201 = vld [vmem:[%s176 + $0xc0] sm:$0xff]
    %v202 = vld [vmem:[%s176 + $0xc8] sm:$0xff]
    %v203 = vld [vmem:[%s176 + $0xd0] sm:$0xff]
    %v204 = vld [vmem:[%s176 + $0xd8] sm:$0xff]
    %s205 = scalar_lea.vmem [#allocation2], 448
    %v206 = vld [vmem:[%s205] sm:$0xff]
    %v207 = vld [vmem:[%s205 + $0x8] sm:$0xff]
    %v208 = vld [vmem:[%s205 + $0x10] sm:$0xff]
    %v209 = vld [vmem:[%s205 + $0x18] sm:$0xff]
    %v210 = vld [vmem:[%s205 + $0x20] sm:$0xff]
    %v211 = vld [vmem:[%s205 + $0x28] sm:$0xff]
    %v212 = vld [vmem:[%s205 + $0x30] sm:$0xff]
    %v213 = vld [vmem:[%s205 + $0x38] sm:$0xff]
    %v214 = vld [vmem:[%s205 + $0x40] sm:$0xff]
    %v215 = vld [vmem:[%s205 + $0x48] sm:$0xff]
    %v216 = vld [vmem:[%s205 + $0x50] sm:$0xff]
    %v217 = vld [vmem:[%s205 + $0x58] sm:$0xff]
    %v218 = vld [vmem:[%s205 + $0x60] sm:$0xff]
    %v219 = vld [vmem:[%s205 + $0x68] sm:$0xff]
    %v220 = vld [vmem:[%s205 + $0x70] sm:$0xff]
    %v221 = vld [vmem:[%s205 + $0x78] sm:$0xff]
    %v222 = vld [vmem:[%s205 + $0x80] sm:$0xff]
    %v223 = vld [vmem:[%s205 + $0x88] sm:$0xff]
    %v224 = vld [vmem:[%s205 + $0x90] sm:$0xff]
    %v225 = vld [vmem:[%s205 + $0x98] sm:$0xff]
    %v226 = vld [vmem:[%s205 + $0xa0] sm:$0xff]
    %v227 = vld [vmem:[%s205 + $0xa8] sm:$0xff]
    %v228 = vld [vmem:[%s205 + $0xb0] sm:$0xff]
    %v229 = vld [vmem:[%s205 + $0xb8] sm:$0xff]
    %v230 = vld [vmem:[%s205 + $0xc0] sm:$0xff]
    %v231 = vld [vmem:[%s205 + $0xc8] sm:$0xff]
    %v232 = vld [vmem:[%s205 + $0xd0] sm:$0xff]
    %v233 = vld [vmem:[%s205 + $0xd8] sm:$0xff]
    %s234 = scalar_lea.vmem [#allocation2], 672
    %v235 = vld [vmem:[%s234] sm:$0xff]
    %v236 = vld [vmem:[%s234 + $0x8] sm:$0xff]
    %v237 = vld [vmem:[%s234 + $0x10] sm:$0xff]
    %v238 = vld [vmem:[%s234 + $0x18] sm:$0xff]
    %v239 = vld [vmem:[%s234 + $0x20] sm:$0xff]
    %v240 = vld [vmem:[%s234 + $0x28] sm:$0xff]
    %v241 = vld [vmem:[%s234 + $0x30] sm:$0xff]
    %v242 = vld [vmem:[%s234 + $0x38] sm:$0xff]
    %v243 = vld [vmem:[%s234 + $0x40] sm:$0xff]
    %v244 = vld [vmem:[%s234 + $0x48] sm:$0xff]
    %v245 = vld [vmem:[%s234 + $0x50] sm:$0xff]
    %v246 = vld [vmem:[%s234 + $0x58] sm:$0xff]
    %v247 = vld [vmem:[%s234 + $0x60] sm:$0xff]
    %v248 = vld [vmem:[%s234 + $0x68] sm:$0xff]
    %v249 = vld [vmem:[%s234 + $0x70] sm:$0xff]
    %v250 = vld [vmem:[%s234 + $0x78] sm:$0xff]
    %v251 = vld [vmem:[%s234 + $0x80] sm:$0xff]
    %v252 = vld [vmem:[%s234 + $0x88] sm:$0xff]
    %v253 = vld [vmem:[%s234 + $0x90] sm:$0xff]
    %v254 = vld [vmem:[%s234 + $0x98] sm:$0xff]
    %v255 = vld [vmem:[%s234 + $0xa0] sm:$0xff]
    %v256 = vld [vmem:[%s234 + $0xa8] sm:$0xff]
    %v257 = vld [vmem:[%s234 + $0xb0] sm:$0xff]
    %v258 = vld [vmem:[%s234 + $0xb8] sm:$0xff]
    %v259 = vld [vmem:[%s234 + $0xc0] sm:$0xff]
    %v260 = vld [vmem:[%s234 + $0xc8] sm:$0xff]
    %v261 = vld [vmem:[%s234 + $0xd0] sm:$0xff]
    %v262 = vld [vmem:[%s234 + $0xd8] sm:$0xff]
    %v263 = vld [vmem:[#allocation4] sm:$0x3]
    %v292 = vunpack.c.l.b16 %v148
    %v293 = vunpack.c.h.b16 %v148
    %v294 = vunpack.c.l.b16 %v149
    %v295 = vunpack.c.h.b16 %v149
    %v296 = vunpack.c.l.b16 %v150
    %v297 = vunpack.c.h.b16 %v150
    %v298 = vunpack.c.l.b16 %v151
    %v299 = vunpack.c.h.b16 %v151
    %v300 = vunpack.c.l.b16 %v152
    %v301 = vunpack.c.h.b16 %v152
    %v302 = vunpack.c.l.b16 %v153
    %v303 = vunpack.c.h.b16 %v153
    %v304 = vunpack.c.l.b16 %v154
    %v305 = vunpack.c.h.b16 %v154
    %v306 = vunpack.c.l.b16 %v155
    %v307 = vunpack.c.h.b16 %v155
    %v308 = vunpack.c.l.b16 %v156
    %v309 = vunpack.c.h.b16 %v156
    %v310 = vunpack.c.l.b16 %v157
    %v311 = vunpack.c.h.b16 %v157
    %v312 = vunpack.c.l.b16 %v158
    %v313 = vunpack.c.h.b16 %v158
    %v314 = vunpack.c.l.b16 %v159
    %v315 = vunpack.c.h.b16 %v159
    %v316 = vunpack.c.l.b16 %v160
    %v317 = vunpack.c.h.b16 %v160
    %v318 = vunpack.c.l.b16 %v161
    %v319 = vunpack.c.h.b16 %v161
    %v320 = vunpack.c.l.b16 %v162
    %v321 = vunpack.c.h.b16 %v162
    %v322 = vunpack.c.l.b16 %v163
    %v323 = vunpack.c.h.b16 %v163
    %v324 = vunpack.c.l.b16 %v164
    %v325 = vunpack.c.h.b16 %v164
    %v326 = vunpack.c.l.b16 %v165
    %v327 = vunpack.c.h.b16 %v165
    %v328 = vunpack.c.l.b16 %v166
    %v329 = vunpack.c.h.b16 %v166
    %v330 = vunpack.c.l.b16 %v167
    %v331 = vunpack.c.h.b16 %v167
    %v332 = vunpack.c.l.b16 %v168
    %v333 = vunpack.c.h.b16 %v168
    %v334 = vunpack.c.l.b16 %v169
    %v335 = vunpack.c.h.b16 %v169
    %v336 = vunpack.c.l.b16 %v170
    %v337 = vunpack.c.h.b16 %v170
    %v338 = vunpack.c.l.b16 %v171
    %v339 = vunpack.c.h.b16 %v171
    %v340 = vunpack.c.l.b16 %v172
    %v341 = vunpack.c.h.b16 %v172
    %v342 = vunpack.c.l.b16 %v173
    %v343 = vunpack.c.h.b16 %v173
    %v344 = vunpack.c.l.b16 %v174
    %v345 = vunpack.c.h.b16 %v174
    %v346 = vunpack.c.l.b16 %v175
    %v347 = vunpack.c.h.b16 %v175
    %v348 = vpack.c.b16 %v294, %v292
    %v349 = vpack.c.b16 %v295, %v293
    %v350 = vpack.c.b16 %v298, %v296
    %v351 = vpack.c.b16 %v299, %v297
    %v352 = vpack.c.b16 %v302, %v300
    %v353 = vpack.c.b16 %v303, %v301
    %v354 = vpack.c.b16 %v306, %v304
    %v355 = vpack.c.b16 %v307, %v305
    %v356 = vpack.c.b16 %v310, %v308
    %v357 = vpack.c.b16 %v311, %v309
    %v358 = vpack.c.b16 %v314, %v312
    %v359 = vpack.c.b16 %v315, %v313
    %v360 = vpack.c.b16 %v318, %v316
    %v361 = vpack.c.b16 %v319, %v317
    %v362 = vpack.c.b16 %v322, %v320
    %v363 = vpack.c.b16 %v323, %v321
    %v364 = vpack.c.b16 %v326, %v324
    %v365 = vpack.c.b16 %v327, %v325
    %v366 = vpack.c.b16 %v330, %v328
    %v367 = vpack.c.b16 %v331, %v329
    %v368 = vpack.c.b16 %v334, %v332
    %v369 = vpack.c.b16 %v335, %v333
    %v370 = vpack.c.b16 %v338, %v336
    %v371 = vpack.c.b16 %v339, %v337
    %v372 = vpack.c.b16 %v342, %v340
    %v373 = vpack.c.b16 %v343, %v341
    %v374 = vpack.c.b16 %v346, %v344
    %v375 = vpack.c.b16 %v347, %v345
    %vm404 = vcmask 785408
    %v406 = vsel %vm404, %v142, 0
    %408 = vmatprep.subr.bf16.mxu0 %v363
    %409 = vmatpush1.bf16.msra.mxu0 %v362
    %410 = vmatprep.subr.bf16.mxu0 %v361
    %411 = vmatpush1.bf16.msra.mxu0 %v360
    %412 = vmatprep.subr.bf16.mxu0 %v359
    %413 = vmatpush1.bf16.msra.mxu0 %v358
    %414 = vmatprep.subr.bf16.mxu0 %v357
    %415 = vmatpush1.bf16.msra.mxu0 %v356
    %416 = vmatprep.subr.bf16.mxu0 %v355
    %417 = vmatpush1.bf16.msra.mxu0 %v354
    %418 = vmatprep.subr.bf16.mxu0 %v353
    %419 = vmatpush1.bf16.msra.mxu0 %v352
    %420 = vmatprep.subr.bf16.mxu0 %v351
    %421 = vmatpush1.bf16.msra.mxu0 %v350
    %422 = vmatprep.subr.bf16.mxu0 %v349
    %423 = vmatpush1.bf16.msra.mxu0 %v348
    %424 = vmatprep.subr.bf16.mxu0 0
    %425 = vmatpush2.bf16.msra.mxu0 0
    %426 = vmatprep.subr.bf16.mxu0 0
    %427 = vmatpush2.bf16.msra.mxu0 0
    %428 = vmatprep.subr.bf16.mxu0 %v375
    %429 = vmatpush2.bf16.msra.mxu0 %v374
    %430 = vmatprep.subr.bf16.mxu0 %v373
    %431 = vmatpush2.bf16.msra.mxu0 %v372
    %432 = vmatprep.subr.bf16.mxu0 %v371
    %433 = vmatpush2.bf16.msra.mxu0 %v370
    %434 = vmatprep.subr.bf16.mxu0 %v369
    %435 = vmatpush2.bf16.msra.mxu0 %v368
    %436 = vmatprep.subr.bf16.mxu0 %v367
    %437 = vmatpush2.bf16.msra.mxu0 %v366
    %438 = vmatprep.subr.bf16.mxu0 %v365
    %439 = vmatpush2.bf16.msra.mxu0 %v364
    %440 = vmatprep.mubr.bf16.mxu0 %v406
    %441 = vmatmul.mubr.bf16.gmra.mxu0 %v141
    %v442 = vpop.f32.mrf.mxu0
    %v443 = vadd.f32 0.0, %v442
    %v444 = vpop.f32.mrf.mxu0
    %v445 = vadd.f32 0.0, %v444
    %v446 = vpop.f32.mrf.mxu0
    %v447 = vpop.f32.mrf.mxu0
    %448 = vdwg.mxu0
    %v477 = vunpack.c.l.b16 %v177
    %v478 = vunpack.c.h.b16 %v177
    %v479 = vunpack.c.l.b16 %v178
    %v480 = vunpack.c.h.b16 %v178
    %v481 = vunpack.c.l.b16 %v179
    %v482 = vunpack.c.h.b16 %v179
    %v483 = vunpack.c.l.b16 %v180
    %v484 = vunpack.c.h.b16 %v180
    %v485 = vunpack.c.l.b16 %v181
    %v486 = vunpack.c.h.b16 %v181
    %v487 = vunpack.c.l.b16 %v182
    %v488 = vunpack.c.h.b16 %v182
    %v489 = vunpack.c.l.b16 %v183
    %v490 = vunpack.c.h.b16 %v183
    %v491 = vunpack.c.l.b16 %v184
    %v492 = vunpack.c.h.b16 %v184
    %v493 = vunpack.c.l.b16 %v185
    %v494 = vunpack.c.h.b16 %v185
    %v495 = vunpack.c.l.b16 %v186
    %v496 = vunpack.c.h.b16 %v186
    %v497 = vunpack.c.l.b16 %v187
    %v498 = vunpack.c.h.b16 %v187
    %v499 = vunpack.c.l.b16 %v188
    %v500 = vunpack.c.h.b16 %v188
    %v501 = vunpack.c.l.b16 %v189
    %v502 = vunpack.c.h.b16 %v189
    %v503 = vunpack.c.l.b16 %v190
    %v504 = vunpack.c.h.b16 %v190
    %v505 = vunpack.c.l.b16 %v191
    %v506 = vunpack.c.h.b16 %v191
    %v507 = vunpack.c.l.b16 %v192
    %v508 = vunpack.c.h.b16 %v192
    %v509 = vunpack.c.l.b16 %v193
    %v510 = vunpack.c.h.b16 %v193
    %v511 = vunpack.c.l.b16 %v194
    %v512 = vunpack.c.h.b16 %v194
    %v513 = vunpack.c.l.b16 %v195
    %v514 = vunpack.c.h.b16 %v195
    %v515 = vunpack.c.l.b16 %v196
    %v516 = vunpack.c.h.b16 %v196
    %v517 = vunpack.c.l.b16 %v197
    %v518 = vunpack.c.h.b16 %v197
    %v519 = vunpack.c.l.b16 %v198
    %v520 = vunpack.c.h.b16 %v198
    %v521 = vunpack.c.l.b16 %v199
    %v522 = vunpack.c.h.b16 %v199
    %v523 = vunpack.c.l.b16 %v200
    %v524 = vunpack.c.h.b16 %v200
    %v525 = vunpack.c.l.b16 %v201
    %v526 = vunpack.c.h.b16 %v201
    %v527 = vunpack.c.l.b16 %v202
    %v528 = vunpack.c.h.b16 %v202
    %v529 = vunpack.c.l.b16 %v203
    %v530 = vunpack.c.h.b16 %v203
    %v531 = vunpack.c.l.b16 %v204
    %v532 = vunpack.c.h.b16 %v204
    %v533 = vpack.c.b16 %v479, %v477
    %v534 = vpack.c.b16 %v480, %v478
    %v535 = vpack.c.b16 %v483, %v481
    %v536 = vpack.c.b16 %v484, %v482
    %v537 = vpack.c.b16 %v487, %v485
    %v538 = vpack.c.b16 %v488, %v486
    %v539 = vpack.c.b16 %v491, %v489
    %v540 = vpack.c.b16 %v492, %v490
    %v541 = vpack.c.b16 %v495, %v493
    %v542 = vpack.c.b16 %v496, %v494
    %v543 = vpack.c.b16 %v499, %v497
    %v544 = vpack.c.b16 %v500, %v498
    %v545 = vpack.c.b16 %v503, %v501
    %v546 = vpack.c.b16 %v504, %v502
    %v547 = vpack.c.b16 %v507, %v505
    %v548 = vpack.c.b16 %v508, %v506
    %v549 = vpack.c.b16 %v511, %v509
    %v550 = vpack.c.b16 %v512, %v510
    %v551 = vpack.c.b16 %v515, %v513
    %v552 = vpack.c.b16 %v516, %v514
    %v553 = vpack.c.b16 %v519, %v517
    %v554 = vpack.c.b16 %v520, %v518
    %v555 = vpack.c.b16 %v523, %v521
    %v556 = vpack.c.b16 %v524, %v522
    %v557 = vpack.c.b16 %v527, %v525
    %v558 = vpack.c.b16 %v528, %v526
    %v559 = vpack.c.b16 %v531, %v529
    %v560 = vpack.c.b16 %v532, %v530
    %589 = vmatprep.subr.bf16.mxu0 %v548
    %590 = vmatpush1.bf16.msra.mxu0 %v547
    %591 = vmatprep.subr.bf16.mxu0 %v546
    %592 = vmatpush1.bf16.msra.mxu0 %v545
    %593 = vmatprep.subr.bf16.mxu0 %v544
    %594 = vmatpush1.bf16.msra.mxu0 %v543
    %595 = vmatprep.subr.bf16.mxu0 %v542
    %596 = vmatpush1.bf16.msra.mxu0 %v541
    %597 = vmatprep.subr.bf16.mxu0 %v540
    %598 = vmatpush1.bf16.msra.mxu0 %v539
    %599 = vmatprep.subr.bf16.mxu0 %v538
    %600 = vmatpush1.bf16.msra.mxu0 %v537
    %601 = vmatprep.subr.bf16.mxu0 %v536
    %602 = vmatpush1.bf16.msra.mxu0 %v535
    %603 = vmatprep.subr.bf16.mxu0 %v534
    %604 = vmatpush1.bf16.msra.mxu0 %v533
    %605 = vmatprep.subr.bf16.mxu0 0
    %606 = vmatpush2.bf16.msra.mxu0 0
    %607 = vmatprep.subr.bf16.mxu0 0
    %608 = vmatpush2.bf16.msra.mxu0 0
    %609 = vmatprep.subr.bf16.mxu0 %v560
    %610 = vmatpush2.bf16.msra.mxu0 %v559
    %611 = vmatprep.subr.bf16.mxu0 %v558
    %612 = vmatpush2.bf16.msra.mxu0 %v557
    %613 = vmatprep.subr.bf16.mxu0 %v556
    %614 = vmatpush2.bf16.msra.mxu0 %v555
    %615 = vmatprep.subr.bf16.mxu0 %v554
    %616 = vmatpush2.bf16.msra.mxu0 %v553
    %617 = vmatprep.subr.bf16.mxu0 %v552
    %618 = vmatpush2.bf16.msra.mxu0 %v551
    %619 = vmatprep.subr.bf16.mxu0 %v550
    %620 = vmatpush2.bf16.msra.mxu0 %v549
    %621 = vmatprep.mubr.bf16.mxu0 %v406
    %622 = vmatmul.mubr.bf16.gmra.mxu0 %v141
    %v623 = vpop.f32.mrf.mxu0
    %v624 = vadd.f32 0.0, %v623
    %v625 = vpop.f32.mrf.mxu0
    %v626 = vadd.f32 0.0, %v625
    %v627 = vpop.f32.mrf.mxu0
    %v628 = vpop.f32.mrf.mxu0
    %629 = vdwg.mxu0
    %v630 = vmax.f32 %v443, %v624
    %v631 = vmax.f32 %v445, %v626
    %v660 = vunpack.c.l.b16 %v206
    %v661 = vunpack.c.h.b16 %v206
    %v662 = vunpack.c.l.b16 %v207
    %v663 = vunpack.c.h.b16 %v207
    %v664 = vunpack.c.l.b16 %v208
    %v665 = vunpack.c.h.b16 %v208
    %v666 = vunpack.c.l.b16 %v209
    %v667 = vunpack.c.h.b16 %v209
    %v668 = vunpack.c.l.b16 %v210
    %v669 = vunpack.c.h.b16 %v210
    %v670 = vunpack.c.l.b16 %v211
    %v671 = vunpack.c.h.b16 %v211
    %v672 = vunpack.c.l.b16 %v212
    %v673 = vunpack.c.h.b16 %v212
    %v674 = vunpack.c.l.b16 %v213
    %v675 = vunpack.c.h.b16 %v213
    %v676 = vunpack.c.l.b16 %v214
    %v677 = vunpack.c.h.b16 %v214
    %v678 = vunpack.c.l.b16 %v215
    %v679 = vunpack.c.h.b16 %v215
    %v680 = vunpack.c.l.b16 %v216
    %v681 = vunpack.c.h.b16 %v216
    %v682 = vunpack.c.l.b16 %v217
    %v683 = vunpack.c.h.b16 %v217
    %v684 = vunpack.c.l.b16 %v218
    %v685 = vunpack.c.h.b16 %v218
    %v686 = vunpack.c.l.b16 %v219
    %v687 = vunpack.c.h.b16 %v219
    %v688 = vunpack.c.l.b16 %v220
    %v689 = vunpack.c.h.b16 %v220
    %v690 = vunpack.c.l.b16 %v221
    %v691 = vunpack.c.h.b16 %v221
    %v692 = vunpack.c.l.b16 %v222
    %v693 = vunpack.c.h.b16 %v222
    %v694 = vunpack.c.l.b16 %v223
    %v695 = vunpack.c.h.b16 %v223
    %v696 = vunpack.c.l.b16 %v224
    %v697 = vunpack.c.h.b16 %v224
    %v698 = vunpack.c.l.b16 %v225
    %v699 = vunpack.c.h.b16 %v225
    %v700 = vunpack.c.l.b16 %v226
    %v701 = vunpack.c.h.b16 %v226
    %v702 = vunpack.c.l.b16 %v227
    %v703 = vunpack.c.h.b16 %v227
    %v704 = vunpack.c.l.b16 %v228
    %v705 = vunpack.c.h.b16 %v228
    %v706 = vunpack.c.l.b16 %v229
    %v707 = vunpack.c.h.b16 %v229
    %v708 = vunpack.c.l.b16 %v230
    %v709 = vunpack.c.h.b16 %v230
    %v710 = vunpack.c.l.b16 %v231
    %v711 = vunpack.c.h.b16 %v231
    %v712 = vunpack.c.l.b16 %v232
    %v713 = vunpack.c.h.b16 %v232
    %v714 = vunpack.c.l.b16 %v233
    %v715 = vunpack.c.h.b16 %v233
    %v716 = vpack.c.b16 %v662, %v660
    %v717 = vpack.c.b16 %v663, %v661
    %v718 = vpack.c.b16 %v666, %v664
    %v719 = vpack.c.b16 %v667, %v665
    %v720 = vpack.c.b16 %v670, %v668
    %v721 = vpack.c.b16 %v671, %v669
    %v722 = vpack.c.b16 %v674, %v672
    %v723 = vpack.c.b16 %v675, %v673
    %v724 = vpack.c.b16 %v678, %v676
    %v725 = vpack.c.b16 %v679, %v677
    %v726 = vpack.c.b16 %v682, %v680
    %v727 = vpack.c.b16 %v683, %v681
    %v728 = vpack.c.b16 %v686, %v684
    %v729 = vpack.c.b16 %v687, %v685
    %v730 = vpack.c.b16 %v690, %v688
    %v731 = vpack.c.b16 %v691, %v689
    %v732 = vpack.c.b16 %v694, %v692
    %v733 = vpack.c.b16 %v695, %v693
    %v734 = vpack.c.b16 %v698, %v696
    %v735 = vpack.c.b16 %v699, %v697
    %v736 = vpack.c.b16 %v702, %v700
    %v737 = vpack.c.b16 %v703, %v701
    %v738 = vpack.c.b16 %v706, %v704
    %v739 = vpack.c.b16 %v707, %v705
    %v740 = vpack.c.b16 %v710, %v708
    %v741 = vpack.c.b16 %v711, %v709
    %v742 = vpack.c.b16 %v714, %v712
    %v743 = vpack.c.b16 %v715, %v713
    %772 = vmatprep.subr.bf16.mxu0 %v731
    %773 = vmatpush1.bf16.msra.mxu0 %v730
    %774 = vmatprep.subr.bf16.mxu0 %v729
    %775 = vmatpush1.bf16.msra.mxu0 %v728
    %776 = vmatprep.subr.bf16.mxu0 %v727
    %777 = vmatpush1.bf16.msra.mxu0 %v726
    %778 = vmatprep.subr.bf16.mxu0 %v725
    %779 = vmatpush1.bf16.msra.mxu0 %v724
    %780 = vmatprep.subr.bf16.mxu0 %v723
    %781 = vmatpush1.bf16.msra.mxu0 %v722
    %782 = vmatprep.subr.bf16.mxu0 %v721
    %783 = vmatpush1.bf16.msra.mxu0 %v720
    %784 = vmatprep.subr.bf16.mxu0 %v719
    %785 = vmatpush1.bf16.msra.mxu0 %v718
    %786 = vmatprep.subr.bf16.mxu0 %v717
    %787 = vmatpush1.bf16.msra.mxu0 %v716
    %788 = vmatprep.subr.bf16.mxu0 0
    %789 = vmatpush2.bf16.msra.mxu0 0
    %790 = vmatprep.subr.bf16.mxu0 0
    %791 = vmatpush2.bf16.msra.mxu0 0
    %792 = vmatprep.subr.bf16.mxu0 %v743
    %793 = vmatpush2.bf16.msra.mxu0 %v742
    %794 = vmatprep.subr.bf16.mxu0 %v741
    %795 = vmatpush2.bf16.msra.mxu0 %v740
    %796 = vmatprep.subr.bf16.mxu0 %v739
    %797 = vmatpush2.bf16.msra.mxu0 %v738
    %798 = vmatprep.subr.bf16.mxu0 %v737
    %799 = vmatpush2.bf16.msra.mxu0 %v736
    %800 = vmatprep.subr.bf16.mxu0 %v735
    %801 = vmatpush2.bf16.msra.mxu0 %v734
    %802 = vmatprep.subr.bf16.mxu0 %v733
    %803 = vmatpush2.bf16.msra.mxu0 %v732
    %804 = vmatprep.mubr.bf16.mxu0 %v406
    %805 = vmatmul.mubr.bf16.gmra.mxu0 %v141
    %v806 = vpop.f32.mrf.mxu0
    %v807 = vadd.f32 0.0, %v806
    %v808 = vpop.f32.mrf.mxu0
    %v809 = vadd.f32 0.0, %v808
    %v810 = vpop.f32.mrf.mxu0
    %v811 = vpop.f32.mrf.mxu0
    %812 = vdwg.mxu0
    %v813 = vmax.f32 %v630, %v807
    %v814 = vmax.f32 %v631, %v809
    %v843 = vunpack.c.l.b16 %v235
    %v844 = vunpack.c.h.b16 %v235
    %v845 = vunpack.c.l.b16 %v236
    %v846 = vunpack.c.h.b16 %v236
    %v847 = vunpack.c.l.b16 %v237
    %v848 = vunpack.c.h.b16 %v237
    %v849 = vunpack.c.l.b16 %v238
    %v850 = vunpack.c.h.b16 %v238
    %v851 = vunpack.c.l.b16 %v239
    %v852 = vunpack.c.h.b16 %v239
    %v853 = vunpack.c.l.b16 %v240
    %v854 = vunpack.c.h.b16 %v240
    %v855 = vunpack.c.l.b16 %v241
    %v856 = vunpack.c.h.b16 %v241
    %v857 = vunpack.c.l.b16 %v242
    %v858 = vunpack.c.h.b16 %v242
    %v859 = vunpack.c.l.b16 %v243
    %v860 = vunpack.c.h.b16 %v243
    %v861 = vunpack.c.l.b16 %v244
    %v862 = vunpack.c.h.b16 %v244
    %v863 = vunpack.c.l.b16 %v245
    %v864 = vunpack.c.h.b16 %v245
    %v865 = vunpack.c.l.b16 %v246
    %v866 = vunpack.c.h.b16 %v246
    %v867 = vunpack.c.l.b16 %v247
    %v868 = vunpack.c.h.b16 %v247
    %v869 = vunpack.c.l.b16 %v248
    %v870 = vunpack.c.h.b16 %v248
    %v871 = vunpack.c.l.b16 %v249
    %v872 = vunpack.c.h.b16 %v249
    %v873 = vunpack.c.l.b16 %v250
    %v874 = vunpack.c.h.b16 %v250
    %v875 = vunpack.c.l.b16 %v251
    %v876 = vunpack.c.h.b16 %v251
    %v877 = vunpack.c.l.b16 %v252
    %v878 = vunpack.c.h.b16 %v252
    %v879 = vunpack.c.l.b16 %v253
    %v880 = vunpack.c.h.b16 %v253
    %v881 = vunpack.c.l.b16 %v254
    %v882 = vunpack.c.h.b16 %v254
    %v883 = vunpack.c.l.b16 %v255
    %v884 = vunpack.c.h.b16 %v255
    %v885 = vunpack.c.l.b16 %v256
    %v886 = vunpack.c.h.b16 %v256
    %v887 = vunpack.c.l.b16 %v257
    %v888 = vunpack.c.h.b16 %v257
    %v889 = vunpack.c.l.b16 %v258
    %v890 = vunpack.c.h.b16 %v258
    %v891 = vunpack.c.l.b16 %v259
    %v892 = vunpack.c.h.b16 %v259
    %v893 = vunpack.c.l.b16 %v260
    %v894 = vunpack.c.h.b16 %v260
    %v895 = vunpack.c.l.b16 %v261
    %v896 = vunpack.c.h.b16 %v261
    %v897 = vunpack.c.l.b16 %v262
    %v898 = vunpack.c.h.b16 %v262
    %v899 = vpack.c.b16 %v845, %v843
    %v900 = vpack.c.b16 %v846, %v844
    %v901 = vpack.c.b16 %v849, %v847
    %v902 = vpack.c.b16 %v850, %v848
    %v903 = vpack.c.b16 %v853, %v851
    %v904 = vpack.c.b16 %v854, %v852
    %v905 = vpack.c.b16 %v857, %v855
    %v906 = vpack.c.b16 %v858, %v856
    %v907 = vpack.c.b16 %v861, %v859
    %v908 = vpack.c.b16 %v862, %v860
    %v909 = vpack.c.b16 %v865, %v863
    %v910 = vpack.c.b16 %v866, %v864
    %v911 = vpack.c.b16 %v869, %v867
    %v912 = vpack.c.b16 %v870, %v868
    %v913 = vpack.c.b16 %v873, %v871
    %v914 = vpack.c.b16 %v874, %v872
    %v915 = vpack.c.b16 %v877, %v875
    %v916 = vpack.c.b16 %v878, %v876
    %v917 = vpack.c.b16 %v881, %v879
    %v918 = vpack.c.b16 %v882, %v880
    %v919 = vpack.c.b16 %v885, %v883
    %v920 = vpack.c.b16 %v886, %v884
    %v921 = vpack.c.b16 %v889, %v887
    %v922 = vpack.c.b16 %v890, %v888
    %v923 = vpack.c.b16 %v893, %v891
    %v924 = vpack.c.b16 %v894, %v892
    %v925 = vpack.c.b16 %v897, %v895
    %v926 = vpack.c.b16 %v898, %v896
    %955 = vmatprep.subr.bf16.mxu0 %v914
    %956 = vmatpush1.bf16.msra.mxu0 %v913
    %957 = vmatprep.subr.bf16.mxu0 %v912
    %958 = vmatpush1.bf16.msra.mxu0 %v911
    %959 = vmatprep.subr.bf16.mxu0 %v910
    %960 = vmatpush1.bf16.msra.mxu0 %v909
    %961 = vmatprep.subr.bf16.mxu0 %v908
    %962 = vmatpush1.bf16.msra.mxu0 %v907
    %963 = vmatprep.subr.bf16.mxu0 %v906
    %964 = vmatpush1.bf16.msra.mxu0 %v905
    %965 = vmatprep.subr.bf16.mxu0 %v904
    %966 = vmatpush1.bf16.msra.mxu0 %v903
    %967 = vmatprep.subr.bf16.mxu0 %v902
    %968 = vmatpush1.bf16.msra.mxu0 %v901
    %969 = vmatprep.subr.bf16.mxu0 %v900
    %970 = vmatpush1.bf16.msra.mxu0 %v899
    %971 = vmatprep.subr.bf16.mxu0 0
    %972 = vmatpush2.bf16.msra.mxu0 0
    %973 = vmatprep.subr.bf16.mxu0 0
    %974 = vmatpush2.bf16.msra.mxu0 0
    %975 = vmatprep.subr.bf16.mxu0 %v926
    %976 = vmatpush2.bf16.msra.mxu0 %v925
    %977 = vmatprep.subr.bf16.mxu0 %v924
    %978 = vmatpush2.bf16.msra.mxu0 %v923
    %979 = vmatprep.subr.bf16.mxu0 %v922
    %980 = vmatpush2.bf16.msra.mxu0 %v921
    %981 = vmatprep.subr.bf16.mxu0 %v920
    %982 = vmatpush2.bf16.msra.mxu0 %v919
    %983 = vmatprep.subr.bf16.mxu0 %v918
    %984 = vmatpush2.bf16.msra.mxu0 %v917
    %985 = vmatprep.subr.bf16.mxu0 %v916
    %986 = vmatpush2.bf16.msra.mxu0 %v915
    %987 = vmatprep.mubr.bf16.mxu0 %v406
    %988 = vmatmul.mubr.bf16.gmra.mxu0 %v141
    %v989 = vpop.f32.mrf.mxu0
    %v990 = vadd.f32 0.0, %v989
    %v991 = vpop.f32.mrf.mxu0
    %v992 = vadd.f32 0.0, %v991
    %v993 = vpop.f32.mrf.mxu0
    %v994 = vpop.f32.mrf.mxu0
    %995 = vdwg.mxu0
    %v996 = vmax.f32 %v813, %v990
    %v997 = vmax.f32 %v814, %v992
    %v999 = vlaneseq
    %v1000 = vshrl.u32 %v999, 7
    %v1001 = vsub.s32 0, %v1000
    %v1002 = vrot.slane %v263, %v1001
    %v1003 = vlaneseq
    %v1004 = vshrl.u32 %v1003, 7
    %v1005 = vsub.s32 1, %v1004
    %v1006 = vrot.slane %v263, %v1005
    %v1009 = vadd.f32 %v996, %v1002
    %v1010 = vadd.f32 %v997, %v1006
    %v1011 = vmax.f32 %v1009, 0.0
    %v1012 = vmax.f32 %v1010, 0.0
    %v1013 = vpack.c.bf16 %v1011, %v1011
    %v1014 = vpack.c.bf16 %v1012, %v1012
    %1018 = vrot.lane.b32.xlu0 %v141, 16
    %v1019 = vpop.permute.xlu0 %1018
    %1020 = vrot.lane.b32.xlu0 %v142, 16
    %v1021 = vpop.permute.xlu0 %1020
    %1022 = vrot.lane.b32.xlu0 %v143, 16
    %v1023 = vpop.permute.xlu0 %1022
    %vm1024 = vcmask 130048
    %v1025 = vsel %vm1024, %v1019, %v1021
    %v1026 = vsel %vm1024, %v1021, %v1023
    %v1029 = vsel %vm404, %v1026, 0
    %1031 = vmatprep.subr.bf16.mxu0 %v363
    %1032 = vmatpush1.bf16.msra.mxu0 %v362
    %1033 = vmatprep.subr.bf16.mxu0 %v361
    %1034 = vmatpush1.bf16.msra.mxu0 %v360
    %1035 = vmatprep.subr.bf16.mxu0 %v359
    %1036 = vmatpush1.bf16.msra.mxu0 %v358
    %1037 = vmatprep.subr.bf16.mxu0 %v357
    %1038 = vmatpush1.bf16.msra.mxu0 %v356
    %1039 = vmatprep.subr.bf16.mxu0 %v355
    %1040 = vmatpush1.bf16.msra.mxu0 %v354
    %1041 = vmatprep.subr.bf16.mxu0 %v353
    %1042 = vmatpush1.bf16.msra.mxu0 %v352
    %1043 = vmatprep.subr.bf16.mxu0 %v351
    %1044 = vmatpush1.bf16.msra.mxu0 %v350
    %1045 = vmatprep.subr.bf16.mxu0 %v349
    %1046 = vmatpush1.bf16.msra.mxu0 %v348
    %1047 = vmatprep.subr.bf16.mxu0 0
    %1048 = vmatpush2.bf16.msra.mxu0 0
    %1049 = vmatprep.subr.bf16.mxu0 0
    %1050 = vmatpush2.bf16.msra.mxu0 0
    %1051 = vmatprep.subr.bf16.mxu0 %v375
    %1052 = vmatpush2.bf16.msra.mxu0 %v374
    %1053 = vmatprep.subr.bf16.mxu0 %v373
    %1054 = vmatpush2.bf16.msra.mxu0 %v372
    %1055 = vmatprep.subr.bf16.mxu0 %v371
    %1056 = vmatpush2.bf16.msra.mxu0 %v370
    %1057 = vmatprep.subr.bf16.mxu0 %v369
    %1058 = vmatpush2.bf16.msra.mxu0 %v368
    %1059 = vmatprep.subr.bf16.mxu0 %v367
    %1060 = vmatpush2.bf16.msra.mxu0 %v366
    %1061 = vmatprep.subr.bf16.mxu0 %v365
    %1062 = vmatpush2.bf16.msra.mxu0 %v364
    %1063 = vmatprep.mubr.bf16.mxu0 %v1029
    %1064 = vmatmul.mubr.bf16.gmra.mxu0 %v1025
    %v1065 = vpop.f32.mrf.mxu0
    %v1066 = vadd.f32 0.0, %v1065
    %v1067 = vpop.f32.mrf.mxu0
    %v1068 = vadd.f32 0.0, %v1067
    %v1069 = vpop.f32.mrf.mxu0
    %v1070 = vpop.f32.mrf.mxu0
    %1071 = vdwg.mxu0
    %1072 = vmatprep.subr.bf16.mxu0 %v548
    %1073 = vmatpush1.bf16.msra.mxu0 %v547
    %1074 = vmatprep.subr.bf16.mxu0 %v546
    %1075 = vmatpush1.bf16.msra.mxu0 %v545
    %1076 = vmatprep.subr.bf16.mxu0 %v544
    %1077 = vmatpush1.bf16.msra.mxu0 %v543
    %1078 = vmatprep.subr.bf16.mxu0 %v542
    %1079 = vmatpush1.bf16.msra.mxu0 %v541
    %1080 = vmatprep.subr.bf16.mxu0 %v540
    %1081 = vmatpush1.bf16.msra.mxu0 %v539
    %1082 = vmatprep.subr.bf16.mxu0 %v538
    %1083 = vmatpush1.bf16.msra.mxu0 %v537
    %1084 = vmatprep.subr.bf16.mxu0 %v536
    %1085 = vmatpush1.bf16.msra.mxu0 %v535
    %1086 = vmatprep.subr.bf16.mxu0 %v534
    %1087 = vmatpush1.bf16.msra.mxu0 %v533
    %1088 = vmatprep.subr.bf16.mxu0 0
    %1089 = vmatpush2.bf16.msra.mxu0 0
    %1090 = vmatprep.subr.bf16.mxu0 0
    %1091 = vmatpush2.bf16.msra.mxu0 0
    %1092 = vmatprep.subr.bf16.mxu0 %v560
    %1093 = vmatpush2.bf16.msra.mxu0 %v559
    %1094 = vmatprep.subr.bf16.mxu0 %v558
    %1095 = vmatpush2.bf16.msra.mxu0 %v557
    %1096 = vmatprep.subr.bf16.mxu0 %v556
    %1097 = vmatpush2.bf16.msra.mxu0 %v555
    %1098 = vmatprep.subr.bf16.mxu0 %v554
    %1099 = vmatpush2.bf16.msra.mxu0 %v553
    %1100 = vmatprep.subr.bf16.mxu0 %v552
    %1101 = vmatpush2.bf16.msra.mxu0 %v551
    %1102 = vmatprep.subr.bf16.mxu0 %v550
    %1103 = vmatpush2.bf16.msra.mxu0 %v549
    %1104 = vmatprep.mubr.bf16.mxu0 %v1029
    %1105 = vmatmul.mubr.bf16.gmra.mxu0 %v1025
    %v1106 = vpop.f32.mrf.mxu0
    %v1107 = vadd.f32 0.0, %v1106
    %v1108 = vpop.f32.mrf.mxu0
    %v1109 = vadd.f32 0.0, %v1108
    %v1110 = vpop.f32.mrf.mxu0
    %v1111 = vpop.f32.mrf.mxu0
    %1112 = vdwg.mxu0
    %v1113 = vmax.f32 %v1066, %v1107
    %v1114 = vmax.f32 %v1068, %v1109
    %1115 = vmatprep.subr.bf16.mxu0 %v731
    %1116 = vmatpush1.bf16.msra.mxu0 %v730
    %1117 = vmatprep.subr.bf16.mxu0 %v729
    %1118 = vmatpush1.bf16.msra.mxu0 %v728
    %1119 = vmatprep.subr.bf16.mxu0 %v727
    %1120 = vmatpush1.bf16.msra.mxu0 %v726
    %1121 = vmatprep.subr.bf16.mxu0 %v725
    %1122 = vmatpush1.bf16.msra.mxu0 %v724
    %1123 = vmatprep.subr.bf16.mxu0 %v723
    %1124 = vmatpush1.bf16.msra.mxu0 %v722
    %1125 = vmatprep.subr.bf16.mxu0 %v721
    %1126 = vmatpush1.bf16.msra.mxu0 %v720
    %1127 = vmatprep.subr.bf16.mxu0 %v719
    %1128 = vmatpush1.bf16.msra.mxu0 %v718
    %1129 = vmatprep.subr.bf16.mxu0 %v717
    %1130 = vmatpush1.bf16.msra.mxu0 %v716
    %1131 = vmatprep.subr.bf16.mxu0 0
    %1132 = vmatpush2.bf16.msra.mxu0 0
    %1133 = vmatprep.subr.bf16.mxu0 0
    %1134 = vmatpush2.bf16.msra.mxu0 0
    %1135 = vmatprep.subr.bf16.mxu0 %v743
    %1136 = vmatpush2.bf16.msra.mxu0 %v742
    %1137 = vmatprep.subr.bf16.mxu0 %v741
    %1138 = vmatpush2.bf16.msra.mxu0 %v740
    %1139 = vmatprep.subr.bf16.mxu0 %v739
    %1140 = vmatpush2.bf16.msra.mxu0 %v738
    %1141 = vmatprep.subr.bf16.mxu0 %v737
    %1142 = vmatpush2.bf16.msra.mxu0 %v736
    %1143 = vmatprep.subr.bf16.mxu0 %v735
    %1144 = vmatpush2.bf16.msra.mxu0 %v734
    %1145 = vmatprep.subr.bf16.mxu0 %v733
    %1146 = vmatpush2.bf16.msra.mxu0 %v732
    %1147 = vmatprep.mubr.bf16.mxu0 %v1029
    %1148 = vmatmul.mubr.bf16.gmra.mxu0 %v1025
    %v1149 = vpop.f32.mrf.mxu0
    %v1150 = vadd.f32 0.0, %v1149
    %v1151 = vpop.f32.mrf.mxu0
    %v1152 = vadd.f32 0.0, %v1151
    %v1153 = vpop.f32.mrf.mxu0
    %v1154 = vpop.f32.mrf.mxu0
    %1155 = vdwg.mxu0
    %v1156 = vmax.f32 %v1113, %v1150
    %v1157 = vmax.f32 %v1114, %v1152
    %1158 = vmatprep.subr.bf16.mxu0 %v914
    %1159 = vmatpush1.bf16.msra.mxu0 %v913
    %1160 = vmatprep.subr.bf16.mxu0 %v912
    %1161 = vmatpush1.bf16.msra.mxu0 %v911
    %1162 = vmatprep.subr.bf16.mxu0 %v910
    %1163 = vmatpush1.bf16.msra.mxu0 %v909
    %1164 = vmatprep.subr.bf16.mxu0 %v908
    %1165 = vmatpush1.bf16.msra.mxu0 %v907
    %1166 = vmatprep.subr.bf16.mxu0 %v906
    %1167 = vmatpush1.bf16.msra.mxu0 %v905
    %1168 = vmatprep.subr.bf16.mxu0 %v904
    %1169 = vmatpush1.bf16.msra.mxu0 %v903
    %1170 = vmatprep.subr.bf16.mxu0 %v902
    %1171 = vmatpush1.bf16.msra.mxu0 %v901
    %1172 = vmatprep.subr.bf16.mxu0 %v900
    %1173 = vmatpush1.bf16.msra.mxu0 %v899
    %1174 = vmatprep.subr.bf16.mxu0 0
    %1175 = vmatpush2.bf16.msra.mxu0 0
    %1176 = vmatprep.subr.bf16.mxu0 0
    %1177 = vmatpush2.bf16.msra.mxu0 0
    %1178 = vmatprep.subr.bf16.mxu0 %v926
    %1179 = vmatpush2.bf16.msra.mxu0 %v925
    %1180 = vmatprep.subr.bf16.mxu0 %v924
    %1181 = vmatpush2.bf16.msra.mxu0 %v923
    %1182 = vmatprep.subr.bf16.mxu0 %v922
    %1183 = vmatpush2.bf16.msra.mxu0 %v921
    %1184 = vmatprep.subr.bf16.mxu0 %v920
    %1185 = vmatpush2.bf16.msra.mxu0 %v919
    %1186 = vmatprep.subr.bf16.mxu0 %v918
    %1187 = vmatpush2.bf16.msra.mxu0 %v917
    %1188 = vmatprep.subr.bf16.mxu0 %v916
    %1189 = vmatpush2.bf16.msra.mxu0 %v915
    %1190 = vmatprep.mubr.bf16.mxu0 %v1029
    %1191 = vmatmul.mubr.bf16.gmra.mxu0 %v1025
    %v1192 = vpop.f32.mrf.mxu0
    %v1193 = vadd.f32 0.0, %v1192
    %v1194 = vpop.f32.mrf.mxu0
    %v1195 = vadd.f32 0.0, %v1194
    %v1196 = vpop.f32.mrf.mxu0
    %v1197 = vpop.f32.mrf.mxu0
    %1198 = vdwg.mxu0
    %v1199 = vmax.f32 %v1156, %v1193
    %v1200 = vmax.f32 %v1157, %v1195
    %v1201 = vadd.f32 %v1199, %v1002
    %v1202 = vadd.f32 %v1200, %v1006
    %v1203 = vmax.f32 %v1201, 0.0
    %v1204 = vmax.f32 %v1202, 0.0
    %v1205 = vpack.c.bf16 %v1203, %v1203
    %v1206 = vpack.c.bf16 %v1204, %v1204
    %1208 = vrot.lane.b32.xlu0 %v142, 32
    %v1209 = vpop.permute.xlu0 %1208
    %1210 = vrot.lane.b32.xlu0 %v143, 32
    %v1211 = vpop.permute.xlu0 %1210
    %1212 = vrot.lane.b32.xlu0 %v144, 32
    %v1213 = vpop.permute.xlu0 %1212
    %vm1214 = vcmask 261120
    %v1215 = vsel %vm1214, %v1209, %v1211
    %v1216 = vsel %vm1214, %v1211, %v1213
    %v1219 = vsel %vm404, %v1216, 0
    %1221 = vmatprep.subr.bf16.mxu0 %v363
    %1222 = vmatpush1.bf16.msra.mxu0 %v362
    %1223 = vmatprep.subr.bf16.mxu0 %v361
    %1224 = vmatpush1.bf16.msra.mxu0 %v360
    %1225 = vmatprep.subr.bf16.mxu0 %v359
    %1226 = vmatpush1.bf16.msra.mxu0 %v358
    %1227 = vmatprep.subr.bf16.mxu0 %v357
    %1228 = vmatpush1.bf16.msra.mxu0 %v356
    %1229 = vmatprep.subr.bf16.mxu0 %v355
    %1230 = vmatpush1.bf16.msra.mxu0 %v354
    %1231 = vmatprep.subr.bf16.mxu0 %v353
    %1232 = vmatpush1.bf16.msra.mxu0 %v352
    %1233 = vmatprep.subr.bf16.mxu0 %v351
    %1234 = vmatpush1.bf16.msra.mxu0 %v350
    %1235 = vmatprep.subr.bf16.mxu0 %v349
    %1236 = vmatpush1.bf16.msra.mxu0 %v348
    %1237 = vmatprep.subr.bf16.mxu0 0
    %1238 = vmatpush2.bf16.msra.mxu0 0
    %1239 = vmatprep.subr.bf16.mxu0 0
    %1240 = vmatpush2.bf16.msra.mxu0 0
    %1241 = vmatprep.subr.bf16.mxu0 %v375
    %1242 = vmatpush2.bf16.msra.mxu0 %v374
    %1243 = vmatprep.subr.bf16.mxu0 %v373
    %1244 = vmatpush2.bf16.msra.mxu0 %v372
    %1245 = vmatprep.subr.bf16.mxu0 %v371
    %1246 = vmatpush2.bf16.msra.mxu0 %v370
    %1247 = vmatprep.subr.bf16.mxu0 %v369
    %1248 = vmatpush2.bf16.msra.mxu0 %v368
    %1249 = vmatprep.subr.bf16.mxu0 %v367
    %1250 = vmatpush2.bf16.msra.mxu0 %v366
    %1251 = vmatprep.subr.bf16.mxu0 %v365
    %1252 = vmatpush2.bf16.msra.mxu0 %v364
    %1253 = vmatprep.mubr.bf16.mxu0 %v1219
    %1254 = vmatmul.mubr.bf16.gmra.mxu0 %v1215
    %v1255 = vpop.f32.mrf.mxu0
    %v1256 = vadd.f32 0.0, %v1255
    %v1257 = vpop.f32.mrf.mxu0
    %v1258 = vadd.f32 0.0, %v1257
    %v1259 = vpop.f32.mrf.mxu0
    %v1260 = vpop.f32.mrf.mxu0
    %1261 = vdwg.mxu0
    %1262 = vmatprep.subr.bf16.mxu0 %v548
    %1263 = vmatpush1.bf16.msra.mxu0 %v547
    %1264 = vmatprep.subr.bf16.mxu0 %v546
    %1265 = vmatpush1.bf16.msra.mxu0 %v545
    %1266 = vmatprep.subr.bf16.mxu0 %v544
    %1267 = vmatpush1.bf16.msra.mxu0 %v543
    %1268 = vmatprep.subr.bf16.mxu0 %v542
    %1269 = vmatpush1.bf16.msra.mxu0 %v541
    %1270 = vmatprep.subr.bf16.mxu0 %v540
    %1271 = vmatpush1.bf16.msra.mxu0 %v539
    %1272 = vmatprep.subr.bf16.mxu0 %v538
    %1273 = vmatpush1.bf16.msra.mxu0 %v537
    %1274 = vmatprep.subr.bf16.mxu0 %v536
    %1275 = vmatpush1.bf16.msra.mxu0 %v535
    %1276 = vmatprep.subr.bf16.mxu0 %v534
    %1277 = vmatpush1.bf16.msra.mxu0 %v533
    %1278 = vmatprep.subr.bf16.mxu0 0
    %1279 = vmatpush2.bf16.msra.mxu0 0
    %1280 = vmatprep.subr.bf16.mxu0 0
    %1281 = vmatpush2.bf16.msra.mxu0 0
    %1282 = vmatprep.subr.bf16.mxu0 %v560
    %1283 = vmatpush2.bf16.msra.mxu0 %v559
    %1284 = vmatprep.subr.bf16.mxu0 %v558
    %1285 = vmatpush2.bf16.msra.mxu0 %v557
    %1286 = vmatprep.subr.bf16.mxu0 %v556
    %1287 = vmatpush2.bf16.msra.mxu0 %v555
    %1288 = vmatprep.subr.bf16.mxu0 %v554
    %1289 = vmatpush2.bf16.msra.mxu0 %v553
    %1290 = vmatprep.subr.bf16.mxu0 %v552
    %1291 = vmatpush2.bf16.msra.mxu0 %v551
    %1292 = vmatprep.subr.bf16.mxu0 %v550
    %1293 = vmatpush2.bf16.msra.mxu0 %v549
    %1294 = vmatprep.mubr.bf16.mxu0 %v1219
    %1295 = vmatmul.mubr.bf16.gmra.mxu0 %v1215
    %v1296 = vpop.f32.mrf.mxu0
    %v1297 = vadd.f32 0.0, %v1296
    %v1298 = vpop.f32.mrf.mxu0
    %v1299 = vadd.f32 0.0, %v1298
    %v1300 = vpop.f32.mrf.mxu0
    %v1301 = vpop.f32.mrf.mxu0
    %1302 = vdwg.mxu0
    %v1303 = vmax.f32 %v1256, %v1297
    %v1304 = vmax.f32 %v1258, %v1299
    %1305 = vmatprep.subr.bf16.mxu0 %v731
    %1306 = vmatpush1.bf16.msra.mxu0 %v730
    %1307 = vmatprep.subr.bf16.mxu0 %v729
    %1308 = vmatpush1.bf16.msra.mxu0 %v728
    %1309 = vmatprep.subr.bf16.mxu0 %v727
    %1310 = vmatpush1.bf16.msra.mxu0 %v726
    %1311 = vmatprep.subr.bf16.mxu0 %v725
    %1312 = vmatpush1.bf16.msra.mxu0 %v724
    %1313 = vmatprep.subr.bf16.mxu0 %v723
    %1314 = vmatpush1.bf16.msra.mxu0 %v722
    %1315 = vmatprep.subr.bf16.mxu0 %v721
    %1316 = vmatpush1.bf16.msra.mxu0 %v720
    %1317 = vmatprep.subr.bf16.mxu0 %v719
    %1318 = vmatpush1.bf16.msra.mxu0 %v718
    %1319 = vmatprep.subr.bf16.mxu0 %v717
    %1320 = vmatpush1.bf16.msra.mxu0 %v716
    %1321 = vmatprep.subr.bf16.mxu0 0
    %1322 = vmatpush2.bf16.msra.mxu0 0
    %1323 = vmatprep.subr.bf16.mxu0 0
    %1324 = vmatpush2.bf16.msra.mxu0 0
    %1325 = vmatprep.subr.bf16.mxu0 %v743
    %1326 = vmatpush2.bf16.msra.mxu0 %v742
    %1327 = vmatprep.subr.bf16.mxu0 %v741
    %1328 = vmatpush2.bf16.msra.mxu0 %v740
    %1329 = vmatprep.subr.bf16.mxu0 %v739
    %1330 = vmatpush2.bf16.msra.mxu0 %v738
    %1331 = vmatprep.subr.bf16.mxu0 %v737
    %1332 = vmatpush2.bf16.msra.mxu0 %v736
    %1333 = vmatprep.subr.bf16.mxu0 %v735
    %1334 = vmatpush2.bf16.msra.mxu0 %v734
    %1335 = vmatprep.subr.bf16.mxu0 %v733
    %1336 = vmatpush2.bf16.msra.mxu0 %v732
    %1337 = vmatprep.mubr.bf16.mxu0 %v1219
    %1338 = vmatmul.mubr.bf16.gmra.mxu0 %v1215
    %v1339 = vpop.f32.mrf.mxu0
    %v1340 = vadd.f32 0.0, %v1339
    %v1341 = vpop.f32.mrf.mxu0
    %v1342 = vadd.f32 0.0, %v1341
    %v1343 = vpop.f32.mrf.mxu0
    %v1344 = vpop.f32.mrf.mxu0
    %1345 = vdwg.mxu0
    %v1346 = vmax.f32 %v1303, %v1340
    %v1347 = vmax.f32 %v1304, %v1342
    %1348 = vmatprep.subr.bf16.mxu0 %v914
    %1349 = vmatpush1.bf16.msra.mxu0 %v913
    %1350 = vmatprep.subr.bf16.mxu0 %v912
    %1351 = vmatpush1.bf16.msra.mxu0 %v911
    %1352 = vmatprep.subr.bf16.mxu0 %v910
    %1353 = vmatpush1.bf16.msra.mxu0 %v909
    %1354 = vmatprep.subr.bf16.mxu0 %v908
    %1355 = vmatpush1.bf16.msra.mxu0 %v907
    %1356 = vmatprep.subr.bf16.mxu0 %v906
    %1357 = vmatpush1.bf16.msra.mxu0 %v905
    %1358 = vmatprep.subr.bf16.mxu0 %v904
    %1359 = vmatpush1.bf16.msra.mxu0 %v903
    %1360 = vmatprep.subr.bf16.mxu0 %v902
    %1361 = vmatpush1.bf16.msra.mxu0 %v901
    %1362 = vmatprep.subr.bf16.mxu0 %v900
    %1363 = vmatpush1.bf16.msra.mxu0 %v899
    %1364 = vmatprep.subr.bf16.mxu0 0
    %1365 = vmatpush2.bf16.msra.mxu0 0
    %1366 = vmatprep.subr.bf16.mxu0 0
    %1367 = vmatpush2.bf16.msra.mxu0 0
    %1368 = vmatprep.subr.bf16.mxu0 %v926
    %1369 = vmatpush2.bf16.msra.mxu0 %v925
    %1370 = vmatprep.subr.bf16.mxu0 %v924
    %1371 = vmatpush2.bf16.msra.mxu0 %v923
    %1372 = vmatprep.subr.bf16.mxu0 %v922
    %1373 = vmatpush2.bf16.msra.mxu0 %v921
    %1374 = vmatprep.subr.bf16.mxu0 %v920
    %1375 = vmatpush2.bf16.msra.mxu0 %v919
    %1376 = vmatprep.subr.bf16.mxu0 %v918
    %1377 = vmatpush2.bf16.msra.mxu0 %v917
    %1378 = vmatprep.subr.bf16.mxu0 %v916
    %1379 = vmatpush2.bf16.msra.mxu0 %v915
    %1380 = vmatprep.mubr.bf16.mxu0 %v1219
    %1381 = vmatmul.mubr.bf16.gmra.mxu0 %v1215
    %v1382 = vpop.f32.mrf.mxu0
    %v1383 = vadd.f32 0.0, %v1382
    %v1384 = vpop.f32.mrf.mxu0
    %v1385 = vadd.f32 0.0, %v1384
    %v1386 = vpop.f32.mrf.mxu0
    %v1387 = vpop.f32.mrf.mxu0
    %1388 = vdwg.mxu0
    %v1389 = vmax.f32 %v1346, %v1383
    %v1390 = vmax.f32 %v1347, %v1385
    %v1391 = vadd.f32 %v1389, %v1002
    %v1392 = vadd.f32 %v1390, %v1006
    %v1393 = vmax.f32 %v1391, 0.0
    %v1394 = vmax.f32 %v1392, 0.0
    %v1395 = vpack.c.bf16 %v1393, %v1393
    %v1396 = vpack.c.bf16 %v1394, %v1394
    %1398 = vrot.lane.b32.xlu0 %v143, 48
    %v1399 = vpop.permute.xlu0 %1398
    %1400 = vrot.lane.b32.xlu0 %v144, 48
    %v1401 = vpop.permute.xlu0 %1400
    %1402 = vrot.lane.b32.xlu0 %v145, 48
    %v1403 = vpop.permute.xlu0 %1402
    %vm1404 = vcmask 392192
    %v1405 = vsel %vm1404, %v1399, %v1401
    %v1406 = vsel %vm1404, %v1401, %v1403
    %v1409 = vsel %vm404, %v1406, 0
    %1411 = vmatprep.subr.bf16.mxu0 %v363
    %1412 = vmatpush1.bf16.msra.mxu0 %v362
    %1413 = vmatprep.subr.bf16.mxu0 %v361
    %1414 = vmatpush1.bf16.msra.mxu0 %v360
    %1415 = vmatprep.subr.bf16.mxu0 %v359
    %1416 = vmatpush1.bf16.msra.mxu0 %v358
    %1417 = vmatprep.subr.bf16.mxu0 %v357
    %1418 = vmatpush1.bf16.msra.mxu0 %v356
    %1419 = vmatprep.subr.bf16.mxu0 %v355
    %1420 = vmatpush1.bf16.msra.mxu0 %v354
    %1421 = vmatprep.subr.bf16.mxu0 %v353
    %1422 = vmatpush1.bf16.msra.mxu0 %v352
    %1423 = vmatprep.subr.bf16.mxu0 %v351
    %1424 = vmatpush1.bf16.msra.mxu0 %v350
    %1425 = vmatprep.subr.bf16.mxu0 %v349
    %1426 = vmatpush1.bf16.msra.mxu0 %v348
    %1427 = vmatprep.subr.bf16.mxu0 0
    %1428 = vmatpush2.bf16.msra.mxu0 0
    %1429 = vmatprep.subr.bf16.mxu0 0
    %1430 = vmatpush2.bf16.msra.mxu0 0
    %1431 = vmatprep.subr.bf16.mxu0 %v375
    %1432 = vmatpush2.bf16.msra.mxu0 %v374
    %1433 = vmatprep.subr.bf16.mxu0 %v373
    %1434 = vmatpush2.bf16.msra.mxu0 %v372
    %1435 = vmatprep.subr.bf16.mxu0 %v371
    %1436 = vmatpush2.bf16.msra.mxu0 %v370
    %1437 = vmatprep.subr.bf16.mxu0 %v369
    %1438 = vmatpush2.bf16.msra.mxu0 %v368
    %1439 = vmatprep.subr.bf16.mxu0 %v367
    %1440 = vmatpush2.bf16.msra.mxu0 %v366
    %1441 = vmatprep.subr.bf16.mxu0 %v365
    %1442 = vmatpush2.bf16.msra.mxu0 %v364
    %1443 = vmatprep.mubr.bf16.mxu0 %v1409
    %1444 = vmatmul.mubr.bf16.gmra.mxu0 %v1405
    %v1445 = vpop.f32.mrf.mxu0
    %v1446 = vadd.f32 0.0, %v1445
    %v1447 = vpop.f32.mrf.mxu0
    %v1448 = vadd.f32 0.0, %v1447
    %v1449 = vpop.f32.mrf.mxu0
    %v1450 = vpop.f32.mrf.mxu0
    %1451 = vdwg.mxu0
    %1452 = vmatprep.subr.bf16.mxu0 %v548
    %1453 = vmatpush1.bf16.msra.mxu0 %v547
    %1454 = vmatprep.subr.bf16.mxu0 %v546
    %1455 = vmatpush1.bf16.msra.mxu0 %v545
    %1456 = vmatprep.subr.bf16.mxu0 %v544
    %1457 = vmatpush1.bf16.msra.mxu0 %v543
    %1458 = vmatprep.subr.bf16.mxu0 %v542
    %1459 = vmatpush1.bf16.msra.mxu0 %v541
    %1460 = vmatprep.subr.bf16.mxu0 %v540
    %1461 = vmatpush1.bf16.msra.mxu0 %v539
    %1462 = vmatprep.subr.bf16.mxu0 %v538
    %1463 = vmatpush1.bf16.msra.mxu0 %v537
    %1464 = vmatprep.subr.bf16.mxu0 %v536
    %1465 = vmatpush1.bf16.msra.mxu0 %v535
    %1466 = vmatprep.subr.bf16.mxu0 %v534
    %1467 = vmatpush1.bf16.msra.mxu0 %v533
    %1468 = vmatprep.subr.bf16.mxu0 0
    %1469 = vmatpush2.bf16.msra.mxu0 0
    %1470 = vmatprep.subr.bf16.mxu0 0
    %1471 = vmatpush2.bf16.msra.mxu0 0
    %1472 = vmatprep.subr.bf16.mxu0 %v560
    %1473 = vmatpush2.bf16.msra.mxu0 %v559
    %1474 = vmatprep.subr.bf16.mxu0 %v558
    %1475 = vmatpush2.bf16.msra.mxu0 %v557
    %1476 = vmatprep.subr.bf16.mxu0 %v556
    %1477 = vmatpush2.bf16.msra.mxu0 %v555
    %1478 = vmatprep.subr.bf16.mxu0 %v554
    %1479 = vmatpush2.bf16.msra.mxu0 %v553
    %1480 = vmatprep.subr.bf16.mxu0 %v552
    %1481 = vmatpush2.bf16.msra.mxu0 %v551
    %1482 = vmatprep.subr.bf16.mxu0 %v550
    %1483 = vmatpush2.bf16.msra.mxu0 %v549
    %1484 = vmatprep.mubr.bf16.mxu0 %v1409
    %1485 = vmatmul.mubr.bf16.gmra.mxu0 %v1405
    %v1486 = vpop.f32.mrf.mxu0
    %v1487 = vadd.f32 0.0, %v1486
    %v1488 = vpop.f32.mrf.mxu0
    %v1489 = vadd.f32 0.0, %v1488
    %v1490 = vpop.f32.mrf.mxu0
    %v1491 = vpop.f32.mrf.mxu0
    %1492 = vdwg.mxu0
    %v1493 = vmax.f32 %v1446, %v1487
    %v1494 = vmax.f32 %v1448, %v1489
    %1495 = vmatprep.subr.bf16.mxu0 %v731
    %1496 = vmatpush1.bf16.msra.mxu0 %v730
    %1497 = vmatprep.subr.bf16.mxu0 %v729
    %1498 = vmatpush1.bf16.msra.mxu0 %v728
    %1499 = vmatprep.subr.bf16.mxu0 %v727
    %1500 = vmatpush1.bf16.msra.mxu0 %v726
    %1501 = vmatprep.subr.bf16.mxu0 %v725
    %1502 = vmatpush1.bf16.msra.mxu0 %v724
    %1503 = vmatprep.subr.bf16.mxu0 %v723
    %1504 = vmatpush1.bf16.msra.mxu0 %v722
    %1505 = vmatprep.subr.bf16.mxu0 %v721
    %1506 = vmatpush1.bf16.msra.mxu0 %v720
    %1507 = vmatprep.subr.bf16.mxu0 %v719
    %1508 = vmatpush1.bf16.msra.mxu0 %v718
    %1509 = vmatprep.subr.bf16.mxu0 %v717
    %1510 = vmatpush1.bf16.msra.mxu0 %v716
    %1511 = vmatprep.subr.bf16.mxu0 0
    %1512 = vmatpush2.bf16.msra.mxu0 0
    %1513 = vmatprep.subr.bf16.mxu0 0
    %1514 = vmatpush2.bf16.msra.mxu0 0
    %1515 = vmatprep.subr.bf16.mxu0 %v743
    %1516 = vmatpush2.bf16.msra.mxu0 %v742
    %1517 = vmatprep.subr.bf16.mxu0 %v741
    %1518 = vmatpush2.bf16.msra.mxu0 %v740
    %1519 = vmatprep.subr.bf16.mxu0 %v739
    %1520 = vmatpush2.bf16.msra.mxu0 %v738
    %1521 = vmatprep.subr.bf16.mxu0 %v737
    %1522 = vmatpush2.bf16.msra.mxu0 %v736
    %1523 = vmatprep.subr.bf16.mxu0 %v735
    %1524 = vmatpush2.bf16.msra.mxu0 %v734
    %1525 = vmatprep.subr.bf16.mxu0 %v733
    %1526 = vmatpush2.bf16.msra.mxu0 %v732
    %1527 = vmatprep.mubr.bf16.mxu0 %v1409
    %1528 = vmatmul.mubr.bf16.gmra.mxu0 %v1405
    %v1529 = vpop.f32.mrf.mxu0
    %v1530 = vadd.f32 0.0, %v1529
    %v1531 = vpop.f32.mrf.mxu0
    %v1532 = vadd.f32 0.0, %v1531
    %v1533 = vpop.f32.mrf.mxu0
    %v1534 = vpop.f32.mrf.mxu0
    %1535 = vdwg.mxu0
    %v1536 = vmax.f32 %v1493, %v1530
    %v1537 = vmax.f32 %v1494, %v1532
    %1538 = vmatprep.subr.bf16.mxu0 %v914
    %1539 = vmatpush1.bf16.msra.mxu0 %v913
    %1540 = vmatprep.subr.bf16.mxu0 %v912
    %1541 = vmatpush1.bf16.msra.mxu0 %v911
    %1542 = vmatprep.subr.bf16.mxu0 %v910
    %1543 = vmatpush1.bf16.msra.mxu0 %v909
    %1544 = vmatprep.subr.bf16.mxu0 %v908
    %1545 = vmatpush1.bf16.msra.mxu0 %v907
    %1546 = vmatprep.subr.bf16.mxu0 %v906
    %1547 = vmatpush1.bf16.msra.mxu0 %v905
    %1548 = vmatprep.subr.bf16.mxu0 %v904
    %1549 = vmatpush1.bf16.msra.mxu0 %v903
    %1550 = vmatprep.subr.bf16.mxu0 %v902
    %1551 = vmatpush1.bf16.msra.mxu0 %v901
    %1552 = vmatprep.subr.bf16.mxu0 %v900
    %1553 = vmatpush1.bf16.msra.mxu0 %v899
    %1554 = vmatprep.subr.bf16.mxu0 0
    %1555 = vmatpush2.bf16.msra.mxu0 0
    %1556 = vmatprep.subr.bf16.mxu0 0
    %1557 = vmatpush2.bf16.msra.mxu0 0
    %1558 = vmatprep.subr.bf16.mxu0 %v926
    %1559 = vmatpush2.bf16.msra.mxu0 %v925
    %1560 = vmatprep.subr.bf16.mxu0 %v924
    %1561 = vmatpush2.bf16.msra.mxu0 %v923
    %1562 = vmatprep.subr.bf16.mxu0 %v922
    %1563 = vmatpush2.bf16.msra.mxu0 %v921
    %1564 = vmatprep.subr.bf16.mxu0 %v920
    %1565 = vmatpush2.bf16.msra.mxu0 %v919
    %1566 = vmatprep.subr.bf16.mxu0 %v918
    %1567 = vmatpush2.bf16.msra.mxu0 %v917
    %1568 = vmatprep.subr.bf16.mxu0 %v916
    %1569 = vmatpush2.bf16.msra.mxu0 %v915
    %1570 = vmatprep.mubr.bf16.mxu0 %v1409
    %1571 = vmatmul.mubr.bf16.gmra.mxu0 %v1405
    %v1572 = vpop.f32.mrf.mxu0
    %v1573 = vadd.f32 0.0, %v1572
    %v1574 = vpop.f32.mrf.mxu0
    %v1575 = vadd.f32 0.0, %v1574
    %v1576 = vpop.f32.mrf.mxu0
    %v1577 = vpop.f32.mrf.mxu0
    %1578 = vdwg.mxu0
    %v1579 = vmax.f32 %v1536, %v1573
    %v1580 = vmax.f32 %v1537, %v1575
    %v1581 = vadd.f32 %v1579, %v1002
    %v1582 = vadd.f32 %v1580, %v1006
    %v1583 = vmax.f32 %v1581, 0.0
    %v1584 = vmax.f32 %v1582, 0.0
    %v1585 = vpack.c.bf16 %v1583, %v1583
    %v1586 = vpack.c.bf16 %v1584, %v1584
    %1588 = vrot.lane.b32.xlu0 %v144, 64
    %v1589 = vpop.permute.xlu0 %1588
    %1590 = vrot.lane.b32.xlu0 %v145, 64
    %v1591 = vpop.permute.xlu0 %1590
    %1592 = vrot.lane.b32.xlu0 %v146, 64
    %v1593 = vpop.permute.xlu0 %1592
    %vm1594 = vcmask 523264
    %v1595 = vsel %vm1594, %v1589, %v1591
    %v1596 = vsel %vm1594, %v1591, %v1593
    %v1599 = vsel %vm404, %v1596, 0
    %1601 = vmatprep.subr.bf16.mxu0 %v363
    %1602 = vmatpush1.bf16.msra.mxu0 %v362
    %1603 = vmatprep.subr.bf16.mxu0 %v361
    %1604 = vmatpush1.bf16.msra.mxu0 %v360
    %1605 = vmatprep.subr.bf16.mxu0 %v359
    %1606 = vmatpush1.bf16.msra.mxu0 %v358
    %1607 = vmatprep.subr.bf16.mxu0 %v357
    %1608 = vmatpush1.bf16.msra.mxu0 %v356
    %1609 = vmatprep.subr.bf16.mxu0 %v355
    %1610 = vmatpush1.bf16.msra.mxu0 %v354
    %1611 = vmatprep.subr.bf16.mxu0 %v353
    %1612 = vmatpush1.bf16.msra.mxu0 %v352
    %1613 = vmatprep.subr.bf16.mxu0 %v351
    %1614 = vmatpush1.bf16.msra.mxu0 %v350
    %1615 = vmatprep.subr.bf16.mxu0 %v349
    %1616 = vmatpush1.bf16.msra.mxu0 %v348
    %1617 = vmatprep.subr.bf16.mxu0 0
    %1618 = vmatpush2.bf16.msra.mxu0 0
    %1619 = vmatprep.subr.bf16.mxu0 0
    %1620 = vmatpush2.bf16.msra.mxu0 0
    %1621 = vmatprep.subr.bf16.mxu0 %v375
    %1622 = vmatpush2.bf16.msra.mxu0 %v374
    %1623 = vmatprep.subr.bf16.mxu0 %v373
    %1624 = vmatpush2.bf16.msra.mxu0 %v372
    %1625 = vmatprep.subr.bf16.mxu0 %v371
    %1626 = vmatpush2.bf16.msra.mxu0 %v370
    %1627 = vmatprep.subr.bf16.mxu0 %v369
    %1628 = vmatpush2.bf16.msra.mxu0 %v368
    %1629 = vmatprep.subr.bf16.mxu0 %v367
    %1630 = vmatpush2.bf16.msra.mxu0 %v366
    %1631 = vmatprep.subr.bf16.mxu0 %v365
    %1632 = vmatpush2.bf16.msra.mxu0 %v364
    %1633 = vmatprep.mubr.bf16.mxu0 %v1599
    %1634 = vmatmul.mubr.bf16.gmra.mxu0 %v1595
    %v1635 = vpop.f32.mrf.mxu0
    %v1636 = vadd.f32 0.0, %v1635
    %v1637 = vpop.f32.mrf.mxu0
    %v1638 = vadd.f32 0.0, %v1637
    %v1639 = vpop.f32.mrf.mxu0
    %v1640 = vpop.f32.mrf.mxu0
    %1641 = vdwg.mxu0
    %1642 = vmatprep.subr.bf16.mxu0 %v548
    %1643 = vmatpush1.bf16.msra.mxu0 %v547
    %1644 = vmatprep.subr.bf16.mxu0 %v546
    %1645 = vmatpush1.bf16.msra.mxu0 %v545
    %1646 = vmatprep.subr.bf16.mxu0 %v544
    %1647 = vmatpush1.bf16.msra.mxu0 %v543
    %1648 = vmatprep.subr.bf16.mxu0 %v542
    %1649 = vmatpush1.bf16.msra.mxu0 %v541
    %1650 = vmatprep.subr.bf16.mxu0 %v540
    %1651 = vmatpush1.bf16.msra.mxu0 %v539
    %1652 = vmatprep.subr.bf16.mxu0 %v538
    %1653 = vmatpush1.bf16.msra.mxu0 %v537
    %1654 = vmatprep.subr.bf16.mxu0 %v536
    %1655 = vmatpush1.bf16.msra.mxu0 %v535
    %1656 = vmatprep.subr.bf16.mxu0 %v534
    %1657 = vmatpush1.bf16.msra.mxu0 %v533
    %1658 = vmatprep.subr.bf16.mxu0 0
    %1659 = vmatpush2.bf16.msra.mxu0 0
    %1660 = vmatprep.subr.bf16.mxu0 0
    %1661 = vmatpush2.bf16.msra.mxu0 0
    %1662 = vmatprep.subr.bf16.mxu0 %v560
    %1663 = vmatpush2.bf16.msra.mxu0 %v559
    %1664 = vmatprep.subr.bf16.mxu0 %v558
    %1665 = vmatpush2.bf16.msra.mxu0 %v557
    %1666 = vmatprep.subr.bf16.mxu0 %v556
    %1667 = vmatpush2.bf16.msra.mxu0 %v555
    %1668 = vmatprep.subr.bf16.mxu0 %v554
    %1669 = vmatpush2.bf16.msra.mxu0 %v553
    %1670 = vmatprep.subr.bf16.mxu0 %v552
    %1671 = vmatpush2.bf16.msra.mxu0 %v551
    %1672 = vmatprep.subr.bf16.mxu0 %v550
    %1673 = vmatpush2.bf16.msra.mxu0 %v549
    %1674 = vmatprep.mubr.bf16.mxu0 %v1599
    %1675 = vmatmul.mubr.bf16.gmra.mxu0 %v1595
    %v1676 = vpop.f32.mrf.mxu0
    %v1677 = vadd.f32 0.0, %v1676
    %v1678 = vpop.f32.mrf.mxu0
    %v1679 = vadd.f32 0.0, %v1678
    %v1680 = vpop.f32.mrf.mxu0
    %v1681 = vpop.f32.mrf.mxu0
    %1682 = vdwg.mxu0
    %v1683 = vmax.f32 %v1636, %v1677
    %v1684 = vmax.f32 %v1638, %v1679
    %1685 = vmatprep.subr.bf16.mxu0 %v731
    %1686 = vmatpush1.bf16.msra.mxu0 %v730
    %1687 = vmatprep.subr.bf16.mxu0 %v729
    %1688 = vmatpush1.bf16.msra.mxu0 %v728
    %1689 = vmatprep.subr.bf16.mxu0 %v727
    %1690 = vmatpush1.bf16.msra.mxu0 %v726
    %1691 = vmatprep.subr.bf16.mxu0 %v725
    %1692 = vmatpush1.bf16.msra.mxu0 %v724
    %1693 = vmatprep.subr.bf16.mxu0 %v723
    %1694 = vmatpush1.bf16.msra.mxu0 %v722
    %1695 = vmatprep.subr.bf16.mxu0 %v721
    %1696 = vmatpush1.bf16.msra.mxu0 %v720
    %1697 = vmatprep.subr.bf16.mxu0 %v719
    %1698 = vmatpush1.bf16.msra.mxu0 %v718
    %1699 = vmatprep.subr.bf16.mxu0 %v717
    %1700 = vmatpush1.bf16.msra.mxu0 %v716
    %1701 = vmatprep.subr.bf16.mxu0 0
    %1702 = vmatpush2.bf16.msra.mxu0 0
    %1703 = vmatprep.subr.bf16.mxu0 0
    %1704 = vmatpush2.bf16.msra.mxu0 0
    %1705 = vmatprep.subr.bf16.mxu0 %v743
    %1706 = vmatpush2.bf16.msra.mxu0 %v742
    %1707 = vmatprep.subr.bf16.mxu0 %v741
    %1708 = vmatpush2.bf16.msra.mxu0 %v740
    %1709 = vmatprep.subr.bf16.mxu0 %v739
    %1710 = vmatpush2.bf16.msra.mxu0 %v738
    %1711 = vmatprep.subr.bf16.mxu0 %v737
    %1712 = vmatpush2.bf16.msra.mxu0 %v736
    %1713 = vmatprep.subr.bf16.mxu0 %v735
    %1714 = vmatpush2.bf16.msra.mxu0 %v734
    %1715 = vmatprep.subr.bf16.mxu0 %v733
    %1716 = vmatpush2.bf16.msra.mxu0 %v732
    %1717 = vmatprep.mubr.bf16.mxu0 %v1599
    %1718 = vmatmul.mubr.bf16.gmra.mxu0 %v1595
    %v1719 = vpop.f32.mrf.mxu0
    %v1720 = vadd.f32 0.0, %v1719
    %v1721 = vpop.f32.mrf.mxu0
    %v1722 = vadd.f32 0.0, %v1721
    %v1723 = vpop.f32.mrf.mxu0
    %v1724 = vpop.f32.mrf.mxu0
    %1725 = vdwg.mxu0
    %v1726 = vmax.f32 %v1683, %v1720
    %v1727 = vmax.f32 %v1684, %v1722
    %1728 = vmatprep.subr.bf16.mxu0 %v914
    %1729 = vmatpush1.bf16.msra.mxu0 %v913
    %1730 = vmatprep.subr.bf16.mxu0 %v912
    %1731 = vmatpush1.bf16.msra.mxu0 %v911
    %1732 = vmatprep.subr.bf16.mxu0 %v910
    %1733 = vmatpush1.bf16.msra.mxu0 %v909
    %1734 = vmatprep.subr.bf16.mxu0 %v908
    %1735 = vmatpush1.bf16.msra.mxu0 %v907
    %1736 = vmatprep.subr.bf16.mxu0 %v906
    %1737 = vmatpush1.bf16.msra.mxu0 %v905
    %1738 = vmatprep.subr.bf16.mxu0 %v904
    %1739 = vmatpush1.bf16.msra.mxu0 %v903
    %1740 = vmatprep.subr.bf16.mxu0 %v902
    %1741 = vmatpush1.bf16.msra.mxu0 %v901
    %1742 = vmatprep.subr.bf16.mxu0 %v900
    %1743 = vmatpush1.bf16.msra.mxu0 %v899
    %1744 = vmatprep.subr.bf16.mxu0 0
    %1745 = vmatpush2.bf16.msra.mxu0 0
    %1746 = vmatprep.subr.bf16.mxu0 0
    %1747 = vmatpush2.bf16.msra.mxu0 0
    %1748 = vmatprep.subr.bf16.mxu0 %v926
    %1749 = vmatpush2.bf16.msra.mxu0 %v925
    %1750 = vmatprep.subr.bf16.mxu0 %v924
    %1751 = vmatpush2.bf16.msra.mxu0 %v923
    %1752 = vmatprep.subr.bf16.mxu0 %v922
    %1753 = vmatpush2.bf16.msra.mxu0 %v921
    %1754 = vmatprep.subr.bf16.mxu0 %v920
    %1755 = vmatpush2.bf16.msra.mxu0 %v919
    %1756 = vmatprep.subr.bf16.mxu0 %v918
    %1757 = vmatpush2.bf16.msra.mxu0 %v917
    %1758 = vmatprep.subr.bf16.mxu0 %v916
    %1759 = vmatpush2.bf16.msra.mxu0 %v915
    %1760 = vmatprep.mubr.bf16.mxu0 %v1599
    %1761 = vmatmul.mubr.bf16.gmra.mxu0 %v1595
    %v1762 = vpop.f32.mrf.mxu0
    %v1763 = vadd.f32 0.0, %v1762
    %v1764 = vpop.f32.mrf.mxu0
    %v1765 = vadd.f32 0.0, %v1764
    %v1766 = vpop.f32.mrf.mxu0
    %v1767 = vpop.f32.mrf.mxu0
    %1768 = vdwg.mxu0
    %v1769 = vmax.f32 %v1726, %v1763
    %v1770 = vmax.f32 %v1727, %v1765
    %v1771 = vadd.f32 %v1769, %v1002
    %v1772 = vadd.f32 %v1770, %v1006
    %v1773 = vmax.f32 %v1771, 0.0
    %v1774 = vmax.f32 %v1772, 0.0
    %v1775 = vpack.c.bf16 %v1773, %v1773
    %v1776 = vpack.c.bf16 %v1774, %v1774
    %1778 = vrot.lane.b32.xlu0 %v145, 80
    %v1779 = vpop.permute.xlu0 %1778
    %1780 = vrot.lane.b32.xlu0 %v146, 80
    %v1781 = vpop.permute.xlu0 %1780
    %1782 = vrot.lane.b32.xlu0 %v147, 80
    %v1783 = vpop.permute.xlu0 %1782
    %vm1784 = vcmask 654336
    %v1785 = vsel %vm1784, %v1779, %v1781
    %v1786 = vsel %vm1784, %v1781, %v1783
    %v1789 = vsel %vm404, %v1786, 0
    %1791 = vmatprep.subr.bf16.mxu0 %v363
    %1792 = vmatpush1.bf16.msra.mxu0 %v362
    %1793 = vmatprep.subr.bf16.mxu0 %v361
    %1794 = vmatpush1.bf16.msra.mxu0 %v360
    %1795 = vmatprep.subr.bf16.mxu0 %v359
    %1796 = vmatpush1.bf16.msra.mxu0 %v358
    %1797 = vmatprep.subr.bf16.mxu0 %v357
    %1798 = vmatpush1.bf16.msra.mxu0 %v356
    %1799 = vmatprep.subr.bf16.mxu0 %v355
    %1800 = vmatpush1.bf16.msra.mxu0 %v354
    %1801 = vmatprep.subr.bf16.mxu0 %v353
    %1802 = vmatpush1.bf16.msra.mxu0 %v352
    %1803 = vmatprep.subr.bf16.mxu0 %v351
    %1804 = vmatpush1.bf16.msra.mxu0 %v350
    %1805 = vmatprep.subr.bf16.mxu0 %v349
    %1806 = vmatpush1.bf16.msra.mxu0 %v348
    %1807 = vmatprep.subr.bf16.mxu0 0
    %1808 = vmatpush2.bf16.msra.mxu0 0
    %1809 = vmatprep.subr.bf16.mxu0 0
    %1810 = vmatpush2.bf16.msra.mxu0 0
    %1811 = vmatprep.subr.bf16.mxu0 %v375
    %1812 = vmatpush2.bf16.msra.mxu0 %v374
    %1813 = vmatprep.subr.bf16.mxu0 %v373
    %1814 = vmatpush2.bf16.msra.mxu0 %v372
    %1815 = vmatprep.subr.bf16.mxu0 %v371
    %1816 = vmatpush2.bf16.msra.mxu0 %v370
    %1817 = vmatprep.subr.bf16.mxu0 %v369
    %1818 = vmatpush2.bf16.msra.mxu0 %v368
    %1819 = vmatprep.subr.bf16.mxu0 %v367
    %1820 = vmatpush2.bf16.msra.mxu0 %v366
    %1821 = vmatprep.subr.bf16.mxu0 %v365
    %1822 = vmatpush2.bf16.msra.mxu0 %v364
    %1823 = vmatprep.mubr.bf16.mxu0 %v1789
    %1824 = vmatmul.mubr.bf16.gmra.mxu0 %v1785
    %v1825 = vpop.f32.mrf.mxu0
    %v1826 = vadd.f32 0.0, %v1825
    %v1827 = vpop.f32.mrf.mxu0
    %v1828 = vadd.f32 0.0, %v1827
    %v1829 = vpop.f32.mrf.mxu0
    %v1830 = vpop.f32.mrf.mxu0
    %1831 = vdwg.mxu0
    %1832 = vmatprep.subr.bf16.mxu0 %v548
    %1833 = vmatpush1.bf16.msra.mxu0 %v547
    %1834 = vmatprep.subr.bf16.mxu0 %v546
    %1835 = vmatpush1.bf16.msra.mxu0 %v545
    %1836 = vmatprep.subr.bf16.mxu0 %v544
    %1837 = vmatpush1.bf16.msra.mxu0 %v543
    %1838 = vmatprep.subr.bf16.mxu0 %v542
    %1839 = vmatpush1.bf16.msra.mxu0 %v541
    %1840 = vmatprep.subr.bf16.mxu0 %v540
    %1841 = vmatpush1.bf16.msra.mxu0 %v539
    %1842 = vmatprep.subr.bf16.mxu0 %v538
    %1843 = vmatpush1.bf16.msra.mxu0 %v537
    %1844 = vmatprep.subr.bf16.mxu0 %v536
    %1845 = vmatpush1.bf16.msra.mxu0 %v535
    %1846 = vmatprep.subr.bf16.mxu0 %v534
    %1847 = vmatpush1.bf16.msra.mxu0 %v533
    %1848 = vmatprep.subr.bf16.mxu0 0
    %1849 = vmatpush2.bf16.msra.mxu0 0
    %1850 = vmatprep.subr.bf16.mxu0 0
    %1851 = vmatpush2.bf16.msra.mxu0 0
    %1852 = vmatprep.subr.bf16.mxu0 %v560
    %1853 = vmatpush2.bf16.msra.mxu0 %v559
    %1854 = vmatprep.subr.bf16.mxu0 %v558
    %1855 = vmatpush2.bf16.msra.mxu0 %v557
    %1856 = vmatprep.subr.bf16.mxu0 %v556
    %1857 = vmatpush2.bf16.msra.mxu0 %v555
    %1858 = vmatprep.subr.bf16.mxu0 %v554
    %1859 = vmatpush2.bf16.msra.mxu0 %v553
    %1860 = vmatprep.subr.bf16.mxu0 %v552
    %1861 = vmatpush2.bf16.msra.mxu0 %v551
    %1862 = vmatprep.subr.bf16.mxu0 %v550
    %1863 = vmatpush2.bf16.msra.mxu0 %v549
    %1864 = vmatprep.mubr.bf16.mxu0 %v1789
    %1865 = vmatmul.mubr.bf16.gmra.mxu0 %v1785
    %v1866 = vpop.f32.mrf.mxu0
    %v1867 = vadd.f32 0.0, %v1866
    %v1868 = vpop.f32.mrf.mxu0
    %v1869 = vadd.f32 0.0, %v1868
    %v1870 = vpop.f32.mrf.mxu0
    %v1871 = vpop.f32.mrf.mxu0
    %1872 = vdwg.mxu0
    %v1873 = vmax.f32 %v1826, %v1867
    %v1874 = vmax.f32 %v1828, %v1869
    %1875 = vmatprep.subr.bf16.mxu0 %v731
    %1876 = vmatpush1.bf16.msra.mxu0 %v730
    %1877 = vmatprep.subr.bf16.mxu0 %v729
    %1878 = vmatpush1.bf16.msra.mxu0 %v728
    %1879 = vmatprep.subr.bf16.mxu0 %v727
    %1880 = vmatpush1.bf16.msra.mxu0 %v726
    %1881 = vmatprep.subr.bf16.mxu0 %v725
    %1882 = vmatpush1.bf16.msra.mxu0 %v724
    %1883 = vmatprep.subr.bf16.mxu0 %v723
    %1884 = vmatpush1.bf16.msra.mxu0 %v722
    %1885 = vmatprep.subr.bf16.mxu0 %v721
    %1886 = vmatpush1.bf16.msra.mxu0 %v720
    %1887 = vmatprep.subr.bf16.mxu0 %v719
    %1888 = vmatpush1.bf16.msra.mxu0 %v718
    %1889 = vmatprep.subr.bf16.mxu0 %v717
    %1890 = vmatpush1.bf16.msra.mxu0 %v716
    %1891 = vmatprep.subr.bf16.mxu0 0
    %1892 = vmatpush2.bf16.msra.mxu0 0
    %1893 = vmatprep.subr.bf16.mxu0 0
    %1894 = vmatpush2.bf16.msra.mxu0 0
    %1895 = vmatprep.subr.bf16.mxu0 %v743
    %1896 = vmatpush2.bf16.msra.mxu0 %v742
    %1897 = vmatprep.subr.bf16.mxu0 %v741
    %1898 = vmatpush2.bf16.msra.mxu0 %v740
    %1899 = vmatprep.subr.bf16.mxu0 %v739
    %1900 = vmatpush2.bf16.msra.mxu0 %v738
    %1901 = vmatprep.subr.bf16.mxu0 %v737
    %1902 = vmatpush2.bf16.msra.mxu0 %v736
    %1903 = vmatprep.subr.bf16.mxu0 %v735
    %1904 = vmatpush2.bf16.msra.mxu0 %v734
    %1905 = vmatprep.subr.bf16.mxu0 %v733
    %1906 = vmatpush2.bf16.msra.mxu0 %v732
    %1907 = vmatprep.mubr.bf16.mxu0 %v1789
    %1908 = vmatmul.mubr.bf16.gmra.mxu0 %v1785
    %v1909 = vpop.f32.mrf.mxu0
    %v1910 = vadd.f32 0.0, %v1909
    %v1911 = vpop.f32.mrf.mxu0
    %v1912 = vadd.f32 0.0, %v1911
    %v1913 = vpop.f32.mrf.mxu0
    %v1914 = vpop.f32.mrf.mxu0
    %1915 = vdwg.mxu0
    %v1916 = vmax.f32 %v1873, %v1910
    %v1917 = vmax.f32 %v1874, %v1912
    %1918 = vmatprep.subr.bf16.mxu0 %v914
    %1919 = vmatpush1.bf16.msra.mxu0 %v913
    %1920 = vmatprep.subr.bf16.mxu0 %v912
    %1921 = vmatpush1.bf16.msra.mxu0 %v911
    %1922 = vmatprep.subr.bf16.mxu0 %v910
    %1923 = vmatpush1.bf16.msra.mxu0 %v909
    %1924 = vmatprep.subr.bf16.mxu0 %v908
    %1925 = vmatpush1.bf16.msra.mxu0 %v907
    %1926 = vmatprep.subr.bf16.mxu0 %v906
    %1927 = vmatpush1.bf16.msra.mxu0 %v905
    %1928 = vmatprep.subr.bf16.mxu0 %v904
    %1929 = vmatpush1.bf16.msra.mxu0 %v903
    %1930 = vmatprep.subr.bf16.mxu0 %v902
    %1931 = vmatpush1.bf16.msra.mxu0 %v901
    %1932 = vmatprep.subr.bf16.mxu0 %v900
    %1933 = vmatpush1.bf16.msra.mxu0 %v899
    %1934 = vmatprep.subr.bf16.mxu0 0
    %1935 = vmatpush2.bf16.msra.mxu0 0
    %1936 = vmatprep.subr.bf16.mxu0 0
    %1937 = vmatpush2.bf16.msra.mxu0 0
    %1938 = vmatprep.subr.bf16.mxu0 %v926
    %1939 = vmatpush2.bf16.msra.mxu0 %v925
    %1940 = vmatprep.subr.bf16.mxu0 %v924
    %1941 = vmatpush2.bf16.msra.mxu0 %v923
    %1942 = vmatprep.subr.bf16.mxu0 %v922
    %1943 = vmatpush2.bf16.msra.mxu0 %v921
    %1944 = vmatprep.subr.bf16.mxu0 %v920
    %1945 = vmatpush2.bf16.msra.mxu0 %v919
    %1946 = vmatprep.subr.bf16.mxu0 %v918
    %1947 = vmatpush2.bf16.msra.mxu0 %v917
    %1948 = vmatprep.subr.bf16.mxu0 %v916
    %1949 = vmatpush2.bf16.msra.mxu0 %v915
    %1950 = vmatprep.mubr.bf16.mxu0 %v1789
    %1951 = vmatmul.mubr.bf16.gmra.mxu0 %v1785
    %v1952 = vpop.f32.mrf.mxu0
    %v1953 = vadd.f32 0.0, %v1952
    %v1954 = vpop.f32.mrf.mxu0
    %v1955 = vadd.f32 0.0, %v1954
    %v1956 = vpop.f32.mrf.mxu0
    %v1957 = vpop.f32.mrf.mxu0
    %1958 = vdwg.mxu0
    %v1959 = vmax.f32 %v1916, %v1953
    %v1960 = vmax.f32 %v1917, %v1955
    %v1961 = vadd.f32 %v1959, %v1002
    %v1962 = vadd.f32 %v1960, %v1006
    %v1963 = vmax.f32 %v1961, 0.0
    %v1964 = vmax.f32 %v1962, 0.0
    %v1965 = vpack.c.bf16 %v1963, %v1963
    %v1966 = vpack.c.bf16 %v1964, %v1964
    %v1967 = vld [vmem:[#allocation6] sm:$0xff]
    %v1968 = vld [vmem:[#allocation6 + $0x8] sm:$0xff]
    %v1969 = vld [vmem:[#allocation6 + $0x10] sm:$0xff]
    %v1970 = vld [vmem:[#allocation6 + $0x18] sm:$0xff]
    %v1971 = vld [vmem:[#allocation6 + $0x20] sm:$0xff]
    %v1972 = vld [vmem:[#allocation6 + $0x28] sm:$0xff]
    %v1973 = vld [vmem:[#allocation6 + $0x30] sm:$0xff]
    %v1974 = vld [vmem:[#allocation6 + $0x38] sm:$0xff]
    %v1975 = vld [vmem:[#allocation6 + $0x40] sm:$0xff]
    %v1976 = vld [vmem:[#allocation6 + $0x48] sm:$0xff]
    %v1977 = vld [vmem:[#allocation6 + $0x50] sm:$0xff]
    %v1978 = vld [vmem:[#allocation6 + $0x58] sm:$0xff]
    %v1979 = vld [vmem:[#allocation6 + $0x60] sm:$0xff]
    %v1980 = vld [vmem:[#allocation6 + $0x68] sm:$0xff]
    %v1981 = vld [vmem:[#allocation6 + $0x70] sm:$0xff]
    %v1982 = vld [vmem:[#allocation6 + $0x78] sm:$0xff]
    %v1983 = vld [vmem:[#allocation6 + $0x80] sm:$0xff]
    %v1984 = vld [vmem:[#allocation6 + $0x88] sm:$0xff]
    %v1985 = vld [vmem:[#allocation6 + $0x90] sm:$0xff]
    %v1986 = vld [vmem:[#allocation6 + $0x98] sm:$0xff]
    %v1987 = vld [vmem:[#allocation6 + $0xa0] sm:$0xff]
    %v1988 = vld [vmem:[#allocation6 + $0xa8] sm:$0xff]
    %v1989 = vld [vmem:[#allocation6 + $0xb0] sm:$0xff]
    %v1990 = vld [vmem:[#allocation6 + $0xb8] sm:$0xff]
    %v1991 = vld [vmem:[#allocation6 + $0xc0] sm:$0xff]
    %v1992 = vld [vmem:[#allocation6 + $0xc8] sm:$0xff]
    %v1993 = vld [vmem:[#allocation6 + $0xd0] sm:$0xff]
    %v1994 = vld [vmem:[#allocation6 + $0xd8] sm:$0xff]
    %v1995 = vld [vmem:[#allocation6 + $0xe0] sm:$0xff]
    %v1996 = vld [vmem:[#allocation6 + $0xe8] sm:$0xff]
    %v1997 = vld [vmem:[#allocation6 + $0xf0] sm:$0xff]
    %v1998 = vld [vmem:[#allocation6 + $0xf8] sm:$0xff]
    %v1999 = vld [vmem:[#allocation6 + $0x100] sm:$0xff]
    %v2000 = vld [vmem:[#allocation6 + $0x108] sm:$0xff]
    %v2001 = vld [vmem:[#allocation6 + $0x110] sm:$0xff]
    %v2002 = vld [vmem:[#allocation6 + $0x118] sm:$0xff]
    %v2003 = vld [vmem:[#allocation6 + $0x120] sm:$0xff]
    %v2004 = vld [vmem:[#allocation6 + $0x128] sm:$0xff]
    %v2005 = vld [vmem:[#allocation6 + $0x130] sm:$0xff]
    %v2006 = vld [vmem:[#allocation6 + $0x138] sm:$0xff]
    %v2007 = vld [vmem:[#allocation6 + $0x140] sm:$0xff]
    %v2008 = vld [vmem:[#allocation6 + $0x148] sm:$0xff]
    %v2009 = vld [vmem:[#allocation6 + $0x150] sm:$0xff]
    %v2010 = vld [vmem:[#allocation6 + $0x158] sm:$0xff]
    %v2011 = vld [vmem:[#allocation6 + $0x160] sm:$0xff]
    %v2012 = vld [vmem:[#allocation6 + $0x168] sm:$0xff]
    %v2013 = vld [vmem:[#allocation6 + $0x170] sm:$0xff]
    %v2014 = vld [vmem:[#allocation6 + $0x178] sm:$0xff]
    %v2015 = vld [vmem:[#allocation6 + $0x180] sm:$0xff]
    %v2016 = vld [vmem:[#allocation6 + $0x188] sm:$0xff]
    %v2017 = vld [vmem:[#allocation6 + $0x190] sm:$0xff]
    %v2018 = vld [vmem:[#allocation6 + $0x198] sm:$0xff]
    %v2019 = vld [vmem:[#allocation6 + $0x1a0] sm:$0xff]
    %v2020 = vld [vmem:[#allocation6 + $0x1a8] sm:$0xff]
    %v2021 = vld [vmem:[#allocation6 + $0x1b0] sm:$0xff]
    %v2022 = vld [vmem:[#allocation6 + $0x1b8] sm:$0xff]
    %v2023 = vld [vmem:[#allocation6 + $0x1c0] sm:$0xff]
    %v2024 = vld [vmem:[#allocation6 + $0x1c8] sm:$0xff]
    %v2025 = vld [vmem:[#allocation6 + $0x1d0] sm:$0xff]
    %v2026 = vld [vmem:[#allocation6 + $0x1d8] sm:$0xff]
    %v2027 = vld [vmem:[#allocation6 + $0x1e0] sm:$0xff]
    %v2028 = vld [vmem:[#allocation6 + $0x1e8] sm:$0xff]
    %v2029 = vld [vmem:[#allocation6 + $0x1f0] sm:$0xff]
    %v2030 = vld [vmem:[#allocation6 + $0x1f8] sm:$0xff]
    %v2031 = vld [vmem:[#allocation6 + $0x200] sm:$0xff]
    %v2032 = vld [vmem:[#allocation6 + $0x208] sm:$0xff]
    %v2033 = vld [vmem:[#allocation6 + $0x210] sm:$0xff]
    %v2034 = vld [vmem:[#allocation6 + $0x218] sm:$0xff]
    %v2035 = vld [vmem:[#allocation6 + $0x220] sm:$0xff]
    %v2036 = vld [vmem:[#allocation6 + $0x228] sm:$0xff]
    %v2037 = vld [vmem:[#allocation6 + $0x230] sm:$0xff]
    %v2038 = vld [vmem:[#allocation6 + $0x238] sm:$0xff]
    %v2039 = vld [vmem:[#allocation6 + $0x240] sm:$0xff]
    %v2040 = vld [vmem:[#allocation6 + $0x248] sm:$0xff]
    %v2041 = vld [vmem:[#allocation6 + $0x250] sm:$0xff]
    %v2042 = vld [vmem:[#allocation6 + $0x258] sm:$0xff]
    %v2043 = vld [vmem:[#allocation6 + $0x260] sm:$0xff]
    %v2044 = vld [vmem:[#allocation6 + $0x268] sm:$0xff]
    %v2045 = vld [vmem:[#allocation6 + $0x270] sm:$0xff]
    %v2046 = vld [vmem:[#allocation6 + $0x278] sm:$0xff]
    %v2047 = vld [vmem:[#allocation6 + $0x280] sm:$0xff]
    %v2048 = vld [vmem:[#allocation6 + $0x288] sm:$0xff]
    %v2049 = vld [vmem:[#allocation6 + $0x290] sm:$0xff]
    %v2050 = vld [vmem:[#allocation6 + $0x298] sm:$0xff]
    %v2051 = vld [vmem:[#allocation6 + $0x2a0] sm:$0xff]
    %v2052 = vld [vmem:[#allocation6 + $0x2a8] sm:$0xff]
    %v2053 = vld [vmem:[#allocation6 + $0x2b0] sm:$0xff]
    %v2054 = vld [vmem:[#allocation6 + $0x2b8] sm:$0xff]
    %v2055 = vld [vmem:[#allocation6 + $0x2c0] sm:$0xff]
    %v2056 = vld [vmem:[#allocation6 + $0x2c8] sm:$0xff]
    %v2057 = vld [vmem:[#allocation6 + $0x2d0] sm:$0xff]
    %v2058 = vld [vmem:[#allocation6 + $0x2d8] sm:$0xff]
    %v2059 = vld [vmem:[#allocation6 + $0x2e0] sm:$0xff]
    %v2060 = vld [vmem:[#allocation6 + $0x2e8] sm:$0xff]
    %v2061 = vld [vmem:[#allocation6 + $0x2f0] sm:$0xff]
    %v2062 = vld [vmem:[#allocation6 + $0x2f8] sm:$0xff]
    %v2063 = vld [vmem:[#allocation6 + $0x300] sm:$0xff]
    %v2064 = vld [vmem:[#allocation6 + $0x308] sm:$0xff]
    %v2065 = vld [vmem:[#allocation6 + $0x310] sm:$0xff]
    %v2066 = vld [vmem:[#allocation6 + $0x318] sm:$0xff]
    %v2067 = vld [vmem:[#allocation6 + $0x320] sm:$0xff]
    %v2068 = vld [vmem:[#allocation6 + $0x328] sm:$0xff]
    %v2069 = vld [vmem:[#allocation6 + $0x330] sm:$0xff]
    %v2070 = vld [vmem:[#allocation6 + $0x338] sm:$0xff]
    %v2071 = vld [vmem:[#allocation6 + $0x340] sm:$0xff]
    %v2072 = vld [vmem:[#allocation6 + $0x348] sm:$0xff]
    %v2073 = vld [vmem:[#allocation6 + $0x350] sm:$0xff]
    %v2074 = vld [vmem:[#allocation6 + $0x358] sm:$0xff]
    %v2075 = vld [vmem:[#allocation6 + $0x360] sm:$0xff]
    %v2076 = vld [vmem:[#allocation6 + $0x368] sm:$0xff]
    %v2077 = vld [vmem:[#allocation6 + $0x370] sm:$0xff]
    %v2078 = vld [vmem:[#allocation6 + $0x378] sm:$0xff]
    %v2079 = vld [vmem:[#allocation6 + $0x380] sm:$0xff]
    %v2080 = vld [vmem:[#allocation6 + $0x388] sm:$0xff]
    %v2081 = vld [vmem:[#allocation6 + $0x390] sm:$0xff]
    %v2082 = vld [vmem:[#allocation6 + $0x398] sm:$0xff]
    %v2083 = vld [vmem:[#allocation6 + $0x3a0] sm:$0xff]
    %v2084 = vld [vmem:[#allocation6 + $0x3a8] sm:$0xff]
    %v2085 = vld [vmem:[#allocation6 + $0x3b0] sm:$0xff]
    %v2086 = vld [vmem:[#allocation6 + $0x3b8] sm:$0xff]
    %v2087 = vld [vmem:[#allocation6 + $0x3c0] sm:$0xff]
    %v2088 = vld [vmem:[#allocation6 + $0x3c8] sm:$0xff]
    %v2089 = vld [vmem:[#allocation6 + $0x3d0] sm:$0xff]
    %v2090 = vld [vmem:[#allocation6 + $0x3d8] sm:$0xff]
    %v2091 = vld [vmem:[#allocation6 + $0x3e0] sm:$0xff]
    %v2092 = vld [vmem:[#allocation6 + $0x3e8] sm:$0xff]
    %v2093 = vld [vmem:[#allocation6 + $0x3f0] sm:$0xff]
    %v2094 = vld [vmem:[#allocation6 + $0x3f8] sm:$0xff]
    %s2095 = scalar_lea.vmem [#allocation6], 1024
    %v2096 = vld [vmem:[%s2095] sm:$0xff]
    %v2097 = vld [vmem:[%s2095 + $0x8] sm:$0xff]
    %v2098 = vld [vmem:[%s2095 + $0x10] sm:$0xff]
    %v2099 = vld [vmem:[%s2095 + $0x18] sm:$0xff]
    %v2100 = vld [vmem:[%s2095 + $0x20] sm:$0xff]
    %v2101 = vld [vmem:[%s2095 + $0x28] sm:$0xff]
    %v2102 = vld [vmem:[%s2095 + $0x30] sm:$0xff]
    %v2103 = vld [vmem:[%s2095 + $0x38] sm:$0xff]
    %v2104 = vld [vmem:[%s2095 + $0x40] sm:$0xff]
    %v2105 = vld [vmem:[%s2095 + $0x48] sm:$0xff]
    %v2106 = vld [vmem:[%s2095 + $0x50] sm:$0xff]
    %v2107 = vld [vmem:[%s2095 + $0x58] sm:$0xff]
    %v2108 = vld [vmem:[%s2095 + $0x60] sm:$0xff]
    %v2109 = vld [vmem:[%s2095 + $0x68] sm:$0xff]
    %v2110 = vld [vmem:[%s2095 + $0x70] sm:$0xff]
    %v2111 = vld [vmem:[%s2095 + $0x78] sm:$0xff]
    %v2112 = vld [vmem:[%s2095 + $0x80] sm:$0xff]
    %v2113 = vld [vmem:[%s2095 + $0x88] sm:$0xff]
    %v2114 = vld [vmem:[%s2095 + $0x90] sm:$0xff]
    %v2115 = vld [vmem:[%s2095 + $0x98] sm:$0xff]
    %v2116 = vld [vmem:[%s2095 + $0xa0] sm:$0xff]
    %v2117 = vld [vmem:[%s2095 + $0xa8] sm:$0xff]
    %v2118 = vld [vmem:[%s2095 + $0xb0] sm:$0xff]
    %v2119 = vld [vmem:[%s2095 + $0xb8] sm:$0xff]
    %v2120 = vld [vmem:[%s2095 + $0xc0] sm:$0xff]
    %v2121 = vld [vmem:[%s2095 + $0xc8] sm:$0xff]
    %v2122 = vld [vmem:[%s2095 + $0xd0] sm:$0xff]
    %v2123 = vld [vmem:[%s2095 + $0xd8] sm:$0xff]
    %v2124 = vld [vmem:[%s2095 + $0xe0] sm:$0xff]
    %v2125 = vld [vmem:[%s2095 + $0xe8] sm:$0xff]
    %v2126 = vld [vmem:[%s2095 + $0xf0] sm:$0xff]
    %v2127 = vld [vmem:[%s2095 + $0xf8] sm:$0xff]
    %v2128 = vld [vmem:[%s2095 + $0x100] sm:$0xff]
    %v2129 = vld [vmem:[%s2095 + $0x108] sm:$0xff]
    %v2130 = vld [vmem:[%s2095 + $0x110] sm:$0xff]
    %v2131 = vld [vmem:[%s2095 + $0x118] sm:$0xff]
    %v2132 = vld [vmem:[%s2095 + $0x120] sm:$0xff]
    %v2133 = vld [vmem:[%s2095 + $0x128] sm:$0xff]
    %v2134 = vld [vmem:[%s2095 + $0x130] sm:$0xff]
    %v2135 = vld [vmem:[%s2095 + $0x138] sm:$0xff]
    %v2136 = vld [vmem:[%s2095 + $0x140] sm:$0xff]
    %v2137 = vld [vmem:[%s2095 + $0x148] sm:$0xff]
    %v2138 = vld [vmem:[%s2095 + $0x150] sm:$0xff]
    %v2139 = vld [vmem:[%s2095 + $0x158] sm:$0xff]
    %v2140 = vld [vmem:[%s2095 + $0x160] sm:$0xff]
    %v2141 = vld [vmem:[%s2095 + $0x168] sm:$0xff]
    %v2142 = vld [vmem:[%s2095 + $0x170] sm:$0xff]
    %v2143 = vld [vmem:[%s2095 + $0x178] sm:$0xff]
    %v2144 = vld [vmem:[%s2095 + $0x180] sm:$0xff]
    %v2145 = vld [vmem:[%s2095 + $0x188] sm:$0xff]
    %v2146 = vld [vmem:[%s2095 + $0x190] sm:$0xff]
    %v2147 = vld [vmem:[%s2095 + $0x198] sm:$0xff]
    %v2148 = vld [vmem:[%s2095 + $0x1a0] sm:$0xff]
    %v2149 = vld [vmem:[%s2095 + $0x1a8] sm:$0xff]
    %v2150 = vld [vmem:[%s2095 + $0x1b0] sm:$0xff]
    %v2151 = vld [vmem:[%s2095 + $0x1b8] sm:$0xff]
    %v2152 = vld [vmem:[%s2095 + $0x1c0] sm:$0xff]
    %v2153 = vld [vmem:[%s2095 + $0x1c8] sm:$0xff]
    %v2154 = vld [vmem:[%s2095 + $0x1d0] sm:$0xff]
    %v2155 = vld [vmem:[%s2095 + $0x1d8] sm:$0xff]
    %v2156 = vld [vmem:[%s2095 + $0x1e0] sm:$0xff]
    %v2157 = vld [vmem:[%s2095 + $0x1e8] sm:$0xff]
    %v2158 = vld [vmem:[%s2095 + $0x1f0] sm:$0xff]
    %v2159 = vld [vmem:[%s2095 + $0x1f8] sm:$0xff]
    %v2160 = vld [vmem:[%s2095 + $0x200] sm:$0xff]
    %v2161 = vld [vmem:[%s2095 + $0x208] sm:$0xff]
    %v2162 = vld [vmem:[%s2095 + $0x210] sm:$0xff]
    %v2163 = vld [vmem:[%s2095 + $0x218] sm:$0xff]
    %v2164 = vld [vmem:[%s2095 + $0x220] sm:$0xff]
    %v2165 = vld [vmem:[%s2095 + $0x228] sm:$0xff]
    %v2166 = vld [vmem:[%s2095 + $0x230] sm:$0xff]
    %v2167 = vld [vmem:[%s2095 + $0x238] sm:$0xff]
    %v2168 = vld [vmem:[%s2095 + $0x240] sm:$0xff]
    %v2169 = vld [vmem:[%s2095 + $0x248] sm:$0xff]
    %v2170 = vld [vmem:[%s2095 + $0x250] sm:$0xff]
    %v2171 = vld [vmem:[%s2095 + $0x258] sm:$0xff]
    %v2172 = vld [vmem:[%s2095 + $0x260] sm:$0xff]
    %v2173 = vld [vmem:[%s2095 + $0x268] sm:$0xff]
    %v2174 = vld [vmem:[%s2095 + $0x270] sm:$0xff]
    %v2175 = vld [vmem:[%s2095 + $0x278] sm:$0xff]
    %v2176 = vld [vmem:[%s2095 + $0x280] sm:$0xff]
    %v2177 = vld [vmem:[%s2095 + $0x288] sm:$0xff]
    %v2178 = vld [vmem:[%s2095 + $0x290] sm:$0xff]
    %v2179 = vld [vmem:[%s2095 + $0x298] sm:$0xff]
    %v2180 = vld [vmem:[%s2095 + $0x2a0] sm:$0xff]
    %v2181 = vld [vmem:[%s2095 + $0x2a8] sm:$0xff]
    %v2182 = vld [vmem:[%s2095 + $0x2b0] sm:$0xff]
    %v2183 = vld [vmem:[%s2095 + $0x2b8] sm:$0xff]
    %v2184 = vld [vmem:[%s2095 + $0x2c0] sm:$0xff]
    %v2185 = vld [vmem:[%s2095 + $0x2c8] sm:$0xff]
    %v2186 = vld [vmem:[%s2095 + $0x2d0] sm:$0xff]
    %v2187 = vld [vmem:[%s2095 + $0x2d8] sm:$0xff]
    %v2188 = vld [vmem:[%s2095 + $0x2e0] sm:$0xff]
    %v2189 = vld [vmem:[%s2095 + $0x2e8] sm:$0xff]
    %v2190 = vld [vmem:[%s2095 + $0x2f0] sm:$0xff]
    %v2191 = vld [vmem:[%s2095 + $0x2f8] sm:$0xff]
    %v2192 = vld [vmem:[%s2095 + $0x300] sm:$0xff]
    %v2193 = vld [vmem:[%s2095 + $0x308] sm:$0xff]
    %v2194 = vld [vmem:[%s2095 + $0x310] sm:$0xff]
    %v2195 = vld [vmem:[%s2095 + $0x318] sm:$0xff]
    %v2196 = vld [vmem:[%s2095 + $0x320] sm:$0xff]
    %v2197 = vld [vmem:[%s2095 + $0x328] sm:$0xff]
    %v2198 = vld [vmem:[%s2095 + $0x330] sm:$0xff]
    %v2199 = vld [vmem:[%s2095 + $0x338] sm:$0xff]
    %v2200 = vld [vmem:[%s2095 + $0x340] sm:$0xff]
    %v2201 = vld [vmem:[%s2095 + $0x348] sm:$0xff]
    %v2202 = vld [vmem:[%s2095 + $0x350] sm:$0xff]
    %v2203 = vld [vmem:[%s2095 + $0x358] sm:$0xff]
    %v2204 = vld [vmem:[%s2095 + $0x360] sm:$0xff]
    %v2205 = vld [vmem:[%s2095 + $0x368] sm:$0xff]
    %v2206 = vld [vmem:[%s2095 + $0x370] sm:$0xff]
    %v2207 = vld [vmem:[%s2095 + $0x378] sm:$0xff]
    %v2208 = vld [vmem:[%s2095 + $0x380] sm:$0xff]
    %v2209 = vld [vmem:[%s2095 + $0x388] sm:$0xff]
    %v2210 = vld [vmem:[%s2095 + $0x390] sm:$0xff]
    %v2211 = vld [vmem:[%s2095 + $0x398] sm:$0xff]
    %v2212 = vld [vmem:[%s2095 + $0x3a0] sm:$0xff]
    %v2213 = vld [vmem:[%s2095 + $0x3a8] sm:$0xff]
    %v2214 = vld [vmem:[%s2095 + $0x3b0] sm:$0xff]
    %v2215 = vld [vmem:[%s2095 + $0x3b8] sm:$0xff]
    %v2216 = vld [vmem:[%s2095 + $0x3c0] sm:$0xff]
    %v2217 = vld [vmem:[%s2095 + $0x3c8] sm:$0xff]
    %v2218 = vld [vmem:[%s2095 + $0x3d0] sm:$0xff]
    %v2219 = vld [vmem:[%s2095 + $0x3d8] sm:$0xff]
    %v2220 = vld [vmem:[%s2095 + $0x3e0] sm:$0xff]
    %v2221 = vld [vmem:[%s2095 + $0x3e8] sm:$0xff]
    %v2222 = vld [vmem:[%s2095 + $0x3f0] sm:$0xff]
    %v2223 = vld [vmem:[%s2095 + $0x3f8] sm:$0xff]
    %s2224 = scalar_lea.vmem [#allocation6], 2048
    %v2225 = vld [vmem:[%s2224] sm:$0xff]
    %v2226 = vld [vmem:[%s2224 + $0x8] sm:$0xff]
    %v2227 = vld [vmem:[%s2224 + $0x10] sm:$0xff]
    %v2228 = vld [vmem:[%s2224 + $0x18] sm:$0xff]
    %v2229 = vld [vmem:[%s2224 + $0x20] sm:$0xff]
    %v2230 = vld [vmem:[%s2224 + $0x28] sm:$0xff]
    %v2231 = vld [vmem:[%s2224 + $0x30] sm:$0xff]
    %v2232 = vld [vmem:[%s2224 + $0x38] sm:$0xff]
    %v2233 = vld [vmem:[%s2224 + $0x40] sm:$0xff]
    %v2234 = vld [vmem:[%s2224 + $0x48] sm:$0xff]
    %v2235 = vld [vmem:[%s2224 + $0x50] sm:$0xff]
    %v2236 = vld [vmem:[%s2224 + $0x58] sm:$0xff]
    %v2237 = vld [vmem:[%s2224 + $0x60] sm:$0xff]
    %v2238 = vld [vmem:[%s2224 + $0x68] sm:$0xff]
    %v2239 = vld [vmem:[%s2224 + $0x70] sm:$0xff]
    %v2240 = vld [vmem:[%s2224 + $0x78] sm:$0xff]
    %v2241 = vld [vmem:[%s2224 + $0x80] sm:$0xff]
    %v2242 = vld [vmem:[%s2224 + $0x88] sm:$0xff]
    %v2243 = vld [vmem:[%s2224 + $0x90] sm:$0xff]
    %v2244 = vld [vmem:[%s2224 + $0x98] sm:$0xff]
    %v2245 = vld [vmem:[%s2224 + $0xa0] sm:$0xff]
    %v2246 = vld [vmem:[%s2224 + $0xa8] sm:$0xff]
    %v2247 = vld [vmem:[%s2224 + $0xb0] sm:$0xff]
    %v2248 = vld [vmem:[%s2224 + $0xb8] sm:$0xff]
    %v2249 = vld [vmem:[%s2224 + $0xc0] sm:$0xff]
    %v2250 = vld [vmem:[%s2224 + $0xc8] sm:$0xff]
    %v2251 = vld [vmem:[%s2224 + $0xd0] sm:$0xff]
    %v2252 = vld [vmem:[%s2224 + $0xd8] sm:$0xff]
    %v2253 = vld [vmem:[%s2224 + $0xe0] sm:$0xff]
    %v2254 = vld [vmem:[%s2224 + $0xe8] sm:$0xff]
    %v2255 = vld [vmem:[%s2224 + $0xf0] sm:$0xff]
    %v2256 = vld [vmem:[%s2224 + $0xf8] sm:$0xff]
    %v2257 = vld [vmem:[%s2224 + $0x100] sm:$0xff]
    %v2258 = vld [vmem:[%s2224 + $0x108] sm:$0xff]
    %v2259 = vld [vmem:[%s2224 + $0x110] sm:$0xff]
    %v2260 = vld [vmem:[%s2224 + $0x118] sm:$0xff]
    %v2261 = vld [vmem:[%s2224 + $0x120] sm:$0xff]
    %v2262 = vld [vmem:[%s2224 + $0x128] sm:$0xff]
    %v2263 = vld [vmem:[%s2224 + $0x130] sm:$0xff]
    %v2264 = vld [vmem:[%s2224 + $0x138] sm:$0xff]
    %v2265 = vld [vmem:[%s2224 + $0x140] sm:$0xff]
    %v2266 = vld [vmem:[%s2224 + $0x148] sm:$0xff]
    %v2267 = vld [vmem:[%s2224 + $0x150] sm:$0xff]
    %v2268 = vld [vmem:[%s2224 + $0x158] sm:$0xff]
    %v2269 = vld [vmem:[%s2224 + $0x160] sm:$0xff]
    %v2270 = vld [vmem:[%s2224 + $0x168] sm:$0xff]
    %v2271 = vld [vmem:[%s2224 + $0x170] sm:$0xff]
    %v2272 = vld [vmem:[%s2224 + $0x178] sm:$0xff]
    %v2273 = vld [vmem:[%s2224 + $0x180] sm:$0xff]
    %v2274 = vld [vmem:[%s2224 + $0x188] sm:$0xff]
    %v2275 = vld [vmem:[%s2224 + $0x190] sm:$0xff]
    %v2276 = vld [vmem:[%s2224 + $0x198] sm:$0xff]
    %v2277 = vld [vmem:[%s2224 + $0x1a0] sm:$0xff]
    %v2278 = vld [vmem:[%s2224 + $0x1a8] sm:$0xff]
    %v2279 = vld [vmem:[%s2224 + $0x1b0] sm:$0xff]
    %v2280 = vld [vmem:[%s2224 + $0x1b8] sm:$0xff]
    %v2281 = vld [vmem:[%s2224 + $0x1c0] sm:$0xff]
    %v2282 = vld [vmem:[%s2224 + $0x1c8] sm:$0xff]
    %v2283 = vld [vmem:[%s2224 + $0x1d0] sm:$0xff]
    %v2284 = vld [vmem:[%s2224 + $0x1d8] sm:$0xff]
    %v2285 = vld [vmem:[%s2224 + $0x1e0] sm:$0xff]
    %v2286 = vld [vmem:[%s2224 + $0x1e8] sm:$0xff]
    %v2287 = vld [vmem:[%s2224 + $0x1f0] sm:$0xff]
    %v2288 = vld [vmem:[%s2224 + $0x1f8] sm:$0xff]
    %v2289 = vld [vmem:[%s2224 + $0x200] sm:$0xff]
    %v2290 = vld [vmem:[%s2224 + $0x208] sm:$0xff]
    %v2291 = vld [vmem:[%s2224 + $0x210] sm:$0xff]
    %v2292 = vld [vmem:[%s2224 + $0x218] sm:$0xff]
    %v2293 = vld [vmem:[%s2224 + $0x220] sm:$0xff]
    %v2294 = vld [vmem:[%s2224 + $0x228] sm:$0xff]
    %v2295 = vld [vmem:[%s2224 + $0x230] sm:$0xff]
    %v2296 = vld [vmem:[%s2224 + $0x238] sm:$0xff]
    %v2297 = vld [vmem:[%s2224 + $0x240] sm:$0xff]
    %v2298 = vld [vmem:[%s2224 + $0x248] sm:$0xff]
    %v2299 = vld [vmem:[%s2224 + $0x250] sm:$0xff]
    %v2300 = vld [vmem:[%s2224 + $0x258] sm:$0xff]
    %v2301 = vld [vmem:[%s2224 + $0x260] sm:$0xff]
    %v2302 = vld [vmem:[%s2224 + $0x268] sm:$0xff]
    %v2303 = vld [vmem:[%s2224 + $0x270] sm:$0xff]
    %v2304 = vld [vmem:[%s2224 + $0x278] sm:$0xff]
    %v2305 = vld [vmem:[%s2224 + $0x280] sm:$0xff]
    %v2306 = vld [vmem:[%s2224 + $0x288] sm:$0xff]
    %v2307 = vld [vmem:[%s2224 + $0x290] sm:$0xff]
    %v2308 = vld [vmem:[%s2224 + $0x298] sm:$0xff]
    %v2309 = vld [vmem:[%s2224 + $0x2a0] sm:$0xff]
    %v2310 = vld [vmem:[%s2224 + $0x2a8] sm:$0xff]
    %v2311 = vld [vmem:[%s2224 + $0x2b0] sm:$0xff]
    %v2312 = vld [vmem:[%s2224 + $0x2b8] sm:$0xff]
    %v2313 = vld [vmem:[%s2224 + $0x2c0] sm:$0xff]
    %v2314 = vld [vmem:[%s2224 + $0x2c8] sm:$0xff]
    %v2315 = vld [vmem:[%s2224 + $0x2d0] sm:$0xff]
    %v2316 = vld [vmem:[%s2224 + $0x2d8] sm:$0xff]
    %v2317 = vld [vmem:[%s2224 + $0x2e0] sm:$0xff]
    %v2318 = vld [vmem:[%s2224 + $0x2e8] sm:$0xff]
    %v2319 = vld [vmem:[%s2224 + $0x2f0] sm:$0xff]
    %v2320 = vld [vmem:[%s2224 + $0x2f8] sm:$0xff]
    %v2321 = vld [vmem:[%s2224 + $0x300] sm:$0xff]
    %v2322 = vld [vmem:[%s2224 + $0x308] sm:$0xff]
    %v2323 = vld [vmem:[%s2224 + $0x310] sm:$0xff]
    %v2324 = vld [vmem:[%s2224 + $0x318] sm:$0xff]
    %v2325 = vld [vmem:[%s2224 + $0x320] sm:$0xff]
    %v2326 = vld [vmem:[%s2224 + $0x328] sm:$0xff]
    %v2327 = vld [vmem:[%s2224 + $0x330] sm:$0xff]
    %v2328 = vld [vmem:[%s2224 + $0x338] sm:$0xff]
    %v2329 = vld [vmem:[%s2224 + $0x340] sm:$0xff]
    %v2330 = vld [vmem:[%s2224 + $0x348] sm:$0xff]
    %v2331 = vld [vmem:[%s2224 + $0x350] sm:$0xff]
    %v2332 = vld [vmem:[%s2224 + $0x358] sm:$0xff]
    %v2333 = vld [vmem:[%s2224 + $0x360] sm:$0xff]
    %v2334 = vld [vmem:[%s2224 + $0x368] sm:$0xff]
    %v2335 = vld [vmem:[%s2224 + $0x370] sm:$0xff]
    %v2336 = vld [vmem:[%s2224 + $0x378] sm:$0xff]
    %v2337 = vld [vmem:[%s2224 + $0x380] sm:$0xff]
    %v2338 = vld [vmem:[%s2224 + $0x388] sm:$0xff]
    %v2339 = vld [vmem:[%s2224 + $0x390] sm:$0xff]
    %v2340 = vld [vmem:[%s2224 + $0x398] sm:$0xff]
    %v2341 = vld [vmem:[%s2224 + $0x3a0] sm:$0xff]
    %v2342 = vld [vmem:[%s2224 + $0x3a8] sm:$0xff]
    %v2343 = vld [vmem:[%s2224 + $0x3b0] sm:$0xff]
    %v2344 = vld [vmem:[%s2224 + $0x3b8] sm:$0xff]
    %v2345 = vld [vmem:[%s2224 + $0x3c0] sm:$0xff]
    %v2346 = vld [vmem:[%s2224 + $0x3c8] sm:$0xff]
    %v2347 = vld [vmem:[%s2224 + $0x3d0] sm:$0xff]
    %v2348 = vld [vmem:[%s2224 + $0x3d8] sm:$0xff]
    %v2349 = vld [vmem:[%s2224 + $0x3e0] sm:$0xff]
    %v2350 = vld [vmem:[%s2224 + $0x3e8] sm:$0xff]
    %v2351 = vld [vmem:[%s2224 + $0x3f0] sm:$0xff]
    %v2352 = vld [vmem:[%s2224 + $0x3f8] sm:$0xff]
    %s2353 = scalar_lea.vmem [#allocation6], 3072
    %v2354 = vld [vmem:[%s2353] sm:$0xff]
    %v2355 = vld [vmem:[%s2353 + $0x8] sm:$0xff]
    %v2356 = vld [vmem:[%s2353 + $0x10] sm:$0xff]
    %v2357 = vld [vmem:[%s2353 + $0x18] sm:$0xff]
    %v2358 = vld [vmem:[%s2353 + $0x20] sm:$0xff]
    %v2359 = vld [vmem:[%s2353 + $0x28] sm:$0xff]
    %v2360 = vld [vmem:[%s2353 + $0x30] sm:$0xff]
    %v2361 = vld [vmem:[%s2353 + $0x38] sm:$0xff]
    %v2362 = vld [vmem:[%s2353 + $0x40] sm:$0xff]
    %v2363 = vld [vmem:[%s2353 + $0x48] sm:$0xff]
    %v2364 = vld [vmem:[%s2353 + $0x50] sm:$0xff]
    %v2365 = vld [vmem:[%s2353 + $0x58] sm:$0xff]
    %v2366 = vld [vmem:[%s2353 + $0x60] sm:$0xff]
    %v2367 = vld [vmem:[%s2353 + $0x68] sm:$0xff]
    %v2368 = vld [vmem:[%s2353 + $0x70] sm:$0xff]
    %v2369 = vld [vmem:[%s2353 + $0x78] sm:$0xff]
    %v2370 = vld [vmem:[%s2353 + $0x80] sm:$0xff]
    %v2371 = vld [vmem:[%s2353 + $0x88] sm:$0xff]
    %v2372 = vld [vmem:[%s2353 + $0x90] sm:$0xff]
    %v2373 = vld [vmem:[%s2353 + $0x98] sm:$0xff]
    %v2374 = vld [vmem:[%s2353 + $0xa0] sm:$0xff]
    %v2375 = vld [vmem:[%s2353 + $0xa8] sm:$0xff]
    %v2376 = vld [vmem:[%s2353 + $0xb0] sm:$0xff]
    %v2377 = vld [vmem:[%s2353 + $0xb8] sm:$0xff]
    %v2378 = vld [vmem:[%s2353 + $0xc0] sm:$0xff]
    %v2379 = vld [vmem:[%s2353 + $0xc8] sm:$0xff]
    %v2380 = vld [vmem:[%s2353 + $0xd0] sm:$0xff]
    %v2381 = vld [vmem:[%s2353 + $0xd8] sm:$0xff]
    %v2382 = vld [vmem:[%s2353 + $0xe0] sm:$0xff]
    %v2383 = vld [vmem:[%s2353 + $0xe8] sm:$0xff]
    %v2384 = vld [vmem:[%s2353 + $0xf0] sm:$0xff]
    %v2385 = vld [vmem:[%s2353 + $0xf8] sm:$0xff]
    %v2386 = vld [vmem:[%s2353 + $0x100] sm:$0xff]
    %v2387 = vld [vmem:[%s2353 + $0x108] sm:$0xff]
    %v2388 = vld [vmem:[%s2353 + $0x110] sm:$0xff]
    %v2389 = vld [vmem:[%s2353 + $0x118] sm:$0xff]
    %v2390 = vld [vmem:[%s2353 + $0x120] sm:$0xff]
    %v2391 = vld [vmem:[%s2353 + $0x128] sm:$0xff]
    %v2392 = vld [vmem:[%s2353 + $0x130] sm:$0xff]
    %v2393 = vld [vmem:[%s2353 + $0x138] sm:$0xff]
    %v2394 = vld [vmem:[%s2353 + $0x140] sm:$0xff]
    %v2395 = vld [vmem:[%s2353 + $0x148] sm:$0xff]
    %v2396 = vld [vmem:[%s2353 + $0x150] sm:$0xff]
    %v2397 = vld [vmem:[%s2353 + $0x158] sm:$0xff]
    %v2398 = vld [vmem:[%s2353 + $0x160] sm:$0xff]
    %v2399 = vld [vmem:[%s2353 + $0x168] sm:$0xff]
    %v2400 = vld [vmem:[%s2353 + $0x170] sm:$0xff]
    %v2401 = vld [vmem:[%s2353 + $0x178] sm:$0xff]
    %v2402 = vld [vmem:[%s2353 + $0x180] sm:$0xff]
    %v2403 = vld [vmem:[%s2353 + $0x188] sm:$0xff]
    %v2404 = vld [vmem:[%s2353 + $0x190] sm:$0xff]
    %v2405 = vld [vmem:[%s2353 + $0x198] sm:$0xff]
    %v2406 = vld [vmem:[%s2353 + $0x1a0] sm:$0xff]
    %v2407 = vld [vmem:[%s2353 + $0x1a8] sm:$0xff]
    %v2408 = vld [vmem:[%s2353 + $0x1b0] sm:$0xff]
    %v2409 = vld [vmem:[%s2353 + $0x1b8] sm:$0xff]
    %v2410 = vld [vmem:[%s2353 + $0x1c0] sm:$0xff]
    %v2411 = vld [vmem:[%s2353 + $0x1c8] sm:$0xff]
    %v2412 = vld [vmem:[%s2353 + $0x1d0] sm:$0xff]
    %v2413 = vld [vmem:[%s2353 + $0x1d8] sm:$0xff]
    %v2414 = vld [vmem:[%s2353 + $0x1e0] sm:$0xff]
    %v2415 = vld [vmem:[%s2353 + $0x1e8] sm:$0xff]
    %v2416 = vld [vmem:[%s2353 + $0x1f0] sm:$0xff]
    %v2417 = vld [vmem:[%s2353 + $0x1f8] sm:$0xff]
    %v2418 = vld [vmem:[%s2353 + $0x200] sm:$0xff]
    %v2419 = vld [vmem:[%s2353 + $0x208] sm:$0xff]
    %v2420 = vld [vmem:[%s2353 + $0x210] sm:$0xff]
    %v2421 = vld [vmem:[%s2353 + $0x218] sm:$0xff]
    %v2422 = vld [vmem:[%s2353 + $0x220] sm:$0xff]
    %v2423 = vld [vmem:[%s2353 + $0x228] sm:$0xff]
    %v2424 = vld [vmem:[%s2353 + $0x230] sm:$0xff]
    %v2425 = vld [vmem:[%s2353 + $0x238] sm:$0xff]
    %v2426 = vld [vmem:[%s2353 + $0x240] sm:$0xff]
    %v2427 = vld [vmem:[%s2353 + $0x248] sm:$0xff]
    %v2428 = vld [vmem:[%s2353 + $0x250] sm:$0xff]
    %v2429 = vld [vmem:[%s2353 + $0x258] sm:$0xff]
    %v2430 = vld [vmem:[%s2353 + $0x260] sm:$0xff]
    %v2431 = vld [vmem:[%s2353 + $0x268] sm:$0xff]
    %v2432 = vld [vmem:[%s2353 + $0x270] sm:$0xff]
    %v2433 = vld [vmem:[%s2353 + $0x278] sm:$0xff]
    %v2434 = vld [vmem:[%s2353 + $0x280] sm:$0xff]
    %v2435 = vld [vmem:[%s2353 + $0x288] sm:$0xff]
    %v2436 = vld [vmem:[%s2353 + $0x290] sm:$0xff]
    %v2437 = vld [vmem:[%s2353 + $0x298] sm:$0xff]
    %v2438 = vld [vmem:[%s2353 + $0x2a0] sm:$0xff]
    %v2439 = vld [vmem:[%s2353 + $0x2a8] sm:$0xff]
    %v2440 = vld [vmem:[%s2353 + $0x2b0] sm:$0xff]
    %v2441 = vld [vmem:[%s2353 + $0x2b8] sm:$0xff]
    %v2442 = vld [vmem:[%s2353 + $0x2c0] sm:$0xff]
    %v2443 = vld [vmem:[%s2353 + $0x2c8] sm:$0xff]
    %v2444 = vld [vmem:[%s2353 + $0x2d0] sm:$0xff]
    %v2445 = vld [vmem:[%s2353 + $0x2d8] sm:$0xff]
    %v2446 = vld [vmem:[%s2353 + $0x2e0] sm:$0xff]
    %v2447 = vld [vmem:[%s2353 + $0x2e8] sm:$0xff]
    %v2448 = vld [vmem:[%s2353 + $0x2f0] sm:$0xff]
    %v2449 = vld [vmem:[%s2353 + $0x2f8] sm:$0xff]
    %v2450 = vld [vmem:[%s2353 + $0x300] sm:$0xff]
    %v2451 = vld [vmem:[%s2353 + $0x308] sm:$0xff]
    %v2452 = vld [vmem:[%s2353 + $0x310] sm:$0xff]
    %v2453 = vld [vmem:[%s2353 + $0x318] sm:$0xff]
    %v2454 = vld [vmem:[%s2353 + $0x320] sm:$0xff]
    %v2455 = vld [vmem:[%s2353 + $0x328] sm:$0xff]
    %v2456 = vld [vmem:[%s2353 + $0x330] sm:$0xff]
    %v2457 = vld [vmem:[%s2353 + $0x338] sm:$0xff]
    %v2458 = vld [vmem:[%s2353 + $0x340] sm:$0xff]
    %v2459 = vld [vmem:[%s2353 + $0x348] sm:$0xff]
    %v2460 = vld [vmem:[%s2353 + $0x350] sm:$0xff]
    %v2461 = vld [vmem:[%s2353 + $0x358] sm:$0xff]
    %v2462 = vld [vmem:[%s2353 + $0x360] sm:$0xff]
    %v2463 = vld [vmem:[%s2353 + $0x368] sm:$0xff]
    %v2464 = vld [vmem:[%s2353 + $0x370] sm:$0xff]
    %v2465 = vld [vmem:[%s2353 + $0x378] sm:$0xff]
    %v2466 = vld [vmem:[%s2353 + $0x380] sm:$0xff]
    %v2467 = vld [vmem:[%s2353 + $0x388] sm:$0xff]
    %v2468 = vld [vmem:[%s2353 + $0x390] sm:$0xff]
    %v2469 = vld [vmem:[%s2353 + $0x398] sm:$0xff]
    %v2470 = vld [vmem:[%s2353 + $0x3a0] sm:$0xff]
    %v2471 = vld [vmem:[%s2353 + $0x3a8] sm:$0xff]
    %v2472 = vld [vmem:[%s2353 + $0x3b0] sm:$0xff]
    %v2473 = vld [vmem:[%s2353 + $0x3b8] sm:$0xff]
    %v2474 = vld [vmem:[%s2353 + $0x3c0] sm:$0xff]
    %v2475 = vld [vmem:[%s2353 + $0x3c8] sm:$0xff]
    %v2476 = vld [vmem:[%s2353 + $0x3d0] sm:$0xff]
    %v2477 = vld [vmem:[%s2353 + $0x3d8] sm:$0xff]
    %v2478 = vld [vmem:[%s2353 + $0x3e0] sm:$0xff]
    %v2479 = vld [vmem:[%s2353 + $0x3e8] sm:$0xff]
    %v2480 = vld [vmem:[%s2353 + $0x3f0] sm:$0xff]
    %v2481 = vld [vmem:[%s2353 + $0x3f8] sm:$0xff]
    %v2482 = vld [vmem:[#allocation7] sm:$0x3]
    %v2611 = vunpack.c.l.b16 %v1967
    %v2612 = vunpack.c.h.b16 %v1967
    %v2613 = vunpack.c.l.b16 %v1968
    %v2614 = vunpack.c.h.b16 %v1968
    %v2615 = vunpack.c.l.b16 %v1969
    %v2616 = vunpack.c.h.b16 %v1969
    %v2617 = vunpack.c.l.b16 %v1970
    %v2618 = vunpack.c.h.b16 %v1970
    %v2619 = vunpack.c.l.b16 %v1971
    %v2620 = vunpack.c.h.b16 %v1971
    %v2621 = vunpack.c.l.b16 %v1972
    %v2622 = vunpack.c.h.b16 %v1972
    %v2623 = vunpack.c.l.b16 %v1973
    %v2624 = vunpack.c.h.b16 %v1973
    %v2625 = vunpack.c.l.b16 %v1974
    %v2626 = vunpack.c.h.b16 %v1974
    %v2627 = vunpack.c.l.b16 %v1975
    %v2628 = vunpack.c.h.b16 %v1975
    %v2629 = vunpack.c.l.b16 %v1976
    %v2630 = vunpack.c.h.b16 %v1976
    %v2631 = vunpack.c.l.b16 %v1977
    %v2632 = vunpack.c.h.b16 %v1977
    %v2633 = vunpack.c.l.b16 %v1978
    %v2634 = vunpack.c.h.b16 %v1978
    %v2635 = vunpack.c.l.b16 %v1979
    %v2636 = vunpack.c.h.b16 %v1979
    %v2637 = vunpack.c.l.b16 %v1980
    %v2638 = vunpack.c.h.b16 %v1980
    %v2639 = vunpack.c.l.b16 %v1981
    %v2640 = vunpack.c.h.b16 %v1981
    %v2641 = vunpack.c.l.b16 %v1982
    %v2642 = vunpack.c.h.b16 %v1982
    %v2643 = vunpack.c.l.b16 %v1983
    %v2644 = vunpack.c.h.b16 %v1983
    %v2645 = vunpack.c.l.b16 %v1984
    %v2646 = vunpack.c.h.b16 %v1984
    %v2647 = vunpack.c.l.b16 %v1985
    %v2648 = vunpack.c.h.b16 %v1985
    %v2649 = vunpack.c.l.b16 %v1986
    %v2650 = vunpack.c.h.b16 %v1986
    %v2651 = vunpack.c.l.b16 %v1987
    %v2652 = vunpack.c.h.b16 %v1987
    %v2653 = vunpack.c.l.b16 %v1988
    %v2654 = vunpack.c.h.b16 %v1988
    %v2655 = vunpack.c.l.b16 %v1989
    %v2656 = vunpack.c.h.b16 %v1989
    %v2657 = vunpack.c.l.b16 %v1990
    %v2658 = vunpack.c.h.b16 %v1990
    %v2659 = vunpack.c.l.b16 %v1991
    %v2660 = vunpack.c.h.b16 %v1991
    %v2661 = vunpack.c.l.b16 %v1992
    %v2662 = vunpack.c.h.b16 %v1992
    %v2663 = vunpack.c.l.b16 %v1993
    %v2664 = vunpack.c.h.b16 %v1993
    %v2665 = vunpack.c.l.b16 %v1994
    %v2666 = vunpack.c.h.b16 %v1994
    %v2667 = vunpack.c.l.b16 %v1995
    %v2668 = vunpack.c.h.b16 %v1995
    %v2669 = vunpack.c.l.b16 %v1996
    %v2670 = vunpack.c.h.b16 %v1996
    %v2671 = vunpack.c.l.b16 %v1997
    %v2672 = vunpack.c.h.b16 %v1997
    %v2673 = vunpack.c.l.b16 %v1998
    %v2674 = vunpack.c.h.b16 %v1998
    %v2675 = vunpack.c.l.b16 %v1999
    %v2676 = vunpack.c.h.b16 %v1999
    %v2677 = vunpack.c.l.b16 %v2000
    %v2678 = vunpack.c.h.b16 %v2000
    %v2679 = vunpack.c.l.b16 %v2001
    %v2680 = vunpack.c.h.b16 %v2001
    %v2681 = vunpack.c.l.b16 %v2002
    %v2682 = vunpack.c.h.b16 %v2002
    %v2683 = vunpack.c.l.b16 %v2003
    %v2684 = vunpack.c.h.b16 %v2003
    %v2685 = vunpack.c.l.b16 %v2004
    %v2686 = vunpack.c.h.b16 %v2004
    %v2687 = vunpack.c.l.b16 %v2005
    %v2688 = vunpack.c.h.b16 %v2005
    %v2689 = vunpack.c.l.b16 %v2006
    %v2690 = vunpack.c.h.b16 %v2006
    %v2691 = vunpack.c.l.b16 %v2007
    %v2692 = vunpack.c.h.b16 %v2007
    %v2693 = vunpack.c.l.b16 %v2008
    %v2694 = vunpack.c.h.b16 %v2008
    %v2695 = vunpack.c.l.b16 %v2009
    %v2696 = vunpack.c.h.b16 %v2009
    %v2697 = vunpack.c.l.b16 %v2010
    %v2698 = vunpack.c.h.b16 %v2010
    %v2699 = vunpack.c.l.b16 %v2011
    %v2700 = vunpack.c.h.b16 %v2011
    %v2701 = vunpack.c.l.b16 %v2012
    %v2702 = vunpack.c.h.b16 %v2012
    %v2703 = vunpack.c.l.b16 %v2013
    %v2704 = vunpack.c.h.b16 %v2013
    %v2705 = vunpack.c.l.b16 %v2014
    %v2706 = vunpack.c.h.b16 %v2014
    %v2707 = vunpack.c.l.b16 %v2015
    %v2708 = vunpack.c.h.b16 %v2015
    %v2709 = vunpack.c.l.b16 %v2016
    %v2710 = vunpack.c.h.b16 %v2016
    %v2711 = vunpack.c.l.b16 %v2017
    %v2712 = vunpack.c.h.b16 %v2017
    %v2713 = vunpack.c.l.b16 %v2018
    %v2714 = vunpack.c.h.b16 %v2018
    %v2715 = vunpack.c.l.b16 %v2019
    %v2716 = vunpack.c.h.b16 %v2019
    %v2717 = vunpack.c.l.b16 %v2020
    %v2718 = vunpack.c.h.b16 %v2020
    %v2719 = vunpack.c.l.b16 %v2021
    %v2720 = vunpack.c.h.b16 %v2021
    %v2721 = vunpack.c.l.b16 %v2022
    %v2722 = vunpack.c.h.b16 %v2022
    %v2723 = vunpack.c.l.b16 %v2023
    %v2724 = vunpack.c.h.b16 %v2023
    %v2725 = vunpack.c.l.b16 %v2024
    %v2726 = vunpack.c.h.b16 %v2024
    %v2727 = vunpack.c.l.b16 %v2025
    %v2728 = vunpack.c.h.b16 %v2025
    %v2729 = vunpack.c.l.b16 %v2026
    %v2730 = vunpack.c.h.b16 %v2026
    %v2731 = vunpack.c.l.b16 %v2027
    %v2732 = vunpack.c.h.b16 %v2027
    %v2733 = vunpack.c.l.b16 %v2028
    %v2734 = vunpack.c.h.b16 %v2028
    %v2735 = vunpack.c.l.b16 %v2029
    %v2736 = vunpack.c.h.b16 %v2029
    %v2737 = vunpack.c.l.b16 %v2030
    %v2738 = vunpack.c.h.b16 %v2030
    %v2739 = vunpack.c.l.b16 %v2031
    %v2740 = vunpack.c.h.b16 %v2031
    %v2741 = vunpack.c.l.b16 %v2032
    %v2742 = vunpack.c.h.b16 %v2032
    %v2743 = vunpack.c.l.b16 %v2033
    %v2744 = vunpack.c.h.b16 %v2033
    %v2745 = vunpack.c.l.b16 %v2034
    %v2746 = vunpack.c.h.b16 %v2034
    %v2747 = vunpack.c.l.b16 %v2035
    %v2748 = vunpack.c.h.b16 %v2035
    %v2749 = vunpack.c.l.b16 %v2036
    %v2750 = vunpack.c.h.b16 %v2036
    %v2751 = vunpack.c.l.b16 %v2037
    %v2752 = vunpack.c.h.b16 %v2037
    %v2753 = vunpack.c.l.b16 %v2038
    %v2754 = vunpack.c.h.b16 %v2038
    %v2755 = vunpack.c.l.b16 %v2039
    %v2756 = vunpack.c.h.b16 %v2039
    %v2757 = vunpack.c.l.b16 %v2040
    %v2758 = vunpack.c.h.b16 %v2040
    %v2759 = vunpack.c.l.b16 %v2041
    %v2760 = vunpack.c.h.b16 %v2041
    %v2761 = vunpack.c.l.b16 %v2042
    %v2762 = vunpack.c.h.b16 %v2042
    %v2763 = vunpack.c.l.b16 %v2043
    %v2764 = vunpack.c.h.b16 %v2043
    %v2765 = vunpack.c.l.b16 %v2044
    %v2766 = vunpack.c.h.b16 %v2044
    %v2767 = vunpack.c.l.b16 %v2045
    %v2768 = vunpack.c.h.b16 %v2045
    %v2769 = vunpack.c.l.b16 %v2046
    %v2770 = vunpack.c.h.b16 %v2046
    %v2771 = vunpack.c.l.b16 %v2047
    %v2772 = vunpack.c.h.b16 %v2047
    %v2773 = vunpack.c.l.b16 %v2048
    %v2774 = vunpack.c.h.b16 %v2048
    %v2775 = vunpack.c.l.b16 %v2049
    %v2776 = vunpack.c.h.b16 %v2049
    %v2777 = vunpack.c.l.b16 %v2050
    %v2778 = vunpack.c.h.b16 %v2050
    %v2779 = vunpack.c.l.b16 %v2051
    %v2780 = vunpack.c.h.b16 %v2051
    %v2781 = vunpack.c.l.b16 %v2052
    %v2782 = vunpack.c.h.b16 %v2052
    %v2783 = vunpack.c.l.b16 %v2053
    %v2784 = vunpack.c.h.b16 %v2053
    %v2785 = vunpack.c.l.b16 %v2054
    %v2786 = vunpack.c.h.b16 %v2054
    %v2787 = vunpack.c.l.b16 %v2055
    %v2788 = vunpack.c.h.b16 %v2055
    %v2789 = vunpack.c.l.b16 %v2056
    %v2790 = vunpack.c.h.b16 %v2056
    %v2791 = vunpack.c.l.b16 %v2057
    %v2792 = vunpack.c.h.b16 %v2057
    %v2793 = vunpack.c.l.b16 %v2058
    %v2794 = vunpack.c.h.b16 %v2058
    %v2795 = vunpack.c.l.b16 %v2059
    %v2796 = vunpack.c.h.b16 %v2059
    %v2797 = vunpack.c.l.b16 %v2060
    %v2798 = vunpack.c.h.b16 %v2060
    %v2799 = vunpack.c.l.b16 %v2061
    %v2800 = vunpack.c.h.b16 %v2061
    %v2801 = vunpack.c.l.b16 %v2062
    %v2802 = vunpack.c.h.b16 %v2062
    %v2803 = vunpack.c.l.b16 %v2063
    %v2804 = vunpack.c.h.b16 %v2063
    %v2805 = vunpack.c.l.b16 %v2064
    %v2806 = vunpack.c.h.b16 %v2064
    %v2807 = vunpack.c.l.b16 %v2065
    %v2808 = vunpack.c.h.b16 %v2065
    %v2809 = vunpack.c.l.b16 %v2066
    %v2810 = vunpack.c.h.b16 %v2066
    %v2811 = vunpack.c.l.b16 %v2067
    %v2812 = vunpack.c.h.b16 %v2067
    %v2813 = vunpack.c.l.b16 %v2068
    %v2814 = vunpack.c.h.b16 %v2068
    %v2815 = vunpack.c.l.b16 %v2069
    %v2816 = vunpack.c.h.b16 %v2069
    %v2817 = vunpack.c.l.b16 %v2070
    %v2818 = vunpack.c.h.b16 %v2070
    %v2819 = vunpack.c.l.b16 %v2071
    %v2820 = vunpack.c.h.b16 %v2071
    %v2821 = vunpack.c.l.b16 %v2072
    %v2822 = vunpack.c.h.b16 %v2072
    %v2823 = vunpack.c.l.b16 %v2073
    %v2824 = vunpack.c.h.b16 %v2073
    %v2825 = vunpack.c.l.b16 %v2074
    %v2826 = vunpack.c.h.b16 %v2074
    %v2827 = vunpack.c.l.b16 %v2075
    %v2828 = vunpack.c.h.b16 %v2075
    %v2829 = vunpack.c.l.b16 %v2076
    %v2830 = vunpack.c.h.b16 %v2076
    %v2831 = vunpack.c.l.b16 %v2077
    %v2832 = vunpack.c.h.b16 %v2077
    %v2833 = vunpack.c.l.b16 %v2078
    %v2834 = vunpack.c.h.b16 %v2078
    %v2835 = vunpack.c.l.b16 %v2079
    %v2836 = vunpack.c.h.b16 %v2079
    %v2837 = vunpack.c.l.b16 %v2080
    %v2838 = vunpack.c.h.b16 %v2080
    %v2839 = vunpack.c.l.b16 %v2081
    %v2840 = vunpack.c.h.b16 %v2081
    %v2841 = vunpack.c.l.b16 %v2082
    %v2842 = vunpack.c.h.b16 %v2082
    %v2843 = vunpack.c.l.b16 %v2083
    %v2844 = vunpack.c.h.b16 %v2083
    %v2845 = vunpack.c.l.b16 %v2084
    %v2846 = vunpack.c.h.b16 %v2084
    %v2847 = vunpack.c.l.b16 %v2085
    %v2848 = vunpack.c.h.b16 %v2085
    %v2849 = vunpack.c.l.b16 %v2086
    %v2850 = vunpack.c.h.b16 %v2086
    %v2851 = vunpack.c.l.b16 %v2087
    %v2852 = vunpack.c.h.b16 %v2087
    %v2853 = vunpack.c.l.b16 %v2088
    %v2854 = vunpack.c.h.b16 %v2088
    %v2855 = vunpack.c.l.b16 %v2089
    %v2856 = vunpack.c.h.b16 %v2089
    %v2857 = vunpack.c.l.b16 %v2090
    %v2858 = vunpack.c.h.b16 %v2090
    %v2859 = vunpack.c.l.b16 %v2091
    %v2860 = vunpack.c.h.b16 %v2091
    %v2861 = vunpack.c.l.b16 %v2092
    %v2862 = vunpack.c.h.b16 %v2092
    %v2863 = vunpack.c.l.b16 %v2093
    %v2864 = vunpack.c.h.b16 %v2093
    %v2865 = vunpack.c.l.b16 %v2094
    %v2866 = vunpack.c.h.b16 %v2094
    %v2867 = vpack.c.b16 %v2613, %v2611
    %v2868 = vpack.c.b16 %v2614, %v2612
    %v2869 = vpack.c.b16 %v2617, %v2615
    %v2870 = vpack.c.b16 %v2618, %v2616
    %v2871 = vpack.c.b16 %v2621, %v2619
    %v2872 = vpack.c.b16 %v2622, %v2620
    %v2873 = vpack.c.b16 %v2625, %v2623
    %v2874 = vpack.c.b16 %v2626, %v2624
    %v2875 = vpack.c.b16 %v2629, %v2627
    %v2876 = vpack.c.b16 %v2630, %v2628
    %v2877 = vpack.c.b16 %v2633, %v2631
    %v2878 = vpack.c.b16 %v2634, %v2632
    %v2879 = vpack.c.b16 %v2637, %v2635
    %v2880 = vpack.c.b16 %v2638, %v2636
    %v2881 = vpack.c.b16 %v2641, %v2639
    %v2882 = vpack.c.b16 %v2642, %v2640
    %v2883 = vpack.c.b16 %v2645, %v2643
    %v2884 = vpack.c.b16 %v2646, %v2644
    %v2885 = vpack.c.b16 %v2649, %v2647
    %v2886 = vpack.c.b16 %v2650, %v2648
    %v2887 = vpack.c.b16 %v2653, %v2651
    %v2888 = vpack.c.b16 %v2654, %v2652
    %v2889 = vpack.c.b16 %v2657, %v2655
    %v2890 = vpack.c.b16 %v2658, %v2656
    %v2891 = vpack.c.b16 %v2661, %v2659
    %v2892 = vpack.c.b16 %v2662, %v2660
    %v2893 = vpack.c.b16 %v2665, %v2663
    %v2894 = vpack.c.b16 %v2666, %v2664
    %v2895 = vpack.c.b16 %v2669, %v2667
    %v2896 = vpack.c.b16 %v2670, %v2668
    %v2897 = vpack.c.b16 %v2673, %v2671
    %v2898 = vpack.c.b16 %v2674, %v2672
    %v2899 = vpack.c.b16 %v2677, %v2675
    %v2900 = vpack.c.b16 %v2678, %v2676
    %v2901 = vpack.c.b16 %v2681, %v2679
    %v2902 = vpack.c.b16 %v2682, %v2680
    %v2903 = vpack.c.b16 %v2685, %v2683
    %v2904 = vpack.c.b16 %v2686, %v2684
    %v2905 = vpack.c.b16 %v2689, %v2687
    %v2906 = vpack.c.b16 %v2690, %v2688
    %v2907 = vpack.c.b16 %v2693, %v2691
    %v2908 = vpack.c.b16 %v2694, %v2692
    %v2909 = vpack.c.b16 %v2697, %v2695
    %v2910 = vpack.c.b16 %v2698, %v2696
    %v2911 = vpack.c.b16 %v2701, %v2699
    %v2912 = vpack.c.b16 %v2702, %v2700
    %v2913 = vpack.c.b16 %v2705, %v2703
    %v2914 = vpack.c.b16 %v2706, %v2704
    %v2915 = vpack.c.b16 %v2709, %v2707
    %v2916 = vpack.c.b16 %v2710, %v2708
    %v2917 = vpack.c.b16 %v2713, %v2711
    %v2918 = vpack.c.b16 %v2714, %v2712
    %v2919 = vpack.c.b16 %v2717, %v2715
    %v2920 = vpack.c.b16 %v2718, %v2716
    %v2921 = vpack.c.b16 %v2721, %v2719
    %v2922 = vpack.c.b16 %v2722, %v2720
    %v2923 = vpack.c.b16 %v2725, %v2723
    %v2924 = vpack.c.b16 %v2726, %v2724
    %v2925 = vpack.c.b16 %v2729, %v2727
    %v2926 = vpack.c.b16 %v2730, %v2728
    %v2927 = vpack.c.b16 %v2733, %v2731
    %v2928 = vpack.c.b16 %v2734, %v2732
    %v2929 = vpack.c.b16 %v2737, %v2735
    %v2930 = vpack.c.b16 %v2738, %v2736
    %v2931 = vpack.c.b16 %v2741, %v2739
    %v2932 = vpack.c.b16 %v2742, %v2740
    %v2933 = vpack.c.b16 %v2745, %v2743
    %v2934 = vpack.c.b16 %v2746, %v2744
    %v2935 = vpack.c.b16 %v2749, %v2747
    %v2936 = vpack.c.b16 %v2750, %v2748
    %v2937 = vpack.c.b16 %v2753, %v2751
    %v2938 = vpack.c.b16 %v2754, %v2752
    %v2939 = vpack.c.b16 %v2757, %v2755
    %v2940 = vpack.c.b16 %v2758, %v2756
    %v2941 = vpack.c.b16 %v2761, %v2759
    %v2942 = vpack.c.b16 %v2762, %v2760
    %v2943 = vpack.c.b16 %v2765, %v2763
    %v2944 = vpack.c.b16 %v2766, %v2764
    %v2945 = vpack.c.b16 %v2769, %v2767
    %v2946 = vpack.c.b16 %v2770, %v2768
    %v2947 = vpack.c.b16 %v2773, %v2771
    %v2948 = vpack.c.b16 %v2774, %v2772
    %v2949 = vpack.c.b16 %v2777, %v2775
    %v2950 = vpack.c.b16 %v2778, %v2776
    %v2951 = vpack.c.b16 %v2781, %v2779
    %v2952 = vpack.c.b16 %v2782, %v2780
    %v2953 = vpack.c.b16 %v2785, %v2783
    %v2954 = vpack.c.b16 %v2786, %v2784
    %v2955 = vpack.c.b16 %v2789, %v2787
    %v2956 = vpack.c.b16 %v2790, %v2788
    %v2957 = vpack.c.b16 %v2793, %v2791
    %v2958 = vpack.c.b16 %v2794, %v2792
    %v2959 = vpack.c.b16 %v2797, %v2795
    %v2960 = vpack.c.b16 %v2798, %v2796
    %v2961 = vpack.c.b16 %v2801, %v2799
    %v2962 = vpack.c.b16 %v2802, %v2800
    %v2963 = vpack.c.b16 %v2805, %v2803
    %v2964 = vpack.c.b16 %v2806, %v2804
    %v2965 = vpack.c.b16 %v2809, %v2807
    %v2966 = vpack.c.b16 %v2810, %v2808
    %v2967 = vpack.c.b16 %v2813, %v2811
    %v2968 = vpack.c.b16 %v2814, %v2812
    %v2969 = vpack.c.b16 %v2817, %v2815
    %v2970 = vpack.c.b16 %v2818, %v2816
    %v2971 = vpack.c.b16 %v2821, %v2819
    %v2972 = vpack.c.b16 %v2822, %v2820
    %v2973 = vpack.c.b16 %v2825, %v2823
    %v2974 = vpack.c.b16 %v2826, %v2824
    %v2975 = vpack.c.b16 %v2829, %v2827
    %v2976 = vpack.c.b16 %v2830, %v2828
    %v2977 = vpack.c.b16 %v2833, %v2831
    %v2978 = vpack.c.b16 %v2834, %v2832
    %v2979 = vpack.c.b16 %v2837, %v2835
    %v2980 = vpack.c.b16 %v2838, %v2836
    %v2981 = vpack.c.b16 %v2841, %v2839
    %v2982 = vpack.c.b16 %v2842, %v2840
    %v2983 = vpack.c.b16 %v2845, %v2843
    %v2984 = vpack.c.b16 %v2846, %v2844
    %v2985 = vpack.c.b16 %v2849, %v2847
    %v2986 = vpack.c.b16 %v2850, %v2848
    %v2987 = vpack.c.b16 %v2853, %v2851
    %v2988 = vpack.c.b16 %v2854, %v2852
    %v2989 = vpack.c.b16 %v2857, %v2855
    %v2990 = vpack.c.b16 %v2858, %v2856
    %v2991 = vpack.c.b16 %v2861, %v2859
    %v2992 = vpack.c.b16 %v2862, %v2860
    %v2993 = vpack.c.b16 %v2865, %v2863
    %v2994 = vpack.c.b16 %v2866, %v2864
    %3123 = vmatprep.subr.bf16.mxu0 %v2882
    %3124 = vmatpush1.bf16.msra.mxu0 %v2881
    %3125 = vmatprep.subr.bf16.mxu0 %v2880
    %3126 = vmatpush1.bf16.msra.mxu0 %v2879
    %3127 = vmatprep.subr.bf16.mxu0 %v2878
    %3128 = vmatpush1.bf16.msra.mxu0 %v2877
    %3129 = vmatprep.subr.bf16.mxu0 %v2876
    %3130 = vmatpush1.bf16.msra.mxu0 %v2875
    %3131 = vmatprep.subr.bf16.mxu0 %v2874
    %3132 = vmatpush1.bf16.msra.mxu0 %v2873
    %3133 = vmatprep.subr.bf16.mxu0 %v2872
    %3134 = vmatpush1.bf16.msra.mxu0 %v2871
    %3135 = vmatprep.subr.bf16.mxu0 %v2870
    %3136 = vmatpush1.bf16.msra.mxu0 %v2869
    %3137 = vmatprep.subr.bf16.mxu0 %v2868
    %3138 = vmatpush1.bf16.msra.mxu0 %v2867
    %3139 = vmatprep.subr.bf16.mxu0 %v2898
    %3140 = vmatpush2.bf16.msra.mxu0 %v2897
    %3141 = vmatprep.subr.bf16.mxu0 %v2896
    %3142 = vmatpush2.bf16.msra.mxu0 %v2895
    %3143 = vmatprep.subr.bf16.mxu0 %v2894
    %3144 = vmatpush2.bf16.msra.mxu0 %v2893
    %3145 = vmatprep.subr.bf16.mxu0 %v2892
    %3146 = vmatpush2.bf16.msra.mxu0 %v2891
    %3147 = vmatprep.subr.bf16.mxu0 %v2890
    %3148 = vmatpush2.bf16.msra.mxu0 %v2889
    %3149 = vmatprep.subr.bf16.mxu0 %v2888
    %3150 = vmatpush2.bf16.msra.mxu0 %v2887
    %3151 = vmatprep.subr.bf16.mxu0 %v2886
    %3152 = vmatpush2.bf16.msra.mxu0 %v2885
    %3153 = vmatprep.subr.bf16.mxu0 %v2884
    %3154 = vmatpush2.bf16.msra.mxu0 %v2883
    %3155 = vmatprep.mubr.bf16.mxu0 %v1014
    %3156 = vmatmul.mubr.bf16.gmra.mxu0 %v1013
    %v3157 = vpop.f32.mrf.mxu0
    %v3158 = vadd.f32 0.0, %v3157
    %v3159 = vpop.f32.mrf.mxu0
    %v3160 = vadd.f32 0.0, %v3159
    %v3161 = vpop.f32.mrf.mxu0
    %v3162 = vpop.f32.mrf.mxu0
    %3163 = vdwg.mxu0
    %3164 = vmatprep.subr.bf16.mxu0 %v2914
    %3165 = vmatpush1.bf16.msra.mxu0 %v2913
    %3166 = vmatprep.subr.bf16.mxu0 %v2912
    %3167 = vmatpush1.bf16.msra.mxu0 %v2911
    %3168 = vmatprep.subr.bf16.mxu0 %v2910
    %3169 = vmatpush1.bf16.msra.mxu0 %v2909
    %3170 = vmatprep.subr.bf16.mxu0 %v2908
    %3171 = vmatpush1.bf16.msra.mxu0 %v2907
    %3172 = vmatprep.subr.bf16.mxu0 %v2906
    %3173 = vmatpush1.bf16.msra.mxu0 %v2905
    %3174 = vmatprep.subr.bf16.mxu0 %v2904
    %3175 = vmatpush1.bf16.msra.mxu0 %v2903
    %3176 = vmatprep.subr.bf16.mxu0 %v2902
    %3177 = vmatpush1.bf16.msra.mxu0 %v2901
    %3178 = vmatprep.subr.bf16.mxu0 %v2900
    %3179 = vmatpush1.bf16.msra.mxu0 %v2899
    %3180 = vmatprep.subr.bf16.mxu0 %v2930
    %3181 = vmatpush2.bf16.msra.mxu0 %v2929
    %3182 = vmatprep.subr.bf16.mxu0 %v2928
    %3183 = vmatpush2.bf16.msra.mxu0 %v2927
    %3184 = vmatprep.subr.bf16.mxu0 %v2926
    %3185 = vmatpush2.bf16.msra.mxu0 %v2925
    %3186 = vmatprep.subr.bf16.mxu0 %v2924
    %3187 = vmatpush2.bf16.msra.mxu0 %v2923
    %3188 = vmatprep.subr.bf16.mxu0 %v2922
    %3189 = vmatpush2.bf16.msra.mxu0 %v2921
    %3190 = vmatprep.subr.bf16.mxu0 %v2920
    %3191 = vmatpush2.bf16.msra.mxu0 %v2919
    %3192 = vmatprep.subr.bf16.mxu0 %v2918
    %3193 = vmatpush2.bf16.msra.mxu0 %v2917
    %3194 = vmatprep.subr.bf16.mxu0 %v2916
    %3195 = vmatpush2.bf16.msra.mxu0 %v2915
    %3196 = vmatprep.mubr.bf16.mxu0 %v1206
    %3197 = vmatmul.mubr.bf16.gmra.mxu0 %v1205
    %v3198 = vpop.f32.mrf.mxu0
    %v3199 = vadd.f32 %v3158, %v3198
    %v3200 = vpop.f32.mrf.mxu0
    %v3201 = vadd.f32 %v3160, %v3200
    %v3202 = vpop.f32.mrf.mxu0
    %v3203 = vpop.f32.mrf.mxu0
    %3204 = vdwg.mxu0
    %3205 = vmatprep.subr.bf16.mxu0 %v2946
    %3206 = vmatpush1.bf16.msra.mxu0 %v2945
    %3207 = vmatprep.subr.bf16.mxu0 %v2944
    %3208 = vmatpush1.bf16.msra.mxu0 %v2943
    %3209 = vmatprep.subr.bf16.mxu0 %v2942
    %3210 = vmatpush1.bf16.msra.mxu0 %v2941
    %3211 = vmatprep.subr.bf16.mxu0 %v2940
    %3212 = vmatpush1.bf16.msra.mxu0 %v2939
    %3213 = vmatprep.subr.bf16.mxu0 %v2938
    %3214 = vmatpush1.bf16.msra.mxu0 %v2937
    %3215 = vmatprep.subr.bf16.mxu0 %v2936
    %3216 = vmatpush1.bf16.msra.mxu0 %v2935
    %3217 = vmatprep.subr.bf16.mxu0 %v2934
    %3218 = vmatpush1.bf16.msra.mxu0 %v2933
    %3219 = vmatprep.subr.bf16.mxu0 %v2932
    %3220 = vmatpush1.bf16.msra.mxu0 %v2931
    %3221 = vmatprep.subr.bf16.mxu0 %v2962
    %3222 = vmatpush2.bf16.msra.mxu0 %v2961
    %3223 = vmatprep.subr.bf16.mxu0 %v2960
    %3224 = vmatpush2.bf16.msra.mxu0 %v2959
    %3225 = vmatprep.subr.bf16.mxu0 %v2958
    %3226 = vmatpush2.bf16.msra.mxu0 %v2957
    %3227 = vmatprep.subr.bf16.mxu0 %v2956
    %3228 = vmatpush2.bf16.msra.mxu0 %v2955
    %3229 = vmatprep.subr.bf16.mxu0 %v2954
    %3230 = vmatpush2.bf16.msra.mxu0 %v2953
    %3231 = vmatprep.subr.bf16.mxu0 %v2952
    %3232 = vmatpush2.bf16.msra.mxu0 %v2951
    %3233 = vmatprep.subr.bf16.mxu0 %v2950
    %3234 = vmatpush2.bf16.msra.mxu0 %v2949
    %3235 = vmatprep.subr.bf16.mxu0 %v2948
    %3236 = vmatpush2.bf16.msra.mxu0 %v2947
    %3237 = vmatprep.mubr.bf16.mxu0 %v1396
    %3238 = vmatmul.mubr.bf16.gmra.mxu0 %v1395
    %v3239 = vpop.f32.mrf.mxu0
    %v3240 = vadd.f32 %v3199, %v3239
    %v3241 = vpop.f32.mrf.mxu0
    %v3242 = vadd.f32 %v3201, %v3241
    %v3243 = vpop.f32.mrf.mxu0
    %v3244 = vpop.f32.mrf.mxu0
    %3245 = vdwg.mxu0
    %3246 = vmatprep.subr.bf16.mxu0 %v2978
    %3247 = vmatpush1.bf16.msra.mxu0 %v2977
    %3248 = vmatprep.subr.bf16.mxu0 %v2976
    %3249 = vmatpush1.bf16.msra.mxu0 %v2975
    %3250 = vmatprep.subr.bf16.mxu0 %v2974
    %3251 = vmatpush1.bf16.msra.mxu0 %v2973
    %3252 = vmatprep.subr.bf16.mxu0 %v2972
    %3253 = vmatpush1.bf16.msra.mxu0 %v2971
    %3254 = vmatprep.subr.bf16.mxu0 %v2970
    %3255 = vmatpush1.bf16.msra.mxu0 %v2969
    %3256 = vmatprep.subr.bf16.mxu0 %v2968
    %3257 = vmatpush1.bf16.msra.mxu0 %v2967
    %3258 = vmatprep.subr.bf16.mxu0 %v2966
    %3259 = vmatpush1.bf16.msra.mxu0 %v2965
    %3260 = vmatprep.subr.bf16.mxu0 %v2964
    %3261 = vmatpush1.bf16.msra.mxu0 %v2963
    %3262 = vmatprep.subr.bf16.mxu0 %v2994
    %3263 = vmatpush2.bf16.msra.mxu0 %v2993
    %3264 = vmatprep.subr.bf16.mxu0 %v2992
    %3265 = vmatpush2.bf16.msra.mxu0 %v2991
    %3266 = vmatprep.subr.bf16.mxu0 %v2990
    %3267 = vmatpush2.bf16.msra.mxu0 %v2989
    %3268 = vmatprep.subr.bf16.mxu0 %v2988
    %3269 = vmatpush2.bf16.msra.mxu0 %v2987
    %3270 = vmatprep.subr.bf16.mxu0 %v2986
    %3271 = vmatpush2.bf16.msra.mxu0 %v2985
    %3272 = vmatprep.subr.bf16.mxu0 %v2984
    %3273 = vmatpush2.bf16.msra.mxu0 %v2983
    %3274 = vmatprep.subr.bf16.mxu0 %v2982
    %3275 = vmatpush2.bf16.msra.mxu0 %v2981
    %3276 = vmatprep.subr.bf16.mxu0 %v2980
    %3277 = vmatpush2.bf16.msra.mxu0 %v2979
    %3278 = vmatprep.mubr.bf16.mxu0 %v1586
    %3279 = vmatmul.mubr.bf16.gmra.mxu0 %v1585
    %v3280 = vpop.f32.mrf.mxu0
    %v3281 = vadd.f32 %v3240, %v3280
    %v3282 = vpop.f32.mrf.mxu0
    %v3283 = vadd.f32 %v3242, %v3282
    %v3284 = vpop.f32.mrf.mxu0
    %v3285 = vpop.f32.mrf.mxu0
    %3286 = vdwg.mxu0
    %v3415 = vunpack.c.l.b16 %v2096
    %v3416 = vunpack.c.h.b16 %v2096
    %v3417 = vunpack.c.l.b16 %v2097
    %v3418 = vunpack.c.h.b16 %v2097
    %v3419 = vunpack.c.l.b16 %v2098
    %v3420 = vunpack.c.h.b16 %v2098
    %v3421 = vunpack.c.l.b16 %v2099
    %v3422 = vunpack.c.h.b16 %v2099
    %v3423 = vunpack.c.l.b16 %v2100
    %v3424 = vunpack.c.h.b16 %v2100
    %v3425 = vunpack.c.l.b16 %v2101
    %v3426 = vunpack.c.h.b16 %v2101
    %v3427 = vunpack.c.l.b16 %v2102
    %v3428 = vunpack.c.h.b16 %v2102
    %v3429 = vunpack.c.l.b16 %v2103
    %v3430 = vunpack.c.h.b16 %v2103
    %v3431 = vunpack.c.l.b16 %v2104
    %v3432 = vunpack.c.h.b16 %v2104
    %v3433 = vunpack.c.l.b16 %v2105
    %v3434 = vunpack.c.h.b16 %v2105
    %v3435 = vunpack.c.l.b16 %v2106
    %v3436 = vunpack.c.h.b16 %v2106
    %v3437 = vunpack.c.l.b16 %v2107
    %v3438 = vunpack.c.h.b16 %v2107
    %v3439 = vunpack.c.l.b16 %v2108
    %v3440 = vunpack.c.h.b16 %v2108
    %v3441 = vunpack.c.l.b16 %v2109
    %v3442 = vunpack.c.h.b16 %v2109
    %v3443 = vunpack.c.l.b16 %v2110
    %v3444 = vunpack.c.h.b16 %v2110
    %v3445 = vunpack.c.l.b16 %v2111
    %v3446 = vunpack.c.h.b16 %v2111
    %v3447 = vunpack.c.l.b16 %v2112
    %v3448 = vunpack.c.h.b16 %v2112
    %v3449 = vunpack.c.l.b16 %v2113
    %v3450 = vunpack.c.h.b16 %v2113
    %v3451 = vunpack.c.l.b16 %v2114
    %v3452 = vunpack.c.h.b16 %v2114
    %v3453 = vunpack.c.l.b16 %v2115
    %v3454 = vunpack.c.h.b16 %v2115
    %v3455 = vunpack.c.l.b16 %v2116
    %v3456 = vunpack.c.h.b16 %v2116
    %v3457 = vunpack.c.l.b16 %v2117
    %v3458 = vunpack.c.h.b16 %v2117
    %v3459 = vunpack.c.l.b16 %v2118
    %v3460 = vunpack.c.h.b16 %v2118
    %v3461 = vunpack.c.l.b16 %v2119
    %v3462 = vunpack.c.h.b16 %v2119
    %v3463 = vunpack.c.l.b16 %v2120
    %v3464 = vunpack.c.h.b16 %v2120
    %v3465 = vunpack.c.l.b16 %v2121
    %v3466 = vunpack.c.h.b16 %v2121
    %v3467 = vunpack.c.l.b16 %v2122
    %v3468 = vunpack.c.h.b16 %v2122
    %v3469 = vunpack.c.l.b16 %v2123
    %v3470 = vunpack.c.h.b16 %v2123
    %v3471 = vunpack.c.l.b16 %v2124
    %v3472 = vunpack.c.h.b16 %v2124
    %v3473 = vunpack.c.l.b16 %v2125
    %v3474 = vunpack.c.h.b16 %v2125
    %v3475 = vunpack.c.l.b16 %v2126
    %v3476 = vunpack.c.h.b16 %v2126
    %v3477 = vunpack.c.l.b16 %v2127
    %v3478 = vunpack.c.h.b16 %v2127
    %v3479 = vunpack.c.l.b16 %v2128
    %v3480 = vunpack.c.h.b16 %v2128
    %v3481 = vunpack.c.l.b16 %v2129
    %v3482 = vunpack.c.h.b16 %v2129
    %v3483 = vunpack.c.l.b16 %v2130
    %v3484 = vunpack.c.h.b16 %v2130
    %v3485 = vunpack.c.l.b16 %v2131
    %v3486 = vunpack.c.h.b16 %v2131
    %v3487 = vunpack.c.l.b16 %v2132
    %v3488 = vunpack.c.h.b16 %v2132
    %v3489 = vunpack.c.l.b16 %v2133
    %v3490 = vunpack.c.h.b16 %v2133
    %v3491 = vunpack.c.l.b16 %v2134
    %v3492 = vunpack.c.h.b16 %v2134
    %v3493 = vunpack.c.l.b16 %v2135
    %v3494 = vunpack.c.h.b16 %v2135
    %v3495 = vunpack.c.l.b16 %v2136
    %v3496 = vunpack.c.h.b16 %v2136
    %v3497 = vunpack.c.l.b16 %v2137
    %v3498 = vunpack.c.h.b16 %v2137
    %v3499 = vunpack.c.l.b16 %v2138
    %v3500 = vunpack.c.h.b16 %v2138
    %v3501 = vunpack.c.l.b16 %v2139
    %v3502 = vunpack.c.h.b16 %v2139
    %v3503 = vunpack.c.l.b16 %v2140
    %v3504 = vunpack.c.h.b16 %v2140
    %v3505 = vunpack.c.l.b16 %v2141
    %v3506 = vunpack.c.h.b16 %v2141
    %v3507 = vunpack.c.l.b16 %v2142
    %v3508 = vunpack.c.h.b16 %v2142
    %v3509 = vunpack.c.l.b16 %v2143
    %v3510 = vunpack.c.h.b16 %v2143
    %v3511 = vunpack.c.l.b16 %v2144
    %v3512 = vunpack.c.h.b16 %v2144
    %v3513 = vunpack.c.l.b16 %v2145
    %v3514 = vunpack.c.h.b16 %v2145
    %v3515 = vunpack.c.l.b16 %v2146
    %v3516 = vunpack.c.h.b16 %v2146
    %v3517 = vunpack.c.l.b16 %v2147
    %v3518 = vunpack.c.h.b16 %v2147
    %v3519 = vunpack.c.l.b16 %v2148
    %v3520 = vunpack.c.h.b16 %v2148
    %v3521 = vunpack.c.l.b16 %v2149
    %v3522 = vunpack.c.h.b16 %v2149
    %v3523 = vunpack.c.l.b16 %v2150
    %v3524 = vunpack.c.h.b16 %v2150
    %v3525 = vunpack.c.l.b16 %v2151
    %v3526 = vunpack.c.h.b16 %v2151
    %v3527 = vunpack.c.l.b16 %v2152
    %v3528 = vunpack.c.h.b16 %v2152
    %v3529 = vunpack.c.l.b16 %v2153
    %v3530 = vunpack.c.h.b16 %v2153
    %v3531 = vunpack.c.l.b16 %v2154
    %v3532 = vunpack.c.h.b16 %v2154
    %v3533 = vunpack.c.l.b16 %v2155
    %v3534 = vunpack.c.h.b16 %v2155
    %v3535 = vunpack.c.l.b16 %v2156
    %v3536 = vunpack.c.h.b16 %v2156
    %v3537 = vunpack.c.l.b16 %v2157
    %v3538 = vunpack.c.h.b16 %v2157
    %v3539 = vunpack.c.l.b16 %v2158
    %v3540 = vunpack.c.h.b16 %v2158
    %v3541 = vunpack.c.l.b16 %v2159
    %v3542 = vunpack.c.h.b16 %v2159
    %v3543 = vunpack.c.l.b16 %v2160
    %v3544 = vunpack.c.h.b16 %v2160
    %v3545 = vunpack.c.l.b16 %v2161
    %v3546 = vunpack.c.h.b16 %v2161
    %v3547 = vunpack.c.l.b16 %v2162
    %v3548 = vunpack.c.h.b16 %v2162
    %v3549 = vunpack.c.l.b16 %v2163
    %v3550 = vunpack.c.h.b16 %v2163
    %v3551 = vunpack.c.l.b16 %v2164
    %v3552 = vunpack.c.h.b16 %v2164
    %v3553 = vunpack.c.l.b16 %v2165
    %v3554 = vunpack.c.h.b16 %v2165
    %v3555 = vunpack.c.l.b16 %v2166
    %v3556 = vunpack.c.h.b16 %v2166
    %v3557 = vunpack.c.l.b16 %v2167
    %v3558 = vunpack.c.h.b16 %v2167
    %v3559 = vunpack.c.l.b16 %v2168
    %v3560 = vunpack.c.h.b16 %v2168
    %v3561 = vunpack.c.l.b16 %v2169
    %v3562 = vunpack.c.h.b16 %v2169
    %v3563 = vunpack.c.l.b16 %v2170
    %v3564 = vunpack.c.h.b16 %v2170
    %v3565 = vunpack.c.l.b16 %v2171
    %v3566 = vunpack.c.h.b16 %v2171
    %v3567 = vunpack.c.l.b16 %v2172
    %v3568 = vunpack.c.h.b16 %v2172
    %v3569 = vunpack.c.l.b16 %v2173
    %v3570 = vunpack.c.h.b16 %v2173
    %v3571 = vunpack.c.l.b16 %v2174
    %v3572 = vunpack.c.h.b16 %v2174
    %v3573 = vunpack.c.l.b16 %v2175
    %v3574 = vunpack.c.h.b16 %v2175
    %v3575 = vunpack.c.l.b16 %v2176
    %v3576 = vunpack.c.h.b16 %v2176
    %v3577 = vunpack.c.l.b16 %v2177
    %v3578 = vunpack.c.h.b16 %v2177
    %v3579 = vunpack.c.l.b16 %v2178
    %v3580 = vunpack.c.h.b16 %v2178
    %v3581 = vunpack.c.l.b16 %v2179
    %v3582 = vunpack.c.h.b16 %v2179
    %v3583 = vunpack.c.l.b16 %v2180
    %v3584 = vunpack.c.h.b16 %v2180
    %v3585 = vunpack.c.l.b16 %v2181
    %v3586 = vunpack.c.h.b16 %v2181
    %v3587 = vunpack.c.l.b16 %v2182
    %v3588 = vunpack.c.h.b16 %v2182
    %v3589 = vunpack.c.l.b16 %v2183
    %v3590 = vunpack.c.h.b16 %v2183
    %v3591 = vunpack.c.l.b16 %v2184
    %v3592 = vunpack.c.h.b16 %v2184
    %v3593 = vunpack.c.l.b16 %v2185
    %v3594 = vunpack.c.h.b16 %v2185
    %v3595 = vunpack.c.l.b16 %v2186
    %v3596 = vunpack.c.h.b16 %v2186
    %v3597 = vunpack.c.l.b16 %v2187
    %v3598 = vunpack.c.h.b16 %v2187
    %v3599 = vunpack.c.l.b16 %v2188
    %v3600 = vunpack.c.h.b16 %v2188
    %v3601 = vunpack.c.l.b16 %v2189
    %v3602 = vunpack.c.h.b16 %v2189
    %v3603 = vunpack.c.l.b16 %v2190
    %v3604 = vunpack.c.h.b16 %v2190
    %v3605 = vunpack.c.l.b16 %v2191
    %v3606 = vunpack.c.h.b16 %v2191
    %v3607 = vunpack.c.l.b16 %v2192
    %v3608 = vunpack.c.h.b16 %v2192
    %v3609 = vunpack.c.l.b16 %v2193
    %v3610 = vunpack.c.h.b16 %v2193
    %v3611 = vunpack.c.l.b16 %v2194
    %v3612 = vunpack.c.h.b16 %v2194
    %v3613 = vunpack.c.l.b16 %v2195
    %v3614 = vunpack.c.h.b16 %v2195
    %v3615 = vunpack.c.l.b16 %v2196
    %v3616 = vunpack.c.h.b16 %v2196
    %v3617 = vunpack.c.l.b16 %v2197
    %v3618 = vunpack.c.h.b16 %v2197
    %v3619 = vunpack.c.l.b16 %v2198
    %v3620 = vunpack.c.h.b16 %v2198
    %v3621 = vunpack.c.l.b16 %v2199
    %v3622 = vunpack.c.h.b16 %v2199
    %v3623 = vunpack.c.l.b16 %v2200
    %v3624 = vunpack.c.h.b16 %v2200
    %v3625 = vunpack.c.l.b16 %v2201
    %v3626 = vunpack.c.h.b16 %v2201
    %v3627 = vunpack.c.l.b16 %v2202
    %v3628 = vunpack.c.h.b16 %v2202
    %v3629 = vunpack.c.l.b16 %v2203
    %v3630 = vunpack.c.h.b16 %v2203
    %v3631 = vunpack.c.l.b16 %v2204
    %v3632 = vunpack.c.h.b16 %v2204
    %v3633 = vunpack.c.l.b16 %v2205
    %v3634 = vunpack.c.h.b16 %v2205
    %v3635 = vunpack.c.l.b16 %v2206
    %v3636 = vunpack.c.h.b16 %v2206
    %v3637 = vunpack.c.l.b16 %v2207
    %v3638 = vunpack.c.h.b16 %v2207
    %v3639 = vunpack.c.l.b16 %v2208
    %v3640 = vunpack.c.h.b16 %v2208
    %v3641 = vunpack.c.l.b16 %v2209
    %v3642 = vunpack.c.h.b16 %v2209
    %v3643 = vunpack.c.l.b16 %v2210
    %v3644 = vunpack.c.h.b16 %v2210
    %v3645 = vunpack.c.l.b16 %v2211
    %v3646 = vunpack.c.h.b16 %v2211
    %v3647 = vunpack.c.l.b16 %v2212
    %v3648 = vunpack.c.h.b16 %v2212
    %v3649 = vunpack.c.l.b16 %v2213
    %v3650 = vunpack.c.h.b16 %v2213
    %v3651 = vunpack.c.l.b16 %v2214
    %v3652 = vunpack.c.h.b16 %v2214
    %v3653 = vunpack.c.l.b16 %v2215
    %v3654 = vunpack.c.h.b16 %v2215
    %v3655 = vunpack.c.l.b16 %v2216
    %v3656 = vunpack.c.h.b16 %v2216
    %v3657 = vunpack.c.l.b16 %v2217
    %v3658 = vunpack.c.h.b16 %v2217
    %v3659 = vunpack.c.l.b16 %v2218
    %v3660 = vunpack.c.h.b16 %v2218
    %v3661 = vunpack.c.l.b16 %v2219
    %v3662 = vunpack.c.h.b16 %v2219
    %v3663 = vunpack.c.l.b16 %v2220
    %v3664 = vunpack.c.h.b16 %v2220
    %v3665 = vunpack.c.l.b16 %v2221
    %v3666 = vunpack.c.h.b16 %v2221
    %v3667 = vunpack.c.l.b16 %v2222
    %v3668 = vunpack.c.h.b16 %v2222
    %v3669 = vunpack.c.l.b16 %v2223
    %v3670 = vunpack.c.h.b16 %v2223
    %v3671 = vpack.c.b16 %v3417, %v3415
    %v3672 = vpack.c.b16 %v3418, %v3416
    %v3673 = vpack.c.b16 %v3421, %v3419
    %v3674 = vpack.c.b16 %v3422, %v3420
    %v3675 = vpack.c.b16 %v3425, %v3423
    %v3676 = vpack.c.b16 %v3426, %v3424
    %v3677 = vpack.c.b16 %v3429, %v3427
    %v3678 = vpack.c.b16 %v3430, %v3428
    %v3679 = vpack.c.b16 %v3433, %v3431
    %v3680 = vpack.c.b16 %v3434, %v3432
    %v3681 = vpack.c.b16 %v3437, %v3435
    %v3682 = vpack.c.b16 %v3438, %v3436
    %v3683 = vpack.c.b16 %v3441, %v3439
    %v3684 = vpack.c.b16 %v3442, %v3440
    %v3685 = vpack.c.b16 %v3445, %v3443
    %v3686 = vpack.c.b16 %v3446, %v3444
    %v3687 = vpack.c.b16 %v3449, %v3447
    %v3688 = vpack.c.b16 %v3450, %v3448
    %v3689 = vpack.c.b16 %v3453, %v3451
    %v3690 = vpack.c.b16 %v3454, %v3452
    %v3691 = vpack.c.b16 %v3457, %v3455
    %v3692 = vpack.c.b16 %v3458, %v3456
    %v3693 = vpack.c.b16 %v3461, %v3459
    %v3694 = vpack.c.b16 %v3462, %v3460
    %v3695 = vpack.c.b16 %v3465, %v3463
    %v3696 = vpack.c.b16 %v3466, %v3464
    %v3697 = vpack.c.b16 %v3469, %v3467
    %v3698 = vpack.c.b16 %v3470, %v3468
    %v3699 = vpack.c.b16 %v3473, %v3471
    %v3700 = vpack.c.b16 %v3474, %v3472
    %v3701 = vpack.c.b16 %v3477, %v3475
    %v3702 = vpack.c.b16 %v3478, %v3476
    %v3703 = vpack.c.b16 %v3481, %v3479
    %v3704 = vpack.c.b16 %v3482, %v3480
    %v3705 = vpack.c.b16 %v3485, %v3483
    %v3706 = vpack.c.b16 %v3486, %v3484
    %v3707 = vpack.c.b16 %v3489, %v3487
    %v3708 = vpack.c.b16 %v3490, %v3488
    %v3709 = vpack.c.b16 %v3493, %v3491
    %v3710 = vpack.c.b16 %v3494, %v3492
    %v3711 = vpack.c.b16 %v3497, %v3495
    %v3712 = vpack.c.b16 %v3498, %v3496
    %v3713 = vpack.c.b16 %v3501, %v3499
    %v3714 = vpack.c.b16 %v3502, %v3500
    %v3715 = vpack.c.b16 %v3505, %v3503
    %v3716 = vpack.c.b16 %v3506, %v3504
    %v3717 = vpack.c.b16 %v3509, %v3507
    %v3718 = vpack.c.b16 %v3510, %v3508
    %v3719 = vpack.c.b16 %v3513, %v3511
    %v3720 = vpack.c.b16 %v3514, %v3512
    %v3721 = vpack.c.b16 %v3517, %v3515
    %v3722 = vpack.c.b16 %v3518, %v3516
    %v3723 = vpack.c.b16 %v3521, %v3519
    %v3724 = vpack.c.b16 %v3522, %v3520
    %v3725 = vpack.c.b16 %v3525, %v3523
    %v3726 = vpack.c.b16 %v3526, %v3524
    %v3727 = vpack.c.b16 %v3529, %v3527
    %v3728 = vpack.c.b16 %v3530, %v3528
    %v3729 = vpack.c.b16 %v3533, %v3531
    %v3730 = vpack.c.b16 %v3534, %v3532
    %v3731 = vpack.c.b16 %v3537, %v3535
    %v3732 = vpack.c.b16 %v3538, %v3536
    %v3733 = vpack.c.b16 %v3541, %v3539
    %v3734 = vpack.c.b16 %v3542, %v3540
    %v3735 = vpack.c.b16 %v3545, %v3543
    %v3736 = vpack.c.b16 %v3546, %v3544
    %v3737 = vpack.c.b16 %v3549, %v3547
    %v3738 = vpack.c.b16 %v3550, %v3548
    %v3739 = vpack.c.b16 %v3553, %v3551
    %v3740 = vpack.c.b16 %v3554, %v3552
    %v3741 = vpack.c.b16 %v3557, %v3555
    %v3742 = vpack.c.b16 %v3558, %v3556
    %v3743 = vpack.c.b16 %v3561, %v3559
    %v3744 = vpack.c.b16 %v3562, %v3560
    %v3745 = vpack.c.b16 %v3565, %v3563
    %v3746 = vpack.c.b16 %v3566, %v3564
    %v3747 = vpack.c.b16 %v3569, %v3567
    %v3748 = vpack.c.b16 %v3570, %v3568
    %v3749 = vpack.c.b16 %v3573, %v3571
    %v3750 = vpack.c.b16 %v3574, %v3572
    %v3751 = vpack.c.b16 %v3577, %v3575
    %v3752 = vpack.c.b16 %v3578, %v3576
    %v3753 = vpack.c.b16 %v3581, %v3579
    %v3754 = vpack.c.b16 %v3582, %v3580
    %v3755 = vpack.c.b16 %v3585, %v3583
    %v3756 = vpack.c.b16 %v3586, %v3584
    %v3757 = vpack.c.b16 %v3589, %v3587
    %v3758 = vpack.c.b16 %v3590, %v3588
    %v3759 = vpack.c.b16 %v3593, %v3591
    %v3760 = vpack.c.b16 %v3594, %v3592
    %v3761 = vpack.c.b16 %v3597, %v3595
    %v3762 = vpack.c.b16 %v3598, %v3596
    %v3763 = vpack.c.b16 %v3601, %v3599
    %v3764 = vpack.c.b16 %v3602, %v3600
    %v3765 = vpack.c.b16 %v3605, %v3603
    %v3766 = vpack.c.b16 %v3606, %v3604
    %v3767 = vpack.c.b16 %v3609, %v3607
    %v3768 = vpack.c.b16 %v3610, %v3608
    %v3769 = vpack.c.b16 %v3613, %v3611
    %v3770 = vpack.c.b16 %v3614, %v3612
    %v3771 = vpack.c.b16 %v3617, %v3615
    %v3772 = vpack.c.b16 %v3618, %v3616
    %v3773 = vpack.c.b16 %v3621, %v3619
    %v3774 = vpack.c.b16 %v3622, %v3620
    %v3775 = vpack.c.b16 %v3625, %v3623
    %v3776 = vpack.c.b16 %v3626, %v3624
    %v3777 = vpack.c.b16 %v3629, %v3627
    %v3778 = vpack.c.b16 %v3630, %v3628
    %v3779 = vpack.c.b16 %v3633, %v3631
    %v3780 = vpack.c.b16 %v3634, %v3632
    %v3781 = vpack.c.b16 %v3637, %v3635
    %v3782 = vpack.c.b16 %v3638, %v3636
    %v3783 = vpack.c.b16 %v3641, %v3639
    %v3784 = vpack.c.b16 %v3642, %v3640
    %v3785 = vpack.c.b16 %v3645, %v3643
    %v3786 = vpack.c.b16 %v3646, %v3644
    %v3787 = vpack.c.b16 %v3649, %v3647
    %v3788 = vpack.c.b16 %v3650, %v3648
    %v3789 = vpack.c.b16 %v3653, %v3651
    %v3790 = vpack.c.b16 %v3654, %v3652
    %v3791 = vpack.c.b16 %v3657, %v3655
    %v3792 = vpack.c.b16 %v3658, %v3656
    %v3793 = vpack.c.b16 %v3661, %v3659
    %v3794 = vpack.c.b16 %v3662, %v3660
    %v3795 = vpack.c.b16 %v3665, %v3663
    %v3796 = vpack.c.b16 %v3666, %v3664
    %v3797 = vpack.c.b16 %v3669, %v3667
    %v3798 = vpack.c.b16 %v3670, %v3668
    %3927 = vmatprep.subr.bf16.mxu0 %v3686
    %3928 = vmatpush1.bf16.msra.mxu0 %v3685
    %3929 = vmatprep.subr.bf16.mxu0 %v3684
    %3930 = vmatpush1.bf16.msra.mxu0 %v3683
    %3931 = vmatprep.subr.bf16.mxu0 %v3682
    %3932 = vmatpush1.bf16.msra.mxu0 %v3681
    %3933 = vmatprep.subr.bf16.mxu0 %v3680
    %3934 = vmatpush1.bf16.msra.mxu0 %v3679
    %3935 = vmatprep.subr.bf16.mxu0 %v3678
    %3936 = vmatpush1.bf16.msra.mxu0 %v3677
    %3937 = vmatprep.subr.bf16.mxu0 %v3676
    %3938 = vmatpush1.bf16.msra.mxu0 %v3675
    %3939 = vmatprep.subr.bf16.mxu0 %v3674
    %3940 = vmatpush1.bf16.msra.mxu0 %v3673
    %3941 = vmatprep.subr.bf16.mxu0 %v3672
    %3942 = vmatpush1.bf16.msra.mxu0 %v3671
    %3943 = vmatprep.subr.bf16.mxu0 %v3702
    %3944 = vmatpush2.bf16.msra.mxu0 %v3701
    %3945 = vmatprep.subr.bf16.mxu0 %v3700
    %3946 = vmatpush2.bf16.msra.mxu0 %v3699
    %3947 = vmatprep.subr.bf16.mxu0 %v3698
    %3948 = vmatpush2.bf16.msra.mxu0 %v3697
    %3949 = vmatprep.subr.bf16.mxu0 %v3696
    %3950 = vmatpush2.bf16.msra.mxu0 %v3695
    %3951 = vmatprep.subr.bf16.mxu0 %v3694
    %3952 = vmatpush2.bf16.msra.mxu0 %v3693
    %3953 = vmatprep.subr.bf16.mxu0 %v3692
    %3954 = vmatpush2.bf16.msra.mxu0 %v3691
    %3955 = vmatprep.subr.bf16.mxu0 %v3690
    %3956 = vmatpush2.bf16.msra.mxu0 %v3689
    %3957 = vmatprep.subr.bf16.mxu0 %v3688
    %3958 = vmatpush2.bf16.msra.mxu0 %v3687
    %3959 = vmatprep.mubr.bf16.mxu0 %v1014
    %3960 = vmatmul.mubr.bf16.gmra.mxu0 %v1013
    %v3961 = vpop.f32.mrf.mxu0
    %v3962 = vadd.f32 0.0, %v3961
    %v3963 = vpop.f32.mrf.mxu0
    %v3964 = vadd.f32 0.0, %v3963
    %v3965 = vpop.f32.mrf.mxu0
    %v3966 = vpop.f32.mrf.mxu0
    %3967 = vdwg.mxu0
    %3968 = vmatprep.subr.bf16.mxu0 %v3718
    %3969 = vmatpush1.bf16.msra.mxu0 %v3717
    %3970 = vmatprep.subr.bf16.mxu0 %v3716
    %3971 = vmatpush1.bf16.msra.mxu0 %v3715
    %3972 = vmatprep.subr.bf16.mxu0 %v3714
    %3973 = vmatpush1.bf16.msra.mxu0 %v3713
    %3974 = vmatprep.subr.bf16.mxu0 %v3712
    %3975 = vmatpush1.bf16.msra.mxu0 %v3711
    %3976 = vmatprep.subr.bf16.mxu0 %v3710
    %3977 = vmatpush1.bf16.msra.mxu0 %v3709
    %3978 = vmatprep.subr.bf16.mxu0 %v3708
    %3979 = vmatpush1.bf16.msra.mxu0 %v3707
    %3980 = vmatprep.subr.bf16.mxu0 %v3706
    %3981 = vmatpush1.bf16.msra.mxu0 %v3705
    %3982 = vmatprep.subr.bf16.mxu0 %v3704
    %3983 = vmatpush1.bf16.msra.mxu0 %v3703
    %3984 = vmatprep.subr.bf16.mxu0 %v3734
    %3985 = vmatpush2.bf16.msra.mxu0 %v3733
    %3986 = vmatprep.subr.bf16.mxu0 %v3732
    %3987 = vmatpush2.bf16.msra.mxu0 %v3731
    %3988 = vmatprep.subr.bf16.mxu0 %v3730
    %3989 = vmatpush2.bf16.msra.mxu0 %v3729
    %3990 = vmatprep.subr.bf16.mxu0 %v3728
    %3991 = vmatpush2.bf16.msra.mxu0 %v3727
    %3992 = vmatprep.subr.bf16.mxu0 %v3726
    %3993 = vmatpush2.bf16.msra.mxu0 %v3725
    %3994 = vmatprep.subr.bf16.mxu0 %v3724
    %3995 = vmatpush2.bf16.msra.mxu0 %v3723
    %3996 = vmatprep.subr.bf16.mxu0 %v3722
    %3997 = vmatpush2.bf16.msra.mxu0 %v3721
    %3998 = vmatprep.subr.bf16.mxu0 %v3720
    %3999 = vmatpush2.bf16.msra.mxu0 %v3719
    %4000 = vmatprep.mubr.bf16.mxu0 %v1206
    %4001 = vmatmul.mubr.bf16.gmra.mxu0 %v1205
    %v4002 = vpop.f32.mrf.mxu0
    %v4003 = vadd.f32 %v3962, %v4002
    %v4004 = vpop.f32.mrf.mxu0
    %v4005 = vadd.f32 %v3964, %v4004
    %v4006 = vpop.f32.mrf.mxu0
    %v4007 = vpop.f32.mrf.mxu0
    %4008 = vdwg.mxu0
    %4009 = vmatprep.subr.bf16.mxu0 %v3750
    %4010 = vmatpush1.bf16.msra.mxu0 %v3749
    %4011 = vmatprep.subr.bf16.mxu0 %v3748
    %4012 = vmatpush1.bf16.msra.mxu0 %v3747
    %4013 = vmatprep.subr.bf16.mxu0 %v3746
    %4014 = vmatpush1.bf16.msra.mxu0 %v3745
    %4015 = vmatprep.subr.bf16.mxu0 %v3744
    %4016 = vmatpush1.bf16.msra.mxu0 %v3743
    %4017 = vmatprep.subr.bf16.mxu0 %v3742
    %4018 = vmatpush1.bf16.msra.mxu0 %v3741
    %4019 = vmatprep.subr.bf16.mxu0 %v3740
    %4020 = vmatpush1.bf16.msra.mxu0 %v3739
    %4021 = vmatprep.subr.bf16.mxu0 %v3738
    %4022 = vmatpush1.bf16.msra.mxu0 %v3737
    %4023 = vmatprep.subr.bf16.mxu0 %v3736
    %4024 = vmatpush1.bf16.msra.mxu0 %v3735
    %4025 = vmatprep.subr.bf16.mxu0 %v3766
    %4026 = vmatpush2.bf16.msra.mxu0 %v3765
    %4027 = vmatprep.subr.bf16.mxu0 %v3764
    %4028 = vmatpush2.bf16.msra.mxu0 %v3763
    %4029 = vmatprep.subr.bf16.mxu0 %v3762
    %4030 = vmatpush2.bf16.msra.mxu0 %v3761
    %4031 = vmatprep.subr.bf16.mxu0 %v3760
    %4032 = vmatpush2.bf16.msra.mxu0 %v3759
    %4033 = vmatprep.subr.bf16.mxu0 %v3758
    %4034 = vmatpush2.bf16.msra.mxu0 %v3757
    %4035 = vmatprep.subr.bf16.mxu0 %v3756
    %4036 = vmatpush2.bf16.msra.mxu0 %v3755
    %4037 = vmatprep.subr.bf16.mxu0 %v3754
    %4038 = vmatpush2.bf16.msra.mxu0 %v3753
    %4039 = vmatprep.subr.bf16.mxu0 %v3752
    %4040 = vmatpush2.bf16.msra.mxu0 %v3751
    %4041 = vmatprep.mubr.bf16.mxu0 %v1396
    %4042 = vmatmul.mubr.bf16.gmra.mxu0 %v1395
    %v4043 = vpop.f32.mrf.mxu0
    %v4044 = vadd.f32 %v4003, %v4043
    %v4045 = vpop.f32.mrf.mxu0
    %v4046 = vadd.f32 %v4005, %v4045
    %v4047 = vpop.f32.mrf.mxu0
    %v4048 = vpop.f32.mrf.mxu0
    %4049 = vdwg.mxu0
    %4050 = vmatprep.subr.bf16.mxu0 %v3782
    %4051 = vmatpush1.bf16.msra.mxu0 %v3781
    %4052 = vmatprep.subr.bf16.mxu0 %v3780
    %4053 = vmatpush1.bf16.msra.mxu0 %v3779
    %4054 = vmatprep.subr.bf16.mxu0 %v3778
    %4055 = vmatpush1.bf16.msra.mxu0 %v3777
    %4056 = vmatprep.subr.bf16.mxu0 %v3776
    %4057 = vmatpush1.bf16.msra.mxu0 %v3775
    %4058 = vmatprep.subr.bf16.mxu0 %v3774
    %4059 = vmatpush1.bf16.msra.mxu0 %v3773
    %4060 = vmatprep.subr.bf16.mxu0 %v3772
    %4061 = vmatpush1.bf16.msra.mxu0 %v3771
    %4062 = vmatprep.subr.bf16.mxu0 %v3770
    %4063 = vmatpush1.bf16.msra.mxu0 %v3769
    %4064 = vmatprep.subr.bf16.mxu0 %v3768
    %4065 = vmatpush1.bf16.msra.mxu0 %v3767
    %4066 = vmatprep.subr.bf16.mxu0 %v3798
    %4067 = vmatpush2.bf16.msra.mxu0 %v3797
    %4068 = vmatprep.subr.bf16.mxu0 %v3796
    %4069 = vmatpush2.bf16.msra.mxu0 %v3795
    %4070 = vmatprep.subr.bf16.mxu0 %v3794
    %4071 = vmatpush2.bf16.msra.mxu0 %v3793
    %4072 = vmatprep.subr.bf16.mxu0 %v3792
    %4073 = vmatpush2.bf16.msra.mxu0 %v3791
    %4074 = vmatprep.subr.bf16.mxu0 %v3790
    %4075 = vmatpush2.bf16.msra.mxu0 %v3789
    %4076 = vmatprep.subr.bf16.mxu0 %v3788
    %4077 = vmatpush2.bf16.msra.mxu0 %v3787
    %4078 = vmatprep.subr.bf16.mxu0 %v3786
    %4079 = vmatpush2.bf16.msra.mxu0 %v3785
    %4080 = vmatprep.subr.bf16.mxu0 %v3784
    %4081 = vmatpush2.bf16.msra.mxu0 %v3783
    %4082 = vmatprep.mubr.bf16.mxu0 %v1586
    %4083 = vmatmul.mubr.bf16.gmra.mxu0 %v1585
    %v4084 = vpop.f32.mrf.mxu0
    %v4085 = vadd.f32 %v4044, %v4084
    %v4086 = vpop.f32.mrf.mxu0
    %v4087 = vadd.f32 %v4046, %v4086
    %v4088 = vpop.f32.mrf.mxu0
    %v4089 = vpop.f32.mrf.mxu0
    %4090 = vdwg.mxu0
    %v4091 = vmax.f32 %v3281, %v4085
    %v4092 = vmax.f32 %v3283, %v4087
    %v4221 = vunpack.c.l.b16 %v2225
    %v4222 = vunpack.c.h.b16 %v2225
    %v4223 = vunpack.c.l.b16 %v2226
    %v4224 = vunpack.c.h.b16 %v2226
    %v4225 = vunpack.c.l.b16 %v2227
    %v4226 = vunpack.c.h.b16 %v2227
    %v4227 = vunpack.c.l.b16 %v2228
    %v4228 = vunpack.c.h.b16 %v2228
    %v4229 = vunpack.c.l.b16 %v2229
    %v4230 = vunpack.c.h.b16 %v2229
    %v4231 = vunpack.c.l.b16 %v2230
    %v4232 = vunpack.c.h.b16 %v2230
    %v4233 = vunpack.c.l.b16 %v2231
    %v4234 = vunpack.c.h.b16 %v2231
    %v4235 = vunpack.c.l.b16 %v2232
    %v4236 = vunpack.c.h.b16 %v2232
    %v4237 = vunpack.c.l.b16 %v2233
    %v4238 = vunpack.c.h.b16 %v2233
    %v4239 = vunpack.c.l.b16 %v2234
    %v4240 = vunpack.c.h.b16 %v2234
    %v4241 = vunpack.c.l.b16 %v2235
    %v4242 = vunpack.c.h.b16 %v2235
    %v4243 = vunpack.c.l.b16 %v2236
    %v4244 = vunpack.c.h.b16 %v2236
    %v4245 = vunpack.c.l.b16 %v2237
    %v4246 = vunpack.c.h.b16 %v2237
    %v4247 = vunpack.c.l.b16 %v2238
    %v4248 = vunpack.c.h.b16 %v2238
    %v4249 = vunpack.c.l.b16 %v2239
    %v4250 = vunpack.c.h.b16 %v2239
    %v4251 = vunpack.c.l.b16 %v2240
    %v4252 = vunpack.c.h.b16 %v2240
    %v4253 = vunpack.c.l.b16 %v2241
    %v4254 = vunpack.c.h.b16 %v2241
    %v4255 = vunpack.c.l.b16 %v2242
    %v4256 = vunpack.c.h.b16 %v2242
    %v4257 = vunpack.c.l.b16 %v2243
    %v4258 = vunpack.c.h.b16 %v2243
    %v4259 = vunpack.c.l.b16 %v2244
    %v4260 = vunpack.c.h.b16 %v2244
    %v4261 = vunpack.c.l.b16 %v2245
    %v4262 = vunpack.c.h.b16 %v2245
    %v4263 = vunpack.c.l.b16 %v2246
    %v4264 = vunpack.c.h.b16 %v2246
    %v4265 = vunpack.c.l.b16 %v2247
    %v4266 = vunpack.c.h.b16 %v2247
    %v4267 = vunpack.c.l.b16 %v2248
    %v4268 = vunpack.c.h.b16 %v2248
    %v4269 = vunpack.c.l.b16 %v2249
    %v4270 = vunpack.c.h.b16 %v2249
    %v4271 = vunpack.c.l.b16 %v2250
    %v4272 = vunpack.c.h.b16 %v2250
    %v4273 = vunpack.c.l.b16 %v2251
    %v4274 = vunpack.c.h.b16 %v2251
    %v4275 = vunpack.c.l.b16 %v2252
    %v4276 = vunpack.c.h.b16 %v2252
    %v4277 = vunpack.c.l.b16 %v2253
    %v4278 = vunpack.c.h.b16 %v2253
    %v4279 = vunpack.c.l.b16 %v2254
    %v4280 = vunpack.c.h.b16 %v2254
    %v4281 = vunpack.c.l.b16 %v2255
    %v4282 = vunpack.c.h.b16 %v2255
    %v4283 = vunpack.c.l.b16 %v2256
    %v4284 = vunpack.c.h.b16 %v2256
    %v4285 = vunpack.c.l.b16 %v2257
    %v4286 = vunpack.c.h.b16 %v2257
    %v4287 = vunpack.c.l.b16 %v2258
    %v4288 = vunpack.c.h.b16 %v2258
    %v4289 = vunpack.c.l.b16 %v2259
    %v4290 = vunpack.c.h.b16 %v2259
    %v4291 = vunpack.c.l.b16 %v2260
    %v4292 = vunpack.c.h.b16 %v2260
    %v4293 = vunpack.c.l.b16 %v2261
    %v4294 = vunpack.c.h.b16 %v2261
    %v4295 = vunpack.c.l.b16 %v2262
    %v4296 = vunpack.c.h.b16 %v2262
    %v4297 = vunpack.c.l.b16 %v2263
    %v4298 = vunpack.c.h.b16 %v2263
    %v4299 = vunpack.c.l.b16 %v2264
    %v4300 = vunpack.c.h.b16 %v2264
    %v4301 = vunpack.c.l.b16 %v2265
    %v4302 = vunpack.c.h.b16 %v2265
    %v4303 = vunpack.c.l.b16 %v2266
    %v4304 = vunpack.c.h.b16 %v2266
    %v4305 = vunpack.c.l.b16 %v2267
    %v4306 = vunpack.c.h.b16 %v2267
    %v4307 = vunpack.c.l.b16 %v2268
    %v4308 = vunpack.c.h.b16 %v2268
    %v4309 = vunpack.c.l.b16 %v2269
    %v4310 = vunpack.c.h.b16 %v2269
    %v4311 = vunpack.c.l.b16 %v2270
    %v4312 = vunpack.c.h.b16 %v2270
    %v4313 = vunpack.c.l.b16 %v2271
    %v4314 = vunpack.c.h.b16 %v2271
    %v4315 = vunpack.c.l.b16 %v2272
    %v4316 = vunpack.c.h.b16 %v2272
    %v4317 = vunpack.c.l.b16 %v2273
    %v4318 = vunpack.c.h.b16 %v2273
    %v4319 = vunpack.c.l.b16 %v2274
    %v4320 = vunpack.c.h.b16 %v2274
    %v4321 = vunpack.c.l.b16 %v2275
    %v4322 = vunpack.c.h.b16 %v2275
    %v4323 = vunpack.c.l.b16 %v2276
    %v4324 = vunpack.c.h.b16 %v2276
    %v4325 = vunpack.c.l.b16 %v2277
    %v4326 = vunpack.c.h.b16 %v2277
    %v4327 = vunpack.c.l.b16 %v2278
    %v4328 = vunpack.c.h.b16 %v2278
    %v4329 = vunpack.c.l.b16 %v2279
    %v4330 = vunpack.c.h.b16 %v2279
    %v4331 = vunpack.c.l.b16 %v2280
    %v4332 = vunpack.c.h.b16 %v2280
    %v4333 = vunpack.c.l.b16 %v2281
    %v4334 = vunpack.c.h.b16 %v2281
    %v4335 = vunpack.c.l.b16 %v2282
    %v4336 = vunpack.c.h.b16 %v2282
    %v4337 = vunpack.c.l.b16 %v2283
    %v4338 = vunpack.c.h.b16 %v2283
    %v4339 = vunpack.c.l.b16 %v2284
    %v4340 = vunpack.c.h.b16 %v2284
    %v4341 = vunpack.c.l.b16 %v2285
    %v4342 = vunpack.c.h.b16 %v2285
    %v4343 = vunpack.c.l.b16 %v2286
    %v4344 = vunpack.c.h.b16 %v2286
    %v4345 = vunpack.c.l.b16 %v2287
    %v4346 = vunpack.c.h.b16 %v2287
    %v4347 = vunpack.c.l.b16 %v2288
    %v4348 = vunpack.c.h.b16 %v2288
    %v4349 = vunpack.c.l.b16 %v2289
    %v4350 = vunpack.c.h.b16 %v2289
    %v4351 = vunpack.c.l.b16 %v2290
    %v4352 = vunpack.c.h.b16 %v2290
    %v4353 = vunpack.c.l.b16 %v2291
    %v4354 = vunpack.c.h.b16 %v2291
    %v4355 = vunpack.c.l.b16 %v2292
    %v4356 = vunpack.c.h.b16 %v2292
    %v4357 = vunpack.c.l.b16 %v2293
    %v4358 = vunpack.c.h.b16 %v2293
    %v4359 = vunpack.c.l.b16 %v2294
    %v4360 = vunpack.c.h.b16 %v2294
    %v4361 = vunpack.c.l.b16 %v2295
    %v4362 = vunpack.c.h.b16 %v2295
    %v4363 = vunpack.c.l.b16 %v2296
    %v4364 = vunpack.c.h.b16 %v2296
    %v4365 = vunpack.c.l.b16 %v2297
    %v4366 = vunpack.c.h.b16 %v2297
    %v4367 = vunpack.c.l.b16 %v2298
    %v4368 = vunpack.c.h.b16 %v2298
    %v4369 = vunpack.c.l.b16 %v2299
    %v4370 = vunpack.c.h.b16 %v2299
    %v4371 = vunpack.c.l.b16 %v2300
    %v4372 = vunpack.c.h.b16 %v2300
    %v4373 = vunpack.c.l.b16 %v2301
    %v4374 = vunpack.c.h.b16 %v2301
    %v4375 = vunpack.c.l.b16 %v2302
    %v4376 = vunpack.c.h.b16 %v2302
    %v4377 = vunpack.c.l.b16 %v2303
    %v4378 = vunpack.c.h.b16 %v2303
    %v4379 = vunpack.c.l.b16 %v2304
    %v4380 = vunpack.c.h.b16 %v2304
    %v4381 = vunpack.c.l.b16 %v2305
    %v4382 = vunpack.c.h.b16 %v2305
    %v4383 = vunpack.c.l.b16 %v2306
    %v4384 = vunpack.c.h.b16 %v2306
    %v4385 = vunpack.c.l.b16 %v2307
    %v4386 = vunpack.c.h.b16 %v2307
    %v4387 = vunpack.c.l.b16 %v2308
    %v4388 = vunpack.c.h.b16 %v2308
    %v4389 = vunpack.c.l.b16 %v2309
    %v4390 = vunpack.c.h.b16 %v2309
    %v4391 = vunpack.c.l.b16 %v2310
    %v4392 = vunpack.c.h.b16 %v2310
    %v4393 = vunpack.c.l.b16 %v2311
    %v4394 = vunpack.c.h.b16 %v2311
    %v4395 = vunpack.c.l.b16 %v2312
    %v4396 = vunpack.c.h.b16 %v2312
    %v4397 = vunpack.c.l.b16 %v2313
    %v4398 = vunpack.c.h.b16 %v2313
    %v4399 = vunpack.c.l.b16 %v2314
    %v4400 = vunpack.c.h.b16 %v2314
    %v4401 = vunpack.c.l.b16 %v2315
    %v4402 = vunpack.c.h.b16 %v2315
    %v4403 = vunpack.c.l.b16 %v2316
    %v4404 = vunpack.c.h.b16 %v2316
    %v4405 = vunpack.c.l.b16 %v2317
    %v4406 = vunpack.c.h.b16 %v2317
    %v4407 = vunpack.c.l.b16 %v2318
    %v4408 = vunpack.c.h.b16 %v2318
    %v4409 = vunpack.c.l.b16 %v2319
    %v4410 = vunpack.c.h.b16 %v2319
    %v4411 = vunpack.c.l.b16 %v2320
    %v4412 = vunpack.c.h.b16 %v2320
    %v4413 = vunpack.c.l.b16 %v2321
    %v4414 = vunpack.c.h.b16 %v2321
    %v4415 = vunpack.c.l.b16 %v2322
    %v4416 = vunpack.c.h.b16 %v2322
    %v4417 = vunpack.c.l.b16 %v2323
    %v4418 = vunpack.c.h.b16 %v2323
    %v4419 = vunpack.c.l.b16 %v2324
    %v4420 = vunpack.c.h.b16 %v2324
    %v4421 = vunpack.c.l.b16 %v2325
    %v4422 = vunpack.c.h.b16 %v2325
    %v4423 = vunpack.c.l.b16 %v2326
    %v4424 = vunpack.c.h.b16 %v2326
    %v4425 = vunpack.c.l.b16 %v2327
    %v4426 = vunpack.c.h.b16 %v2327
    %v4427 = vunpack.c.l.b16 %v2328
    %v4428 = vunpack.c.h.b16 %v2328
    %v4429 = vunpack.c.l.b16 %v2329
    %v4430 = vunpack.c.h.b16 %v2329
    %v4431 = vunpack.c.l.b16 %v2330
    %v4432 = vunpack.c.h.b16 %v2330
    %v4433 = vunpack.c.l.b16 %v2331
    %v4434 = vunpack.c.h.b16 %v2331
    %v4435 = vunpack.c.l.b16 %v2332
    %v4436 = vunpack.c.h.b16 %v2332
    %v4437 = vunpack.c.l.b16 %v2333
    %v4438 = vunpack.c.h.b16 %v2333
    %v4439 = vunpack.c.l.b16 %v2334
    %v4440 = vunpack.c.h.b16 %v2334
    %v4441 = vunpack.c.l.b16 %v2335
    %v4442 = vunpack.c.h.b16 %v2335
    %v4443 = vunpack.c.l.b16 %v2336
    %v4444 = vunpack.c.h.b16 %v2336
    %v4445 = vunpack.c.l.b16 %v2337
    %v4446 = vunpack.c.h.b16 %v2337
    %v4447 = vunpack.c.l.b16 %v2338
    %v4448 = vunpack.c.h.b16 %v2338
    %v4449 = vunpack.c.l.b16 %v2339
    %v4450 = vunpack.c.h.b16 %v2339
    %v4451 = vunpack.c.l.b16 %v2340
    %v4452 = vunpack.c.h.b16 %v2340
    %v4453 = vunpack.c.l.b16 %v2341
    %v4454 = vunpack.c.h.b16 %v2341
    %v4455 = vunpack.c.l.b16 %v2342
    %v4456 = vunpack.c.h.b16 %v2342
    %v4457 = vunpack.c.l.b16 %v2343
    %v4458 = vunpack.c.h.b16 %v2343
    %v4459 = vunpack.c.l.b16 %v2344
    %v4460 = vunpack.c.h.b16 %v2344
    %v4461 = vunpack.c.l.b16 %v2345
    %v4462 = vunpack.c.h.b16 %v2345
    %v4463 = vunpack.c.l.b16 %v2346
    %v4464 = vunpack.c.h.b16 %v2346
    %v4465 = vunpack.c.l.b16 %v2347
    %v4466 = vunpack.c.h.b16 %v2347
    %v4467 = vunpack.c.l.b16 %v2348
    %v4468 = vunpack.c.h.b16 %v2348
    %v4469 = vunpack.c.l.b16 %v2349
    %v4470 = vunpack.c.h.b16 %v2349
    %v4471 = vunpack.c.l.b16 %v2350
    %v4472 = vunpack.c.h.b16 %v2350
    %v4473 = vunpack.c.l.b16 %v2351
    %v4474 = vunpack.c.h.b16 %v2351
    %v4475 = vunpack.c.l.b16 %v2352
    %v4476 = vunpack.c.h.b16 %v2352
    %v4477 = vpack.c.b16 %v4223, %v4221
    %v4478 = vpack.c.b16 %v4224, %v4222
    %v4479 = vpack.c.b16 %v4227, %v4225
    %v4480 = vpack.c.b16 %v4228, %v4226
    %v4481 = vpack.c.b16 %v4231, %v4229
    %v4482 = vpack.c.b16 %v4232, %v4230
    %v4483 = vpack.c.b16 %v4235, %v4233
    %v4484 = vpack.c.b16 %v4236, %v4234
    %v4485 = vpack.c.b16 %v4239, %v4237
    %v4486 = vpack.c.b16 %v4240, %v4238
    %v4487 = vpack.c.b16 %v4243, %v4241
    %v4488 = vpack.c.b16 %v4244, %v4242
    %v4489 = vpack.c.b16 %v4247, %v4245
    %v4490 = vpack.c.b16 %v4248, %v4246
    %v4491 = vpack.c.b16 %v4251, %v4249
    %v4492 = vpack.c.b16 %v4252, %v4250
    %v4493 = vpack.c.b16 %v4255, %v4253
    %v4494 = vpack.c.b16 %v4256, %v4254
    %v4495 = vpack.c.b16 %v4259, %v4257
    %v4496 = vpack.c.b16 %v4260, %v4258
    %v4497 = vpack.c.b16 %v4263, %v4261
    %v4498 = vpack.c.b16 %v4264, %v4262
    %v4499 = vpack.c.b16 %v4267, %v4265
    %v4500 = vpack.c.b16 %v4268, %v4266
    %v4501 = vpack.c.b16 %v4271, %v4269
    %v4502 = vpack.c.b16 %v4272, %v4270
    %v4503 = vpack.c.b16 %v4275, %v4273
    %v4504 = vpack.c.b16 %v4276, %v4274
    %v4505 = vpack.c.b16 %v4279, %v4277
    %v4506 = vpack.c.b16 %v4280, %v4278
    %v4507 = vpack.c.b16 %v4283, %v4281
    %v4508 = vpack.c.b16 %v4284, %v4282
    %v4509 = vpack.c.b16 %v4287, %v4285
    %v4510 = vpack.c.b16 %v4288, %v4286
    %v4511 = vpack.c.b16 %v4291, %v4289
    %v4512 = vpack.c.b16 %v4292, %v4290
    %v4513 = vpack.c.b16 %v4295, %v4293
    %v4514 = vpack.c.b16 %v4296, %v4294
    %v4515 = vpack.c.b16 %v4299, %v4297
    %v4516 = vpack.c.b16 %v4300, %v4298
    %v4517 = vpack.c.b16 %v4303, %v4301
    %v4518 = vpack.c.b16 %v4304, %v4302
    %v4519 = vpack.c.b16 %v4307, %v4305
    %v4520 = vpack.c.b16 %v4308, %v4306
    %v4521 = vpack.c.b16 %v4311, %v4309
    %v4522 = vpack.c.b16 %v4312, %v4310
    %v4523 = vpack.c.b16 %v4315, %v4313
    %v4524 = vpack.c.b16 %v4316, %v4314
    %v4525 = vpack.c.b16 %v4319, %v4317
    %v4526 = vpack.c.b16 %v4320, %v4318
    %v4527 = vpack.c.b16 %v4323, %v4321
    %v4528 = vpack.c.b16 %v4324, %v4322
    %v4529 = vpack.c.b16 %v4327, %v4325
    %v4530 = vpack.c.b16 %v4328, %v4326
    %v4531 = vpack.c.b16 %v4331, %v4329
    %v4532 = vpack.c.b16 %v4332, %v4330
    %v4533 = vpack.c.b16 %v4335, %v4333
    %v4534 = vpack.c.b16 %v4336, %v4334
    %v4535 = vpack.c.b16 %v4339, %v4337
    %v4536 = vpack.c.b16 %v4340, %v4338
    %v4537 = vpack.c.b16 %v4343, %v4341
    %v4538 = vpack.c.b16 %v4344, %v4342
    %v4539 = vpack.c.b16 %v4347, %v4345
    %v4540 = vpack.c.b16 %v4348, %v4346
    %v4541 = vpack.c.b16 %v4351, %v4349
    %v4542 = vpack.c.b16 %v4352, %v4350
    %v4543 = vpack.c.b16 %v4355, %v4353
    %v4544 = vpack.c.b16 %v4356, %v4354
    %v4545 = vpack.c.b16 %v4359, %v4357
    %v4546 = vpack.c.b16 %v4360, %v4358
    %v4547 = vpack.c.b16 %v4363, %v4361
    %v4548 = vpack.c.b16 %v4364, %v4362
    %v4549 = vpack.c.b16 %v4367, %v4365
    %v4550 = vpack.c.b16 %v4368, %v4366
    %v4551 = vpack.c.b16 %v4371, %v4369
    %v4552 = vpack.c.b16 %v4372, %v4370
    %v4553 = vpack.c.b16 %v4375, %v4373
    %v4554 = vpack.c.b16 %v4376, %v4374
    %v4555 = vpack.c.b16 %v4379, %v4377
    %v4556 = vpack.c.b16 %v4380, %v4378
    %v4557 = vpack.c.b16 %v4383, %v4381
    %v4558 = vpack.c.b16 %v4384, %v4382
    %v4559 = vpack.c.b16 %v4387, %v4385
    %v4560 = vpack.c.b16 %v4388, %v4386
    %v4561 = vpack.c.b16 %v4391, %v4389
    %v4562 = vpack.c.b16 %v4392, %v4390
    %v4563 = vpack.c.b16 %v4395, %v4393
    %v4564 = vpack.c.b16 %v4396, %v4394
    %v4565 = vpack.c.b16 %v4399, %v4397
    %v4566 = vpack.c.b16 %v4400, %v4398
    %v4567 = vpack.c.b16 %v4403, %v4401
    %v4568 = vpack.c.b16 %v4404, %v4402
    %v4569 = vpack.c.b16 %v4407, %v4405
    %v4570 = vpack.c.b16 %v4408, %v4406
    %v4571 = vpack.c.b16 %v4411, %v4409
    %v4572 = vpack.c.b16 %v4412, %v4410
    %v4573 = vpack.c.b16 %v4415, %v4413
    %v4574 = vpack.c.b16 %v4416, %v4414
    %v4575 = vpack.c.b16 %v4419, %v4417
    %v4576 = vpack.c.b16 %v4420, %v4418
    %v4577 = vpack.c.b16 %v4423, %v4421
    %v4578 = vpack.c.b16 %v4424, %v4422
    %v4579 = vpack.c.b16 %v4427, %v4425
    %v4580 = vpack.c.b16 %v4428, %v4426
    %v4581 = vpack.c.b16 %v4431, %v4429
    %v4582 = vpack.c.b16 %v4432, %v4430
    %v4583 = vpack.c.b16 %v4435, %v4433
    %v4584 = vpack.c.b16 %v4436, %v4434
    %v4585 = vpack.c.b16 %v4439, %v4437
    %v4586 = vpack.c.b16 %v4440, %v4438
    %v4587 = vpack.c.b16 %v4443, %v4441
    %v4588 = vpack.c.b16 %v4444, %v4442
    %v4589 = vpack.c.b16 %v4447, %v4445
    %v4590 = vpack.c.b16 %v4448, %v4446
    %v4591 = vpack.c.b16 %v4451, %v4449
    %v4592 = vpack.c.b16 %v4452, %v4450
    %v4593 = vpack.c.b16 %v4455, %v4453
    %v4594 = vpack.c.b16 %v4456, %v4454
    %v4595 = vpack.c.b16 %v4459, %v4457
    %v4596 = vpack.c.b16 %v4460, %v4458
    %v4597 = vpack.c.b16 %v4463, %v4461
    %v4598 = vpack.c.b16 %v4464, %v4462
    %v4599 = vpack.c.b16 %v4467, %v4465
    %v4600 = vpack.c.b16 %v4468, %v4466
    %v4601 = vpack.c.b16 %v4471, %v4469
    %v4602 = vpack.c.b16 %v4472, %v4470
    %v4603 = vpack.c.b16 %v4475, %v4473
    %v4604 = vpack.c.b16 %v4476, %v4474
    %4733 = vmatprep.subr.bf16.mxu0 %v4492
    %4734 = vmatpush1.bf16.msra.mxu0 %v4491
    %4735 = vmatprep.subr.bf16.mxu0 %v4490
    %4736 = vmatpush1.bf16.msra.mxu0 %v4489
    %4737 = vmatprep.subr.bf16.mxu0 %v4488
    %4738 = vmatpush1.bf16.msra.mxu0 %v4487
    %4739 = vmatprep.subr.bf16.mxu0 %v4486
    %4740 = vmatpush1.bf16.msra.mxu0 %v4485
    %4741 = vmatprep.subr.bf16.mxu0 %v4484
    %4742 = vmatpush1.bf16.msra.mxu0 %v4483
    %4743 = vmatprep.subr.bf16.mxu0 %v4482
    %4744 = vmatpush1.bf16.msra.mxu0 %v4481
    %4745 = vmatprep.subr.bf16.mxu0 %v4480
    %4746 = vmatpush1.bf16.msra.mxu0 %v4479
    %4747 = vmatprep.subr.bf16.mxu0 %v4478
    %4748 = vmatpush1.bf16.msra.mxu0 %v4477
    %4749 = vmatprep.subr.bf16.mxu0 %v4508
    %4750 = vmatpush2.bf16.msra.mxu0 %v4507
    %4751 = vmatprep.subr.bf16.mxu0 %v4506
    %4752 = vmatpush2.bf16.msra.mxu0 %v4505
    %4753 = vmatprep.subr.bf16.mxu0 %v4504
    %4754 = vmatpush2.bf16.msra.mxu0 %v4503
    %4755 = vmatprep.subr.bf16.mxu0 %v4502
    %4756 = vmatpush2.bf16.msra.mxu0 %v4501
    %4757 = vmatprep.subr.bf16.mxu0 %v4500
    %4758 = vmatpush2.bf16.msra.mxu0 %v4499
    %4759 = vmatprep.subr.bf16.mxu0 %v4498
    %4760 = vmatpush2.bf16.msra.mxu0 %v4497
    %4761 = vmatprep.subr.bf16.mxu0 %v4496
    %4762 = vmatpush2.bf16.msra.mxu0 %v4495
    %4763 = vmatprep.subr.bf16.mxu0 %v4494
    %4764 = vmatpush2.bf16.msra.mxu0 %v4493
    %4765 = vmatprep.mubr.bf16.mxu0 %v1014
    %4766 = vmatmul.mubr.bf16.gmra.mxu0 %v1013
    %v4767 = vpop.f32.mrf.mxu0
    %v4768 = vadd.f32 0.0, %v4767
    %v4769 = vpop.f32.mrf.mxu0
    %v4770 = vadd.f32 0.0, %v4769
    %v4771 = vpop.f32.mrf.mxu0
    %v4772 = vpop.f32.mrf.mxu0
    %4773 = vdwg.mxu0
    %4774 = vmatprep.subr.bf16.mxu0 %v4524
    %4775 = vmatpush1.bf16.msra.mxu0 %v4523
    %4776 = vmatprep.subr.bf16.mxu0 %v4522
    %4777 = vmatpush1.bf16.msra.mxu0 %v4521
    %4778 = vmatprep.subr.bf16.mxu0 %v4520
    %4779 = vmatpush1.bf16.msra.mxu0 %v4519
    %4780 = vmatprep.subr.bf16.mxu0 %v4518
    %4781 = vmatpush1.bf16.msra.mxu0 %v4517
    %4782 = vmatprep.subr.bf16.mxu0 %v4516
    %4783 = vmatpush1.bf16.msra.mxu0 %v4515
    %4784 = vmatprep.subr.bf16.mxu0 %v4514
    %4785 = vmatpush1.bf16.msra.mxu0 %v4513
    %4786 = vmatprep.subr.bf16.mxu0 %v4512
    %4787 = vmatpush1.bf16.msra.mxu0 %v4511
    %4788 = vmatprep.subr.bf16.mxu0 %v4510
    %4789 = vmatpush1.bf16.msra.mxu0 %v4509
    %4790 = vmatprep.subr.bf16.mxu0 %v4540
    %4791 = vmatpush2.bf16.msra.mxu0 %v4539
    %4792 = vmatprep.subr.bf16.mxu0 %v4538
    %4793 = vmatpush2.bf16.msra.mxu0 %v4537
    %4794 = vmatprep.subr.bf16.mxu0 %v4536
    %4795 = vmatpush2.bf16.msra.mxu0 %v4535
    %4796 = vmatprep.subr.bf16.mxu0 %v4534
    %4797 = vmatpush2.bf16.msra.mxu0 %v4533
    %4798 = vmatprep.subr.bf16.mxu0 %v4532
    %4799 = vmatpush2.bf16.msra.mxu0 %v4531
    %4800 = vmatprep.subr.bf16.mxu0 %v4530
    %4801 = vmatpush2.bf16.msra.mxu0 %v4529
    %4802 = vmatprep.subr.bf16.mxu0 %v4528
    %4803 = vmatpush2.bf16.msra.mxu0 %v4527
    %4804 = vmatprep.subr.bf16.mxu0 %v4526
    %4805 = vmatpush2.bf16.msra.mxu0 %v4525
    %4806 = vmatprep.mubr.bf16.mxu0 %v1206
    %4807 = vmatmul.mubr.bf16.gmra.mxu0 %v1205
    %v4808 = vpop.f32.mrf.mxu0
    %v4809 = vadd.f32 %v4768, %v4808
    %v4810 = vpop.f32.mrf.mxu0
    %v4811 = vadd.f32 %v4770, %v4810
    %v4812 = vpop.f32.mrf.mxu0
    %v4813 = vpop.f32.mrf.mxu0
    %4814 = vdwg.mxu0
    %4815 = vmatprep.subr.bf16.mxu0 %v4556
    %4816 = vmatpush1.bf16.msra.mxu0 %v4555
    %4817 = vmatprep.subr.bf16.mxu0 %v4554
    %4818 = vmatpush1.bf16.msra.mxu0 %v4553
    %4819 = vmatprep.subr.bf16.mxu0 %v4552
    %4820 = vmatpush1.bf16.msra.mxu0 %v4551
    %4821 = vmatprep.subr.bf16.mxu0 %v4550
    %4822 = vmatpush1.bf16.msra.mxu0 %v4549
    %4823 = vmatprep.subr.bf16.mxu0 %v4548
    %4824 = vmatpush1.bf16.msra.mxu0 %v4547
    %4825 = vmatprep.subr.bf16.mxu0 %v4546
    %4826 = vmatpush1.bf16.msra.mxu0 %v4545
    %4827 = vmatprep.subr.bf16.mxu0 %v4544
    %4828 = vmatpush1.bf16.msra.mxu0 %v4543
    %4829 = vmatprep.subr.bf16.mxu0 %v4542
    %4830 = vmatpush1.bf16.msra.mxu0 %v4541
    %4831 = vmatprep.subr.bf16.mxu0 %v4572
    %4832 = vmatpush2.bf16.msra.mxu0 %v4571
    %4833 = vmatprep.subr.bf16.mxu0 %v4570
    %4834 = vmatpush2.bf16.msra.mxu0 %v4569
    %4835 = vmatprep.subr.bf16.mxu0 %v4568
    %4836 = vmatpush2.bf16.msra.mxu0 %v4567
    %4837 = vmatprep.subr.bf16.mxu0 %v4566
    %4838 = vmatpush2.bf16.msra.mxu0 %v4565
    %4839 = vmatprep.subr.bf16.mxu0 %v4564
    %4840 = vmatpush2.bf16.msra.mxu0 %v4563
    %4841 = vmatprep.subr.bf16.mxu0 %v4562
    %4842 = vmatpush2.bf16.msra.mxu0 %v4561
    %4843 = vmatprep.subr.bf16.mxu0 %v4560
    %4844 = vmatpush2.bf16.msra.mxu0 %v4559
    %4845 = vmatprep.subr.bf16.mxu0 %v4558
    %4846 = vmatpush2.bf16.msra.mxu0 %v4557
    %4847 = vmatprep.mubr.bf16.mxu0 %v1396
    %4848 = vmatmul.mubr.bf16.gmra.mxu0 %v1395
    %v4849 = vpop.f32.mrf.mxu0
    %v4850 = vadd.f32 %v4809, %v4849
    %v4851 = vpop.f32.mrf.mxu0
    %v4852 = vadd.f32 %v4811, %v4851
    %v4853 = vpop.f32.mrf.mxu0
    %v4854 = vpop.f32.mrf.mxu0
    %4855 = vdwg.mxu0
    %4856 = vmatprep.subr.bf16.mxu0 %v4588
    %4857 = vmatpush1.bf16.msra.mxu0 %v4587
    %4858 = vmatprep.subr.bf16.mxu0 %v4586
    %4859 = vmatpush1.bf16.msra.mxu0 %v4585
    %4860 = vmatprep.subr.bf16.mxu0 %v4584
    %4861 = vmatpush1.bf16.msra.mxu0 %v4583
    %4862 = vmatprep.subr.bf16.mxu0 %v4582
    %4863 = vmatpush1.bf16.msra.mxu0 %v4581
    %4864 = vmatprep.subr.bf16.mxu0 %v4580
    %4865 = vmatpush1.bf16.msra.mxu0 %v4579
    %4866 = vmatprep.subr.bf16.mxu0 %v4578
    %4867 = vmatpush1.bf16.msra.mxu0 %v4577
    %4868 = vmatprep.subr.bf16.mxu0 %v4576
    %4869 = vmatpush1.bf16.msra.mxu0 %v4575
    %4870 = vmatprep.subr.bf16.mxu0 %v4574
    %4871 = vmatpush1.bf16.msra.mxu0 %v4573
    %4872 = vmatprep.subr.bf16.mxu0 %v4604
    %4873 = vmatpush2.bf16.msra.mxu0 %v4603
    %4874 = vmatprep.subr.bf16.mxu0 %v4602
    %4875 = vmatpush2.bf16.msra.mxu0 %v4601
    %4876 = vmatprep.subr.bf16.mxu0 %v4600
    %4877 = vmatpush2.bf16.msra.mxu0 %v4599
    %4878 = vmatprep.subr.bf16.mxu0 %v4598
    %4879 = vmatpush2.bf16.msra.mxu0 %v4597
    %4880 = vmatprep.subr.bf16.mxu0 %v4596
    %4881 = vmatpush2.bf16.msra.mxu0 %v4595
    %4882 = vmatprep.subr.bf16.mxu0 %v4594
    %4883 = vmatpush2.bf16.msra.mxu0 %v4593
    %4884 = vmatprep.subr.bf16.mxu0 %v4592
    %4885 = vmatpush2.bf16.msra.mxu0 %v4591
    %4886 = vmatprep.subr.bf16.mxu0 %v4590
    %4887 = vmatpush2.bf16.msra.mxu0 %v4589
    %4888 = vmatprep.mubr.bf16.mxu0 %v1586
    %4889 = vmatmul.mubr.bf16.gmra.mxu0 %v1585
    %v4890 = vpop.f32.mrf.mxu0
    %v4891 = vadd.f32 %v4850, %v4890
    %v4892 = vpop.f32.mrf.mxu0
    %v4893 = vadd.f32 %v4852, %v4892
    %v4894 = vpop.f32.mrf.mxu0
    %v4895 = vpop.f32.mrf.mxu0
    %4896 = vdwg.mxu0
    %v4897 = vmax.f32 %v4091, %v4891
    %v4898 = vmax.f32 %v4092, %v4893
    %v5027 = vunpack.c.l.b16 %v2354
    %v5028 = vunpack.c.h.b16 %v2354
    %v5029 = vunpack.c.l.b16 %v2355
    %v5030 = vunpack.c.h.b16 %v2355
    %v5031 = vunpack.c.l.b16 %v2356
    %v5032 = vunpack.c.h.b16 %v2356
    %v5033 = vunpack.c.l.b16 %v2357
    %v5034 = vunpack.c.h.b16 %v2357
    %v5035 = vunpack.c.l.b16 %v2358
    %v5036 = vunpack.c.h.b16 %v2358
    %v5037 = vunpack.c.l.b16 %v2359
    %v5038 = vunpack.c.h.b16 %v2359
    %v5039 = vunpack.c.l.b16 %v2360
    %v5040 = vunpack.c.h.b16 %v2360
    %v5041 = vunpack.c.l.b16 %v2361
    %v5042 = vunpack.c.h.b16 %v2361
    %v5043 = vunpack.c.l.b16 %v2362
    %v5044 = vunpack.c.h.b16 %v2362
    %v5045 = vunpack.c.l.b16 %v2363
    %v5046 = vunpack.c.h.b16 %v2363
    %v5047 = vunpack.c.l.b16 %v2364
    %v5048 = vunpack.c.h.b16 %v2364
    %v5049 = vunpack.c.l.b16 %v2365
    %v5050 = vunpack.c.h.b16 %v2365
    %v5051 = vunpack.c.l.b16 %v2366
    %v5052 = vunpack.c.h.b16 %v2366
    %v5053 = vunpack.c.l.b16 %v2367
    %v5054 = vunpack.c.h.b16 %v2367
    %v5055 = vunpack.c.l.b16 %v2368
    %v5056 = vunpack.c.h.b16 %v2368
    %v5057 = vunpack.c.l.b16 %v2369
    %v5058 = vunpack.c.h.b16 %v2369
    %v5059 = vunpack.c.l.b16 %v2370
    %v5060 = vunpack.c.h.b16 %v2370
    %v5061 = vunpack.c.l.b16 %v2371
    %v5062 = vunpack.c.h.b16 %v2371
    %v5063 = vunpack.c.l.b16 %v2372
    %v5064 = vunpack.c.h.b16 %v2372
    %v5065 = vunpack.c.l.b16 %v2373
    %v5066 = vunpack.c.h.b16 %v2373
    %v5067 = vunpack.c.l.b16 %v2374
    %v5068 = vunpack.c.h.b16 %v2374
    %v5069 = vunpack.c.l.b16 %v2375
    %v5070 = vunpack.c.h.b16 %v2375
    %v5071 = vunpack.c.l.b16 %v2376
    %v5072 = vunpack.c.h.b16 %v2376
    %v5073 = vunpack.c.l.b16 %v2377
    %v5074 = vunpack.c.h.b16 %v2377
    %v5075 = vunpack.c.l.b16 %v2378
    %v5076 = vunpack.c.h.b16 %v2378
    %v5077 = vunpack.c.l.b16 %v2379
    %v5078 = vunpack.c.h.b16 %v2379
    %v5079 = vunpack.c.l.b16 %v2380
    %v5080 = vunpack.c.h.b16 %v2380
    %v5081 = vunpack.c.l.b16 %v2381
    %v5082 = vunpack.c.h.b16 %v2381
    %v5083 = vunpack.c.l.b16 %v2382
    %v5084 = vunpack.c.h.b16 %v2382
    %v5085 = vunpack.c.l.b16 %v2383
    %v5086 = vunpack.c.h.b16 %v2383
    %v5087 = vunpack.c.l.b16 %v2384
    %v5088 = vunpack.c.h.b16 %v2384
    %v5089 = vunpack.c.l.b16 %v2385
    %v5090 = vunpack.c.h.b16 %v2385
    %v5091 = vunpack.c.l.b16 %v2386
    %v5092 = vunpack.c.h.b16 %v2386
    %v5093 = vunpack.c.l.b16 %v2387
    %v5094 = vunpack.c.h.b16 %v2387
    %v5095 = vunpack.c.l.b16 %v2388
    %v5096 = vunpack.c.h.b16 %v2388
    %v5097 = vunpack.c.l.b16 %v2389
    %v5098 = vunpack.c.h.b16 %v2389
    %v5099 = vunpack.c.l.b16 %v2390
    %v5100 = vunpack.c.h.b16 %v2390
    %v5101 = vunpack.c.l.b16 %v2391
    %v5102 = vunpack.c.h.b16 %v2391
    %v5103 = vunpack.c.l.b16 %v2392
    %v5104 = vunpack.c.h.b16 %v2392
    %v5105 = vunpack.c.l.b16 %v2393
    %v5106 = vunpack.c.h.b16 %v2393
    %v5107 = vunpack.c.l.b16 %v2394
    %v5108 = vunpack.c.h.b16 %v2394
    %v5109 = vunpack.c.l.b16 %v2395
    %v5110 = vunpack.c.h.b16 %v2395
    %v5111 = vunpack.c.l.b16 %v2396
    %v5112 = vunpack.c.h.b16 %v2396
    %v5113 = vunpack.c.l.b16 %v2397
    %v5114 = vunpack.c.h.b16 %v2397
    %v5115 = vunpack.c.l.b16 %v2398
    %v5116 = vunpack.c.h.b16 %v2398
    %v5117 = vunpack.c.l.b16 %v2399
    %v5118 = vunpack.c.h.b16 %v2399
    %v5119 = vunpack.c.l.b16 %v2400
    %v5120 = vunpack.c.h.b16 %v2400
    %v5121 = vunpack.c.l.b16 %v2401
    %v5122 = vunpack.c.h.b16 %v2401
    %v5123 = vunpack.c.l.b16 %v2402
    %v5124 = vunpack.c.h.b16 %v2402
    %v5125 = vunpack.c.l.b16 %v2403
    %v5126 = vunpack.c.h.b16 %v2403
    %v5127 = vunpack.c.l.b16 %v2404
    %v5128 = vunpack.c.h.b16 %v2404
    %v5129 = vunpack.c.l.b16 %v2405
    %v5130 = vunpack.c.h.b16 %v2405
    %v5131 = vunpack.c.l.b16 %v2406
    %v5132 = vunpack.c.h.b16 %v2406
    %v5133 = vunpack.c.l.b16 %v2407
    %v5134 = vunpack.c.h.b16 %v2407
    %v5135 = vunpack.c.l.b16 %v2408
    %v5136 = vunpack.c.h.b16 %v2408
    %v5137 = vunpack.c.l.b16 %v2409
    %v5138 = vunpack.c.h.b16 %v2409
    %v5139 = vunpack.c.l.b16 %v2410
    %v5140 = vunpack.c.h.b16 %v2410
    %v5141 = vunpack.c.l.b16 %v2411
    %v5142 = vunpack.c.h.b16 %v2411
    %v5143 = vunpack.c.l.b16 %v2412
    %v5144 = vunpack.c.h.b16 %v2412
    %v5145 = vunpack.c.l.b16 %v2413
    %v5146 = vunpack.c.h.b16 %v2413
    %v5147 = vunpack.c.l.b16 %v2414
    %v5148 = vunpack.c.h.b16 %v2414
    %v5149 = vunpack.c.l.b16 %v2415
    %v5150 = vunpack.c.h.b16 %v2415
    %v5151 = vunpack.c.l.b16 %v2416
    %v5152 = vunpack.c.h.b16 %v2416
    %v5153 = vunpack.c.l.b16 %v2417
    %v5154 = vunpack.c.h.b16 %v2417
    %v5155 = vunpack.c.l.b16 %v2418
    %v5156 = vunpack.c.h.b16 %v2418
    %v5157 = vunpack.c.l.b16 %v2419
    %v5158 = vunpack.c.h.b16 %v2419
    %v5159 = vunpack.c.l.b16 %v2420
    %v5160 = vunpack.c.h.b16 %v2420
    %v5161 = vunpack.c.l.b16 %v2421
    %v5162 = vunpack.c.h.b16 %v2421
    %v5163 = vunpack.c.l.b16 %v2422
    %v5164 = vunpack.c.h.b16 %v2422
    %v5165 = vunpack.c.l.b16 %v2423
    %v5166 = vunpack.c.h.b16 %v2423
    %v5167 = vunpack.c.l.b16 %v2424
    %v5168 = vunpack.c.h.b16 %v2424
    %v5169 = vunpack.c.l.b16 %v2425
    %v5170 = vunpack.c.h.b16 %v2425
    %v5171 = vunpack.c.l.b16 %v2426
    %v5172 = vunpack.c.h.b16 %v2426
    %v5173 = vunpack.c.l.b16 %v2427
    %v5174 = vunpack.c.h.b16 %v2427
    %v5175 = vunpack.c.l.b16 %v2428
    %v5176 = vunpack.c.h.b16 %v2428
    %v5177 = vunpack.c.l.b16 %v2429
    %v5178 = vunpack.c.h.b16 %v2429
    %v5179 = vunpack.c.l.b16 %v2430
    %v5180 = vunpack.c.h.b16 %v2430
    %v5181 = vunpack.c.l.b16 %v2431
    %v5182 = vunpack.c.h.b16 %v2431
    %v5183 = vunpack.c.l.b16 %v2432
    %v5184 = vunpack.c.h.b16 %v2432
    %v5185 = vunpack.c.l.b16 %v2433
    %v5186 = vunpack.c.h.b16 %v2433
    %v5187 = vunpack.c.l.b16 %v2434
    %v5188 = vunpack.c.h.b16 %v2434
    %v5189 = vunpack.c.l.b16 %v2435
    %v5190 = vunpack.c.h.b16 %v2435
    %v5191 = vunpack.c.l.b16 %v2436
    %v5192 = vunpack.c.h.b16 %v2436
    %v5193 = vunpack.c.l.b16 %v2437
    %v5194 = vunpack.c.h.b16 %v2437
    %v5195 = vunpack.c.l.b16 %v2438
    %v5196 = vunpack.c.h.b16 %v2438
    %v5197 = vunpack.c.l.b16 %v2439
    %v5198 = vunpack.c.h.b16 %v2439
    %v5199 = vunpack.c.l.b16 %v2440
    %v5200 = vunpack.c.h.b16 %v2440
    %v5201 = vunpack.c.l.b16 %v2441
    %v5202 = vunpack.c.h.b16 %v2441
    %v5203 = vunpack.c.l.b16 %v2442
    %v5204 = vunpack.c.h.b16 %v2442
    %v5205 = vunpack.c.l.b16 %v2443
    %v5206 = vunpack.c.h.b16 %v2443
    %v5207 = vunpack.c.l.b16 %v2444
    %v5208 = vunpack.c.h.b16 %v2444
    %v5209 = vunpack.c.l.b16 %v2445
    %v5210 = vunpack.c.h.b16 %v2445
    %v5211 = vunpack.c.l.b16 %v2446
    %v5212 = vunpack.c.h.b16 %v2446
    %v5213 = vunpack.c.l.b16 %v2447
    %v5214 = vunpack.c.h.b16 %v2447
    %v5215 = vunpack.c.l.b16 %v2448
    %v5216 = vunpack.c.h.b16 %v2448
    %v5217 = vunpack.c.l.b16 %v2449
    %v5218 = vunpack.c.h.b16 %v2449
    %v5219 = vunpack.c.l.b16 %v2450
    %v5220 = vunpack.c.h.b16 %v2450
    %v5221 = vunpack.c.l.b16 %v2451
    %v5222 = vunpack.c.h.b16 %v2451
    %v5223 = vunpack.c.l.b16 %v2452
    %v5224 = vunpack.c.h.b16 %v2452
    %v5225 = vunpack.c.l.b16 %v2453
    %v5226 = vunpack.c.h.b16 %v2453
    %v5227 = vunpack.c.l.b16 %v2454
    %v5228 = vunpack.c.h.b16 %v2454
    %v5229 = vunpack.c.l.b16 %v2455
    %v5230 = vunpack.c.h.b16 %v2455
    %v5231 = vunpack.c.l.b16 %v2456
    %v5232 = vunpack.c.h.b16 %v2456
    %v5233 = vunpack.c.l.b16 %v2457
    %v5234 = vunpack.c.h.b16 %v2457
    %v5235 = vunpack.c.l.b16 %v2458
    %v5236 = vunpack.c.h.b16 %v2458
    %v5237 = vunpack.c.l.b16 %v2459
    %v5238 = vunpack.c.h.b16 %v2459
    %v5239 = vunpack.c.l.b16 %v2460
    %v5240 = vunpack.c.h.b16 %v2460
    %v5241 = vunpack.c.l.b16 %v2461
    %v5242 = vunpack.c.h.b16 %v2461
    %v5243 = vunpack.c.l.b16 %v2462
    %v5244 = vunpack.c.h.b16 %v2462
    %v5245 = vunpack.c.l.b16 %v2463
    %v5246 = vunpack.c.h.b16 %v2463
    %v5247 = vunpack.c.l.b16 %v2464
    %v5248 = vunpack.c.h.b16 %v2464
    %v5249 = vunpack.c.l.b16 %v2465
    %v5250 = vunpack.c.h.b16 %v2465
    %v5251 = vunpack.c.l.b16 %v2466
    %v5252 = vunpack.c.h.b16 %v2466
    %v5253 = vunpack.c.l.b16 %v2467
    %v5254 = vunpack.c.h.b16 %v2467
    %v5255 = vunpack.c.l.b16 %v2468
    %v5256 = vunpack.c.h.b16 %v2468
    %v5257 = vunpack.c.l.b16 %v2469
    %v5258 = vunpack.c.h.b16 %v2469
    %v5259 = vunpack.c.l.b16 %v2470
    %v5260 = vunpack.c.h.b16 %v2470
    %v5261 = vunpack.c.l.b16 %v2471
    %v5262 = vunpack.c.h.b16 %v2471
    %v5263 = vunpack.c.l.b16 %v2472
    %v5264 = vunpack.c.h.b16 %v2472
    %v5265 = vunpack.c.l.b16 %v2473
    %v5266 = vunpack.c.h.b16 %v2473
    %v5267 = vunpack.c.l.b16 %v2474
    %v5268 = vunpack.c.h.b16 %v2474
    %v5269 = vunpack.c.l.b16 %v2475
    %v5270 = vunpack.c.h.b16 %v2475
    %v5271 = vunpack.c.l.b16 %v2476
    %v5272 = vunpack.c.h.b16 %v2476
    %v5273 = vunpack.c.l.b16 %v2477
    %v5274 = vunpack.c.h.b16 %v2477
    %v5275 = vunpack.c.l.b16 %v2478
    %v5276 = vunpack.c.h.b16 %v2478
    %v5277 = vunpack.c.l.b16 %v2479
    %v5278 = vunpack.c.h.b16 %v2479
    %v5279 = vunpack.c.l.b16 %v2480
    %v5280 = vunpack.c.h.b16 %v2480
    %v5281 = vunpack.c.l.b16 %v2481
    %v5282 = vunpack.c.h.b16 %v2481
    %v5283 = vpack.c.b16 %v5029, %v5027
    %v5284 = vpack.c.b16 %v5030, %v5028
    %v5285 = vpack.c.b16 %v5033, %v5031
    %v5286 = vpack.c.b16 %v5034, %v5032
    %v5287 = vpack.c.b16 %v5037, %v5035
    %v5288 = vpack.c.b16 %v5038, %v5036
    %v5289 = vpack.c.b16 %v5041, %v5039
    %v5290 = vpack.c.b16 %v5042, %v5040
    %v5291 = vpack.c.b16 %v5045, %v5043
    %v5292 = vpack.c.b16 %v5046, %v5044
    %v5293 = vpack.c.b16 %v5049, %v5047
    %v5294 = vpack.c.b16 %v5050, %v5048
    %v5295 = vpack.c.b16 %v5053, %v5051
    %v5296 = vpack.c.b16 %v5054, %v5052
    %v5297 = vpack.c.b16 %v5057, %v5055
    %v5298 = vpack.c.b16 %v5058, %v5056
    %v5299 = vpack.c.b16 %v5061, %v5059
    %v5300 = vpack.c.b16 %v5062, %v5060
    %v5301 = vpack.c.b16 %v5065, %v5063
    %v5302 = vpack.c.b16 %v5066, %v5064
    %v5303 = vpack.c.b16 %v5069, %v5067
    %v5304 = vpack.c.b16 %v5070, %v5068
    %v5305 = vpack.c.b16 %v5073, %v5071
    %v5306 = vpack.c.b16 %v5074, %v5072
    %v5307 = vpack.c.b16 %v5077, %v5075
    %v5308 = vpack.c.b16 %v5078, %v5076
    %v5309 = vpack.c.b16 %v5081, %v5079
    %v5310 = vpack.c.b16 %v5082, %v5080
    %v5311 = vpack.c.b16 %v5085, %v5083
    %v5312 = vpack.c.b16 %v5086, %v5084
    %v5313 = vpack.c.b16 %v5089, %v5087
    %v5314 = vpack.c.b16 %v5090, %v5088
    %v5315 = vpack.c.b16 %v5093, %v5091
    %v5316 = vpack.c.b16 %v5094, %v5092
    %v5317 = vpack.c.b16 %v5097, %v5095
    %v5318 = vpack.c.b16 %v5098, %v5096
    %v5319 = vpack.c.b16 %v5101, %v5099
    %v5320 = vpack.c.b16 %v5102, %v5100
    %v5321 = vpack.c.b16 %v5105, %v5103
    %v5322 = vpack.c.b16 %v5106, %v5104
    %v5323 = vpack.c.b16 %v5109, %v5107
    %v5324 = vpack.c.b16 %v5110, %v5108
    %v5325 = vpack.c.b16 %v5113, %v5111
    %v5326 = vpack.c.b16 %v5114, %v5112
    %v5327 = vpack.c.b16 %v5117, %v5115
    %v5328 = vpack.c.b16 %v5118, %v5116
    %v5329 = vpack.c.b16 %v5121, %v5119
    %v5330 = vpack.c.b16 %v5122, %v5120
    %v5331 = vpack.c.b16 %v5125, %v5123
    %v5332 = vpack.c.b16 %v5126, %v5124
    %v5333 = vpack.c.b16 %v5129, %v5127
    %v5334 = vpack.c.b16 %v5130, %v5128
    %v5335 = vpack.c.b16 %v5133, %v5131
    %v5336 = vpack.c.b16 %v5134, %v5132
    %v5337 = vpack.c.b16 %v5137, %v5135
    %v5338 = vpack.c.b16 %v5138, %v5136
    %v5339 = vpack.c.b16 %v5141, %v5139
    %v5340 = vpack.c.b16 %v5142, %v5140
    %v5341 = vpack.c.b16 %v5145, %v5143
    %v5342 = vpack.c.b16 %v5146, %v5144
    %v5343 = vpack.c.b16 %v5149, %v5147
    %v5344 = vpack.c.b16 %v5150, %v5148
    %v5345 = vpack.c.b16 %v5153, %v5151
    %v5346 = vpack.c.b16 %v5154, %v5152
    %v5347 = vpack.c.b16 %v5157, %v5155
    %v5348 = vpack.c.b16 %v5158, %v5156
    %v5349 = vpack.c.b16 %v5161, %v5159
    %v5350 = vpack.c.b16 %v5162, %v5160
    %v5351 = vpack.c.b16 %v5165, %v5163
    %v5352 = vpack.c.b16 %v5166, %v5164
    %v5353 = vpack.c.b16 %v5169, %v5167
    %v5354 = vpack.c.b16 %v5170, %v5168
    %v5355 = vpack.c.b16 %v5173, %v5171
    %v5356 = vpack.c.b16 %v5174, %v5172
    %v5357 = vpack.c.b16 %v5177, %v5175
    %v5358 = vpack.c.b16 %v5178, %v5176
    %v5359 = vpack.c.b16 %v5181, %v5179
    %v5360 = vpack.c.b16 %v5182, %v5180
    %v5361 = vpack.c.b16 %v5185, %v5183
    %v5362 = vpack.c.b16 %v5186, %v5184
    %v5363 = vpack.c.b16 %v5189, %v5187
    %v5364 = vpack.c.b16 %v5190, %v5188
    %v5365 = vpack.c.b16 %v5193, %v5191
    %v5366 = vpack.c.b16 %v5194, %v5192
    %v5367 = vpack.c.b16 %v5197, %v5195
    %v5368 = vpack.c.b16 %v5198, %v5196
    %v5369 = vpack.c.b16 %v5201, %v5199
    %v5370 = vpack.c.b16 %v5202, %v5200
    %v5371 = vpack.c.b16 %v5205, %v5203
    %v5372 = vpack.c.b16 %v5206, %v5204
    %v5373 = vpack.c.b16 %v5209, %v5207
    %v5374 = vpack.c.b16 %v5210, %v5208
    %v5375 = vpack.c.b16 %v5213, %v5211
    %v5376 = vpack.c.b16 %v5214, %v5212
    %v5377 = vpack.c.b16 %v5217, %v5215
    %v5378 = vpack.c.b16 %v5218, %v5216
    %v5379 = vpack.c.b16 %v5221, %v5219
    %v5380 = vpack.c.b16 %v5222, %v5220
    %v5381 = vpack.c.b16 %v5225, %v5223
    %v5382 = vpack.c.b16 %v5226, %v5224
    %v5383 = vpack.c.b16 %v5229, %v5227
    %v5384 = vpack.c.b16 %v5230, %v5228
    %v5385 = vpack.c.b16 %v5233, %v5231
    %v5386 = vpack.c.b16 %v5234, %v5232
    %v5387 = vpack.c.b16 %v5237, %v5235
    %v5388 = vpack.c.b16 %v5238, %v5236
    %v5389 = vpack.c.b16 %v5241, %v5239
    %v5390 = vpack.c.b16 %v5242, %v5240
    %v5391 = vpack.c.b16 %v5245, %v5243
    %v5392 = vpack.c.b16 %v5246, %v5244
    %v5393 = vpack.c.b16 %v5249, %v5247
    %v5394 = vpack.c.b16 %v5250, %v5248
    %v5395 = vpack.c.b16 %v5253, %v5251
    %v5396 = vpack.c.b16 %v5254, %v5252
    %v5397 = vpack.c.b16 %v5257, %v5255
    %v5398 = vpack.c.b16 %v5258, %v5256
    %v5399 = vpack.c.b16 %v5261, %v5259
    %v5400 = vpack.c.b16 %v5262, %v5260
    %v5401 = vpack.c.b16 %v5265, %v5263
    %v5402 = vpack.c.b16 %v5266, %v5264
    %v5403 = vpack.c.b16 %v5269, %v5267
    %v5404 = vpack.c.b16 %v5270, %v5268
    %v5405 = vpack.c.b16 %v5273, %v5271
    %v5406 = vpack.c.b16 %v5274, %v5272
    %v5407 = vpack.c.b16 %v5277, %v5275
    %v5408 = vpack.c.b16 %v5278, %v5276
    %v5409 = vpack.c.b16 %v5281, %v5279
    %v5410 = vpack.c.b16 %v5282, %v5280
    %5539 = vmatprep.subr.bf16.mxu0 %v5298
    %5540 = vmatpush1.bf16.msra.mxu0 %v5297
    %5541 = vmatprep.subr.bf16.mxu0 %v5296
    %5542 = vmatpush1.bf16.msra.mxu0 %v5295
    %5543 = vmatprep.subr.bf16.mxu0 %v5294
    %5544 = vmatpush1.bf16.msra.mxu0 %v5293
    %5545 = vmatprep.subr.bf16.mxu0 %v5292
    %5546 = vmatpush1.bf16.msra.mxu0 %v5291
    %5547 = vmatprep.subr.bf16.mxu0 %v5290
    %5548 = vmatpush1.bf16.msra.mxu0 %v5289
    %5549 = vmatprep.subr.bf16.mxu0 %v5288
    %5550 = vmatpush1.bf16.msra.mxu0 %v5287
    %5551 = vmatprep.subr.bf16.mxu0 %v5286
    %5552 = vmatpush1.bf16.msra.mxu0 %v5285
    %5553 = vmatprep.subr.bf16.mxu0 %v5284
    %5554 = vmatpush1.bf16.msra.mxu0 %v5283
    %5555 = vmatprep.subr.bf16.mxu0 %v5314
    %5556 = vmatpush2.bf16.msra.mxu0 %v5313
    %5557 = vmatprep.subr.bf16.mxu0 %v5312
    %5558 = vmatpush2.bf16.msra.mxu0 %v5311
    %5559 = vmatprep.subr.bf16.mxu0 %v5310
    %5560 = vmatpush2.bf16.msra.mxu0 %v5309
    %5561 = vmatprep.subr.bf16.mxu0 %v5308
    %5562 = vmatpush2.bf16.msra.mxu0 %v5307
    %5563 = vmatprep.subr.bf16.mxu0 %v5306
    %5564 = vmatpush2.bf16.msra.mxu0 %v5305
    %5565 = vmatprep.subr.bf16.mxu0 %v5304
    %5566 = vmatpush2.bf16.msra.mxu0 %v5303
    %5567 = vmatprep.subr.bf16.mxu0 %v5302
    %5568 = vmatpush2.bf16.msra.mxu0 %v5301
    %5569 = vmatprep.subr.bf16.mxu0 %v5300
    %5570 = vmatpush2.bf16.msra.mxu0 %v5299
    %5571 = vmatprep.mubr.bf16.mxu0 %v1014
    %5572 = vmatmul.mubr.bf16.gmra.mxu0 %v1013
    %v5573 = vpop.f32.mrf.mxu0
    %v5574 = vadd.f32 0.0, %v5573
    %v5575 = vpop.f32.mrf.mxu0
    %v5576 = vadd.f32 0.0, %v5575
    %v5577 = vpop.f32.mrf.mxu0
    %v5578 = vpop.f32.mrf.mxu0
    %5579 = vdwg.mxu0
    %5580 = vmatprep.subr.bf16.mxu0 %v5330
    %5581 = vmatpush1.bf16.msra.mxu0 %v5329
    %5582 = vmatprep.subr.bf16.mxu0 %v5328
    %5583 = vmatpush1.bf16.msra.mxu0 %v5327
    %5584 = vmatprep.subr.bf16.mxu0 %v5326
    %5585 = vmatpush1.bf16.msra.mxu0 %v5325
    %5586 = vmatprep.subr.bf16.mxu0 %v5324
    %5587 = vmatpush1.bf16.msra.mxu0 %v5323
    %5588 = vmatprep.subr.bf16.mxu0 %v5322
    %5589 = vmatpush1.bf16.msra.mxu0 %v5321
    %5590 = vmatprep.subr.bf16.mxu0 %v5320
    %5591 = vmatpush1.bf16.msra.mxu0 %v5319
    %5592 = vmatprep.subr.bf16.mxu0 %v5318
    %5593 = vmatpush1.bf16.msra.mxu0 %v5317
    %5594 = vmatprep.subr.bf16.mxu0 %v5316
    %5595 = vmatpush1.bf16.msra.mxu0 %v5315
    %5596 = vmatprep.subr.bf16.mxu0 %v5346
    %5597 = vmatpush2.bf16.msra.mxu0 %v5345
    %5598 = vmatprep.subr.bf16.mxu0 %v5344
    %5599 = vmatpush2.bf16.msra.mxu0 %v5343
    %5600 = vmatprep.subr.bf16.mxu0 %v5342
    %5601 = vmatpush2.bf16.msra.mxu0 %v5341
    %5602 = vmatprep.subr.bf16.mxu0 %v5340
    %5603 = vmatpush2.bf16.msra.mxu0 %v5339
    %5604 = vmatprep.subr.bf16.mxu0 %v5338
    %5605 = vmatpush2.bf16.msra.mxu0 %v5337
    %5606 = vmatprep.subr.bf16.mxu0 %v5336
    %5607 = vmatpush2.bf16.msra.mxu0 %v5335
    %5608 = vmatprep.subr.bf16.mxu0 %v5334
    %5609 = vmatpush2.bf16.msra.mxu0 %v5333
    %5610 = vmatprep.subr.bf16.mxu0 %v5332
    %5611 = vmatpush2.bf16.msra.mxu0 %v5331
    %5612 = vmatprep.mubr.bf16.mxu0 %v1206
    %5613 = vmatmul.mubr.bf16.gmra.mxu0 %v1205
    %v5614 = vpop.f32.mrf.mxu0
    %v5615 = vadd.f32 %v5574, %v5614
    %v5616 = vpop.f32.mrf.mxu0
    %v5617 = vadd.f32 %v5576, %v5616
    %v5618 = vpop.f32.mrf.mxu0
    %v5619 = vpop.f32.mrf.mxu0
    %5620 = vdwg.mxu0
    %5621 = vmatprep.subr.bf16.mxu0 %v5362
    %5622 = vmatpush1.bf16.msra.mxu0 %v5361
    %5623 = vmatprep.subr.bf16.mxu0 %v5360
    %5624 = vmatpush1.bf16.msra.mxu0 %v5359
    %5625 = vmatprep.subr.bf16.mxu0 %v5358
    %5626 = vmatpush1.bf16.msra.mxu0 %v5357
    %5627 = vmatprep.subr.bf16.mxu0 %v5356
    %5628 = vmatpush1.bf16.msra.mxu0 %v5355
    %5629 = vmatprep.subr.bf16.mxu0 %v5354
    %5630 = vmatpush1.bf16.msra.mxu0 %v5353
    %5631 = vmatprep.subr.bf16.mxu0 %v5352
    %5632 = vmatpush1.bf16.msra.mxu0 %v5351
    %5633 = vmatprep.subr.bf16.mxu0 %v5350
    %5634 = vmatpush1.bf16.msra.mxu0 %v5349
    %5635 = vmatprep.subr.bf16.mxu0 %v5348
    %5636 = vmatpush1.bf16.msra.mxu0 %v5347
    %5637 = vmatprep.subr.bf16.mxu0 %v5378
    %5638 = vmatpush2.bf16.msra.mxu0 %v5377
    %5639 = vmatprep.subr.bf16.mxu0 %v5376
    %5640 = vmatpush2.bf16.msra.mxu0 %v5375
    %5641 = vmatprep.subr.bf16.mxu0 %v5374
    %5642 = vmatpush2.bf16.msra.mxu0 %v5373
    %5643 = vmatprep.subr.bf16.mxu0 %v5372
    %5644 = vmatpush2.bf16.msra.mxu0 %v5371
    %5645 = vmatprep.subr.bf16.mxu0 %v5370
    %5646 = vmatpush2.bf16.msra.mxu0 %v5369
    %5647 = vmatprep.subr.bf16.mxu0 %v5368
    %5648 = vmatpush2.bf16.msra.mxu0 %v5367
    %5649 = vmatprep.subr.bf16.mxu0 %v5366
    %5650 = vmatpush2.bf16.msra.mxu0 %v5365
    %5651 = vmatprep.subr.bf16.mxu0 %v5364
    %5652 = vmatpush2.bf16.msra.mxu0 %v5363
    %5653 = vmatprep.mubr.bf16.mxu0 %v1396
    %5654 = vmatmul.mubr.bf16.gmra.mxu0 %v1395
    %v5655 = vpop.f32.mrf.mxu0
    %v5656 = vadd.f32 %v5615, %v5655
    %v5657 = vpop.f32.mrf.mxu0
    %v5658 = vadd.f32 %v5617, %v5657
    %v5659 = vpop.f32.mrf.mxu0
    %v5660 = vpop.f32.mrf.mxu0
    %5661 = vdwg.mxu0
    %5662 = vmatprep.subr.bf16.mxu0 %v5394
    %5663 = vmatpush1.bf16.msra.mxu0 %v5393
    %5664 = vmatprep.subr.bf16.mxu0 %v5392
    %5665 = vmatpush1.bf16.msra.mxu0 %v5391
    %5666 = vmatprep.subr.bf16.mxu0 %v5390
    %5667 = vmatpush1.bf16.msra.mxu0 %v5389
    %5668 = vmatprep.subr.bf16.mxu0 %v5388
    %5669 = vmatpush1.bf16.msra.mxu0 %v5387
    %5670 = vmatprep.subr.bf16.mxu0 %v5386
    %5671 = vmatpush1.bf16.msra.mxu0 %v5385
    %5672 = vmatprep.subr.bf16.mxu0 %v5384
    %5673 = vmatpush1.bf16.msra.mxu0 %v5383
    %5674 = vmatprep.subr.bf16.mxu0 %v5382
    %5675 = vmatpush1.bf16.msra.mxu0 %v5381
    %5676 = vmatprep.subr.bf16.mxu0 %v5380
    %5677 = vmatpush1.bf16.msra.mxu0 %v5379
    %5678 = vmatprep.subr.bf16.mxu0 %v5410
    %5679 = vmatpush2.bf16.msra.mxu0 %v5409
    %5680 = vmatprep.subr.bf16.mxu0 %v5408
    %5681 = vmatpush2.bf16.msra.mxu0 %v5407
    %5682 = vmatprep.subr.bf16.mxu0 %v5406
    %5683 = vmatpush2.bf16.msra.mxu0 %v5405
    %5684 = vmatprep.subr.bf16.mxu0 %v5404
    %5685 = vmatpush2.bf16.msra.mxu0 %v5403
    %5686 = vmatprep.subr.bf16.mxu0 %v5402
    %5687 = vmatpush2.bf16.msra.mxu0 %v5401
    %5688 = vmatprep.subr.bf16.mxu0 %v5400
    %5689 = vmatpush2.bf16.msra.mxu0 %v5399
    %5690 = vmatprep.subr.bf16.mxu0 %v5398
    %5691 = vmatpush2.bf16.msra.mxu0 %v5397
    %5692 = vmatprep.subr.bf16.mxu0 %v5396
    %5693 = vmatpush2.bf16.msra.mxu0 %v5395
    %5694 = vmatprep.mubr.bf16.mxu0 %v1586
    %5695 = vmatmul.mubr.bf16.gmra.mxu0 %v1585
    %v5696 = vpop.f32.mrf.mxu0
    %v5697 = vadd.f32 %v5656, %v5696
    %v5698 = vpop.f32.mrf.mxu0
    %v5699 = vadd.f32 %v5658, %v5698
    %v5700 = vpop.f32.mrf.mxu0
    %v5701 = vpop.f32.mrf.mxu0
    %5702 = vdwg.mxu0
    %v5703 = vmax.f32 %v4897, %v5697
    %v5704 = vmax.f32 %v4898, %v5699
    %v5706 = vlaneseq
    %v5707 = vshrl.u32 %v5706, 7
    %v5708 = vsub.s32 0, %v5707
    %v5709 = vrot.slane %v2482, %v5708
    %v5710 = vlaneseq
    %v5711 = vshrl.u32 %v5710, 7
    %v5712 = vsub.s32 1, %v5711
    %v5713 = vrot.slane %v2482, %v5712
    %v5716 = vadd.f32 %v5703, %v5709
    %v5717 = vadd.f32 %v5704, %v5713
    %v5718 = vmax.f32 %v5716, 0.0
    %v5719 = vmax.f32 %v5717, 0.0
    %v5720 = vpack.c.bf16 %v5718, %v5718
    %v5721 = vpack.c.bf16 %v5719, %v5719
    %5722 = vmatprep.subr.bf16.mxu0 %v2882
    %5723 = vmatpush1.bf16.msra.mxu0 %v2881
    %5724 = vmatprep.subr.bf16.mxu0 %v2880
    %5725 = vmatpush1.bf16.msra.mxu0 %v2879
    %5726 = vmatprep.subr.bf16.mxu0 %v2878
    %5727 = vmatpush1.bf16.msra.mxu0 %v2877
    %5728 = vmatprep.subr.bf16.mxu0 %v2876
    %5729 = vmatpush1.bf16.msra.mxu0 %v2875
    %5730 = vmatprep.subr.bf16.mxu0 %v2874
    %5731 = vmatpush1.bf16.msra.mxu0 %v2873
    %5732 = vmatprep.subr.bf16.mxu0 %v2872
    %5733 = vmatpush1.bf16.msra.mxu0 %v2871
    %5734 = vmatprep.subr.bf16.mxu0 %v2870
    %5735 = vmatpush1.bf16.msra.mxu0 %v2869
    %5736 = vmatprep.subr.bf16.mxu0 %v2868
    %5737 = vmatpush1.bf16.msra.mxu0 %v2867
    %5738 = vmatprep.subr.bf16.mxu0 %v2898
    %5739 = vmatpush2.bf16.msra.mxu0 %v2897
    %5740 = vmatprep.subr.bf16.mxu0 %v2896
    %5741 = vmatpush2.bf16.msra.mxu0 %v2895
    %5742 = vmatprep.subr.bf16.mxu0 %v2894
    %5743 = vmatpush2.bf16.msra.mxu0 %v2893
    %5744 = vmatprep.subr.bf16.mxu0 %v2892
    %5745 = vmatpush2.bf16.msra.mxu0 %v2891
    %5746 = vmatprep.subr.bf16.mxu0 %v2890
    %5747 = vmatpush2.bf16.msra.mxu0 %v2889
    %5748 = vmatprep.subr.bf16.mxu0 %v2888
    %5749 = vmatpush2.bf16.msra.mxu0 %v2887
    %5750 = vmatprep.subr.bf16.mxu0 %v2886
    %5751 = vmatpush2.bf16.msra.mxu0 %v2885
    %5752 = vmatprep.subr.bf16.mxu0 %v2884
    %5753 = vmatpush2.bf16.msra.mxu0 %v2883
    %5754 = vmatprep.mubr.bf16.mxu0 %v1396
    %5755 = vmatmul.mubr.bf16.gmra.mxu0 %v1395
    %v5756 = vpop.f32.mrf.mxu0
    %v5757 = vadd.f32 0.0, %v5756
    %v5758 = vpop.f32.mrf.mxu0
    %v5759 = vadd.f32 0.0, %v5758
    %v5760 = vpop.f32.mrf.mxu0
    %v5761 = vpop.f32.mrf.mxu0
    %5762 = vdwg.mxu0
    %5763 = vmatprep.subr.bf16.mxu0 %v2914
    %5764 = vmatpush1.bf16.msra.mxu0 %v2913
    %5765 = vmatprep.subr.bf16.mxu0 %v2912
    %5766 = vmatpush1.bf16.msra.mxu0 %v2911
    %5767 = vmatprep.subr.bf16.mxu0 %v2910
    %5768 = vmatpush1.bf16.msra.mxu0 %v2909
    %5769 = vmatprep.subr.bf16.mxu0 %v2908
    %5770 = vmatpush1.bf16.msra.mxu0 %v2907
    %5771 = vmatprep.subr.bf16.mxu0 %v2906
    %5772 = vmatpush1.bf16.msra.mxu0 %v2905
    %5773 = vmatprep.subr.bf16.mxu0 %v2904
    %5774 = vmatpush1.bf16.msra.mxu0 %v2903
    %5775 = vmatprep.subr.bf16.mxu0 %v2902
    %5776 = vmatpush1.bf16.msra.mxu0 %v2901
    %5777 = vmatprep.subr.bf16.mxu0 %v2900
    %5778 = vmatpush1.bf16.msra.mxu0 %v2899
    %5779 = vmatprep.subr.bf16.mxu0 %v2930
    %5780 = vmatpush2.bf16.msra.mxu0 %v2929
    %5781 = vmatprep.subr.bf16.mxu0 %v2928
    %5782 = vmatpush2.bf16.msra.mxu0 %v2927
    %5783 = vmatprep.subr.bf16.mxu0 %v2926
    %5784 = vmatpush2.bf16.msra.mxu0 %v2925
    %5785 = vmatprep.subr.bf16.mxu0 %v2924
    %5786 = vmatpush2.bf16.msra.mxu0 %v2923
    %5787 = vmatprep.subr.bf16.mxu0 %v2922
    %5788 = vmatpush2.bf16.msra.mxu0 %v2921
    %5789 = vmatprep.subr.bf16.mxu0 %v2920
    %5790 = vmatpush2.bf16.msra.mxu0 %v2919
    %5791 = vmatprep.subr.bf16.mxu0 %v2918
    %5792 = vmatpush2.bf16.msra.mxu0 %v2917
    %5793 = vmatprep.subr.bf16.mxu0 %v2916
    %5794 = vmatpush2.bf16.msra.mxu0 %v2915
    %5795 = vmatprep.mubr.bf16.mxu0 %v1586
    %5796 = vmatmul.mubr.bf16.gmra.mxu0 %v1585
    %v5797 = vpop.f32.mrf.mxu0
    %v5798 = vadd.f32 %v5757, %v5797
    %v5799 = vpop.f32.mrf.mxu0
    %v5800 = vadd.f32 %v5759, %v5799
    %v5801 = vpop.f32.mrf.mxu0
    %v5802 = vpop.f32.mrf.mxu0
    %5803 = vdwg.mxu0
    %5804 = vmatprep.subr.bf16.mxu0 %v2946
    %5805 = vmatpush1.bf16.msra.mxu0 %v2945
    %5806 = vmatprep.subr.bf16.mxu0 %v2944
    %5807 = vmatpush1.bf16.msra.mxu0 %v2943
    %5808 = vmatprep.subr.bf16.mxu0 %v2942
    %5809 = vmatpush1.bf16.msra.mxu0 %v2941
    %5810 = vmatprep.subr.bf16.mxu0 %v2940
    %5811 = vmatpush1.bf16.msra.mxu0 %v2939
    %5812 = vmatprep.subr.bf16.mxu0 %v2938
    %5813 = vmatpush1.bf16.msra.mxu0 %v2937
    %5814 = vmatprep.subr.bf16.mxu0 %v2936
    %5815 = vmatpush1.bf16.msra.mxu0 %v2935
    %5816 = vmatprep.subr.bf16.mxu0 %v2934
    %5817 = vmatpush1.bf16.msra.mxu0 %v2933
    %5818 = vmatprep.subr.bf16.mxu0 %v2932
    %5819 = vmatpush1.bf16.msra.mxu0 %v2931
    %5820 = vmatprep.subr.bf16.mxu0 %v2962
    %5821 = vmatpush2.bf16.msra.mxu0 %v2961
    %5822 = vmatprep.subr.bf16.mxu0 %v2960
    %5823 = vmatpush2.bf16.msra.mxu0 %v2959
    %5824 = vmatprep.subr.bf16.mxu0 %v2958
    %5825 = vmatpush2.bf16.msra.mxu0 %v2957
    %5826 = vmatprep.subr.bf16.mxu0 %v2956
    %5827 = vmatpush2.bf16.msra.mxu0 %v2955
    %5828 = vmatprep.subr.bf16.mxu0 %v2954
    %5829 = vmatpush2.bf16.msra.mxu0 %v2953
    %5830 = vmatprep.subr.bf16.mxu0 %v2952
    %5831 = vmatpush2.bf16.msra.mxu0 %v2951
    %5832 = vmatprep.subr.bf16.mxu0 %v2950
    %5833 = vmatpush2.bf16.msra.mxu0 %v2949
    %5834 = vmatprep.subr.bf16.mxu0 %v2948
    %5835 = vmatpush2.bf16.msra.mxu0 %v2947
    %5836 = vmatprep.mubr.bf16.mxu0 %v1776
    %5837 = vmatmul.mubr.bf16.gmra.mxu0 %v1775
    %v5838 = vpop.f32.mrf.mxu0
    %v5839 = vadd.f32 %v5798, %v5838
    %v5840 = vpop.f32.mrf.mxu0
    %v5841 = vadd.f32 %v5800, %v5840
    %v5842 = vpop.f32.mrf.mxu0
    %v5843 = vpop.f32.mrf.mxu0
    %5844 = vdwg.mxu0
    %5845 = vmatprep.subr.bf16.mxu0 %v2978
    %5846 = vmatpush1.bf16.msra.mxu0 %v2977
    %5847 = vmatprep.subr.bf16.mxu0 %v2976
    %5848 = vmatpush1.bf16.msra.mxu0 %v2975
    %5849 = vmatprep.subr.bf16.mxu0 %v2974
    %5850 = vmatpush1.bf16.msra.mxu0 %v2973
    %5851 = vmatprep.subr.bf16.mxu0 %v2972
    %5852 = vmatpush1.bf16.msra.mxu0 %v2971
    %5853 = vmatprep.subr.bf16.mxu0 %v2970
    %5854 = vmatpush1.bf16.msra.mxu0 %v2969
    %5855 = vmatprep.subr.bf16.mxu0 %v2968
    %5856 = vmatpush1.bf16.msra.mxu0 %v2967
    %5857 = vmatprep.subr.bf16.mxu0 %v2966
    %5858 = vmatpush1.bf16.msra.mxu0 %v2965
    %5859 = vmatprep.subr.bf16.mxu0 %v2964
    %5860 = vmatpush1.bf16.msra.mxu0 %v2963
    %5861 = vmatprep.subr.bf16.mxu0 %v2994
    %5862 = vmatpush2.bf16.msra.mxu0 %v2993
    %5863 = vmatprep.subr.bf16.mxu0 %v2992
    %5864 = vmatpush2.bf16.msra.mxu0 %v2991
    %5865 = vmatprep.subr.bf16.mxu0 %v2990
    %5866 = vmatpush2.bf16.msra.mxu0 %v2989
    %5867 = vmatprep.subr.bf16.mxu0 %v2988
    %5868 = vmatpush2.bf16.msra.mxu0 %v2987
    %5869 = vmatprep.subr.bf16.mxu0 %v2986
    %5870 = vmatpush2.bf16.msra.mxu0 %v2985
    %5871 = vmatprep.subr.bf16.mxu0 %v2984
    %5872 = vmatpush2.bf16.msra.mxu0 %v2983
    %5873 = vmatprep.subr.bf16.mxu0 %v2982
    %5874 = vmatpush2.bf16.msra.mxu0 %v2981
    %5875 = vmatprep.subr.bf16.mxu0 %v2980
    %5876 = vmatpush2.bf16.msra.mxu0 %v2979
    %5877 = vmatprep.mubr.bf16.mxu0 %v1966
    %5878 = vmatmul.mubr.bf16.gmra.mxu0 %v1965
    %v5879 = vpop.f32.mrf.mxu0
    %v5880 = vadd.f32 %v5839, %v5879
    %v5881 = vpop.f32.mrf.mxu0
    %v5882 = vadd.f32 %v5841, %v5881
    %v5883 = vpop.f32.mrf.mxu0
    %v5884 = vpop.f32.mrf.mxu0
    %5885 = vdwg.mxu0
    %5886 = vmatprep.subr.bf16.mxu0 %v3686
    %5887 = vmatpush1.bf16.msra.mxu0 %v3685
    %5888 = vmatprep.subr.bf16.mxu0 %v3684
    %5889 = vmatpush1.bf16.msra.mxu0 %v3683
    %5890 = vmatprep.subr.bf16.mxu0 %v3682
    %5891 = vmatpush1.bf16.msra.mxu0 %v3681
    %5892 = vmatprep.subr.bf16.mxu0 %v3680
    %5893 = vmatpush1.bf16.msra.mxu0 %v3679
    %5894 = vmatprep.subr.bf16.mxu0 %v3678
    %5895 = vmatpush1.bf16.msra.mxu0 %v3677
    %5896 = vmatprep.subr.bf16.mxu0 %v3676
    %5897 = vmatpush1.bf16.msra.mxu0 %v3675
    %5898 = vmatprep.subr.bf16.mxu0 %v3674
    %5899 = vmatpush1.bf16.msra.mxu0 %v3673
    %5900 = vmatprep.subr.bf16.mxu0 %v3672
    %5901 = vmatpush1.bf16.msra.mxu0 %v3671
    %5902 = vmatprep.subr.bf16.mxu0 %v3702
    %5903 = vmatpush2.bf16.msra.mxu0 %v3701
    %5904 = vmatprep.subr.bf16.mxu0 %v3700
    %5905 = vmatpush2.bf16.msra.mxu0 %v3699
    %5906 = vmatprep.subr.bf16.mxu0 %v3698
    %5907 = vmatpush2.bf16.msra.mxu0 %v3697
    %5908 = vmatprep.subr.bf16.mxu0 %v3696
    %5909 = vmatpush2.bf16.msra.mxu0 %v3695
    %5910 = vmatprep.subr.bf16.mxu0 %v3694
    %5911 = vmatpush2.bf16.msra.mxu0 %v3693
    %5912 = vmatprep.subr.bf16.mxu0 %v3692
    %5913 = vmatpush2.bf16.msra.mxu0 %v3691
    %5914 = vmatprep.subr.bf16.mxu0 %v3690
    %5915 = vmatpush2.bf16.msra.mxu0 %v3689
    %5916 = vmatprep.subr.bf16.mxu0 %v3688
    %5917 = vmatpush2.bf16.msra.mxu0 %v3687
    %5918 = vmatprep.mubr.bf16.mxu0 %v1396
    %5919 = vmatmul.mubr.bf16.gmra.mxu0 %v1395
    %v5920 = vpop.f32.mrf.mxu0
    %v5921 = vadd.f32 0.0, %v5920
    %v5922 = vpop.f32.mrf.mxu0
    %v5923 = vadd.f32 0.0, %v5922
    %v5924 = vpop.f32.mrf.mxu0
    %v5925 = vpop.f32.mrf.mxu0
    %5926 = vdwg.mxu0
    %5927 = vmatprep.subr.bf16.mxu0 %v3718
    %5928 = vmatpush1.bf16.msra.mxu0 %v3717
    %5929 = vmatprep.subr.bf16.mxu0 %v3716
    %5930 = vmatpush1.bf16.msra.mxu0 %v3715
    %5931 = vmatprep.subr.bf16.mxu0 %v3714
    %5932 = vmatpush1.bf16.msra.mxu0 %v3713
    %5933 = vmatprep.subr.bf16.mxu0 %v3712
    %5934 = vmatpush1.bf16.msra.mxu0 %v3711
    %5935 = vmatprep.subr.bf16.mxu0 %v3710
    %5936 = vmatpush1.bf16.msra.mxu0 %v3709
    %5937 = vmatprep.subr.bf16.mxu0 %v3708
    %5938 = vmatpush1.bf16.msra.mxu0 %v3707
    %5939 = vmatprep.subr.bf16.mxu0 %v3706
    %5940 = vmatpush1.bf16.msra.mxu0 %v3705
    %5941 = vmatprep.subr.bf16.mxu0 %v3704
    %5942 = vmatpush1.bf16.msra.mxu0 %v3703
    %5943 = vmatprep.subr.bf16.mxu0 %v3734
    %5944 = vmatpush2.bf16.msra.mxu0 %v3733
    %5945 = vmatprep.subr.bf16.mxu0 %v3732
    %5946 = vmatpush2.bf16.msra.mxu0 %v3731
    %5947 = vmatprep.subr.bf16.mxu0 %v3730
    %5948 = vmatpush2.bf16.msra.mxu0 %v3729
    %5949 = vmatprep.subr.bf16.mxu0 %v3728
    %5950 = vmatpush2.bf16.msra.mxu0 %v3727
    %5951 = vmatprep.subr.bf16.mxu0 %v3726
    %5952 = vmatpush2.bf16.msra.mxu0 %v3725
    %5953 = vmatprep.subr.bf16.mxu0 %v3724
    %5954 = vmatpush2.bf16.msra.mxu0 %v3723
    %5955 = vmatprep.subr.bf16.mxu0 %v3722
    %5956 = vmatpush2.bf16.msra.mxu0 %v3721
    %5957 = vmatprep.subr.bf16.mxu0 %v3720
    %5958 = vmatpush2.bf16.msra.mxu0 %v3719
    %5959 = vmatprep.mubr.bf16.mxu0 %v1586
    %5960 = vmatmul.mubr.bf16.gmra.mxu0 %v1585
    %v5961 = vpop.f32.mrf.mxu0
    %v5962 = vadd.f32 %v5921, %v5961
    %v5963 = vpop.f32.mrf.mxu0
    %v5964 = vadd.f32 %v5923, %v5963
    %v5965 = vpop.f32.mrf.mxu0
    %v5966 = vpop.f32.mrf.mxu0
    %5967 = vdwg.mxu0
    %5968 = vmatprep.subr.bf16.mxu0 %v3750
    %5969 = vmatpush1.bf16.msra.mxu0 %v3749
    %5970 = vmatprep.subr.bf16.mxu0 %v3748
    %5971 = vmatpush1.bf16.msra.mxu0 %v3747
    %5972 = vmatprep.subr.bf16.mxu0 %v3746
    %5973 = vmatpush1.bf16.msra.mxu0 %v3745
    %5974 = vmatprep.subr.bf16.mxu0 %v3744
    %5975 = vmatpush1.bf16.msra.mxu0 %v3743
    %5976 = vmatprep.subr.bf16.mxu0 %v3742
    %5977 = vmatpush1.bf16.msra.mxu0 %v3741
    %5978 = vmatprep.subr.bf16.mxu0 %v3740
    %5979 = vmatpush1.bf16.msra.mxu0 %v3739
    %5980 = vmatprep.subr.bf16.mxu0 %v3738
    %5981 = vmatpush1.bf16.msra.mxu0 %v3737
    %5982 = vmatprep.subr.bf16.mxu0 %v3736
    %5983 = vmatpush1.bf16.msra.mxu0 %v3735
    %5984 = vmatprep.subr.bf16.mxu0 %v3766
    %5985 = vmatpush2.bf16.msra.mxu0 %v3765
    %5986 = vmatprep.subr.bf16.mxu0 %v3764
    %5987 = vmatpush2.bf16.msra.mxu0 %v3763
    %5988 = vmatprep.subr.bf16.mxu0 %v3762
    %5989 = vmatpush2.bf16.msra.mxu0 %v3761
    %5990 = vmatprep.subr.bf16.mxu0 %v3760
    %5991 = vmatpush2.bf16.msra.mxu0 %v3759
    %5992 = vmatprep.subr.bf16.mxu0 %v3758
    %5993 = vmatpush2.bf16.msra.mxu0 %v3757
    %5994 = vmatprep.subr.bf16.mxu0 %v3756
    %5995 = vmatpush2.bf16.msra.mxu0 %v3755
    %5996 = vmatprep.subr.bf16.mxu0 %v3754
    %5997 = vmatpush2.bf16.msra.mxu0 %v3753
    %5998 = vmatprep.subr.bf16.mxu0 %v3752
    %5999 = vmatpush2.bf16.msra.mxu0 %v3751
    %6000 = vmatprep.mubr.bf16.mxu0 %v1776
    %6001 = vmatmul.mubr.bf16.gmra.mxu0 %v1775
    %v6002 = vpop.f32.mrf.mxu0
    %v6003 = vadd.f32 %v5962, %v6002
    %v6004 = vpop.f32.mrf.mxu0
    %v6005 = vadd.f32 %v5964, %v6004
    %v6006 = vpop.f32.mrf.mxu0
    %v6007 = vpop.f32.mrf.mxu0
    %6008 = vdwg.mxu0
    %6009 = vmatprep.subr.bf16.mxu0 %v3782
    %6010 = vmatpush1.bf16.msra.mxu0 %v3781
    %6011 = vmatprep.subr.bf16.mxu0 %v3780
    %6012 = vmatpush1.bf16.msra.mxu0 %v3779
    %6013 = vmatprep.subr.bf16.mxu0 %v3778
    %6014 = vmatpush1.bf16.msra.mxu0 %v3777
    %6015 = vmatprep.subr.bf16.mxu0 %v3776
    %6016 = vmatpush1.bf16.msra.mxu0 %v3775
    %6017 = vmatprep.subr.bf16.mxu0 %v3774
    %6018 = vmatpush1.bf16.msra.mxu0 %v3773
    %6019 = vmatprep.subr.bf16.mxu0 %v3772
    %6020 = vmatpush1.bf16.msra.mxu0 %v3771
    %6021 = vmatprep.subr.bf16.mxu0 %v3770
    %6022 = vmatpush1.bf16.msra.mxu0 %v3769
    %6023 = vmatprep.subr.bf16.mxu0 %v3768
    %6024 = vmatpush1.bf16.msra.mxu0 %v3767
    %6025 = vmatprep.subr.bf16.mxu0 %v3798
    %6026 = vmatpush2.bf16.msra.mxu0 %v3797
    %6027 = vmatprep.subr.bf16.mxu0 %v3796
    %6028 = vmatpush2.bf16.msra.mxu0 %v3795
    %6029 = vmatprep.subr.bf16.mxu0 %v3794
    %6030 = vmatpush2.bf16.msra.mxu0 %v3793
    %6031 = vmatprep.subr.bf16.mxu0 %v3792
    %6032 = vmatpush2.bf16.msra.mxu0 %v3791
    %6033 = vmatprep.subr.bf16.mxu0 %v3790
    %6034 = vmatpush2.bf16.msra.mxu0 %v3789
    %6035 = vmatprep.subr.bf16.mxu0 %v3788
    %6036 = vmatpush2.bf16.msra.mxu0 %v3787
    %6037 = vmatprep.subr.bf16.mxu0 %v3786
    %6038 = vmatpush2.bf16.msra.mxu0 %v3785
    %6039 = vmatprep.subr.bf16.mxu0 %v3784
    %6040 = vmatpush2.bf16.msra.mxu0 %v3783
    %6041 = vmatprep.mubr.bf16.mxu0 %v1966
    %6042 = vmatmul.mubr.bf16.gmra.mxu0 %v1965
    %v6043 = vpop.f32.mrf.mxu0
    %v6044 = vadd.f32 %v6003, %v6043
    %v6045 = vpop.f32.mrf.mxu0
    %v6046 = vadd.f32 %v6005, %v6045
    %v6047 = vpop.f32.mrf.mxu0
    %v6048 = vpop.f32.mrf.mxu0
    %6049 = vdwg.mxu0
    %v6050 = vmax.f32 %v5880, %v6044
    %v6051 = vmax.f32 %v5882, %v6046
    %6052 = vmatprep.subr.bf16.mxu0 %v4492
    %6053 = vmatpush1.bf16.msra.mxu0 %v4491
    %6054 = vmatprep.subr.bf16.mxu0 %v4490
    %6055 = vmatpush1.bf16.msra.mxu0 %v4489
    %6056 = vmatprep.subr.bf16.mxu0 %v4488
    %6057 = vmatpush1.bf16.msra.mxu0 %v4487
    %6058 = vmatprep.subr.bf16.mxu0 %v4486
    %6059 = vmatpush1.bf16.msra.mxu0 %v4485
    %6060 = vmatprep.subr.bf16.mxu0 %v4484
    %6061 = vmatpush1.bf16.msra.mxu0 %v4483
    %6062 = vmatprep.subr.bf16.mxu0 %v4482
    %6063 = vmatpush1.bf16.msra.mxu0 %v4481
    %6064 = vmatprep.subr.bf16.mxu0 %v4480
    %6065 = vmatpush1.bf16.msra.mxu0 %v4479
    %6066 = vmatprep.subr.bf16.mxu0 %v4478
    %6067 = vmatpush1.bf16.msra.mxu0 %v4477
    %6068 = vmatprep.subr.bf16.mxu0 %v4508
    %6069 = vmatpush2.bf16.msra.mxu0 %v4507
    %6070 = vmatprep.subr.bf16.mxu0 %v4506
    %6071 = vmatpush2.bf16.msra.mxu0 %v4505
    %6072 = vmatprep.subr.bf16.mxu0 %v4504
    %6073 = vmatpush2.bf16.msra.mxu0 %v4503
    %6074 = vmatprep.subr.bf16.mxu0 %v4502
    %6075 = vmatpush2.bf16.msra.mxu0 %v4501
    %6076 = vmatprep.subr.bf16.mxu0 %v4500
    %6077 = vmatpush2.bf16.msra.mxu0 %v4499
    %6078 = vmatprep.subr.bf16.mxu0 %v4498
    %6079 = vmatpush2.bf16.msra.mxu0 %v4497
    %6080 = vmatprep.subr.bf16.mxu0 %v4496
    %6081 = vmatpush2.bf16.msra.mxu0 %v4495
    %6082 = vmatprep.subr.bf16.mxu0 %v4494
    %6083 = vmatpush2.bf16.msra.mxu0 %v4493
    %6084 = vmatprep.mubr.bf16.mxu0 %v1396
    %6085 = vmatmul.mubr.bf16.gmra.mxu0 %v1395
    %v6086 = vpop.f32.mrf.mxu0
    %v6087 = vadd.f32 0.0, %v6086
    %v6088 = vpop.f32.mrf.mxu0
    %v6089 = vadd.f32 0.0, %v6088
    %v6090 = vpop.f32.mrf.mxu0
    %v6091 = vpop.f32.mrf.mxu0
    %6092 = vdwg.mxu0
    %6093 = vmatprep.subr.bf16.mxu0 %v4524
    %6094 = vmatpush1.bf16.msra.mxu0 %v4523
    %6095 = vmatprep.subr.bf16.mxu0 %v4522
    %6096 = vmatpush1.bf16.msra.mxu0 %v4521
    %6097 = vmatprep.subr.bf16.mxu0 %v4520
    %6098 = vmatpush1.bf16.msra.mxu0 %v4519
    %6099 = vmatprep.subr.bf16.mxu0 %v4518
    %6100 = vmatpush1.bf16.msra.mxu0 %v4517
    %6101 = vmatprep.subr.bf16.mxu0 %v4516
    %6102 = vmatpush1.bf16.msra.mxu0 %v4515
    %6103 = vmatprep.subr.bf16.mxu0 %v4514
    %6104 = vmatpush1.bf16.msra.mxu0 %v4513
    %6105 = vmatprep.subr.bf16.mxu0 %v4512
    %6106 = vmatpush1.bf16.msra.mxu0 %v4511
    %6107 = vmatprep.subr.bf16.mxu0 %v4510
    %6108 = vmatpush1.bf16.msra.mxu0 %v4509
    %6109 = vmatprep.subr.bf16.mxu0 %v4540
    %6110 = vmatpush2.bf16.msra.mxu0 %v4539
    %6111 = vmatprep.subr.bf16.mxu0 %v4538
    %6112 = vmatpush2.bf16.msra.mxu0 %v4537
    %6113 = vmatprep.subr.bf16.mxu0 %v4536
    %6114 = vmatpush2.bf16.msra.mxu0 %v4535
    %6115 = vmatprep.subr.bf16.mxu0 %v4534
    %6116 = vmatpush2.bf16.msra.mxu0 %v4533
    %6117 = vmatprep.subr.bf16.mxu0 %v4532
    %6118 = vmatpush2.bf16.msra.mxu0 %v4531
    %6119 = vmatprep.subr.bf16.mxu0 %v4530
    %6120 = vmatpush2.bf16.msra.mxu0 %v4529
    %6121 = vmatprep.subr.bf16.mxu0 %v4528
    %6122 = vmatpush2.bf16.msra.mxu0 %v4527
    %6123 = vmatprep.subr.bf16.mxu0 %v4526
    %6124 = vmatpush2.bf16.msra.mxu0 %v4525
    %6125 = vmatprep.mubr.bf16.mxu0 %v1586
    %6126 = vmatmul.mubr.bf16.gmra.mxu0 %v1585
    %v6127 = vpop.f32.mrf.mxu0
    %v6128 = vadd.f32 %v6087, %v6127
    %v6129 = vpop.f32.mrf.mxu0
    %v6130 = vadd.f32 %v6089, %v6129
    %v6131 = vpop.f32.mrf.mxu0
    %v6132 = vpop.f32.mrf.mxu0
    %6133 = vdwg.mxu0
    %6134 = vmatprep.subr.bf16.mxu0 %v4556
    %6135 = vmatpush1.bf16.msra.mxu0 %v4555
    %6136 = vmatprep.subr.bf16.mxu0 %v4554
    %6137 = vmatpush1.bf16.msra.mxu0 %v4553
    %6138 = vmatprep.subr.bf16.mxu0 %v4552
    %6139 = vmatpush1.bf16.msra.mxu0 %v4551
    %6140 = vmatprep.subr.bf16.mxu0 %v4550
    %6141 = vmatpush1.bf16.msra.mxu0 %v4549
    %6142 = vmatprep.subr.bf16.mxu0 %v4548
    %6143 = vmatpush1.bf16.msra.mxu0 %v4547
    %6144 = vmatprep.subr.bf16.mxu0 %v4546
    %6145 = vmatpush1.bf16.msra.mxu0 %v4545
    %6146 = vmatprep.subr.bf16.mxu0 %v4544
    %6147 = vmatpush1.bf16.msra.mxu0 %v4543
    %6148 = vmatprep.subr.bf16.mxu0 %v4542
    %6149 = vmatpush1.bf16.msra.mxu0 %v4541
    %6150 = vmatprep.subr.bf16.mxu0 %v4572
    %6151 = vmatpush2.bf16.msra.mxu0 %v4571
    %6152 = vmatprep.subr.bf16.mxu0 %v4570
    %6153 = vmatpush2.bf16.msra.mxu0 %v4569
    %6154 = vmatprep.subr.bf16.mxu0 %v4568
    %6155 = vmatpush2.bf16.msra.mxu0 %v4567
    %6156 = vmatprep.subr.bf16.mxu0 %v4566
    %6157 = vmatpush2.bf16.msra.mxu0 %v4565
    %6158 = vmatprep.subr.bf16.mxu0 %v4564
    %6159 = vmatpush2.bf16.msra.mxu0 %v4563
    %6160 = vmatprep.subr.bf16.mxu0 %v4562
    %6161 = vmatpush2.bf16.msra.mxu0 %v4561
    %6162 = vmatprep.subr.bf16.mxu0 %v4560
    %6163 = vmatpush2.bf16.msra.mxu0 %v4559
    %6164 = vmatprep.subr.bf16.mxu0 %v4558
    %6165 = vmatpush2.bf16.msra.mxu0 %v4557
    %6166 = vmatprep.mubr.bf16.mxu0 %v1776
    %6167 = vmatmul.mubr.bf16.gmra.mxu0 %v1775
    %v6168 = vpop.f32.mrf.mxu0
    %v6169 = vadd.f32 %v6128, %v6168
    %v6170 = vpop.f32.mrf.mxu0
    %v6171 = vadd.f32 %v6130, %v6170
    %v6172 = vpop.f32.mrf.mxu0
    %v6173 = vpop.f32.mrf.mxu0
    %6174 = vdwg.mxu0
    %6175 = vmatprep.subr.bf16.mxu0 %v4588
    %6176 = vmatpush1.bf16.msra.mxu0 %v4587
    %6177 = vmatprep.subr.bf16.mxu0 %v4586
    %6178 = vmatpush1.bf16.msra.mxu0 %v4585
    %6179 = vmatprep.subr.bf16.mxu0 %v4584
    %6180 = vmatpush1.bf16.msra.mxu0 %v4583
    %6181 = vmatprep.subr.bf16.mxu0 %v4582
    %6182 = vmatpush1.bf16.msra.mxu0 %v4581
    %6183 = vmatprep.subr.bf16.mxu0 %v4580
    %6184 = vmatpush1.bf16.msra.mxu0 %v4579
    %6185 = vmatprep.subr.bf16.mxu0 %v4578
    %6186 = vmatpush1.bf16.msra.mxu0 %v4577
    %6187 = vmatprep.subr.bf16.mxu0 %v4576
    %6188 = vmatpush1.bf16.msra.mxu0 %v4575
    %6189 = vmatprep.subr.bf16.mxu0 %v4574
    %6190 = vmatpush1.bf16.msra.mxu0 %v4573
    %6191 = vmatprep.subr.bf16.mxu0 %v4604
    %6192 = vmatpush2.bf16.msra.mxu0 %v4603
    %6193 = vmatprep.subr.bf16.mxu0 %v4602
    %6194 = vmatpush2.bf16.msra.mxu0 %v4601
    %6195 = vmatprep.subr.bf16.mxu0 %v4600
    %6196 = vmatpush2.bf16.msra.mxu0 %v4599
    %6197 = vmatprep.subr.bf16.mxu0 %v4598
    %6198 = vmatpush2.bf16.msra.mxu0 %v4597
    %6199 = vmatprep.subr.bf16.mxu0 %v4596
    %6200 = vmatpush2.bf16.msra.mxu0 %v4595
    %6201 = vmatprep.subr.bf16.mxu0 %v4594
    %6202 = vmatpush2.bf16.msra.mxu0 %v4593
    %6203 = vmatprep.subr.bf16.mxu0 %v4592
    %6204 = vmatpush2.bf16.msra.mxu0 %v4591
    %6205 = vmatprep.subr.bf16.mxu0 %v4590
    %6206 = vmatpush2.bf16.msra.mxu0 %v4589
    %6207 = vmatprep.mubr.bf16.mxu0 %v1966
    %6208 = vmatmul.mubr.bf16.gmra.mxu0 %v1965
    %v6209 = vpop.f32.mrf.mxu0
    %v6210 = vadd.f32 %v6169, %v6209
    %v6211 = vpop.f32.mrf.mxu0
    %v6212 = vadd.f32 %v6171, %v6211
    %v6213 = vpop.f32.mrf.mxu0
    %v6214 = vpop.f32.mrf.mxu0
    %6215 = vdwg.mxu0
    %v6216 = vmax.f32 %v6050, %v6210
    %v6217 = vmax.f32 %v6051, %v6212
    %6218 = vmatprep.subr.bf16.mxu0 %v5298
    %6219 = vmatpush1.bf16.msra.mxu0 %v5297
    %6220 = vmatprep.subr.bf16.mxu0 %v5296
    %6221 = vmatpush1.bf16.msra.mxu0 %v5295
    %6222 = vmatprep.subr.bf16.mxu0 %v5294
    %6223 = vmatpush1.bf16.msra.mxu0 %v5293
    %6224 = vmatprep.subr.bf16.mxu0 %v5292
    %6225 = vmatpush1.bf16.msra.mxu0 %v5291
    %6226 = vmatprep.subr.bf16.mxu0 %v5290
    %6227 = vmatpush1.bf16.msra.mxu0 %v5289
    %6228 = vmatprep.subr.bf16.mxu0 %v5288
    %6229 = vmatpush1.bf16.msra.mxu0 %v5287
    %6230 = vmatprep.subr.bf16.mxu0 %v5286
    %6231 = vmatpush1.bf16.msra.mxu0 %v5285
    %6232 = vmatprep.subr.bf16.mxu0 %v5284
    %6233 = vmatpush1.bf16.msra.mxu0 %v5283
    %6234 = vmatprep.subr.bf16.mxu0 %v5314
    %6235 = vmatpush2.bf16.msra.mxu0 %v5313
    %6236 = vmatprep.subr.bf16.mxu0 %v5312
    %6237 = vmatpush2.bf16.msra.mxu0 %v5311
    %6238 = vmatprep.subr.bf16.mxu0 %v5310
    %6239 = vmatpush2.bf16.msra.mxu0 %v5309
    %6240 = vmatprep.subr.bf16.mxu0 %v5308
    %6241 = vmatpush2.bf16.msra.mxu0 %v5307
    %6242 = vmatprep.subr.bf16.mxu0 %v5306
    %6243 = vmatpush2.bf16.msra.mxu0 %v5305
    %6244 = vmatprep.subr.bf16.mxu0 %v5304
    %6245 = vmatpush2.bf16.msra.mxu0 %v5303
    %6246 = vmatprep.subr.bf16.mxu0 %v5302
    %6247 = vmatpush2.bf16.msra.mxu0 %v5301
    %6248 = vmatprep.subr.bf16.mxu0 %v5300
    %6249 = vmatpush2.bf16.msra.mxu0 %v5299
    %6250 = vmatprep.mubr.bf16.mxu0 %v1396
    %6251 = vmatmul.mubr.bf16.gmra.mxu0 %v1395
    %v6252 = vpop.f32.mrf.mxu0
    %v6253 = vadd.f32 0.0, %v6252
    %v6254 = vpop.f32.mrf.mxu0
    %v6255 = vadd.f32 0.0, %v6254
    %v6256 = vpop.f32.mrf.mxu0
    %v6257 = vpop.f32.mrf.mxu0
    %6258 = vdwg.mxu0
    %6259 = vmatprep.subr.bf16.mxu0 %v5330
    %6260 = vmatpush1.bf16.msra.mxu0 %v5329
    %6261 = vmatprep.subr.bf16.mxu0 %v5328
    %6262 = vmatpush1.bf16.msra.mxu0 %v5327
    %6263 = vmatprep.subr.bf16.mxu0 %v5326
    %6264 = vmatpush1.bf16.msra.mxu0 %v5325
    %6265 = vmatprep.subr.bf16.mxu0 %v5324
    %6266 = vmatpush1.bf16.msra.mxu0 %v5323
    %6267 = vmatprep.subr.bf16.mxu0 %v5322
    %6268 = vmatpush1.bf16.msra.mxu0 %v5321
    %6269 = vmatprep.subr.bf16.mxu0 %v5320
    %6270 = vmatpush1.bf16.msra.mxu0 %v5319
    %6271 = vmatprep.subr.bf16.mxu0 %v5318
    %6272 = vmatpush1.bf16.msra.mxu0 %v5317
    %6273 = vmatprep.subr.bf16.mxu0 %v5316
    %6274 = vmatpush1.bf16.msra.mxu0 %v5315
    %6275 = vmatprep.subr.bf16.mxu0 %v5346
    %6276 = vmatpush2.bf16.msra.mxu0 %v5345
    %6277 = vmatprep.subr.bf16.mxu0 %v5344
    %6278 = vmatpush2.bf16.msra.mxu0 %v5343
    %6279 = vmatprep.subr.bf16.mxu0 %v5342
    %6280 = vmatpush2.bf16.msra.mxu0 %v5341
    %6281 = vmatprep.subr.bf16.mxu0 %v5340
    %6282 = vmatpush2.bf16.msra.mxu0 %v5339
    %6283 = vmatprep.subr.bf16.mxu0 %v5338
    %6284 = vmatpush2.bf16.msra.mxu0 %v5337
    %6285 = vmatprep.subr.bf16.mxu0 %v5336
    %6286 = vmatpush2.bf16.msra.mxu0 %v5335
    %6287 = vmatprep.subr.bf16.mxu0 %v5334
    %6288 = vmatpush2.bf16.msra.mxu0 %v5333
    %6289 = vmatprep.subr.bf16.mxu0 %v5332
    %6290 = vmatpush2.bf16.msra.mxu0 %v5331
    %6291 = vmatprep.mubr.bf16.mxu0 %v1586
    %6292 = vmatmul.mubr.bf16.gmra.mxu0 %v1585
    %v6293 = vpop.f32.mrf.mxu0
    %v6294 = vadd.f32 %v6253, %v6293
    %v6295 = vpop.f32.mrf.mxu0
    %v6296 = vadd.f32 %v6255, %v6295
    %v6297 = vpop.f32.mrf.mxu0
    %v6298 = vpop.f32.mrf.mxu0
    %6299 = vdwg.mxu0
    %6300 = vmatprep.subr.bf16.mxu0 %v5362
    %6301 = vmatpush1.bf16.msra.mxu0 %v5361
    %6302 = vmatprep.subr.bf16.mxu0 %v5360
    %6303 = vmatpush1.bf16.msra.mxu0 %v5359
    %6304 = vmatprep.subr.bf16.mxu0 %v5358
    %6305 = vmatpush1.bf16.msra.mxu0 %v5357
    %6306 = vmatprep.subr.bf16.mxu0 %v5356
    %6307 = vmatpush1.bf16.msra.mxu0 %v5355
    %6308 = vmatprep.subr.bf16.mxu0 %v5354
    %6309 = vmatpush1.bf16.msra.mxu0 %v5353
    %6310 = vmatprep.subr.bf16.mxu0 %v5352
    %6311 = vmatpush1.bf16.msra.mxu0 %v5351
    %6312 = vmatprep.subr.bf16.mxu0 %v5350
    %6313 = vmatpush1.bf16.msra.mxu0 %v5349
    %6314 = vmatprep.subr.bf16.mxu0 %v5348
    %6315 = vmatpush1.bf16.msra.mxu0 %v5347
    %6316 = vmatprep.subr.bf16.mxu0 %v5378
    %6317 = vmatpush2.bf16.msra.mxu0 %v5377
    %6318 = vmatprep.subr.bf16.mxu0 %v5376
    %6319 = vmatpush2.bf16.msra.mxu0 %v5375
    %6320 = vmatprep.subr.bf16.mxu0 %v5374
    %6321 = vmatpush2.bf16.msra.mxu0 %v5373
    %6322 = vmatprep.subr.bf16.mxu0 %v5372
    %6323 = vmatpush2.bf16.msra.mxu0 %v5371
    %6324 = vmatprep.subr.bf16.mxu0 %v5370
    %6325 = vmatpush2.bf16.msra.mxu0 %v5369
    %6326 = vmatprep.subr.bf16.mxu0 %v5368
    %6327 = vmatpush2.bf16.msra.mxu0 %v5367
    %6328 = vmatprep.subr.bf16.mxu0 %v5366
    %6329 = vmatpush2.bf16.msra.mxu0 %v5365
    %6330 = vmatprep.subr.bf16.mxu0 %v5364
    %6331 = vmatpush2.bf16.msra.mxu0 %v5363
    %6332 = vmatprep.mubr.bf16.mxu0 %v1776
    %6333 = vmatmul.mubr.bf16.gmra.mxu0 %v1775
    %v6334 = vpop.f32.mrf.mxu0
    %v6335 = vadd.f32 %v6294, %v6334
    %v6336 = vpop.f32.mrf.mxu0
    %v6337 = vadd.f32 %v6296, %v6336
    %v6338 = vpop.f32.mrf.mxu0
    %v6339 = vpop.f32.mrf.mxu0
    %6340 = vdwg.mxu0
    %6341 = vmatprep.subr.bf16.mxu0 %v5394
    %6342 = vmatpush1.bf16.msra.mxu0 %v5393
    %6343 = vmatprep.subr.bf16.mxu0 %v5392
    %6344 = vmatpush1.bf16.msra.mxu0 %v5391
    %6345 = vmatprep.subr.bf16.mxu0 %v5390
    %6346 = vmatpush1.bf16.msra.mxu0 %v5389
    %6347 = vmatprep.subr.bf16.mxu0 %v5388
    %6348 = vmatpush1.bf16.msra.mxu0 %v5387
    %6349 = vmatprep.subr.bf16.mxu0 %v5386
    %6350 = vmatpush1.bf16.msra.mxu0 %v5385
    %6351 = vmatprep.subr.bf16.mxu0 %v5384
    %6352 = vmatpush1.bf16.msra.mxu0 %v5383
    %6353 = vmatprep.subr.bf16.mxu0 %v5382
    %6354 = vmatpush1.bf16.msra.mxu0 %v5381
    %6355 = vmatprep.subr.bf16.mxu0 %v5380
    %6356 = vmatpush1.bf16.msra.mxu0 %v5379
    %6357 = vmatprep.subr.bf16.mxu0 %v5410
    %6358 = vmatpush2.bf16.msra.mxu0 %v5409
    %6359 = vmatprep.subr.bf16.mxu0 %v5408
    %6360 = vmatpush2.bf16.msra.mxu0 %v5407
    %6361 = vmatprep.subr.bf16.mxu0 %v5406
    %6362 = vmatpush2.bf16.msra.mxu0 %v5405
    %6363 = vmatprep.subr.bf16.mxu0 %v5404
    %6364 = vmatpush2.bf16.msra.mxu0 %v5403
    %6365 = vmatprep.subr.bf16.mxu0 %v5402
    %6366 = vmatpush2.bf16.msra.mxu0 %v5401
    %6367 = vmatprep.subr.bf16.mxu0 %v5400
    %6368 = vmatpush2.bf16.msra.mxu0 %v5399
    %6369 = vmatprep.subr.bf16.mxu0 %v5398
    %6370 = vmatpush2.bf16.msra.mxu0 %v5397
    %6371 = vmatprep.subr.bf16.mxu0 %v5396
    %6372 = vmatpush2.bf16.msra.mxu0 %v5395
    %6373 = vmatprep.mubr.bf16.mxu0 %v1966
    %6374 = vmatmul.mubr.bf16.gmra.mxu0 %v1965
    %v6375 = vpop.f32.mrf.mxu0
    %v6376 = vadd.f32 %v6335, %v6375
    %v6377 = vpop.f32.mrf.mxu0
    %v6378 = vadd.f32 %v6337, %v6377
    %v6379 = vpop.f32.mrf.mxu0
    %v6380 = vpop.f32.mrf.mxu0
    %6381 = vdwg.mxu0
    %v6382 = vmax.f32 %v6216, %v6376
    %v6383 = vmax.f32 %v6217, %v6378
    %v6384 = vadd.f32 %v6382, %v5709
    %v6385 = vadd.f32 %v6383, %v5713
    %v6386 = vmax.f32 %v6384, 0.0
    %v6387 = vmax.f32 %v6385, 0.0
    %v6388 = vpack.c.bf16 %v6386, %v6386
    %v6389 = vpack.c.bf16 %v6387, %v6387
    %v6390 = vld [vmem:[#allocation9] sm:$0xf]
    %v6391 = vld [vmem:[#allocation9 + $0x4] sm:$0xf]
    %v6392 = vld [vmem:[#allocation9 + $0x8] sm:$0xf]
    %v6393 = vld [vmem:[#allocation9 + $0xc] sm:$0xf]
    %v6394 = vld [vmem:[#allocation9 + $0x10] sm:$0xf]
    %v6395 = vld [vmem:[#allocation9 + $0x14] sm:$0xf]
    %v6396 = vld [vmem:[#allocation9 + $0x18] sm:$0xf]
    %v6397 = vld [vmem:[#allocation9 + $0x1c] sm:$0xf]
    %v6398 = vld [vmem:[#allocation9 + $0x20] sm:$0xf]
    %v6399 = vld [vmem:[#allocation9 + $0x24] sm:$0xf]
    %v6400 = vld [vmem:[#allocation9 + $0x28] sm:$0xf]
    %v6401 = vld [vmem:[#allocation9 + $0x2c] sm:$0xf]
    %v6402 = vld [vmem:[#allocation9 + $0x30] sm:$0xf]
    %v6403 = vld [vmem:[#allocation9 + $0x34] sm:$0xf]
    %v6404 = vld [vmem:[#allocation9 + $0x38] sm:$0xf]
    %v6405 = vld [vmem:[#allocation9 + $0x3c] sm:$0xf]
    %v6406 = vld [vmem:[#allocation9 + $0x40] sm:$0xf]
    %v6407 = vld [vmem:[#allocation9 + $0x44] sm:$0xf]
    %v6408 = vld [vmem:[#allocation9 + $0x48] sm:$0xf]
    %v6409 = vld [vmem:[#allocation9 + $0x4c] sm:$0xf]
    %v6410 = vld [vmem:[#allocation9 + $0x50] sm:$0xf]
    %v6411 = vld [vmem:[#allocation9 + $0x54] sm:$0xf]
    %v6412 = vld [vmem:[#allocation9 + $0x58] sm:$0xf]
    %v6413 = vld [vmem:[#allocation9 + $0x5c] sm:$0xf]
    %v6414 = vld [vmem:[#allocation9 + $0x60] sm:$0xf]
    %v6415 = vld [vmem:[#allocation9 + $0x64] sm:$0xf]
    %v6416 = vld [vmem:[#allocation9 + $0x68] sm:$0xf]
    %v6417 = vld [vmem:[#allocation9 + $0x6c] sm:$0xf]
    %v6418 = vld [vmem:[#allocation9 + $0x70] sm:$0xf]
    %v6419 = vld [vmem:[#allocation9 + $0x74] sm:$0xf]
    %v6420 = vld [vmem:[#allocation9 + $0x78] sm:$0xf]
    %v6421 = vld [vmem:[#allocation9 + $0x7c] sm:$0xf]
    %v6422 = vld [vmem:[#allocation9 + $0x80] sm:$0xf]
    %v6423 = vld [vmem:[#allocation9 + $0x84] sm:$0xf]
    %v6424 = vld [vmem:[#allocation9 + $0x88] sm:$0xf]
    %v6425 = vld [vmem:[#allocation9 + $0x8c] sm:$0xf]
    %v6426 = vld [vmem:[#allocation9 + $0x90] sm:$0xf]
    %v6427 = vld [vmem:[#allocation9 + $0x94] sm:$0xf]
    %v6428 = vld [vmem:[#allocation9 + $0x98] sm:$0xf]
    %v6429 = vld [vmem:[#allocation9 + $0x9c] sm:$0xf]
    %v6430 = vld [vmem:[#allocation9 + $0xa0] sm:$0xf]
    %v6431 = vld [vmem:[#allocation9 + $0xa4] sm:$0xf]
    %v6432 = vld [vmem:[#allocation9 + $0xa8] sm:$0xf]
    %v6433 = vld [vmem:[#allocation9 + $0xac] sm:$0xf]
    %v6434 = vld [vmem:[#allocation9 + $0xb0] sm:$0xf]
    %v6435 = vld [vmem:[#allocation9 + $0xb4] sm:$0xf]
    %v6436 = vld [vmem:[#allocation9 + $0xb8] sm:$0xf]
    %v6437 = vld [vmem:[#allocation9 + $0xbc] sm:$0xf]
    %v6438 = vld [vmem:[#allocation9 + $0xc0] sm:$0xf]
    %v6439 = vld [vmem:[#allocation9 + $0xc4] sm:$0xf]
    %v6440 = vld [vmem:[#allocation9 + $0xc8] sm:$0xf]
    %v6441 = vld [vmem:[#allocation9 + $0xcc] sm:$0xf]
    %v6442 = vld [vmem:[#allocation9 + $0xd0] sm:$0xf]
    %v6443 = vld [vmem:[#allocation9 + $0xd4] sm:$0xf]
    %v6444 = vld [vmem:[#allocation9 + $0xd8] sm:$0xf]
    %v6445 = vld [vmem:[#allocation9 + $0xdc] sm:$0xf]
    %v6446 = vld [vmem:[#allocation9 + $0xe0] sm:$0xf]
    %v6447 = vld [vmem:[#allocation9 + $0xe4] sm:$0xf]
    %v6448 = vld [vmem:[#allocation9 + $0xe8] sm:$0xf]
    %v6449 = vld [vmem:[#allocation9 + $0xec] sm:$0xf]
    %v6450 = vld [vmem:[#allocation9 + $0xf0] sm:$0xf]
    %v6451 = vld [vmem:[#allocation9 + $0xf4] sm:$0xf]
    %v6452 = vld [vmem:[#allocation9 + $0xf8] sm:$0xf]
    %v6453 = vld [vmem:[#allocation9 + $0xfc] sm:$0xf]
    %v6454 = vld [vmem:[#allocation10] sm:$0x1]
    %v6456 = vlaneseq
    %v6457 = vshrl.u32 %v6456, 7
    %v6458 = vsub.s32 0, %v6457
    %v6459 = vrot.slane %v6454, %v6458
    %v6525 = vunpack.c.l.b16 %v6390
    %v6526 = vunpack.c.l.b16 %v6391
    %v6527 = vunpack.c.l.b16 %v6392
    %v6528 = vunpack.c.l.b16 %v6393
    %v6529 = vunpack.c.l.b16 %v6394
    %v6530 = vunpack.c.l.b16 %v6395
    %v6531 = vunpack.c.l.b16 %v6396
    %v6532 = vunpack.c.l.b16 %v6397
    %v6533 = vunpack.c.l.b16 %v6398
    %v6534 = vunpack.c.l.b16 %v6399
    %v6535 = vunpack.c.l.b16 %v6400
    %v6536 = vunpack.c.l.b16 %v6401
    %v6537 = vunpack.c.l.b16 %v6402
    %v6538 = vunpack.c.l.b16 %v6403
    %v6539 = vunpack.c.l.b16 %v6404
    %v6540 = vunpack.c.l.b16 %v6405
    %v6541 = vunpack.c.l.b16 %v6406
    %v6542 = vunpack.c.l.b16 %v6407
    %v6543 = vunpack.c.l.b16 %v6408
    %v6544 = vunpack.c.l.b16 %v6409
    %v6545 = vunpack.c.l.b16 %v6410
    %v6546 = vunpack.c.l.b16 %v6411
    %v6547 = vunpack.c.l.b16 %v6412
    %v6548 = vunpack.c.l.b16 %v6413
    %v6549 = vunpack.c.l.b16 %v6414
    %v6550 = vunpack.c.l.b16 %v6415
    %v6551 = vunpack.c.l.b16 %v6416
    %v6552 = vunpack.c.l.b16 %v6417
    %v6553 = vunpack.c.l.b16 %v6418
    %v6554 = vunpack.c.l.b16 %v6419
    %v6555 = vunpack.c.l.b16 %v6420
    %v6556 = vunpack.c.l.b16 %v6421
    %v6557 = vunpack.c.l.b16 %v6422
    %v6558 = vunpack.c.l.b16 %v6423
    %v6559 = vunpack.c.l.b16 %v6424
    %v6560 = vunpack.c.l.b16 %v6425
    %v6561 = vunpack.c.l.b16 %v6426
    %v6562 = vunpack.c.l.b16 %v6427
    %v6563 = vunpack.c.l.b16 %v6428
    %v6564 = vunpack.c.l.b16 %v6429
    %v6565 = vunpack.c.l.b16 %v6430
    %v6566 = vunpack.c.l.b16 %v6431
    %v6567 = vunpack.c.l.b16 %v6432
    %v6568 = vunpack.c.l.b16 %v6433
    %v6569 = vunpack.c.l.b16 %v6434
    %v6570 = vunpack.c.l.b16 %v6435
    %v6571 = vunpack.c.l.b16 %v6436
    %v6572 = vunpack.c.l.b16 %v6437
    %v6573 = vunpack.c.l.b16 %v6438
    %v6574 = vunpack.c.l.b16 %v6439
    %v6575 = vunpack.c.l.b16 %v6440
    %v6576 = vunpack.c.l.b16 %v6441
    %v6577 = vunpack.c.l.b16 %v6442
    %v6578 = vunpack.c.l.b16 %v6443
    %v6579 = vunpack.c.l.b16 %v6444
    %v6580 = vunpack.c.l.b16 %v6445
    %v6581 = vunpack.c.l.b16 %v6446
    %v6582 = vunpack.c.l.b16 %v6447
    %v6583 = vunpack.c.l.b16 %v6448
    %v6584 = vunpack.c.l.b16 %v6449
    %v6585 = vunpack.c.l.b16 %v6450
    %v6586 = vunpack.c.l.b16 %v6451
    %v6587 = vunpack.c.l.b16 %v6452
    %v6588 = vunpack.c.l.b16 %v6453
    %v6589 = vpack.c.b16 %v6526, %v6525
    %v6590 = vpack.c.b16 %v6528, %v6527
    %v6591 = vpack.c.b16 %v6530, %v6529
    %v6592 = vpack.c.b16 %v6532, %v6531
    %v6593 = vpack.c.b16 %v6534, %v6533
    %v6594 = vpack.c.b16 %v6536, %v6535
    %v6595 = vpack.c.b16 %v6538, %v6537
    %v6596 = vpack.c.b16 %v6540, %v6539
    %v6597 = vpack.c.b16 %v6542, %v6541
    %v6598 = vpack.c.b16 %v6544, %v6543
    %v6599 = vpack.c.b16 %v6546, %v6545
    %v6600 = vpack.c.b16 %v6548, %v6547
    %v6601 = vpack.c.b16 %v6550, %v6549
    %v6602 = vpack.c.b16 %v6552, %v6551
    %v6603 = vpack.c.b16 %v6554, %v6553
    %v6604 = vpack.c.b16 %v6556, %v6555
    %v6605 = vpack.c.b16 %v6558, %v6557
    %v6606 = vpack.c.b16 %v6560, %v6559
    %v6607 = vpack.c.b16 %v6562, %v6561
    %v6608 = vpack.c.b16 %v6564, %v6563
    %v6609 = vpack.c.b16 %v6566, %v6565
    %v6610 = vpack.c.b16 %v6568, %v6567
    %v6611 = vpack.c.b16 %v6570, %v6569
    %v6612 = vpack.c.b16 %v6572, %v6571
    %v6613 = vpack.c.b16 %v6574, %v6573
    %v6614 = vpack.c.b16 %v6576, %v6575
    %v6615 = vpack.c.b16 %v6578, %v6577
    %v6616 = vpack.c.b16 %v6580, %v6579
    %v6617 = vpack.c.b16 %v6582, %v6581
    %v6618 = vpack.c.b16 %v6584, %v6583
    %v6619 = vpack.c.b16 %v6586, %v6585
    %v6620 = vpack.c.b16 %v6588, %v6587
    %6653 = vmatprep.subr.bf16.mxu0 0
    %6654 = vmatpush1.bf16.msra.mxu0 %v6596
    %6655 = vmatprep.subr.bf16.mxu0 0
    %6656 = vmatpush1.bf16.msra.mxu0 %v6595
    %6657 = vmatprep.subr.bf16.mxu0 0
    %6658 = vmatpush1.bf16.msra.mxu0 %v6594
    %6659 = vmatprep.subr.bf16.mxu0 0
    %6660 = vmatpush1.bf16.msra.mxu0 %v6593
    %6661 = vmatprep.subr.bf16.mxu0 0
    %6662 = vmatpush1.bf16.msra.mxu0 %v6592
    %6663 = vmatprep.subr.bf16.mxu0 0
    %6664 = vmatpush1.bf16.msra.mxu0 %v6591
    %6665 = vmatprep.subr.bf16.mxu0 0
    %6666 = vmatpush1.bf16.msra.mxu0 %v6590
    %6667 = vmatprep.subr.bf16.mxu0 0
    %6668 = vmatpush1.bf16.msra.mxu0 %v6589
    %6669 = vmatprep.subr.bf16.mxu0 0
    %6670 = vmatpush2.bf16.msra.mxu0 %v6604
    %6671 = vmatprep.subr.bf16.mxu0 0
    %6672 = vmatpush2.bf16.msra.mxu0 %v6603
    %6673 = vmatprep.subr.bf16.mxu0 0
    %6674 = vmatpush2.bf16.msra.mxu0 %v6602
    %6675 = vmatprep.subr.bf16.mxu0 0
    %6676 = vmatpush2.bf16.msra.mxu0 %v6601
    %6677 = vmatprep.subr.bf16.mxu0 0
    %6678 = vmatpush2.bf16.msra.mxu0 %v6600
    %6679 = vmatprep.subr.bf16.mxu0 0
    %6680 = vmatpush2.bf16.msra.mxu0 %v6599
    %6681 = vmatprep.subr.bf16.mxu0 0
    %6682 = vmatpush2.bf16.msra.mxu0 %v6598
    %6683 = vmatprep.subr.bf16.mxu0 0
    %6684 = vmatpush2.bf16.msra.mxu0 %v6597
    %6685 = vmatprep.mubr.bf16.mxu0 %v5721
    %6686 = vmatmul.mubr.bf16.gmra.mxu0 %v5720
    %v6687 = vpop.f32.mrf.mxu0
    %v6688 = vadd.f32 %v6459, %v6687
    %v6689 = vpop.f32.mrf.mxu0
    %v6690 = vpop.f32.mrf.mxu0
    %v6691 = vpop.f32.mrf.mxu0
    %6692 = vdwg.mxu0
    %6693 = vmatprep.subr.bf16.mxu0 0
    %6694 = vmatpush1.bf16.msra.mxu0 %v6612
    %6695 = vmatprep.subr.bf16.mxu0 0
    %6696 = vmatpush1.bf16.msra.mxu0 %v6611
    %6697 = vmatprep.subr.bf16.mxu0 0
    %6698 = vmatpush1.bf16.msra.mxu0 %v6610
    %6699 = vmatprep.subr.bf16.mxu0 0
    %6700 = vmatpush1.bf16.msra.mxu0 %v6609
    %6701 = vmatprep.subr.bf16.mxu0 0
    %6702 = vmatpush1.bf16.msra.mxu0 %v6608
    %6703 = vmatprep.subr.bf16.mxu0 0
    %6704 = vmatpush1.bf16.msra.mxu0 %v6607
    %6705 = vmatprep.subr.bf16.mxu0 0
    %6706 = vmatpush1.bf16.msra.mxu0 %v6606
    %6707 = vmatprep.subr.bf16.mxu0 0
    %6708 = vmatpush1.bf16.msra.mxu0 %v6605
    %6709 = vmatprep.subr.bf16.mxu0 0
    %6710 = vmatpush2.bf16.msra.mxu0 %v6620
    %6711 = vmatprep.subr.bf16.mxu0 0
    %6712 = vmatpush2.bf16.msra.mxu0 %v6619
    %6713 = vmatprep.subr.bf16.mxu0 0
    %6714 = vmatpush2.bf16.msra.mxu0 %v6618
    %6715 = vmatprep.subr.bf16.mxu0 0
    %6716 = vmatpush2.bf16.msra.mxu0 %v6617
    %6717 = vmatprep.subr.bf16.mxu0 0
    %6718 = vmatpush2.bf16.msra.mxu0 %v6616
    %6719 = vmatprep.subr.bf16.mxu0 0
    %6720 = vmatpush2.bf16.msra.mxu0 %v6615
    %6721 = vmatprep.subr.bf16.mxu0 0
    %6722 = vmatpush2.bf16.msra.mxu0 %v6614
    %6723 = vmatprep.subr.bf16.mxu0 0
    %6724 = vmatpush2.bf16.msra.mxu0 %v6613
    %6725 = vmatprep.mubr.bf16.mxu0 %v6389
    %6726 = vmatmul.mubr.bf16.gmra.mxu0 %v6388
    %v6727 = vpop.f32.mrf.mxu0
    %v6728 = vadd.f32 %v6688, %v6727
    %v6729 = vpop.f32.mrf.mxu0
    %v6730 = vpop.f32.mrf.mxu0
    %v6731 = vpop.f32.mrf.mxu0
    %6732 = vdwg.mxu0
    %v6733 = vmax.f32 %v6728, 0.0
    %v6734 = vpack.c.bf16 %v6733, %v6733
    %v6735 = vld [vmem:[#allocation12] sm:$0xf]
    %v6736 = vld [vmem:[#allocation12 + $0x4] sm:$0xf]
    %v6737 = vld [vmem:[#allocation12 + $0x8] sm:$0xf]
    %v6738 = vld [vmem:[#allocation12 + $0xc] sm:$0xf]
    %v6739 = vld [vmem:[#allocation12 + $0x10] sm:$0xf]
    %v6740 = vld [vmem:[#allocation12 + $0x14] sm:$0xf]
    %v6741 = vld [vmem:[#allocation12 + $0x18] sm:$0xf]
    %v6742 = vld [vmem:[#allocation12 + $0x1c] sm:$0xf]
    %v6743 = vld [vmem:[#allocation12 + $0x20] sm:$0xf]
    %v6744 = vld [vmem:[#allocation12 + $0x24] sm:$0xf]
    %v6745 = vld [vmem:[#allocation12 + $0x28] sm:$0xf]
    %v6746 = vld [vmem:[#allocation12 + $0x2c] sm:$0xf]
    %v6747 = vld [vmem:[#allocation12 + $0x30] sm:$0xf]
    %v6748 = vld [vmem:[#allocation12 + $0x34] sm:$0xf]
    %v6749 = vld [vmem:[#allocation12 + $0x38] sm:$0xf]
    %v6750 = vld [vmem:[#allocation12 + $0x3c] sm:$0xf]
    %v6751 = vld [vmem:[#allocation13] sm:$0x1]
    %v6753 = vlaneseq
    %v6754 = vshrl.u32 %v6753, 7
    %v6755 = vsub.s32 0, %v6754
    %v6756 = vrot.slane %v6751, %v6755
    %v6774 = vunpack.c.l.b16 %v6735
    %v6775 = vunpack.c.l.b16 %v6736
    %v6776 = vunpack.c.l.b16 %v6737
    %v6777 = vunpack.c.l.b16 %v6738
    %v6778 = vunpack.c.l.b16 %v6739
    %v6779 = vunpack.c.l.b16 %v6740
    %v6780 = vunpack.c.l.b16 %v6741
    %v6781 = vunpack.c.l.b16 %v6742
    %v6782 = vunpack.c.l.b16 %v6743
    %v6783 = vunpack.c.l.b16 %v6744
    %v6784 = vunpack.c.l.b16 %v6745
    %v6785 = vunpack.c.l.b16 %v6746
    %v6786 = vunpack.c.l.b16 %v6747
    %v6787 = vunpack.c.l.b16 %v6748
    %v6788 = vunpack.c.l.b16 %v6749
    %v6789 = vunpack.c.l.b16 %v6750
    %v6790 = vpack.c.b16 %v6775, %v6774
    %v6791 = vpack.c.b16 %v6777, %v6776
    %v6792 = vpack.c.b16 %v6779, %v6778
    %v6793 = vpack.c.b16 %v6781, %v6780
    %v6794 = vpack.c.b16 %v6783, %v6782
    %v6795 = vpack.c.b16 %v6785, %v6784
    %v6796 = vpack.c.b16 %v6787, %v6786
    %v6797 = vpack.c.b16 %v6789, %v6788
    %6806 = vmatprep.subr.bf16.mxu0 0
    %6807 = vmatpush1.bf16.msra.mxu0 %v6797
    %6808 = vmatprep.subr.bf16.mxu0 0
    %6809 = vmatpush1.bf16.msra.mxu0 %v6796
    %6810 = vmatprep.subr.bf16.mxu0 0
    %6811 = vmatpush1.bf16.msra.mxu0 %v6795
    %6812 = vmatprep.subr.bf16.mxu0 0
    %6813 = vmatpush1.bf16.msra.mxu0 %v6794
    %6814 = vmatprep.subr.bf16.mxu0 0
    %6815 = vmatpush1.bf16.msra.mxu0 %v6793
    %6816 = vmatprep.subr.bf16.mxu0 0
    %6817 = vmatpush1.bf16.msra.mxu0 %v6792
    %6818 = vmatprep.subr.bf16.mxu0 0
    %6819 = vmatpush1.bf16.msra.mxu0 %v6791
    %6820 = vmatprep.subr.bf16.mxu0 0
    %6821 = vmatpush1.bf16.msra.mxu0 %v6790
    %6822 = vmatprep.subr.bf16.mxu0 0
    %6823 = vmatpush2.bf16.msra.mxu0 0
    %6824 = vmatprep.subr.bf16.mxu0 0
    %6825 = vmatpush2.bf16.msra.mxu0 0
    %6826 = vmatprep.subr.bf16.mxu0 0
    %6827 = vmatpush2.bf16.msra.mxu0 0
    %6828 = vmatprep.subr.bf16.mxu0 0
    %6829 = vmatpush2.bf16.msra.mxu0 0
    %6830 = vmatprep.subr.bf16.mxu0 0
    %6831 = vmatpush2.bf16.msra.mxu0 0
    %6832 = vmatprep.subr.bf16.mxu0 0
    %6833 = vmatpush2.bf16.msra.mxu0 0
    %6834 = vmatprep.subr.bf16.mxu0 0
    %6835 = vmatpush2.bf16.msra.mxu0 0
    %6836 = vmatprep.subr.bf16.mxu0 0
    %6837 = vmatpush2.bf16.msra.mxu0 0
    %6838 = vmatprep.mubr.bf16.mxu0 0
    %6839 = vmatmul.mubr.bf16.gmra.mxu0 %v6734
    %v6840 = vpop.f32.mrf.mxu0
    %v6841 = vadd.f32 %v6756, %v6840
    %v6842 = vpop.f32.mrf.mxu0
    %v6843 = vpop.f32.mrf.mxu0
    %v6844 = vpop.f32.mrf.mxu0
    %6845 = vdwg.mxu0
    %6846 = vmax.xlane.f32.xlu0 %v6841
    %v6847 = vpop.xlane.xlu0 %6846
    %v6848 = vsub.f32 %v6841, %v6847
    %v6849 = vmul.f32 %v6848, 1.442695
    %v6850 = vpow.pop %v6849
    %6851 = vadd.xlane.f32.xlu0 %v6850
    %v6852 = vpop.xlane.xlu0 %6851
    %v6853 = vlog2.pop %v6852
    %v6854 = vmul.f32 %v6853, 0.6931472
    %v6855 = vsub.f32 %v6848, %v6854
    %6856 = vst [vmem:[%s9] sm:$0xff] %v6855
    // Predicated region
    $region70: #{mnist_net_forward.1} parent=1 // pred_check
      _
    $region71: #{mnist_net_forward.1} parent=1 // pred_check_branch
      %6858 = sbr.rel (0) target = $region73
    $region72: #{mnist_net_forward.1} parent=1 // pred_region
      _
    $region73: #{mnist_net_forward.1} parent=1 // pred_fallthru
      _
    // Predicated region
    $region74: #{mnist_net_forward.1} parent=1 // pred_check
      _
    $region75: #{mnist_net_forward.1} parent=1 // pred_check_branch
      %6860 = sbr.rel (0) target = $region77
    $region76: #{mnist_net_forward.1} parent=1 // pred_region
      _
    $region77: #{mnist_net_forward.1} parent=1 // pred_fallthru
      _
    %6861 = vsyncpa [#allocation3], 1
    %6862 = vsyncpa [#allocation5], 1
    %6863 = vsyncpa [#allocation8], 1
    %6864 = vsyncpa [#allocation11], 1
    %6865 = vsyncpa [#allocation14], 1

</llo_original>
